<compile_context>
chip_gen: v7x
topology: tpu7x:2x2x1
jax: 0.10.0
libtpu: 0.0.40
codegen_flags: <defaults>
</compile_context>

<pallas_src>
import jax
import jax.numpy as jnp
from jax.experimental import pallas as pl
from jax.experimental.pallas import tpu as pltpu


# -----------------------------------------------------------------------------
# Fused Pallas kernel:  out = act( x @ W_eff + shift_eff )
#   W_eff already has the BN scale folded into its columns; shift_eff = b*scale + bn_shift.
#   bf16 operands on the MXU, f32 accumulator scratch, K-reduction grid axis.
# -----------------------------------------------------------------------------
def _mm_kernel_factory(act):
    def kernel(x_ref, w_ref, t_ref, o_ref, acc_ref):
        k = pl.program_id(1)

        @pl.when(k == 0)
        def _():
            acc_ref[...] = jnp.zeros_like(acc_ref)

        acc_ref[...] += jnp.dot(x_ref[...], w_ref[...],
                                preferred_element_type=jnp.float32)

        @pl.when(k == pl.num_programs(1) - 1)
        def _():
            y = acc_ref[...] + t_ref[...]
            if act == "elu":
                y = jnp.where(y > 0, y, jnp.exp(jnp.minimum(y, 0.0)) - 1.0)
            elif act == "tanh":
                y = jnp.tanh(y)
            # act == "none": identity
            o_ref[...] = y.astype(o_ref.dtype)

    return kernel


def _round_up(v, m):
    return ((v + m - 1) // m) * m


_VMEM_BUDGET = 20 * 1024 * 1024          # tile-picking budget (estimate), v7x-safe
_VMEM_LIMIT = 32 * 1024 * 1024           # scoped VMEM limit handed to Mosaic


def fused_matmul_act(x, w, shift, act, out_dtype=jnp.bfloat16):
    """out = act(x @ w + shift).  x:[M,K] (any float dtype), w:[K,Cout] f32, shift:[Cout] f32."""
    M, K = x.shape
    Cout = w.shape[1]
    Cp = _round_up(Cout, 128)

    # K tile: single step when small, otherwise 1024-wide reduction steps.
    tk = min(_round_up(K, 128), 1024)
    Kp = _round_up(K, tk)

    # M tile: as big as possible (few grid steps) subject to the VMEM budget.
    tm = min(_round_up(max(M, 1), 8), 2048)
    out_bytes = jnp.dtype(out_dtype).itemsize

    def _vmem_est(tm_, tk_):
        return (2 * tm_ * tk_ * 2          # x tile, bf16, double-buffered
                + 2 * tk_ * Cp * 2         # w tile, bf16, double-buffered
                + 2 * tm_ * Cp * out_bytes  # output tile, double-buffered
                + tm_ * Cp * 4             # f32 accumulator scratch
                + 2 * Cp * 4)              # shift row

    while _vmem_est(tm, tk) > _VMEM_BUDGET and tm > 256:
        tm = max(256, tm // 2)
    Mp = _round_up(M, tm)

    xw = x.astype(jnp.bfloat16)
    if (Mp, Kp) != (M, K):
        xw = jnp.pad(xw, ((0, Mp - M), (0, Kp - K)))
    ww = w.astype(jnp.bfloat16)
    if (Kp, Cp) != (K, Cout):
        ww = jnp.pad(ww, ((0, Kp - K), (0, Cp - Cout)))
    tt = shift.astype(jnp.float32)
    if Cp != Cout:
        tt = jnp.pad(tt, (0, Cp - Cout))
    tt = tt.reshape(1, Cp)

    grid = (Mp // tm, Kp // tk)

    out = pl.pallas_call(
        _mm_kernel_factory(act),
        out_shape=jax.ShapeDtypeStruct((Mp, Cp), out_dtype),
        grid_spec=pltpu.PrefetchScalarGridSpec(
            num_scalar_prefetch=0,
            grid=grid,
            in_specs=[
                pl.BlockSpec((tm, tk), lambda i, k: (i, k)),
                pl.BlockSpec((tk, Cp), lambda i, k: (k, 0)),
                pl.BlockSpec((1, Cp), lambda i, k: (0, 0)),
            ],
            out_specs=pl.BlockSpec((tm, Cp), lambda i, k: (i, 0)),
            scratch_shapes=[pltpu.VMEM((tm, Cp), jnp.float32)],
        ),
        compiler_params=pltpu.CompilerParams(
            dimension_semantics=("parallel", "arbitrary"),
            vmem_limit_bytes=_VMEM_LIMIT,
        ),
    )(xw, ww, tt)

    if (Mp, Cp) != (M, Cout):
        out = out[:M, :Cout]
    return out


# -----------------------------------------------------------------------------
# Convolution wrappers (im2col glue + BN/bias folding in JAX, math in the Pallas kernel)
# -----------------------------------------------------------------------------
def _fold(w2d, b, scale, shift):
    """Fold BN scale into weight columns and bias into the additive shift."""
    w_eff = w2d * scale[None, :]
    t_eff = b * scale + shift
    return w_eff, t_eff


def _conv_k3(x, w, b, scale, shift, act, out_dtype=jnp.bfloat16):
    """3x3x3, stride 1, zero padding (== Minkowski conv on a dense grid). w: [27,Cin,Cout]."""
    N, D, H, W_, Cin = x.shape
    Cout = w.shape[-1]
    x = x.astype(jnp.bfloat16)
    xp = jnp.pad(x, ((0, 0), (1, 1), (1, 1), (1, 1), (0, 0)))
    pats = []
    for dz in range(3):
        for dy in range(3):
            for dx in range(3):
                pats.append(xp[:, dz:dz + D, dy:dy + H, dx:dx + W_, :])
    pat = jnp.concatenate(pats, axis=-1).reshape(N * D * H * W_, 27 * Cin)
    w_eff, t_eff = _fold(w.reshape(27 * Cin, Cout), b, scale, shift)
    out = fused_matmul_act(pat, w_eff, t_eff, act, out_dtype)
    return out.reshape(N, D, H, W_, Cout)


def _conv_k2s2(x, w, b, scale, shift, act, out_dtype=jnp.bfloat16):
    """2x2x2, stride 2 downsampling conv (offsets [0,2) per dim). w: [8,Cin,Cout]."""
    N, D, H, W_, Cin = x.shape
    Cout = w.shape[-1]
    Do, Ho, Wo = -(-D // 2), -(-H // 2), -(-W_ // 2)
    x = x.astype(jnp.bfloat16)
    xp = jnp.pad(x, ((0, 0), (0, 2 * Do - D), (0, 2 * Ho - H),
                     (0, 2 * Wo - W_), (0, 0)))
    pats = []
    for dz in range(2):
        for dy in range(2):
            for dx in range(2):
                pats.append(xp[:, dz::2, dy::2, dx::2, :])
    pat = jnp.concatenate(pats, axis=-1).reshape(N * Do * Ho * Wo, 8 * Cin)
    w_eff, t_eff = _fold(w.reshape(8 * Cin, Cout), b, scale, shift)
    out = fused_matmul_act(pat, w_eff, t_eff, act, out_dtype)
    return out.reshape(N, Do, Ho, Wo, Cout)


def _convT_k4s2(x, w, b, out_size, scale, shift, act, out_dtype=jnp.bfloat16):
    """Transposed conv, kernel 4, stride 2:  out[y] += w[y - 2x] @ in[x], offsets in [0,4)^3.
    All 8 output parities fused into ONE matmul with a [8*Cin, 8*Cout] weight; the parities
    map to disjoint fine-grid voxels, so bias/BN/activation are applied exactly once each.
    w: [4,4,4,Cin,Cout]."""
    N, Dc, Hc, Wc, Cin = x.shape
    Cout = w.shape[-1]
    x = x.astype(jnp.bfloat16)
    xp = jnp.pad(x, ((0, 0), (1, 0), (1, 0), (1, 0), (0, 0)))
    pats = []
    for jz in range(2):
        for jy in range(2):
            for jx in range(2):
                pats.append(xp[:, 1 - jz:1 - jz + Dc, 1 - jy:1 - jy + Hc,
                               1 - jx:1 - jx + Wc, :])
    pat = jnp.concatenate(pats, axis=-1).reshape(N * Dc * Hc * Wc, 8 * Cin)

    cols = []
    for pz in range(2):
        for py in range(2):
            for px in range(2):
                wp = jnp.concatenate(
                    [w[pz + 2 * jz, py + 2 * jy, px + 2 * jx]
                     for jz in range(2) for jy in range(2) for jx in range(2)],
                    axis=0)                       # (8*Cin, Cout)
                cols.append(wp * scale[None, :])  # BN scale folded per column
    w_big = jnp.concatenate(cols, axis=1)         # (8*Cin, 8*Cout)
    t_big = jnp.tile(b * scale + shift, 8)        # (8*Cout,)

    out = fused_matmul_act(pat, w_big, t_big, act, out_dtype)   # (M, 8*Cout)
    out = out.reshape(N, Dc, Hc, Wc, 2, 2, 2, Cout)
    out = jnp.transpose(out, (0, 1, 4, 2, 5, 3, 6, 7)).reshape(
        N, 2 * Dc, 2 * Hc, 2 * Wc, Cout)
    Do, Ho, Wo = out_size
    return out[:, :Do, :Ho, :Wo, :]


def conv_k3(x, cp, bnp, act, out_dtype=jnp.bfloat16):
    return _conv_k3(x, cp["w"], cp["b"], bnp["scale"], bnp["shift"], act, out_dtype)


def conv_k2s2(x, cp, bnp, act, out_dtype=jnp.bfloat16):
    return _conv_k2s2(x, cp["w"], cp["b"], bnp["scale"], bnp["shift"], act, out_dtype)


def convT_k4s2(x, cp, bnp, out_size, act, out_dtype=jnp.bfloat16):
    return _convT_k4s2(x, cp["w"], cp["b"], out_size,
                       bnp["scale"], bnp["shift"], act, out_dtype)


# -----------------------------------------------------------------------------
# Parameter initialization (deterministic, synthetic)
# -----------------------------------------------------------------------------
class _KeyGen:
    def __init__(self, key):
        self.key, self.i = key, 0

    def __call__(self):
        self.i += 1
        return jax.random.fold_in(self.key, self.i)


def init_params(key, in_ch, out_ch, enc_ch, dec_ch):
    kg = _KeyGen(key)

    def conv(kvol, cin, cout, bias):
        w = 0.3 * jax.random.normal(kg(), (kvol, cin, cout), jnp.float32) \
            / jnp.sqrt(float(kvol * cin))
        b = (0.05 * jax.random.normal(kg(), (cout,), jnp.float32)
             if bias else jnp.zeros((cout,), jnp.float32))
        return {"w": w, "b": b}

    def convT(cin, cout, bias):
        w = 0.3 * jax.random.normal(kg(), (4, 4, 4, cin, cout), jnp.float32) \
            / jnp.sqrt(float(64 * cin))
        b = (0.05 * jax.random.normal(kg(), (cout,), jnp.float32)
             if bias else jnp.zeros((cout,), jnp.float32))
        return {"w": w, "b": b}

    def bn(c):
        gamma = 1.0 + 0.1 * jax.random.normal(kg(), (c,), jnp.float32)
        beta = 0.05 * jax.random.normal(kg(), (c,), jnp.float32)
        mean = jnp.zeros((c,), jnp.float32)
        var = jnp.ones((c,), jnp.float32)
        eps = 1e-5
        scale = gamma / jnp.sqrt(var + eps)
        return {"scale": scale, "shift": beta - mean * scale}

    P = {}
    C, Dch = enc_ch, dec_ch
    P["enc_s1_conv"] = conv(27, in_ch, C[0], True)
    P["enc_s1_bn"] = bn(C[0])

    def enc_stage(name, cin, cout, bias):
        P[name + "_conv0"] = conv(8, cin, cout, bias)
        P[name + "_bn0"] = bn(cout)
        P[name + "_conv1"] = conv(27, cout, cout, bias)
        P[name + "_bn1"] = bn(cout)

    enc_stage("enc_s1s2", C[0], C[1], True)
    enc_stage("enc_s2s4", C[1], C[2], True)
    enc_stage("enc_s4s8", C[2], C[3], False)   # MinkowskiConvolution default bias=False
    enc_stage("enc_s8s16", C[3], C[4], True)
    enc_stage("enc_s16s32", C[4], C[5], False)
    enc_stage("enc_s32s64", C[5], C[6], True)

    def dec_stage(name, cin_up, cout, conv_bias=True):
        P[name + "_up"] = convT(cin_up, cout, True)
        P[name + "_bn_up"] = bn(cout)
        P[name + "_conv"] = conv(27, 2 * cout, cout, conv_bias)
        P[name + "_bn"] = bn(cout)

    dec_stage("dec_s32", C[6], Dch[5])
    dec_stage("dec_s16", Dch[5], Dch[4])
    dec_stage("dec_s8", Dch[4], Dch[3])
    dec_stage("dec_s4", Dch[3], Dch[2])
    dec_stage("dec_s2", Dch[2], Dch[1])
    dec_stage("dec_s1", Dch[1], Dch[0], conv_bias=False)

    P["dec_out_conv"] = conv(27, Dch[0], out_ch, True)
    P["dec_out_idbn"] = {"scale": jnp.ones((out_ch,), jnp.float32),
                         "shift": jnp.zeros((out_ch,), jnp.float32)}
    return P


# -----------------------------------------------------------------------------
# Forward pass (mirrors CompletionNetSigMask.forward)
# -----------------------------------------------------------------------------
def forward(params, x, voxelspace_size):
    p = params
    enc_s1 = conv_k3(x, p["enc_s1_conv"], p["enc_s1_bn"], "elu")

    def enc_stage(h, name):
        h = conv_k2s2(h, p[name + "_conv0"], p[name + "_bn0"], "elu")
        h = conv_k3(h, p[name + "_conv1"], p[name + "_bn1"], "elu")
        return h

    enc_s2 = enc_stage(enc_s1, "enc_s1s2")
    enc_s4 = enc_stage(enc_s2, "enc_s2s4")
    enc_s8 = enc_stage(enc_s4, "enc_s4s8")
    enc_s16 = enc_stage(enc_s8, "enc_s8s16")
    enc_s32 = enc_stage(enc_s16, "enc_s16s32")
    enc_s64 = enc_stage(enc_s32, "enc_s32s64")

    def dec_stage(h_dec, skip, name):
        out_sz = skip.shape[1:4]
        h = convT_k4s2(h_dec, p[name + "_up"], p[name + "_bn_up"], out_sz, "elu")
        h = jnp.concatenate([h, skip.astype(h.dtype)], axis=-1)   # ME.cat((dec, enc))
        h = conv_k3(h, p[name + "_conv"], p[name + "_bn"], "elu")
        return h

    dec_s32 = dec_stage(enc_s64, enc_s32, "dec_s32")
    dec_s16 = dec_stage(dec_s32, enc_s16, "dec_s16")
    dec_s8 = dec_stage(dec_s16, enc_s8, "dec_s8")
    dec_s4 = dec_stage(dec_s8, enc_s4, "dec_s4")
    dec_s2 = dec_stage(dec_s4, enc_s2, "dec_s2")
    dec_s1 = dec_stage(dec_s2, enc_s1, "dec_s1")

    out = conv_k3(dec_s1, p["dec_out_conv"], p["dec_out_idbn"], "tanh",
                  out_dtype=jnp.float32)

    # _final_pruning_layer: keep = coords < voxelspace_size.  On this dense grid, every
    # voxel coordinate lies inside the active volume, so MinkowskiPruning is a no-op.
    del voxelspace_size
    return out


# -----------------------------------------------------------------------------
if __name__ == "__main__":
    voxelspace_size = (16, 16, 16)
    enc_ch = [4, 4, 8, 8, 8, 8, 8]
    dec_ch = [4, 4, 8, 8, 8, 8, 8]
    in_nchannel, out_nchannel = 1, 1

    key = jax.random.PRNGKey(0)
    kx, kp = jax.random.split(key)
    # dense occupancy-like input, layout NDHWC
    x = jax.random.normal(kx, (1, 16, 16, 16, in_nchannel), jnp.float32)

    params = init_params(kp, in_nchannel, out_nchannel, enc_ch, dec_ch)
    out = forward(params, x, voxelspace_size)
    out = jax.block_until_ready(out)

    assert out.shape == (1, 16, 16, 16, out_nchannel), out.shape
    assert bool(jnp.all(jnp.isfinite(out)))
    assert bool(jnp.all(jnp.abs(out) <= 1.0))  # tanh final layer
    print("KERNEL_OK")
</pallas_src>

<mosaic_0001>
module attributes {stable_mosaic.version = 11 : i64} {
  func.func @kernel(%arg0: i32, %arg1: i32, %arg2: memref<2048x128xbf16, #tpu.memory_space<vmem>>, %arg3: memref<128x128xbf16, #tpu.memory_space<vmem>>, %arg4: memref<1x128xf32, #tpu.memory_space<vmem>>, %arg5: memref<2048x128xbf16, #tpu.memory_space<vmem>>, %arg6: memref<2048x128xf32, #tpu.memory_space<vmem>>) attributes {dimension_semantics = [#tpu.dimension_semantics<parallel>, #tpu.dimension_semantics<arbitrary>], iteration_bounds = array<i64: 2, 1>, scalar_prefetch = 0 : i64, scratch_operands = 1 : i64, tpu.core_type = #tpu.core_type<tc>, window_params = [{transform_indices = @transform_0, window_bounds = array<i64: 2048, 128>}, {transform_indices = @transform_1, window_bounds = array<i64: 128, 128>}, {pipeline_mode = #tpu.pipeline_mode<synchronous>, transform_indices = @transform_2, window_bounds = array<i64: 1, 128>}, {transform_indices = @transform_3, window_bounds = array<i64: 2048, 128>}]} {
    %c0_i32 = arith.constant 0 : i32
    %0 = arith.cmpi eq, %arg1, %c0_i32 : i32
    %1 = arith.extui %0 : i1 to i32
    %c0_i32_0 = arith.constant 0 : i32
    %2 = arith.cmpi ne, %1, %c0_i32_0 : i32
    scf.if %2 {
      %cst_10 = arith.constant 0.000000e+00 : f32
      %12 = vector.broadcast %cst_10 : f32 to vector<2048x128xf32>
      %c0_11 = arith.constant 0 : index
      %c0_12 = arith.constant 0 : index
      %13 = vector.load %arg6[%c0_11, %c0_12] : memref<2048x128xf32, #tpu.memory_space<vmem>>, vector<2048x128xf32>
      tpu.vector_store %arg6[%c0_11, %c0_12], %12 {strides = array<i32>} : memref<2048x128xf32, #tpu.memory_space<vmem>>, vector<2048x128xf32>,
    } else {
    }
    %c0 = arith.constant 0 : index
    %c0_1 = arith.constant 0 : index
    %3 = vector.load %arg6[%c0, %c0_1] : memref<2048x128xf32, #tpu.memory_space<vmem>>, vector<2048x128xf32>
    %c0_2 = arith.constant 0 : index
    %c0_3 = arith.constant 0 : index
    %4 = vector.load %arg2[%c0_2, %c0_3] : memref<2048x128xbf16, #tpu.memory_space<vmem>>, vector<2048x128xbf16>
    %c0_4 = arith.constant 0 : index
    %c0_5 = arith.constant 0 : index
    %5 = vector.load %arg3[%c0_4, %c0_5] : memref<128x128xbf16, #tpu.memory_space<vmem>>, vector<128x128xbf16>
    %cst = arith.constant dense<0.000000e+00> : vector<2048x128xf32>
    %6 = tpu.matmul %4, %5, %cst {dimension_numbers = #tpu.dot_dimension_numbers<[1], [0], [0], [1], [0, 0, 1, 1], [], []>} : vector<2048x128xbf16>, vector<128x128xbf16>, vector<2048x128xf32> -> vector<2048x128xf32>
    %7 = arith.addf %3, %6 : vector<2048x128xf32>
    %c0_6 = arith.constant 0 : index
    %c0_7 = arith.constant 0 : index
    %8 = vector.load %arg6[%c0_6, %c0_7] : memref<2048x128xf32, #tpu.memory_space<vmem>>, vector<2048x128xf32>
    tpu.vector_store %arg6[%c0_6, %c0_7], %7 {strides = array<i32>} : memref<2048x128xf32, #tpu.memory_space<vmem>>, vector<2048x128xf32>,
    %c0_i32_8 = arith.constant 0 : i32
    %9 = arith.cmpi eq, %arg1, %c0_i32_8 : i32
    %10 = arith.extui %9 : i1 to i32
    %c0_i32_9 = arith.constant 0 : i32
    %11 = arith.cmpi ne, %10, %c0_i32_9 : i32
    scf.if %11 {
      %c0_10 = arith.constant 0 : index
      %c0_11 = arith.constant 0 : index
      %12 = vector.load %arg6[%c0_10, %c0_11] : memref<2048x128xf32, #tpu.memory_space<vmem>>, vector<2048x128xf32>
      %c0_12 = arith.constant 0 : index
      %c0_13 = arith.constant 0 : index
      %13 = vector.load %arg4[%c0_12, %c0_13] : memref<1x128xf32, #tpu.memory_space<vmem>>, vector<1x128xf32>
      %14 = vector.broadcast %13 : vector<1x128xf32> to vector<2048x128xf32>
      %15 = arith.addf %12, %14 : vector<2048x128xf32>
      %cst_14 = arith.constant 0.000000e+00 : f32
      %16 = vector.broadcast %cst_14 : f32 to vector<2048x128xf32>
      %17 = arith.cmpf ogt, %15, %16 : vector<2048x128xf32>
      %cst_15 = arith.constant 0.000000e+00 : f32
      %18 = vector.broadcast %cst_15 : f32 to vector<2048x128xf32>
      %19 = arith.minimumf %15, %18 : vector<2048x128xf32>
      %20 = math.exp %19 : vector<2048x128xf32>
      %cst_16 = arith.constant 1.000000e+00 : f32
      %21 = vector.broadcast %cst_16 : f32 to vector<2048x128xf32>
      %22 = arith.subf %20, %21 : vector<2048x128xf32>
      %23 = arith.select %17, %15, %22 : vector<2048x128xi1>, vector<2048x128xf32>
      %24 = arith.truncf %23 : vector<2048x128xf32> to vector<2048x128xbf16>
      %c0_17 = arith.constant 0 : index
      %c0_18 = arith.constant 0 : index
      %25 = vector.load %arg5[%c0_17, %c0_18] : memref<2048x128xbf16, #tpu.memory_space<vmem>>, vector<2048x128xbf16>
      tpu.vector_store %arg5[%c0_17, %c0_18], %24 {strides = array<i32>} : memref<2048x128xbf16, #tpu.memory_space<vmem>>, vector<2048x128xbf16>,
    } else {
    }
    return
  }
  func.func @transform_0(%arg0: i32, %arg1: i32) -> (i32, i32) {
    %c0_i32 = arith.constant 0 : i32
    return %arg0, %arg1 : i32, i32
  }
  func.func @transform_1(%arg0: i32, %arg1: i32) -> (i32, i32) {
    %c0_i32 = arith.constant 0 : i32
    %c0_i32_0 = arith.constant 0 : i32
    return %arg1, %c0_i32 : i32, i32
  }
  func.func @transform_2(%arg0: i32, %arg1: i32) -> (i32, i32) {
    %c0_i32 = arith.constant 0 : i32
    %c0_i32_0 = arith.constant 0 : i32
    %c0_i32_1 = arith.constant 0 : i32
    return %c0_i32, %c0_i32_0 : i32, i32
  }
  func.func @transform_3(%arg0: i32, %arg1: i32) -> (i32, i32) {
    %c0_i32 = arith.constant 0 : i32
    %c0_i32_0 = arith.constant 0 : i32
    return %arg0, %c0_i32 : i32, i32
  }
}

</mosaic_0001>

<llo_original>
// kernel: tpu_custom_call.1
$region0: #{tpu_custom_call.1}
  #allocation0 [shape = 'u32[]', space=smem, size = 0x4, offset = 0x4, fixed_abs, tag = 'smem constant byte address 0x4 - core index']
  #allocation1 [shape = 'u32[144,128]{1,0:T(1,128)}', space=vmem, size = 0x12000, scoped, tag = 'internal scratch']
  #allocation2 [shape = 'f32[2048,128]{1,0:T(8,128)}', space=vmem, size = 0x100000, scoped, tag = 'scratch operand']
  %s0 = inlined_call_operand.hbm [shape: bf16[4096,128], index: 0, kind: input, shape index: {}]
  %s1 = inlined_call_operand.hbm [shape: bf16[128,128], index: 1, kind: input, shape index: {}]
  %s2 = inlined_call_operand.vmem [shape: f32[1,128], index: 2, kind: input, shape index: {}]
  %s3 = inlined_call_operand.hbm [shape: bf16[4096,128], index: 3, kind: output, shape index: {}]
  %s4 = sld [smem:[#allocation0]]
  $region61: #{tpu_custom_call.1} parent=0
    _
  %s6 = ssub.s32 1, %s4
  %s7 = scalar_select 0, %s6, %s4
  $region1: #{tpu_custom_call.1} parent=0
    #allocation3 [shape = 'u8[1048576]{0}', space=vmem, size = 0x100000, scoped, tag = 'input window, operand 0']
    #allocation4 [shape = 's32[2]{0}', space=sflag, size = 0x8, scoped, tag = 'scoped memory for tpu_custom_call.1']
    #allocation5 [shape = 's32[2]{0}', space=sflag, size = 0x8, scoped, tag = 'scoped memory for tpu_custom_call.1']
    #allocation6 [shape = 'u8[32768]{0}', space=vmem, size = 0x8000, scoped, tag = 'input window, operand 1, single buffered']
    #allocation7 [shape = 's32[1]{0}', space=sflag, size = 0x4, scoped, tag = 'scoped memory for tpu_custom_call.1']
    #allocation8 [shape = 'u8[1048576]{0}', space=vmem, size = 0x100000, scoped, tag = 'output window, operand 0']
    %8 = vsyncpa [#allocation4], 0
    %s9 = scalar_lea.sflag [#allocation4], 1
    %10 = vsyncpa %s9, 0
    %11 = vsyncpa [#allocation7], 0
    %12 = vsyncpa [#allocation5], 0
    %s13 = scalar_lea.sflag [#allocation5], 1
    %14 = vsyncpa %s13, 0
    loop: start=0, step=1, limit=4
    $region2: #{tpu_custom_call.1} parent=1 // loop_pre_header
      _
    $region3: #{tpu_custom_call.1} parent=1 // loop_header
      %s16 = sphi 0, %s20
      %p17 = scmp.ge.s32.totalorder %s16, 4
      %s23 = sphi 0, %s35
      %s24 = sphi 0, %s31
      %s25 = sphi 0, %s23
      %s26 = sphi 0, %s24
      %s27 = sphi 0, %s25
      %s28 = sphi 0, %s26
      %s40 = sphi 0, %s42
      %s43 = sphi 0, %s40
      %s44 = sphi 0, %s43
      %s60 = sphi 0, %s44
      %s66 = sphi 0, %s68
      %s69 = sphi 0, %s66
      %s70 = sphi 0, %s69
      %s86 = sphi 0, %s70
      %s90 = sphi 0, %s90
      %s92 = sphi 0, %s90
      %s93 = sphi 0, %s92
      %s107 = sphi 0, %s93
      %s113 = sphi 0, %s115
      %s116 = sphi 0, %s113
      %s117 = sphi 0, %s116
      %s133 = sphi 0, %s117
    $region4: #{tpu_custom_call.1} parent=1 // loop_header_branch
      %19 = sbr.rel (%p17) target = $region8
    $region5: #{tpu_custom_call.1} parent=1 // loop_body
      %s21 = ssub.s32 %s16, 1
      %s22 = ssub.s32 %s16, 2
      %s29 = sadd.s32 1, %s24
      %p30 = scmp.ge.s32.totalorder %s29, 1
      %s31 = scalar_select %p30, 0, %s29
      %s32 = sadd.s32 1, %s23
      %s33 = scalar_select %p30, %s32, %s23
      %p34 = scmp.ge.s32.totalorder %s33, 2
      %s35 = scalar_select %p34, 0, %s33
      %s36 = ssub.s32 %s23, %s35
      %s37 = ssub.s32 %s24, %s31
      %s38 = sor.u32 %s36, %s37
      %p39 = scmp.eq.s32.totalorder %s38, 0
      %s41 = sadd.s32 %s40, 1
      %s42 = scalar_select %p39, %s40, %s41
      %p45 = pneg %p39
      %p46 = scmp.eq.s32.totalorder %s16, 1
      %p47 = por %p45, %p46
      %p48 = scmp.ne.s32.totalorder %s40, %s43
      %p49 = scmp.eq.s32.totalorder %s16, 0
      %p50 = por %p48, %p49
      %p51 = scmp.ne.s32.totalorder %s40, %s43
      %p52 = scmp.eq.s32.totalorder %s21, 1
      %p53 = por %p51, %p52
      %p54 = scmp.ne.s32.totalorder %s43, %s44
      %p55 = scmp.eq.s32.totalorder %s21, 0
      %p56 = por %p54, %p55
      %p57 = scmp.ne.s32.totalorder %s43, %s44
      %p58 = scmp.eq.s32.totalorder %s22, 1
      %p59 = por %p57, %p58
      %p61 = scmp.ne.s32.totalorder %s44, %s60
      %p62 = scmp.eq.s32.totalorder %s22, 0
      %p63 = por %p61, %p62
      %s64 = ssub.s32 %s24, %s31
      %p65 = scmp.eq.s32.totalorder %s64, 0
      %s67 = sadd.s32 %s66, 1
      %s68 = scalar_select %p65, %s66, %s67
      %p71 = pneg %p65
      %p72 = scmp.eq.s32.totalorder %s16, 1
      %p73 = por %p71, %p72
      %p74 = scmp.ne.s32.totalorder %s66, %s69
      %p75 = scmp.eq.s32.totalorder %s16, 0
      %p76 = por %p74, %p75
      %p77 = scmp.ne.s32.totalorder %s66, %s69
      %p78 = scmp.eq.s32.totalorder %s21, 1
      %p79 = por %p77, %p78
      %p80 = scmp.ne.s32.totalorder %s69, %s70
      %p81 = scmp.eq.s32.totalorder %s21, 0
      %p82 = por %p80, %p81
      %p83 = scmp.ne.s32.totalorder %s69, %s70
      %p84 = scmp.eq.s32.totalorder %s22, 1
      %p85 = por %p83, %p84
      %p87 = scmp.ne.s32.totalorder %s70, %s86
      %p88 = scmp.eq.s32.totalorder %s22, 0
      %p89 = por %p87, %p88
      %s91 = sadd.s32 %s90, 1
      %p94 = scmp.eq.s32.totalorder %s16, 1
      %p95 = scmp.ne.s32.totalorder %s90, %s92
      %p96 = scmp.eq.s32.totalorder %s16, 0
      %p97 = por %p95, %p96
      %p98 = scmp.ne.s32.totalorder %s90, %s92
      %p99 = scmp.eq.s32.totalorder %s21, 1
      %p100 = por %p98, %p99
      %p101 = scmp.ne.s32.totalorder %s92, %s93
      %p102 = scmp.eq.s32.totalorder %s21, 0
      %p103 = por %p101, %p102
      %p104 = scmp.ne.s32.totalorder %s92, %s93
      %p105 = scmp.eq.s32.totalorder %s22, 1
      %p106 = por %p104, %p105
      %p108 = scmp.ne.s32.totalorder %s93, %s107
      %p109 = scmp.eq.s32.totalorder %s22, 0
      %p110 = por %p108, %p109
      %s111 = ssub.s32 %s23, %s35
      %p112 = scmp.eq.s32.totalorder %s111, 0
      %s114 = sadd.s32 %s113, 1
      %s115 = scalar_select %p112, %s113, %s114
      %p118 = pneg %p112
      %p119 = scmp.eq.s32.totalorder %s16, 1
      %p120 = por %p118, %p119
      %p121 = scmp.ne.s32.totalorder %s113, %s116
      %p122 = scmp.eq.s32.totalorder %s16, 0
      %p123 = por %p121, %p122
      %p124 = scmp.ne.s32.totalorder %s113, %s116
      %p125 = scmp.eq.s32.totalorder %s21, 1
      %p126 = por %p124, %p125
      %p127 = scmp.ne.s32.totalorder %s116, %s117
      %p128 = scmp.eq.s32.totalorder %s21, 0
      %p129 = por %p127, %p128
      %p130 = scmp.ne.s32.totalorder %s116, %s117
      %p131 = scmp.eq.s32.totalorder %s22, 1
      %p132 = por %p130, %p131
      %p134 = scmp.ne.s32.totalorder %s117, %s133
      %p135 = scmp.eq.s32.totalorder %s22, 0
      %p136 = por %p134, %p135
      %p137 = scmp.le.s32.totalorder 1, %s16
      %p138 = scmp.lt.s32.totalorder %s16, 3
      %p139 = pnand %p137, %p138
      %p140 = pneg %p139
      // Predicated region
      $region9: #{tpu_custom_call.1} parent=5 // pred_check
        _
      $region10: #{tpu_custom_call.1} parent=5 // pred_check_branch
        %142 = sbr.rel (%p139) target = $region12
      $region11: #{tpu_custom_call.1} parent=5 // pred_region
        %s143 = ssub.s32 %s16, 1
        // Predicated region
        $region13: #{tpu_custom_call.1} parent=11 // pred_check
          %p144 = pneg %p82
        $region14: #{tpu_custom_call.1} parent=11 // pred_check_branch
          %146 = sbr.rel (%p144) target = $region16
        $region15: #{tpu_custom_call.1} parent=11 // pred_region
          %s147 = smul.u32 16, %s26
          %s149 = ssub.s32 1024, 1024
          %150 = vsyncadd [#allocation7], %s149
          %s151 = smul.addr %s147, 64
          %s152 = scalar_lea.hbm %s1, %s151
          %s153 = sshll.u32 [#allocation6], 4
          %s154 = int_to_ptr.vmem [resolvable:$true] %s153
          %159 = dma.hbm_to_vmem [thread:$0]  %s152, 1024, %s154, [#allocation7], 64, 64, 4
        $region16: #{tpu_custom_call.1} parent=11 // pred_fallthru
          _
        // Predicated region
        $region17: #{tpu_custom_call.1} parent=11 // pred_check
          %p160 = pneg %p103
        $region18: #{tpu_custom_call.1} parent=11 // pred_check_branch
          %162 = sbr.rel (%p160) target = $region20
        $region19: #{tpu_custom_call.1} parent=11 // pred_region
          _
        $region20: #{tpu_custom_call.1} parent=11 // pred_fallthru
          _
      $region12: #{tpu_custom_call.1} parent=5 // pred_fallthru
        _
      %p163 = scmp.lt.s32.totalorder %s16, 2
      // Predicated region
      $region21: #{tpu_custom_call.1} parent=5 // pred_check
        %p164 = pneg %p163
      $region22: #{tpu_custom_call.1} parent=5 // pred_check_branch
        %166 = sbr.rel (%p164) target = $region24
      $region23: #{tpu_custom_call.1} parent=5 // pred_region
        // Predicated region
        $region25: #{tpu_custom_call.1} parent=23 // pred_check
          %p167 = pneg %p50
        $region26: #{tpu_custom_call.1} parent=23 // pred_check_branch
          %169 = sbr.rel (%p167) target = $region28
        $region27: #{tpu_custom_call.1} parent=23 // pred_region
          %s170 = sand.u32 %s40, 1
          %s171 = scalar_lea.sflag [#allocation4], %s170
          %s172 = sand.u32 %s40, 1
          %s173 = smul.addr %s172, 1024
          %s174 = scalar_lea.vmem [#allocation3], %s173
          %s175 = smul.u32 256, %s23
          %s177 = ssub.s32 16384, 16384
          %178 = vsyncadd %s171, %s177
          %s179 = sadd.s32 %s24, %s175
          %s180 = smul.addr %s179, 64
          %s181 = scalar_lea.hbm %s0, %s180
          %s182 = sshll.u32 %s174, 4
          %s183 = int_to_ptr.vmem [resolvable:$true] %s182
          %188 = dma.hbm_to_vmem [thread:$0]  %s181, 16384, %s183, %s171, 64, 64, 4
        $region28: #{tpu_custom_call.1} parent=23 // pred_fallthru
          _
      $region24: #{tpu_custom_call.1} parent=5 // pred_fallthru
        _
      %p189 = scmp.le.s32.totalorder 1, %s16
      %p190 = scmp.lt.s32.totalorder %s16, 3
      %p191 = pnand %p189, %p190
      %p192 = pneg %p191
      // Predicated region
      $region29: #{tpu_custom_call.1} parent=5 // pred_check
        _
      $region30: #{tpu_custom_call.1} parent=5 // pred_check_branch
        %194 = sbr.rel (%p191) target = $region32
      $region31: #{tpu_custom_call.1} parent=5 // pred_region
        %s195 = ssub.s32 %s16, 1
        %s196 = sand.u32 %s43, 1
        %s197 = scalar_lea.sflag [#allocation4], %s196
        %s198 = sand.u32 %s43, 1
        %s199 = smul.addr %s198, 1024
        %s200 = scalar_lea.vmem [#allocation3], %s199
        // Predicated region
        $region33: #{tpu_custom_call.1} parent=31 // pred_check
          %p201 = pneg %p56
        $region34: #{tpu_custom_call.1} parent=31 // pred_check_branch
          %203 = sbr.rel (%p201) target = $region36
        $region35: #{tpu_custom_call.1} parent=31 // pred_region
          %204 = dma.done %s197, 16384
        $region36: #{tpu_custom_call.1} parent=31 // pred_fallthru
          _
        // Predicated region
        $region37: #{tpu_custom_call.1} parent=31 // pred_check
          %p205 = pneg %p82
        $region38: #{tpu_custom_call.1} parent=31 // pred_check_branch
          %207 = sbr.rel (%p205) target = $region40
        $region39: #{tpu_custom_call.1} parent=31 // pred_region
          %208 = dma.done [#allocation7], 1024
        $region40: #{tpu_custom_call.1} parent=31 // pred_fallthru
          _
        %s209 = sand.u32 %s43, 1
        %s210 = scalar_lea.sflag [#allocation4], %s209
        %s211 = sand.u32 %s43, 1
        %s212 = smul.addr %s211, 1024
        %s213 = scalar_lea.vmem [#allocation3], %s212
        %p214 = pneg %p56
        %p215 = pneg %p53
        %p216 = pneg %p82
        %p217 = pneg %p79
        %p218 = pneg %p103
        %p219 = pneg %p100
        %p220 = pneg %p129
        %p221 = pneg %p126
        %s222 = sand.u32 %s116, 1
        %s223 = scalar_lea.sflag [#allocation5], %s222
        %s224 = sand.u32 %s116, 1
        %s225 = smul.addr %s224, 1024
        %s226 = scalar_lea.vmem [#allocation8], %s225
        %s227 = smul.u32 256, %s25
        %s228 = smul.u32 16, %s26
        %s229 = smul.u32 256, %s25
        %p231 = scmp.eq.s32.totalorder %s26, 0
        // Predicated region
        $region41: #{tpu_custom_call.1} parent=31 // pred_check
          %p232 = pneg %p231
        $region42: #{tpu_custom_call.1} parent=31 // pred_check_branch
          %234 = sbr.rel (%p232) target = $region44
        $region43: #{tpu_custom_call.1} parent=31 // pred_region
          %235 = vst [vmem:[#allocation2] sm:$0xff] 0.0
          %236 = vst [vmem:[#allocation2 + $0x8] sm:$0xff] 0.0
          %237 = vst [vmem:[#allocation2 + $0x10] sm:$0xff] 0.0
          %238 = vst [vmem:[#allocation2 + $0x18] sm:$0xff] 0.0
          %239 = vst [vmem:[#allocation2 + $0x20] sm:$0xff] 0.0
          %240 = vst [vmem:[#allocation2 + $0x28] sm:$0xff] 0.0
          %241 = vst [vmem:[#allocation2 + $0x30] sm:$0xff] 0.0
          %242 = vst [vmem:[#allocation2 + $0x38] sm:$0xff] 0.0
          %243 = vst [vmem:[#allocation2 + $0x40] sm:$0xff] 0.0
          %244 = vst [vmem:[#allocation2 + $0x48] sm:$0xff] 0.0
          %245 = vst [vmem:[#allocation2 + $0x50] sm:$0xff] 0.0
          %246 = vst [vmem:[#allocation2 + $0x58] sm:$0xff] 0.0
          %247 = vst [vmem:[#allocation2 + $0x60] sm:$0xff] 0.0
          %248 = vst [vmem:[#allocation2 + $0x68] sm:$0xff] 0.0
          %249 = vst [vmem:[#allocation2 + $0x70] sm:$0xff] 0.0
          %250 = vst [vmem:[#allocation2 + $0x78] sm:$0xff] 0.0
          %251 = vst [vmem:[#allocation2 + $0x80] sm:$0xff] 0.0
          %252 = vst [vmem:[#allocation2 + $0x88] sm:$0xff] 0.0
          %253 = vst [vmem:[#allocation2 + $0x90] sm:$0xff] 0.0
          %254 = vst [vmem:[#allocation2 + $0x98] sm:$0xff] 0.0
          %255 = vst [vmem:[#allocation2 + $0xa0] sm:$0xff] 0.0
          %256 = vst [vmem:[#allocation2 + $0xa8] sm:$0xff] 0.0
          %257 = vst [vmem:[#allocation2 + $0xb0] sm:$0xff] 0.0
          %258 = vst [vmem:[#allocation2 + $0xb8] sm:$0xff] 0.0
          %259 = vst [vmem:[#allocation2 + $0xc0] sm:$0xff] 0.0
          %260 = vst [vmem:[#allocation2 + $0xc8] sm:$0xff] 0.0
          %261 = vst [vmem:[#allocation2 + $0xd0] sm:$0xff] 0.0
          %262 = vst [vmem:[#allocation2 + $0xd8] sm:$0xff] 0.0
          %263 = vst [vmem:[#allocation2 + $0xe0] sm:$0xff] 0.0
          %264 = vst [vmem:[#allocation2 + $0xe8] sm:$0xff] 0.0
          %265 = vst [vmem:[#allocation2 + $0xf0] sm:$0xff] 0.0
          %266 = vst [vmem:[#allocation2 + $0xf8] sm:$0xff] 0.0
          %267 = vst [vmem:[#allocation2 + $0x100] sm:$0xff] 0.0
          %268 = vst [vmem:[#allocation2 + $0x108] sm:$0xff] 0.0
          %269 = vst [vmem:[#allocation2 + $0x110] sm:$0xff] 0.0
          %270 = vst [vmem:[#allocation2 + $0x118] sm:$0xff] 0.0
          %271 = vst [vmem:[#allocation2 + $0x120] sm:$0xff] 0.0
          %272 = vst [vmem:[#allocation2 + $0x128] sm:$0xff] 0.0
          %273 = vst [vmem:[#allocation2 + $0x130] sm:$0xff] 0.0
          %274 = vst [vmem:[#allocation2 + $0x138] sm:$0xff] 0.0
          %275 = vst [vmem:[#allocation2 + $0x140] sm:$0xff] 0.0
          %276 = vst [vmem:[#allocation2 + $0x148] sm:$0xff] 0.0
          %277 = vst [vmem:[#allocation2 + $0x150] sm:$0xff] 0.0
          %278 = vst [vmem:[#allocation2 + $0x158] sm:$0xff] 0.0
          %279 = vst [vmem:[#allocation2 + $0x160] sm:$0xff] 0.0
          %280 = vst [vmem:[#allocation2 + $0x168] sm:$0xff] 0.0
          %281 = vst [vmem:[#allocation2 + $0x170] sm:$0xff] 0.0
          %282 = vst [vmem:[#allocation2 + $0x178] sm:$0xff] 0.0
          %283 = vst [vmem:[#allocation2 + $0x180] sm:$0xff] 0.0
          %284 = vst [vmem:[#allocation2 + $0x188] sm:$0xff] 0.0
          %285 = vst [vmem:[#allocation2 + $0x190] sm:$0xff] 0.0
          %286 = vst [vmem:[#allocation2 + $0x198] sm:$0xff] 0.0
          %287 = vst [vmem:[#allocation2 + $0x1a0] sm:$0xff] 0.0
          %288 = vst [vmem:[#allocation2 + $0x1a8] sm:$0xff] 0.0
          %289 = vst [vmem:[#allocation2 + $0x1b0] sm:$0xff] 0.0
          %290 = vst [vmem:[#allocation2 + $0x1b8] sm:$0xff] 0.0
          %291 = vst [vmem:[#allocation2 + $0x1c0] sm:$0xff] 0.0
          %292 = vst [vmem:[#allocation2 + $0x1c8] sm:$0xff] 0.0
          %293 = vst [vmem:[#allocation2 + $0x1d0] sm:$0xff] 0.0
          %294 = vst [vmem:[#allocation2 + $0x1d8] sm:$0xff] 0.0
          %295 = vst [vmem:[#allocation2 + $0x1e0] sm:$0xff] 0.0
          %296 = vst [vmem:[#allocation2 + $0x1e8] sm:$0xff] 0.0
          %297 = vst [vmem:[#allocation2 + $0x1f0] sm:$0xff] 0.0
          %298 = vst [vmem:[#allocation2 + $0x1f8] sm:$0xff] 0.0
          %299 = vst [vmem:[#allocation2 + $0x200] sm:$0xff] 0.0
          %300 = vst [vmem:[#allocation2 + $0x208] sm:$0xff] 0.0
          %301 = vst [vmem:[#allocation2 + $0x210] sm:$0xff] 0.0
          %302 = vst [vmem:[#allocation2 + $0x218] sm:$0xff] 0.0
          %303 = vst [vmem:[#allocation2 + $0x220] sm:$0xff] 0.0
          %304 = vst [vmem:[#allocation2 + $0x228] sm:$0xff] 0.0
          %305 = vst [vmem:[#allocation2 + $0x230] sm:$0xff] 0.0
          %306 = vst [vmem:[#allocation2 + $0x238] sm:$0xff] 0.0
          %307 = vst [vmem:[#allocation2 + $0x240] sm:$0xff] 0.0
          %308 = vst [vmem:[#allocation2 + $0x248] sm:$0xff] 0.0
          %309 = vst [vmem:[#allocation2 + $0x250] sm:$0xff] 0.0
          %310 = vst [vmem:[#allocation2 + $0x258] sm:$0xff] 0.0
          %311 = vst [vmem:[#allocation2 + $0x260] sm:$0xff] 0.0
          %312 = vst [vmem:[#allocation2 + $0x268] sm:$0xff] 0.0
          %313 = vst [vmem:[#allocation2 + $0x270] sm:$0xff] 0.0
          %314 = vst [vmem:[#allocation2 + $0x278] sm:$0xff] 0.0
          %315 = vst [vmem:[#allocation2 + $0x280] sm:$0xff] 0.0
          %316 = vst [vmem:[#allocation2 + $0x288] sm:$0xff] 0.0
          %317 = vst [vmem:[#allocation2 + $0x290] sm:$0xff] 0.0
          %318 = vst [vmem:[#allocation2 + $0x298] sm:$0xff] 0.0
          %319 = vst [vmem:[#allocation2 + $0x2a0] sm:$0xff] 0.0
          %320 = vst [vmem:[#allocation2 + $0x2a8] sm:$0xff] 0.0
          %321 = vst [vmem:[#allocation2 + $0x2b0] sm:$0xff] 0.0
          %322 = vst [vmem:[#allocation2 + $0x2b8] sm:$0xff] 0.0
          %323 = vst [vmem:[#allocation2 + $0x2c0] sm:$0xff] 0.0
          %324 = vst [vmem:[#allocation2 + $0x2c8] sm:$0xff] 0.0
          %325 = vst [vmem:[#allocation2 + $0x2d0] sm:$0xff] 0.0
          %326 = vst [vmem:[#allocation2 + $0x2d8] sm:$0xff] 0.0
          %327 = vst [vmem:[#allocation2 + $0x2e0] sm:$0xff] 0.0
          %328 = vst [vmem:[#allocation2 + $0x2e8] sm:$0xff] 0.0
          %329 = vst [vmem:[#allocation2 + $0x2f0] sm:$0xff] 0.0
          %330 = vst [vmem:[#allocation2 + $0x2f8] sm:$0xff] 0.0
          %331 = vst [vmem:[#allocation2 + $0x300] sm:$0xff] 0.0
          %332 = vst [vmem:[#allocation2 + $0x308] sm:$0xff] 0.0
          %333 = vst [vmem:[#allocation2 + $0x310] sm:$0xff] 0.0
          %334 = vst [vmem:[#allocation2 + $0x318] sm:$0xff] 0.0
          %335 = vst [vmem:[#allocation2 + $0x320] sm:$0xff] 0.0
          %336 = vst [vmem:[#allocation2 + $0x328] sm:$0xff] 0.0
          %337 = vst [vmem:[#allocation2 + $0x330] sm:$0xff] 0.0
          %338 = vst [vmem:[#allocation2 + $0x338] sm:$0xff] 0.0
          %339 = vst [vmem:[#allocation2 + $0x340] sm:$0xff] 0.0
          %340 = vst [vmem:[#allocation2 + $0x348] sm:$0xff] 0.0
          %341 = vst [vmem:[#allocation2 + $0x350] sm:$0xff] 0.0
          %342 = vst [vmem:[#allocation2 + $0x358] sm:$0xff] 0.0
          %343 = vst [vmem:[#allocation2 + $0x360] sm:$0xff] 0.0
          %344 = vst [vmem:[#allocation2 + $0x368] sm:$0xff] 0.0
          %345 = vst [vmem:[#allocation2 + $0x370] sm:$0xff] 0.0
          %346 = vst [vmem:[#allocation2 + $0x378] sm:$0xff] 0.0
          %347 = vst [vmem:[#allocation2 + $0x380] sm:$0xff] 0.0
          %348 = vst [vmem:[#allocation2 + $0x388] sm:$0xff] 0.0
          %349 = vst [vmem:[#allocation2 + $0x390] sm:$0xff] 0.0
          %350 = vst [vmem:[#allocation2 + $0x398] sm:$0xff] 0.0
          %351 = vst [vmem:[#allocation2 + $0x3a0] sm:$0xff] 0.0
          %352 = vst [vmem:[#allocation2 + $0x3a8] sm:$0xff] 0.0
          %353 = vst [vmem:[#allocation2 + $0x3b0] sm:$0xff] 0.0
          %354 = vst [vmem:[#allocation2 + $0x3b8] sm:$0xff] 0.0
          %355 = vst [vmem:[#allocation2 + $0x3c0] sm:$0xff] 0.0
          %356 = vst [vmem:[#allocation2 + $0x3c8] sm:$0xff] 0.0
          %357 = vst [vmem:[#allocation2 + $0x3d0] sm:$0xff] 0.0
          %358 = vst [vmem:[#allocation2 + $0x3d8] sm:$0xff] 0.0
          %359 = vst [vmem:[#allocation2 + $0x3e0] sm:$0xff] 0.0
          %360 = vst [vmem:[#allocation2 + $0x3e8] sm:$0xff] 0.0
          %361 = vst [vmem:[#allocation2 + $0x3f0] sm:$0xff] 0.0
          %362 = vst [vmem:[#allocation2 + $0x3f8] sm:$0xff] 0.0
          %363 = vst [vmem:[#allocation2 + $0x400] sm:$0xff] 0.0
          %364 = vst [vmem:[#allocation2 + $0x408] sm:$0xff] 0.0
          %365 = vst [vmem:[#allocation2 + $0x410] sm:$0xff] 0.0
          %366 = vst [vmem:[#allocation2 + $0x418] sm:$0xff] 0.0
          %367 = vst [vmem:[#allocation2 + $0x420] sm:$0xff] 0.0
          %368 = vst [vmem:[#allocation2 + $0x428] sm:$0xff] 0.0
          %369 = vst [vmem:[#allocation2 + $0x430] sm:$0xff] 0.0
          %370 = vst [vmem:[#allocation2 + $0x438] sm:$0xff] 0.0
          %371 = vst [vmem:[#allocation2 + $0x440] sm:$0xff] 0.0
          %372 = vst [vmem:[#allocation2 + $0x448] sm:$0xff] 0.0
          %373 = vst [vmem:[#allocation2 + $0x450] sm:$0xff] 0.0
          %374 = vst [vmem:[#allocation2 + $0x458] sm:$0xff] 0.0
          %375 = vst [vmem:[#allocation2 + $0x460] sm:$0xff] 0.0
          %376 = vst [vmem:[#allocation2 + $0x468] sm:$0xff] 0.0
          %377 = vst [vmem:[#allocation2 + $0x470] sm:$0xff] 0.0
          %378 = vst [vmem:[#allocation2 + $0x478] sm:$0xff] 0.0
          %379 = vst [vmem:[#allocation2 + $0x480] sm:$0xff] 0.0
          %380 = vst [vmem:[#allocation2 + $0x488] sm:$0xff] 0.0
          %381 = vst [vmem:[#allocation2 + $0x490] sm:$0xff] 0.0
          %382 = vst [vmem:[#allocation2 + $0x498] sm:$0xff] 0.0
          %383 = vst [vmem:[#allocation2 + $0x4a0] sm:$0xff] 0.0
          %384 = vst [vmem:[#allocation2 + $0x4a8] sm:$0xff] 0.0
          %385 = vst [vmem:[#allocation2 + $0x4b0] sm:$0xff] 0.0
          %386 = vst [vmem:[#allocation2 + $0x4b8] sm:$0xff] 0.0
          %387 = vst [vmem:[#allocation2 + $0x4c0] sm:$0xff] 0.0
          %388 = vst [vmem:[#allocation2 + $0x4c8] sm:$0xff] 0.0
          %389 = vst [vmem:[#allocation2 + $0x4d0] sm:$0xff] 0.0
          %390 = vst [vmem:[#allocation2 + $0x4d8] sm:$0xff] 0.0
          %391 = vst [vmem:[#allocation2 + $0x4e0] sm:$0xff] 0.0
          %392 = vst [vmem:[#allocation2 + $0x4e8] sm:$0xff] 0.0
          %393 = vst [vmem:[#allocation2 + $0x4f0] sm:$0xff] 0.0
          %394 = vst [vmem:[#allocation2 + $0x4f8] sm:$0xff] 0.0
          %395 = vst [vmem:[#allocation2 + $0x500] sm:$0xff] 0.0
          %396 = vst [vmem:[#allocation2 + $0x508] sm:$0xff] 0.0
          %397 = vst [vmem:[#allocation2 + $0x510] sm:$0xff] 0.0
          %398 = vst [vmem:[#allocation2 + $0x518] sm:$0xff] 0.0
          %399 = vst [vmem:[#allocation2 + $0x520] sm:$0xff] 0.0
          %400 = vst [vmem:[#allocation2 + $0x528] sm:$0xff] 0.0
          %401 = vst [vmem:[#allocation2 + $0x530] sm:$0xff] 0.0
          %402 = vst [vmem:[#allocation2 + $0x538] sm:$0xff] 0.0
          %403 = vst [vmem:[#allocation2 + $0x540] sm:$0xff] 0.0
          %404 = vst [vmem:[#allocation2 + $0x548] sm:$0xff] 0.0
          %405 = vst [vmem:[#allocation2 + $0x550] sm:$0xff] 0.0
          %406 = vst [vmem:[#allocation2 + $0x558] sm:$0xff] 0.0
          %407 = vst [vmem:[#allocation2 + $0x560] sm:$0xff] 0.0
          %408 = vst [vmem:[#allocation2 + $0x568] sm:$0xff] 0.0
          %409 = vst [vmem:[#allocation2 + $0x570] sm:$0xff] 0.0
          %410 = vst [vmem:[#allocation2 + $0x578] sm:$0xff] 0.0
          %411 = vst [vmem:[#allocation2 + $0x580] sm:$0xff] 0.0
          %412 = vst [vmem:[#allocation2 + $0x588] sm:$0xff] 0.0
          %413 = vst [vmem:[#allocation2 + $0x590] sm:$0xff] 0.0
          %414 = vst [vmem:[#allocation2 + $0x598] sm:$0xff] 0.0
          %415 = vst [vmem:[#allocation2 + $0x5a0] sm:$0xff] 0.0
          %416 = vst [vmem:[#allocation2 + $0x5a8] sm:$0xff] 0.0
          %417 = vst [vmem:[#allocation2 + $0x5b0] sm:$0xff] 0.0
          %418 = vst [vmem:[#allocation2 + $0x5b8] sm:$0xff] 0.0
          %419 = vst [vmem:[#allocation2 + $0x5c0] sm:$0xff] 0.0
          %420 = vst [vmem:[#allocation2 + $0x5c8] sm:$0xff] 0.0
          %421 = vst [vmem:[#allocation2 + $0x5d0] sm:$0xff] 0.0
          %422 = vst [vmem:[#allocation2 + $0x5d8] sm:$0xff] 0.0
          %423 = vst [vmem:[#allocation2 + $0x5e0] sm:$0xff] 0.0
          %424 = vst [vmem:[#allocation2 + $0x5e8] sm:$0xff] 0.0
          %425 = vst [vmem:[#allocation2 + $0x5f0] sm:$0xff] 0.0
          %426 = vst [vmem:[#allocation2 + $0x5f8] sm:$0xff] 0.0
          %427 = vst [vmem:[#allocation2 + $0x600] sm:$0xff] 0.0
          %428 = vst [vmem:[#allocation2 + $0x608] sm:$0xff] 0.0
          %429 = vst [vmem:[#allocation2 + $0x610] sm:$0xff] 0.0
          %430 = vst [vmem:[#allocation2 + $0x618] sm:$0xff] 0.0
          %431 = vst [vmem:[#allocation2 + $0x620] sm:$0xff] 0.0
          %432 = vst [vmem:[#allocation2 + $0x628] sm:$0xff] 0.0
          %433 = vst [vmem:[#allocation2 + $0x630] sm:$0xff] 0.0
          %434 = vst [vmem:[#allocation2 + $0x638] sm:$0xff] 0.0
          %435 = vst [vmem:[#allocation2 + $0x640] sm:$0xff] 0.0
          %436 = vst [vmem:[#allocation2 + $0x648] sm:$0xff] 0.0
          %437 = vst [vmem:[#allocation2 + $0x650] sm:$0xff] 0.0
          %438 = vst [vmem:[#allocation2 + $0x658] sm:$0xff] 0.0
          %439 = vst [vmem:[#allocation2 + $0x660] sm:$0xff] 0.0
          %440 = vst [vmem:[#allocation2 + $0x668] sm:$0xff] 0.0
          %441 = vst [vmem:[#allocation2 + $0x670] sm:$0xff] 0.0
          %442 = vst [vmem:[#allocation2 + $0x678] sm:$0xff] 0.0
          %443 = vst [vmem:[#allocation2 + $0x680] sm:$0xff] 0.0
          %444 = vst [vmem:[#allocation2 + $0x688] sm:$0xff] 0.0
          %445 = vst [vmem:[#allocation2 + $0x690] sm:$0xff] 0.0
          %446 = vst [vmem:[#allocation2 + $0x698] sm:$0xff] 0.0
          %447 = vst [vmem:[#allocation2 + $0x6a0] sm:$0xff] 0.0
          %448 = vst [vmem:[#allocation2 + $0x6a8] sm:$0xff] 0.0
          %449 = vst [vmem:[#allocation2 + $0x6b0] sm:$0xff] 0.0
          %450 = vst [vmem:[#allocation2 + $0x6b8] sm:$0xff] 0.0
          %451 = vst [vmem:[#allocation2 + $0x6c0] sm:$0xff] 0.0
          %452 = vst [vmem:[#allocation2 + $0x6c8] sm:$0xff] 0.0
          %453 = vst [vmem:[#allocation2 + $0x6d0] sm:$0xff] 0.0
          %454 = vst [vmem:[#allocation2 + $0x6d8] sm:$0xff] 0.0
          %455 = vst [vmem:[#allocation2 + $0x6e0] sm:$0xff] 0.0
          %456 = vst [vmem:[#allocation2 + $0x6e8] sm:$0xff] 0.0
          %457 = vst [vmem:[#allocation2 + $0x6f0] sm:$0xff] 0.0
          %458 = vst [vmem:[#allocation2 + $0x6f8] sm:$0xff] 0.0
          %459 = vst [vmem:[#allocation2 + $0x700] sm:$0xff] 0.0
          %460 = vst [vmem:[#allocation2 + $0x708] sm:$0xff] 0.0
          %461 = vst [vmem:[#allocation2 + $0x710] sm:$0xff] 0.0
          %462 = vst [vmem:[#allocation2 + $0x718] sm:$0xff] 0.0
          %463 = vst [vmem:[#allocation2 + $0x720] sm:$0xff] 0.0
          %464 = vst [vmem:[#allocation2 + $0x728] sm:$0xff] 0.0
          %465 = vst [vmem:[#allocation2 + $0x730] sm:$0xff] 0.0
          %466 = vst [vmem:[#allocation2 + $0x738] sm:$0xff] 0.0
          %467 = vst [vmem:[#allocation2 + $0x740] sm:$0xff] 0.0
          %468 = vst [vmem:[#allocation2 + $0x748] sm:$0xff] 0.0
          %469 = vst [vmem:[#allocation2 + $0x750] sm:$0xff] 0.0
          %470 = vst [vmem:[#allocation2 + $0x758] sm:$0xff] 0.0
          %471 = vst [vmem:[#allocation2 + $0x760] sm:$0xff] 0.0
          %472 = vst [vmem:[#allocation2 + $0x768] sm:$0xff] 0.0
          %473 = vst [vmem:[#allocation2 + $0x770] sm:$0xff] 0.0
          %474 = vst [vmem:[#allocation2 + $0x778] sm:$0xff] 0.0
          %475 = vst [vmem:[#allocation2 + $0x780] sm:$0xff] 0.0
          %476 = vst [vmem:[#allocation2 + $0x788] sm:$0xff] 0.0
          %477 = vst [vmem:[#allocation2 + $0x790] sm:$0xff] 0.0
          %478 = vst [vmem:[#allocation2 + $0x798] sm:$0xff] 0.0
          %479 = vst [vmem:[#allocation2 + $0x7a0] sm:$0xff] 0.0
          %480 = vst [vmem:[#allocation2 + $0x7a8] sm:$0xff] 0.0
          %481 = vst [vmem:[#allocation2 + $0x7b0] sm:$0xff] 0.0
          %482 = vst [vmem:[#allocation2 + $0x7b8] sm:$0xff] 0.0
          %483 = vst [vmem:[#allocation2 + $0x7c0] sm:$0xff] 0.0
          %484 = vst [vmem:[#allocation2 + $0x7c8] sm:$0xff] 0.0
          %485 = vst [vmem:[#allocation2 + $0x7d0] sm:$0xff] 0.0
          %486 = vst [vmem:[#allocation2 + $0x7d8] sm:$0xff] 0.0
          %487 = vst [vmem:[#allocation2 + $0x7e0] sm:$0xff] 0.0
          %488 = vst [vmem:[#allocation2 + $0x7e8] sm:$0xff] 0.0
          %489 = vst [vmem:[#allocation2 + $0x7f0] sm:$0xff] 0.0
          %490 = vst [vmem:[#allocation2 + $0x7f8] sm:$0xff] 0.0
        $region44: #{tpu_custom_call.1} parent=31 // pred_fallthru
          _
        %v491 = vld [vmem:[#allocation2] sm:$0xff]
        %v492 = vld [vmem:[#allocation2 + $0x8] sm:$0xff]
        %v493 = vld [vmem:[#allocation2 + $0x10] sm:$0xff]
        %v494 = vld [vmem:[#allocation2 + $0x18] sm:$0xff]
        %v495 = vld [vmem:[#allocation2 + $0x20] sm:$0xff]
        %v496 = vld [vmem:[#allocation2 + $0x28] sm:$0xff]
        %v497 = vld [vmem:[#allocation2 + $0x30] sm:$0xff]
        %v498 = vld [vmem:[#allocation2 + $0x38] sm:$0xff]
        %v499 = vld [vmem:[#allocation2 + $0x40] sm:$0xff]
        %v500 = vld [vmem:[#allocation2 + $0x48] sm:$0xff]
        %v501 = vld [vmem:[#allocation2 + $0x50] sm:$0xff]
        %v502 = vld [vmem:[#allocation2 + $0x58] sm:$0xff]
        %v503 = vld [vmem:[#allocation2 + $0x60] sm:$0xff]
        %v504 = vld [vmem:[#allocation2 + $0x68] sm:$0xff]
        %v505 = vld [vmem:[#allocation2 + $0x70] sm:$0xff]
        %v506 = vld [vmem:[#allocation2 + $0x78] sm:$0xff]
        %v507 = vld [vmem:[#allocation2 + $0x80] sm:$0xff]
        %v508 = vld [vmem:[#allocation2 + $0x88] sm:$0xff]
        %v509 = vld [vmem:[#allocation2 + $0x90] sm:$0xff]
        %v510 = vld [vmem:[#allocation2 + $0x98] sm:$0xff]
        %v511 = vld [vmem:[#allocation2 + $0xa0] sm:$0xff]
        %v512 = vld [vmem:[#allocation2 + $0xa8] sm:$0xff]
        %v513 = vld [vmem:[#allocation2 + $0xb0] sm:$0xff]
        %v514 = vld [vmem:[#allocation2 + $0xb8] sm:$0xff]
        %v515 = vld [vmem:[#allocation2 + $0xc0] sm:$0xff]
        %v516 = vld [vmem:[#allocation2 + $0xc8] sm:$0xff]
        %v517 = vld [vmem:[#allocation2 + $0xd0] sm:$0xff]
        %v518 = vld [vmem:[#allocation2 + $0xd8] sm:$0xff]
        %v519 = vld [vmem:[#allocation2 + $0xe0] sm:$0xff]
        %v520 = vld [vmem:[#allocation2 + $0xe8] sm:$0xff]
        %v521 = vld [vmem:[#allocation2 + $0xf0] sm:$0xff]
        %v522 = vld [vmem:[#allocation2 + $0xf8] sm:$0xff]
        %v523 = vld [vmem:[#allocation2 + $0x100] sm:$0xff]
        %v524 = vld [vmem:[#allocation2 + $0x108] sm:$0xff]
        %v525 = vld [vmem:[#allocation2 + $0x110] sm:$0xff]
        %v526 = vld [vmem:[#allocation2 + $0x118] sm:$0xff]
        %v527 = vld [vmem:[#allocation2 + $0x120] sm:$0xff]
        %v528 = vld [vmem:[#allocation2 + $0x128] sm:$0xff]
        %v529 = vld [vmem:[#allocation2 + $0x130] sm:$0xff]
        %v530 = vld [vmem:[#allocation2 + $0x138] sm:$0xff]
        %v531 = vld [vmem:[#allocation2 + $0x140] sm:$0xff]
        %v532 = vld [vmem:[#allocation2 + $0x148] sm:$0xff]
        %v533 = vld [vmem:[#allocation2 + $0x150] sm:$0xff]
        %v534 = vld [vmem:[#allocation2 + $0x158] sm:$0xff]
        %v535 = vld [vmem:[#allocation2 + $0x160] sm:$0xff]
        %v536 = vld [vmem:[#allocation2 + $0x168] sm:$0xff]
        %v537 = vld [vmem:[#allocation2 + $0x170] sm:$0xff]
        %v538 = vld [vmem:[#allocation2 + $0x178] sm:$0xff]
        %v539 = vld [vmem:[#allocation2 + $0x180] sm:$0xff]
        %v540 = vld [vmem:[#allocation2 + $0x188] sm:$0xff]
        %v541 = vld [vmem:[#allocation2 + $0x190] sm:$0xff]
        %v542 = vld [vmem:[#allocation2 + $0x198] sm:$0xff]
        %v543 = vld [vmem:[#allocation2 + $0x1a0] sm:$0xff]
        %v544 = vld [vmem:[#allocation2 + $0x1a8] sm:$0xff]
        %v545 = vld [vmem:[#allocation2 + $0x1b0] sm:$0xff]
        %v546 = vld [vmem:[#allocation2 + $0x1b8] sm:$0xff]
        %v547 = vld [vmem:[#allocation2 + $0x1c0] sm:$0xff]
        %v548 = vld [vmem:[#allocation2 + $0x1c8] sm:$0xff]
        %v549 = vld [vmem:[#allocation2 + $0x1d0] sm:$0xff]
        %v550 = vld [vmem:[#allocation2 + $0x1d8] sm:$0xff]
        %v551 = vld [vmem:[#allocation2 + $0x1e0] sm:$0xff]
        %v552 = vld [vmem:[#allocation2 + $0x1e8] sm:$0xff]
        %v553 = vld [vmem:[#allocation2 + $0x1f0] sm:$0xff]
        %v554 = vld [vmem:[#allocation2 + $0x1f8] sm:$0xff]
        %v555 = vld [vmem:[#allocation2 + $0x200] sm:$0xff]
        %v556 = vld [vmem:[#allocation2 + $0x208] sm:$0xff]
        %v557 = vld [vmem:[#allocation2 + $0x210] sm:$0xff]
        %v558 = vld [vmem:[#allocation2 + $0x218] sm:$0xff]
        %v559 = vld [vmem:[#allocation2 + $0x220] sm:$0xff]
        %v560 = vld [vmem:[#allocation2 + $0x228] sm:$0xff]
        %v561 = vld [vmem:[#allocation2 + $0x230] sm:$0xff]
        %v562 = vld [vmem:[#allocation2 + $0x238] sm:$0xff]
        %v563 = vld [vmem:[#allocation2 + $0x240] sm:$0xff]
        %v564 = vld [vmem:[#allocation2 + $0x248] sm:$0xff]
        %v565 = vld [vmem:[#allocation2 + $0x250] sm:$0xff]
        %v566 = vld [vmem:[#allocation2 + $0x258] sm:$0xff]
        %v567 = vld [vmem:[#allocation2 + $0x260] sm:$0xff]
        %v568 = vld [vmem:[#allocation2 + $0x268] sm:$0xff]
        %v569 = vld [vmem:[#allocation2 + $0x270] sm:$0xff]
        %v570 = vld [vmem:[#allocation2 + $0x278] sm:$0xff]
        %v571 = vld [vmem:[#allocation2 + $0x280] sm:$0xff]
        %v572 = vld [vmem:[#allocation2 + $0x288] sm:$0xff]
        %v573 = vld [vmem:[#allocation2 + $0x290] sm:$0xff]
        %v574 = vld [vmem:[#allocation2 + $0x298] sm:$0xff]
        %v575 = vld [vmem:[#allocation2 + $0x2a0] sm:$0xff]
        %v576 = vld [vmem:[#allocation2 + $0x2a8] sm:$0xff]
        %v577 = vld [vmem:[#allocation2 + $0x2b0] sm:$0xff]
        %v578 = vld [vmem:[#allocation2 + $0x2b8] sm:$0xff]
        %v579 = vld [vmem:[#allocation2 + $0x2c0] sm:$0xff]
        %v580 = vld [vmem:[#allocation2 + $0x2c8] sm:$0xff]
        %v581 = vld [vmem:[#allocation2 + $0x2d0] sm:$0xff]
        %v582 = vld [vmem:[#allocation2 + $0x2d8] sm:$0xff]
        %v583 = vld [vmem:[#allocation2 + $0x2e0] sm:$0xff]
        %v584 = vld [vmem:[#allocation2 + $0x2e8] sm:$0xff]
        %v585 = vld [vmem:[#allocation2 + $0x2f0] sm:$0xff]
        %v586 = vld [vmem:[#allocation2 + $0x2f8] sm:$0xff]
        %v587 = vld [vmem:[#allocation2 + $0x300] sm:$0xff]
        %v588 = vld [vmem:[#allocation2 + $0x308] sm:$0xff]
        %v589 = vld [vmem:[#allocation2 + $0x310] sm:$0xff]
        %v590 = vld [vmem:[#allocation2 + $0x318] sm:$0xff]
        %v591 = vld [vmem:[#allocation2 + $0x320] sm:$0xff]
        %v592 = vld [vmem:[#allocation2 + $0x328] sm:$0xff]
        %v593 = vld [vmem:[#allocation2 + $0x330] sm:$0xff]
        %v594 = vld [vmem:[#allocation2 + $0x338] sm:$0xff]
        %v595 = vld [vmem:[#allocation2 + $0x340] sm:$0xff]
        %v596 = vld [vmem:[#allocation2 + $0x348] sm:$0xff]
        %v597 = vld [vmem:[#allocation2 + $0x350] sm:$0xff]
        %v598 = vld [vmem:[#allocation2 + $0x358] sm:$0xff]
        %v599 = vld [vmem:[#allocation2 + $0x360] sm:$0xff]
        %v600 = vld [vmem:[#allocation2 + $0x368] sm:$0xff]
        %v601 = vld [vmem:[#allocation2 + $0x370] sm:$0xff]
        %v602 = vld [vmem:[#allocation2 + $0x378] sm:$0xff]
        %v603 = vld [vmem:[#allocation2 + $0x380] sm:$0xff]
        %v604 = vld [vmem:[#allocation2 + $0x388] sm:$0xff]
        %v605 = vld [vmem:[#allocation2 + $0x390] sm:$0xff]
        %v606 = vld [vmem:[#allocation2 + $0x398] sm:$0xff]
        %v607 = vld [vmem:[#allocation2 + $0x3a0] sm:$0xff]
        %v608 = vld [vmem:[#allocation2 + $0x3a8] sm:$0xff]
        %v609 = vld [vmem:[#allocation2 + $0x3b0] sm:$0xff]
        %v610 = vld [vmem:[#allocation2 + $0x3b8] sm:$0xff]
        %v611 = vld [vmem:[#allocation2 + $0x3c0] sm:$0xff]
        %v612 = vld [vmem:[#allocation2 + $0x3c8] sm:$0xff]
        %v613 = vld [vmem:[#allocation2 + $0x3d0] sm:$0xff]
        %v614 = vld [vmem:[#allocation2 + $0x3d8] sm:$0xff]
        %v615 = vld [vmem:[#allocation2 + $0x3e0] sm:$0xff]
        %v616 = vld [vmem:[#allocation2 + $0x3e8] sm:$0xff]
        %v617 = vld [vmem:[#allocation2 + $0x3f0] sm:$0xff]
        %v618 = vld [vmem:[#allocation2 + $0x3f8] sm:$0xff]
        %v619 = vld [vmem:[#allocation2 + $0x400] sm:$0xff]
        %v620 = vld [vmem:[#allocation2 + $0x408] sm:$0xff]
        %v621 = vld [vmem:[#allocation2 + $0x410] sm:$0xff]
        %v622 = vld [vmem:[#allocation2 + $0x418] sm:$0xff]
        %v623 = vld [vmem:[#allocation2 + $0x420] sm:$0xff]
        %v624 = vld [vmem:[#allocation2 + $0x428] sm:$0xff]
        %v625 = vld [vmem:[#allocation2 + $0x430] sm:$0xff]
        %v626 = vld [vmem:[#allocation2 + $0x438] sm:$0xff]
        %v627 = vld [vmem:[#allocation2 + $0x440] sm:$0xff]
        %v628 = vld [vmem:[#allocation2 + $0x448] sm:$0xff]
        %v629 = vld [vmem:[#allocation2 + $0x450] sm:$0xff]
        %v630 = vld [vmem:[#allocation2 + $0x458] sm:$0xff]
        %v631 = vld [vmem:[#allocation2 + $0x460] sm:$0xff]
        %v632 = vld [vmem:[#allocation2 + $0x468] sm:$0xff]
        %v633 = vld [vmem:[#allocation2 + $0x470] sm:$0xff]
        %v634 = vld [vmem:[#allocation2 + $0x478] sm:$0xff]
        %v635 = vld [vmem:[#allocation2 + $0x480] sm:$0xff]
        %v636 = vld [vmem:[#allocation2 + $0x488] sm:$0xff]
        %v637 = vld [vmem:[#allocation2 + $0x490] sm:$0xff]
        %v638 = vld [vmem:[#allocation2 + $0x498] sm:$0xff]
        %v639 = vld [vmem:[#allocation2 + $0x4a0] sm:$0xff]
        %v640 = vld [vmem:[#allocation2 + $0x4a8] sm:$0xff]
        %v641 = vld [vmem:[#allocation2 + $0x4b0] sm:$0xff]
        %v642 = vld [vmem:[#allocation2 + $0x4b8] sm:$0xff]
        %v643 = vld [vmem:[#allocation2 + $0x4c0] sm:$0xff]
        %v644 = vld [vmem:[#allocation2 + $0x4c8] sm:$0xff]
        %v645 = vld [vmem:[#allocation2 + $0x4d0] sm:$0xff]
        %v646 = vld [vmem:[#allocation2 + $0x4d8] sm:$0xff]
        %v647 = vld [vmem:[#allocation2 + $0x4e0] sm:$0xff]
        %v648 = vld [vmem:[#allocation2 + $0x4e8] sm:$0xff]
        %v649 = vld [vmem:[#allocation2 + $0x4f0] sm:$0xff]
        %v650 = vld [vmem:[#allocation2 + $0x4f8] sm:$0xff]
        %v651 = vld [vmem:[#allocation2 + $0x500] sm:$0xff]
        %v652 = vld [vmem:[#allocation2 + $0x508] sm:$0xff]
        %v653 = vld [vmem:[#allocation2 + $0x510] sm:$0xff]
        %v654 = vld [vmem:[#allocation2 + $0x518] sm:$0xff]
        %v655 = vld [vmem:[#allocation2 + $0x520] sm:$0xff]
        %v656 = vld [vmem:[#allocation2 + $0x528] sm:$0xff]
        %v657 = vld [vmem:[#allocation2 + $0x530] sm:$0xff]
        %v658 = vld [vmem:[#allocation2 + $0x538] sm:$0xff]
        %v659 = vld [vmem:[#allocation2 + $0x540] sm:$0xff]
        %v660 = vld [vmem:[#allocation2 + $0x548] sm:$0xff]
        %v661 = vld [vmem:[#allocation2 + $0x550] sm:$0xff]
        %v662 = vld [vmem:[#allocation2 + $0x558] sm:$0xff]
        %v663 = vld [vmem:[#allocation2 + $0x560] sm:$0xff]
        %v664 = vld [vmem:[#allocation2 + $0x568] sm:$0xff]
        %v665 = vld [vmem:[#allocation2 + $0x570] sm:$0xff]
        %v666 = vld [vmem:[#allocation2 + $0x578] sm:$0xff]
        %v667 = vld [vmem:[#allocation2 + $0x580] sm:$0xff]
        %v668 = vld [vmem:[#allocation2 + $0x588] sm:$0xff]
        %v669 = vld [vmem:[#allocation2 + $0x590] sm:$0xff]
        %v670 = vld [vmem:[#allocation2 + $0x598] sm:$0xff]
        %v671 = vld [vmem:[#allocation2 + $0x5a0] sm:$0xff]
        %v672 = vld [vmem:[#allocation2 + $0x5a8] sm:$0xff]
        %v673 = vld [vmem:[#allocation2 + $0x5b0] sm:$0xff]
        %v674 = vld [vmem:[#allocation2 + $0x5b8] sm:$0xff]
        %v675 = vld [vmem:[#allocation2 + $0x5c0] sm:$0xff]
        %v676 = vld [vmem:[#allocation2 + $0x5c8] sm:$0xff]
        %v677 = vld [vmem:[#allocation2 + $0x5d0] sm:$0xff]
        %v678 = vld [vmem:[#allocation2 + $0x5d8] sm:$0xff]
        %v679 = vld [vmem:[#allocation2 + $0x5e0] sm:$0xff]
        %v680 = vld [vmem:[#allocation2 + $0x5e8] sm:$0xff]
        %v681 = vld [vmem:[#allocation2 + $0x5f0] sm:$0xff]
        %v682 = vld [vmem:[#allocation2 + $0x5f8] sm:$0xff]
        %v683 = vld [vmem:[#allocation2 + $0x600] sm:$0xff]
        %v684 = vld [vmem:[#allocation2 + $0x608] sm:$0xff]
        %v685 = vld [vmem:[#allocation2 + $0x610] sm:$0xff]
        %v686 = vld [vmem:[#allocation2 + $0x618] sm:$0xff]
        %v687 = vld [vmem:[#allocation2 + $0x620] sm:$0xff]
        %v688 = vld [vmem:[#allocation2 + $0x628] sm:$0xff]
        %v689 = vld [vmem:[#allocation2 + $0x630] sm:$0xff]
        %v690 = vld [vmem:[#allocation2 + $0x638] sm:$0xff]
        %v691 = vld [vmem:[#allocation2 + $0x640] sm:$0xff]
        %v692 = vld [vmem:[#allocation2 + $0x648] sm:$0xff]
        %v693 = vld [vmem:[#allocation2 + $0x650] sm:$0xff]
        %v694 = vld [vmem:[#allocation2 + $0x658] sm:$0xff]
        %v695 = vld [vmem:[#allocation2 + $0x660] sm:$0xff]
        %v696 = vld [vmem:[#allocation2 + $0x668] sm:$0xff]
        %v697 = vld [vmem:[#allocation2 + $0x670] sm:$0xff]
        %v698 = vld [vmem:[#allocation2 + $0x678] sm:$0xff]
        %v699 = vld [vmem:[#allocation2 + $0x680] sm:$0xff]
        %v700 = vld [vmem:[#allocation2 + $0x688] sm:$0xff]
        %v701 = vld [vmem:[#allocation2 + $0x690] sm:$0xff]
        %v702 = vld [vmem:[#allocation2 + $0x698] sm:$0xff]
        %v703 = vld [vmem:[#allocation2 + $0x6a0] sm:$0xff]
        %v704 = vld [vmem:[#allocation2 + $0x6a8] sm:$0xff]
        %v705 = vld [vmem:[#allocation2 + $0x6b0] sm:$0xff]
        %v706 = vld [vmem:[#allocation2 + $0x6b8] sm:$0xff]
        %v707 = vld [vmem:[#allocation2 + $0x6c0] sm:$0xff]
        %v708 = vld [vmem:[#allocation2 + $0x6c8] sm:$0xff]
        %v709 = vld [vmem:[#allocation2 + $0x6d0] sm:$0xff]
        %v710 = vld [vmem:[#allocation2 + $0x6d8] sm:$0xff]
        %v711 = vld [vmem:[#allocation2 + $0x6e0] sm:$0xff]
        %v712 = vld [vmem:[#allocation2 + $0x6e8] sm:$0xff]
        %v713 = vld [vmem:[#allocation2 + $0x6f0] sm:$0xff]
        %v714 = vld [vmem:[#allocation2 + $0x6f8] sm:$0xff]
        %v715 = vld [vmem:[#allocation2 + $0x700] sm:$0xff]
        %v716 = vld [vmem:[#allocation2 + $0x708] sm:$0xff]
        %v717 = vld [vmem:[#allocation2 + $0x710] sm:$0xff]
        %v718 = vld [vmem:[#allocation2 + $0x718] sm:$0xff]
        %v719 = vld [vmem:[#allocation2 + $0x720] sm:$0xff]
        %v720 = vld [vmem:[#allocation2 + $0x728] sm:$0xff]
        %v721 = vld [vmem:[#allocation2 + $0x730] sm:$0xff]
        %v722 = vld [vmem:[#allocation2 + $0x738] sm:$0xff]
        %v723 = vld [vmem:[#allocation2 + $0x740] sm:$0xff]
        %v724 = vld [vmem:[#allocation2 + $0x748] sm:$0xff]
        %v725 = vld [vmem:[#allocation2 + $0x750] sm:$0xff]
        %v726 = vld [vmem:[#allocation2 + $0x758] sm:$0xff]
        %v727 = vld [vmem:[#allocation2 + $0x760] sm:$0xff]
        %v728 = vld [vmem:[#allocation2 + $0x768] sm:$0xff]
        %v729 = vld [vmem:[#allocation2 + $0x770] sm:$0xff]
        %v730 = vld [vmem:[#allocation2 + $0x778] sm:$0xff]
        %v731 = vld [vmem:[#allocation2 + $0x780] sm:$0xff]
        %v732 = vld [vmem:[#allocation2 + $0x788] sm:$0xff]
        %v733 = vld [vmem:[#allocation2 + $0x790] sm:$0xff]
        %v734 = vld [vmem:[#allocation2 + $0x798] sm:$0xff]
        %v735 = vld [vmem:[#allocation2 + $0x7a0] sm:$0xff]
        %v736 = vld [vmem:[#allocation2 + $0x7a8] sm:$0xff]
        %v737 = vld [vmem:[#allocation2 + $0x7b0] sm:$0xff]
        %v738 = vld [vmem:[#allocation2 + $0x7b8] sm:$0xff]
        %v739 = vld [vmem:[#allocation2 + $0x7c0] sm:$0xff]
        %v740 = vld [vmem:[#allocation2 + $0x7c8] sm:$0xff]
        %v741 = vld [vmem:[#allocation2 + $0x7d0] sm:$0xff]
        %v742 = vld [vmem:[#allocation2 + $0x7d8] sm:$0xff]
        %v743 = vld [vmem:[#allocation2 + $0x7e0] sm:$0xff]
        %v744 = vld [vmem:[#allocation2 + $0x7e8] sm:$0xff]
        %v745 = vld [vmem:[#allocation2 + $0x7f0] sm:$0xff]
        %v746 = vld [vmem:[#allocation2 + $0x7f8] sm:$0xff]
        %v747 = vld [vmem:[%s200] sm:$0xf]
        %v748 = vld [vmem:[%s200 + $0x4] sm:$0xf]
        %v749 = vld [vmem:[%s200 + $0x8] sm:$0xf]
        %v750 = vld [vmem:[%s200 + $0xc] sm:$0xf]
        %v751 = vld [vmem:[%s200 + $0x10] sm:$0xf]
        %v752 = vld [vmem:[%s200 + $0x14] sm:$0xf]
        %v753 = vld [vmem:[%s200 + $0x18] sm:$0xf]
        %v754 = vld [vmem:[%s200 + $0x1c] sm:$0xf]
        %v755 = vld [vmem:[%s200 + $0x20] sm:$0xf]
        %v756 = vld [vmem:[%s200 + $0x24] sm:$0xf]
        %v757 = vld [vmem:[%s200 + $0x28] sm:$0xf]
        %v758 = vld [vmem:[%s200 + $0x2c] sm:$0xf]
        %v759 = vld [vmem:[%s200 + $0x30] sm:$0xf]
        %v760 = vld [vmem:[%s200 + $0x34] sm:$0xf]
        %v761 = vld [vmem:[%s200 + $0x38] sm:$0xf]
        %v762 = vld [vmem:[%s200 + $0x3c] sm:$0xf]
        %v763 = vld [vmem:[%s200 + $0x40] sm:$0xf]
        %v764 = vld [vmem:[%s200 + $0x44] sm:$0xf]
        %v765 = vld [vmem:[%s200 + $0x48] sm:$0xf]
        %v766 = vld [vmem:[%s200 + $0x4c] sm:$0xf]
        %v767 = vld [vmem:[%s200 + $0x50] sm:$0xf]
        %v768 = vld [vmem:[%s200 + $0x54] sm:$0xf]
        %v769 = vld [vmem:[%s200 + $0x58] sm:$0xf]
        %v770 = vld [vmem:[%s200 + $0x5c] sm:$0xf]
        %v771 = vld [vmem:[%s200 + $0x60] sm:$0xf]
        %v772 = vld [vmem:[%s200 + $0x64] sm:$0xf]
        %v773 = vld [vmem:[%s200 + $0x68] sm:$0xf]
        %v774 = vld [vmem:[%s200 + $0x6c] sm:$0xf]
        %v775 = vld [vmem:[%s200 + $0x70] sm:$0xf]
        %v776 = vld [vmem:[%s200 + $0x74] sm:$0xf]
        %v777 = vld [vmem:[%s200 + $0x78] sm:$0xf]
        %v778 = vld [vmem:[%s200 + $0x7c] sm:$0xf]
        %v779 = vld [vmem:[%s200 + $0x80] sm:$0xf]
        %v780 = vld [vmem:[%s200 + $0x84] sm:$0xf]
        %v781 = vld [vmem:[%s200 + $0x88] sm:$0xf]
        %v782 = vld [vmem:[%s200 + $0x8c] sm:$0xf]
        %v783 = vld [vmem:[%s200 + $0x90] sm:$0xf]
        %v784 = vld [vmem:[%s200 + $0x94] sm:$0xf]
        %v785 = vld [vmem:[%s200 + $0x98] sm:$0xf]
        %v786 = vld [vmem:[%s200 + $0x9c] sm:$0xf]
        %v787 = vld [vmem:[%s200 + $0xa0] sm:$0xf]
        %v788 = vld [vmem:[%s200 + $0xa4] sm:$0xf]
        %v789 = vld [vmem:[%s200 + $0xa8] sm:$0xf]
        %v790 = vld [vmem:[%s200 + $0xac] sm:$0xf]
        %v791 = vld [vmem:[%s200 + $0xb0] sm:$0xf]
        %v792 = vld [vmem:[%s200 + $0xb4] sm:$0xf]
        %v793 = vld [vmem:[%s200 + $0xb8] sm:$0xf]
        %v794 = vld [vmem:[%s200 + $0xbc] sm:$0xf]
        %v795 = vld [vmem:[%s200 + $0xc0] sm:$0xf]
        %v796 = vld [vmem:[%s200 + $0xc4] sm:$0xf]
        %v797 = vld [vmem:[%s200 + $0xc8] sm:$0xf]
        %v798 = vld [vmem:[%s200 + $0xcc] sm:$0xf]
        %v799 = vld [vmem:[%s200 + $0xd0] sm:$0xf]
        %v800 = vld [vmem:[%s200 + $0xd4] sm:$0xf]
        %v801 = vld [vmem:[%s200 + $0xd8] sm:$0xf]
        %v802 = vld [vmem:[%s200 + $0xdc] sm:$0xf]
        %v803 = vld [vmem:[%s200 + $0xe0] sm:$0xf]
        %v804 = vld [vmem:[%s200 + $0xe4] sm:$0xf]
        %v805 = vld [vmem:[%s200 + $0xe8] sm:$0xf]
        %v806 = vld [vmem:[%s200 + $0xec] sm:$0xf]
        %v807 = vld [vmem:[%s200 + $0xf0] sm:$0xf]
        %v808 = vld [vmem:[%s200 + $0xf4] sm:$0xf]
        %v809 = vld [vmem:[%s200 + $0xf8] sm:$0xf]
        %v810 = vld [vmem:[%s200 + $0xfc] sm:$0xf]
        %v811 = vld [vmem:[%s200 + $0x100] sm:$0xf]
        %v812 = vld [vmem:[%s200 + $0x104] sm:$0xf]
        %v813 = vld [vmem:[%s200 + $0x108] sm:$0xf]
        %v814 = vld [vmem:[%s200 + $0x10c] sm:$0xf]
        %v815 = vld [vmem:[%s200 + $0x110] sm:$0xf]
        %v816 = vld [vmem:[%s200 + $0x114] sm:$0xf]
        %v817 = vld [vmem:[%s200 + $0x118] sm:$0xf]
        %v818 = vld [vmem:[%s200 + $0x11c] sm:$0xf]
        %v819 = vld [vmem:[%s200 + $0x120] sm:$0xf]
        %v820 = vld [vmem:[%s200 + $0x124] sm:$0xf]
        %v821 = vld [vmem:[%s200 + $0x128] sm:$0xf]
        %v822 = vld [vmem:[%s200 + $0x12c] sm:$0xf]
        %v823 = vld [vmem:[%s200 + $0x130] sm:$0xf]
        %v824 = vld [vmem:[%s200 + $0x134] sm:$0xf]
        %v825 = vld [vmem:[%s200 + $0x138] sm:$0xf]
        %v826 = vld [vmem:[%s200 + $0x13c] sm:$0xf]
        %v827 = vld [vmem:[%s200 + $0x140] sm:$0xf]
        %v828 = vld [vmem:[%s200 + $0x144] sm:$0xf]
        %v829 = vld [vmem:[%s200 + $0x148] sm:$0xf]
        %v830 = vld [vmem:[%s200 + $0x14c] sm:$0xf]
        %v831 = vld [vmem:[%s200 + $0x150] sm:$0xf]
        %v832 = vld [vmem:[%s200 + $0x154] sm:$0xf]
        %v833 = vld [vmem:[%s200 + $0x158] sm:$0xf]
        %v834 = vld [vmem:[%s200 + $0x15c] sm:$0xf]
        %v835 = vld [vmem:[%s200 + $0x160] sm:$0xf]
        %v836 = vld [vmem:[%s200 + $0x164] sm:$0xf]
        %v837 = vld [vmem:[%s200 + $0x168] sm:$0xf]
        %v838 = vld [vmem:[%s200 + $0x16c] sm:$0xf]
        %v839 = vld [vmem:[%s200 + $0x170] sm:$0xf]
        %v840 = vld [vmem:[%s200 + $0x174] sm:$0xf]
        %v841 = vld [vmem:[%s200 + $0x178] sm:$0xf]
        %v842 = vld [vmem:[%s200 + $0x17c] sm:$0xf]
        %v843 = vld [vmem:[%s200 + $0x180] sm:$0xf]
        %v844 = vld [vmem:[%s200 + $0x184] sm:$0xf]
        %v845 = vld [vmem:[%s200 + $0x188] sm:$0xf]
        %v846 = vld [vmem:[%s200 + $0x18c] sm:$0xf]
        %v847 = vld [vmem:[%s200 + $0x190] sm:$0xf]
        %v848 = vld [vmem:[%s200 + $0x194] sm:$0xf]
        %v849 = vld [vmem:[%s200 + $0x198] sm:$0xf]
        %v850 = vld [vmem:[%s200 + $0x19c] sm:$0xf]
        %v851 = vld [vmem:[%s200 + $0x1a0] sm:$0xf]
        %v852 = vld [vmem:[%s200 + $0x1a4] sm:$0xf]
        %v853 = vld [vmem:[%s200 + $0x1a8] sm:$0xf]
        %v854 = vld [vmem:[%s200 + $0x1ac] sm:$0xf]
        %v855 = vld [vmem:[%s200 + $0x1b0] sm:$0xf]
        %v856 = vld [vmem:[%s200 + $0x1b4] sm:$0xf]
        %v857 = vld [vmem:[%s200 + $0x1b8] sm:$0xf]
        %v858 = vld [vmem:[%s200 + $0x1bc] sm:$0xf]
        %v859 = vld [vmem:[%s200 + $0x1c0] sm:$0xf]
        %v860 = vld [vmem:[%s200 + $0x1c4] sm:$0xf]
        %v861 = vld [vmem:[%s200 + $0x1c8] sm:$0xf]
        %v862 = vld [vmem:[%s200 + $0x1cc] sm:$0xf]
        %v863 = vld [vmem:[%s200 + $0x1d0] sm:$0xf]
        %v864 = vld [vmem:[%s200 + $0x1d4] sm:$0xf]
        %v865 = vld [vmem:[%s200 + $0x1d8] sm:$0xf]
        %v866 = vld [vmem:[%s200 + $0x1dc] sm:$0xf]
        %v867 = vld [vmem:[%s200 + $0x1e0] sm:$0xf]
        %v868 = vld [vmem:[%s200 + $0x1e4] sm:$0xf]
        %v869 = vld [vmem:[%s200 + $0x1e8] sm:$0xf]
        %v870 = vld [vmem:[%s200 + $0x1ec] sm:$0xf]
        %v871 = vld [vmem:[%s200 + $0x1f0] sm:$0xf]
        %v872 = vld [vmem:[%s200 + $0x1f4] sm:$0xf]
        %v873 = vld [vmem:[%s200 + $0x1f8] sm:$0xf]
        %v874 = vld [vmem:[%s200 + $0x1fc] sm:$0xf]
        %v875 = vld [vmem:[%s200 + $0x200] sm:$0xf]
        %v876 = vld [vmem:[%s200 + $0x204] sm:$0xf]
        %v877 = vld [vmem:[%s200 + $0x208] sm:$0xf]
        %v878 = vld [vmem:[%s200 + $0x20c] sm:$0xf]
        %v879 = vld [vmem:[%s200 + $0x210] sm:$0xf]
        %v880 = vld [vmem:[%s200 + $0x214] sm:$0xf]
        %v881 = vld [vmem:[%s200 + $0x218] sm:$0xf]
        %v882 = vld [vmem:[%s200 + $0x21c] sm:$0xf]
        %v883 = vld [vmem:[%s200 + $0x220] sm:$0xf]
        %v884 = vld [vmem:[%s200 + $0x224] sm:$0xf]
        %v885 = vld [vmem:[%s200 + $0x228] sm:$0xf]
        %v886 = vld [vmem:[%s200 + $0x22c] sm:$0xf]
        %v887 = vld [vmem:[%s200 + $0x230] sm:$0xf]
        %v888 = vld [vmem:[%s200 + $0x234] sm:$0xf]
        %v889 = vld [vmem:[%s200 + $0x238] sm:$0xf]
        %v890 = vld [vmem:[%s200 + $0x23c] sm:$0xf]
        %v891 = vld [vmem:[%s200 + $0x240] sm:$0xf]
        %v892 = vld [vmem:[%s200 + $0x244] sm:$0xf]
        %v893 = vld [vmem:[%s200 + $0x248] sm:$0xf]
        %v894 = vld [vmem:[%s200 + $0x24c] sm:$0xf]
        %v895 = vld [vmem:[%s200 + $0x250] sm:$0xf]
        %v896 = vld [vmem:[%s200 + $0x254] sm:$0xf]
        %v897 = vld [vmem:[%s200 + $0x258] sm:$0xf]
        %v898 = vld [vmem:[%s200 + $0x25c] sm:$0xf]
        %v899 = vld [vmem:[%s200 + $0x260] sm:$0xf]
        %v900 = vld [vmem:[%s200 + $0x264] sm:$0xf]
        %v901 = vld [vmem:[%s200 + $0x268] sm:$0xf]
        %v902 = vld [vmem:[%s200 + $0x26c] sm:$0xf]
        %v903 = vld [vmem:[%s200 + $0x270] sm:$0xf]
        %v904 = vld [vmem:[%s200 + $0x274] sm:$0xf]
        %v905 = vld [vmem:[%s200 + $0x278] sm:$0xf]
        %v906 = vld [vmem:[%s200 + $0x27c] sm:$0xf]
        %v907 = vld [vmem:[%s200 + $0x280] sm:$0xf]
        %v908 = vld [vmem:[%s200 + $0x284] sm:$0xf]
        %v909 = vld [vmem:[%s200 + $0x288] sm:$0xf]
        %v910 = vld [vmem:[%s200 + $0x28c] sm:$0xf]
        %v911 = vld [vmem:[%s200 + $0x290] sm:$0xf]
        %v912 = vld [vmem:[%s200 + $0x294] sm:$0xf]
        %v913 = vld [vmem:[%s200 + $0x298] sm:$0xf]
        %v914 = vld [vmem:[%s200 + $0x29c] sm:$0xf]
        %v915 = vld [vmem:[%s200 + $0x2a0] sm:$0xf]
        %v916 = vld [vmem:[%s200 + $0x2a4] sm:$0xf]
        %v917 = vld [vmem:[%s200 + $0x2a8] sm:$0xf]
        %v918 = vld [vmem:[%s200 + $0x2ac] sm:$0xf]
        %v919 = vld [vmem:[%s200 + $0x2b0] sm:$0xf]
        %v920 = vld [vmem:[%s200 + $0x2b4] sm:$0xf]
        %v921 = vld [vmem:[%s200 + $0x2b8] sm:$0xf]
        %v922 = vld [vmem:[%s200 + $0x2bc] sm:$0xf]
        %v923 = vld [vmem:[%s200 + $0x2c0] sm:$0xf]
        %v924 = vld [vmem:[%s200 + $0x2c4] sm:$0xf]
        %v925 = vld [vmem:[%s200 + $0x2c8] sm:$0xf]
        %v926 = vld [vmem:[%s200 + $0x2cc] sm:$0xf]
        %v927 = vld [vmem:[%s200 + $0x2d0] sm:$0xf]
        %v928 = vld [vmem:[%s200 + $0x2d4] sm:$0xf]
        %v929 = vld [vmem:[%s200 + $0x2d8] sm:$0xf]
        %v930 = vld [vmem:[%s200 + $0x2dc] sm:$0xf]
        %v931 = vld [vmem:[%s200 + $0x2e0] sm:$0xf]
        %v932 = vld [vmem:[%s200 + $0x2e4] sm:$0xf]
        %v933 = vld [vmem:[%s200 + $0x2e8] sm:$0xf]
        %v934 = vld [vmem:[%s200 + $0x2ec] sm:$0xf]
        %v935 = vld [vmem:[%s200 + $0x2f0] sm:$0xf]
        %v936 = vld [vmem:[%s200 + $0x2f4] sm:$0xf]
        %v937 = vld [vmem:[%s200 + $0x2f8] sm:$0xf]
        %v938 = vld [vmem:[%s200 + $0x2fc] sm:$0xf]
        %v939 = vld [vmem:[%s200 + $0x300] sm:$0xf]
        %v940 = vld [vmem:[%s200 + $0x304] sm:$0xf]
        %v941 = vld [vmem:[%s200 + $0x308] sm:$0xf]
        %v942 = vld [vmem:[%s200 + $0x30c] sm:$0xf]
        %v943 = vld [vmem:[%s200 + $0x310] sm:$0xf]
        %v944 = vld [vmem:[%s200 + $0x314] sm:$0xf]
        %v945 = vld [vmem:[%s200 + $0x318] sm:$0xf]
        %v946 = vld [vmem:[%s200 + $0x31c] sm:$0xf]
        %v947 = vld [vmem:[%s200 + $0x320] sm:$0xf]
        %v948 = vld [vmem:[%s200 + $0x324] sm:$0xf]
        %v949 = vld [vmem:[%s200 + $0x328] sm:$0xf]
        %v950 = vld [vmem:[%s200 + $0x32c] sm:$0xf]
        %v951 = vld [vmem:[%s200 + $0x330] sm:$0xf]
        %v952 = vld [vmem:[%s200 + $0x334] sm:$0xf]
        %v953 = vld [vmem:[%s200 + $0x338] sm:$0xf]
        %v954 = vld [vmem:[%s200 + $0x33c] sm:$0xf]
        %v955 = vld [vmem:[%s200 + $0x340] sm:$0xf]
        %v956 = vld [vmem:[%s200 + $0x344] sm:$0xf]
        %v957 = vld [vmem:[%s200 + $0x348] sm:$0xf]
        %v958 = vld [vmem:[%s200 + $0x34c] sm:$0xf]
        %v959 = vld [vmem:[%s200 + $0x350] sm:$0xf]
        %v960 = vld [vmem:[%s200 + $0x354] sm:$0xf]
        %v961 = vld [vmem:[%s200 + $0x358] sm:$0xf]
        %v962 = vld [vmem:[%s200 + $0x35c] sm:$0xf]
        %v963 = vld [vmem:[%s200 + $0x360] sm:$0xf]
        %v964 = vld [vmem:[%s200 + $0x364] sm:$0xf]
        %v965 = vld [vmem:[%s200 + $0x368] sm:$0xf]
        %v966 = vld [vmem:[%s200 + $0x36c] sm:$0xf]
        %v967 = vld [vmem:[%s200 + $0x370] sm:$0xf]
        %v968 = vld [vmem:[%s200 + $0x374] sm:$0xf]
        %v969 = vld [vmem:[%s200 + $0x378] sm:$0xf]
        %v970 = vld [vmem:[%s200 + $0x37c] sm:$0xf]
        %v971 = vld [vmem:[%s200 + $0x380] sm:$0xf]
        %v972 = vld [vmem:[%s200 + $0x384] sm:$0xf]
        %v973 = vld [vmem:[%s200 + $0x388] sm:$0xf]
        %v974 = vld [vmem:[%s200 + $0x38c] sm:$0xf]
        %v975 = vld [vmem:[%s200 + $0x390] sm:$0xf]
        %v976 = vld [vmem:[%s200 + $0x394] sm:$0xf]
        %v977 = vld [vmem:[%s200 + $0x398] sm:$0xf]
        %v978 = vld [vmem:[%s200 + $0x39c] sm:$0xf]
        %v979 = vld [vmem:[%s200 + $0x3a0] sm:$0xf]
        %v980 = vld [vmem:[%s200 + $0x3a4] sm:$0xf]
        %v981 = vld [vmem:[%s200 + $0x3a8] sm:$0xf]
        %v982 = vld [vmem:[%s200 + $0x3ac] sm:$0xf]
        %v983 = vld [vmem:[%s200 + $0x3b0] sm:$0xf]
        %v984 = vld [vmem:[%s200 + $0x3b4] sm:$0xf]
        %v985 = vld [vmem:[%s200 + $0x3b8] sm:$0xf]
        %v986 = vld [vmem:[%s200 + $0x3bc] sm:$0xf]
        %v987 = vld [vmem:[%s200 + $0x3c0] sm:$0xf]
        %v988 = vld [vmem:[%s200 + $0x3c4] sm:$0xf]
        %v989 = vld [vmem:[%s200 + $0x3c8] sm:$0xf]
        %v990 = vld [vmem:[%s200 + $0x3cc] sm:$0xf]
        %v991 = vld [vmem:[%s200 + $0x3d0] sm:$0xf]
        %v992 = vld [vmem:[%s200 + $0x3d4] sm:$0xf]
        %v993 = vld [vmem:[%s200 + $0x3d8] sm:$0xf]
        %v994 = vld [vmem:[%s200 + $0x3dc] sm:$0xf]
        %v995 = vld [vmem:[%s200 + $0x3e0] sm:$0xf]
        %v996 = vld [vmem:[%s200 + $0x3e4] sm:$0xf]
        %v997 = vld [vmem:[%s200 + $0x3e8] sm:$0xf]
        %v998 = vld [vmem:[%s200 + $0x3ec] sm:$0xf]
        %v999 = vld [vmem:[%s200 + $0x3f0] sm:$0xf]
        %v1000 = vld [vmem:[%s200 + $0x3f4] sm:$0xf]
        %v1001 = vld [vmem:[%s200 + $0x3f8] sm:$0xf]
        %v1002 = vld [vmem:[%s200 + $0x3fc] sm:$0xf]
        %v1003 = vld [vmem:[#allocation6] sm:$0xf]
        %v1004 = vld [vmem:[#allocation6 + $0x4] sm:$0xf]
        %v1005 = vld [vmem:[#allocation6 + $0x8] sm:$0xf]
        %v1006 = vld [vmem:[#allocation6 + $0xc] sm:$0xf]
        %v1007 = vld [vmem:[#allocation6 + $0x10] sm:$0xf]
        %v1008 = vld [vmem:[#allocation6 + $0x14] sm:$0xf]
        %v1009 = vld [vmem:[#allocation6 + $0x18] sm:$0xf]
        %v1010 = vld [vmem:[#allocation6 + $0x1c] sm:$0xf]
        %v1011 = vld [vmem:[#allocation6 + $0x20] sm:$0xf]
        %v1012 = vld [vmem:[#allocation6 + $0x24] sm:$0xf]
        %v1013 = vld [vmem:[#allocation6 + $0x28] sm:$0xf]
        %v1014 = vld [vmem:[#allocation6 + $0x2c] sm:$0xf]
        %v1015 = vld [vmem:[#allocation6 + $0x30] sm:$0xf]
        %v1016 = vld [vmem:[#allocation6 + $0x34] sm:$0xf]
        %v1017 = vld [vmem:[#allocation6 + $0x38] sm:$0xf]
        %v1018 = vld [vmem:[#allocation6 + $0x3c] sm:$0xf]
        %v1275 = vunpack.c.l.b16 %v747
        %v1276 = vunpack.c.l.b16 %v748
        %v1277 = vunpack.c.l.b16 %v749
        %v1278 = vunpack.c.l.b16 %v750
        %v1279 = vunpack.c.l.b16 %v751
        %v1280 = vunpack.c.l.b16 %v752
        %v1281 = vunpack.c.l.b16 %v753
        %v1282 = vunpack.c.l.b16 %v754
        %v1283 = vunpack.c.l.b16 %v755
        %v1284 = vunpack.c.l.b16 %v756
        %v1285 = vunpack.c.l.b16 %v757
        %v1286 = vunpack.c.l.b16 %v758
        %v1287 = vunpack.c.l.b16 %v759
        %v1288 = vunpack.c.l.b16 %v760
        %v1289 = vunpack.c.l.b16 %v761
        %v1290 = vunpack.c.l.b16 %v762
        %v1291 = vunpack.c.l.b16 %v763
        %v1292 = vunpack.c.l.b16 %v764
        %v1293 = vunpack.c.l.b16 %v765
        %v1294 = vunpack.c.l.b16 %v766
        %v1295 = vunpack.c.l.b16 %v767
        %v1296 = vunpack.c.l.b16 %v768
        %v1297 = vunpack.c.l.b16 %v769
        %v1298 = vunpack.c.l.b16 %v770
        %v1299 = vunpack.c.l.b16 %v771
        %v1300 = vunpack.c.l.b16 %v772
        %v1301 = vunpack.c.l.b16 %v773
        %v1302 = vunpack.c.l.b16 %v774
        %v1303 = vunpack.c.l.b16 %v775
        %v1304 = vunpack.c.l.b16 %v776
        %v1305 = vunpack.c.l.b16 %v777
        %v1306 = vunpack.c.l.b16 %v778
        %v1307 = vunpack.c.l.b16 %v779
        %v1308 = vunpack.c.l.b16 %v780
        %v1309 = vunpack.c.l.b16 %v781
        %v1310 = vunpack.c.l.b16 %v782
        %v1311 = vunpack.c.l.b16 %v783
        %v1312 = vunpack.c.l.b16 %v784
        %v1313 = vunpack.c.l.b16 %v785
        %v1314 = vunpack.c.l.b16 %v786
        %v1315 = vunpack.c.l.b16 %v787
        %v1316 = vunpack.c.l.b16 %v788
        %v1317 = vunpack.c.l.b16 %v789
        %v1318 = vunpack.c.l.b16 %v790
        %v1319 = vunpack.c.l.b16 %v791
        %v1320 = vunpack.c.l.b16 %v792
        %v1321 = vunpack.c.l.b16 %v793
        %v1322 = vunpack.c.l.b16 %v794
        %v1323 = vunpack.c.l.b16 %v795
        %v1324 = vunpack.c.l.b16 %v796
        %v1325 = vunpack.c.l.b16 %v797
        %v1326 = vunpack.c.l.b16 %v798
        %v1327 = vunpack.c.l.b16 %v799
        %v1328 = vunpack.c.l.b16 %v800
        %v1329 = vunpack.c.l.b16 %v801
        %v1330 = vunpack.c.l.b16 %v802
        %v1331 = vunpack.c.l.b16 %v803
        %v1332 = vunpack.c.l.b16 %v804
        %v1333 = vunpack.c.l.b16 %v805
        %v1334 = vunpack.c.l.b16 %v806
        %v1335 = vunpack.c.l.b16 %v807
        %v1336 = vunpack.c.l.b16 %v808
        %v1337 = vunpack.c.l.b16 %v809
        %v1338 = vunpack.c.l.b16 %v810
        %v1339 = vunpack.c.l.b16 %v811
        %v1340 = vunpack.c.l.b16 %v812
        %v1341 = vunpack.c.l.b16 %v813
        %v1342 = vunpack.c.l.b16 %v814
        %v1343 = vunpack.c.l.b16 %v815
        %v1344 = vunpack.c.l.b16 %v816
        %v1345 = vunpack.c.l.b16 %v817
        %v1346 = vunpack.c.l.b16 %v818
        %v1347 = vunpack.c.l.b16 %v819
        %v1348 = vunpack.c.l.b16 %v820
        %v1349 = vunpack.c.l.b16 %v821
        %v1350 = vunpack.c.l.b16 %v822
        %v1351 = vunpack.c.l.b16 %v823
        %v1352 = vunpack.c.l.b16 %v824
        %v1353 = vunpack.c.l.b16 %v825
        %v1354 = vunpack.c.l.b16 %v826
        %v1355 = vunpack.c.l.b16 %v827
        %v1356 = vunpack.c.l.b16 %v828
        %v1357 = vunpack.c.l.b16 %v829
        %v1358 = vunpack.c.l.b16 %v830
        %v1359 = vunpack.c.l.b16 %v831
        %v1360 = vunpack.c.l.b16 %v832
        %v1361 = vunpack.c.l.b16 %v833
        %v1362 = vunpack.c.l.b16 %v834
        %v1363 = vunpack.c.l.b16 %v835
        %v1364 = vunpack.c.l.b16 %v836
        %v1365 = vunpack.c.l.b16 %v837
        %v1366 = vunpack.c.l.b16 %v838
        %v1367 = vunpack.c.l.b16 %v839
        %v1368 = vunpack.c.l.b16 %v840
        %v1369 = vunpack.c.l.b16 %v841
        %v1370 = vunpack.c.l.b16 %v842
        %v1371 = vunpack.c.l.b16 %v843
        %v1372 = vunpack.c.l.b16 %v844
        %v1373 = vunpack.c.l.b16 %v845
        %v1374 = vunpack.c.l.b16 %v846
        %v1375 = vunpack.c.l.b16 %v847
        %v1376 = vunpack.c.l.b16 %v848
        %v1377 = vunpack.c.l.b16 %v849
        %v1378 = vunpack.c.l.b16 %v850
        %v1379 = vunpack.c.l.b16 %v851
        %v1380 = vunpack.c.l.b16 %v852
        %v1381 = vunpack.c.l.b16 %v853
        %v1382 = vunpack.c.l.b16 %v854
        %v1383 = vunpack.c.l.b16 %v855
        %v1384 = vunpack.c.l.b16 %v856
        %v1385 = vunpack.c.l.b16 %v857
        %v1386 = vunpack.c.l.b16 %v858
        %v1387 = vunpack.c.l.b16 %v859
        %v1388 = vunpack.c.l.b16 %v860
        %v1389 = vunpack.c.l.b16 %v861
        %v1390 = vunpack.c.l.b16 %v862
        %v1391 = vunpack.c.l.b16 %v863
        %v1392 = vunpack.c.l.b16 %v864
        %v1393 = vunpack.c.l.b16 %v865
        %v1394 = vunpack.c.l.b16 %v866
        %v1395 = vunpack.c.l.b16 %v867
        %v1396 = vunpack.c.l.b16 %v868
        %v1397 = vunpack.c.l.b16 %v869
        %v1398 = vunpack.c.l.b16 %v870
        %v1399 = vunpack.c.l.b16 %v871
        %v1400 = vunpack.c.l.b16 %v872
        %v1401 = vunpack.c.l.b16 %v873
        %v1402 = vunpack.c.l.b16 %v874
        %v1403 = vunpack.c.l.b16 %v875
        %v1404 = vunpack.c.l.b16 %v876
        %v1405 = vunpack.c.l.b16 %v877
        %v1406 = vunpack.c.l.b16 %v878
        %v1407 = vunpack.c.l.b16 %v879
        %v1408 = vunpack.c.l.b16 %v880
        %v1409 = vunpack.c.l.b16 %v881
        %v1410 = vunpack.c.l.b16 %v882
        %v1411 = vunpack.c.l.b16 %v883
        %v1412 = vunpack.c.l.b16 %v884
        %v1413 = vunpack.c.l.b16 %v885
        %v1414 = vunpack.c.l.b16 %v886
        %v1415 = vunpack.c.l.b16 %v887
        %v1416 = vunpack.c.l.b16 %v888
        %v1417 = vunpack.c.l.b16 %v889
        %v1418 = vunpack.c.l.b16 %v890
        %v1419 = vunpack.c.l.b16 %v891
        %v1420 = vunpack.c.l.b16 %v892
        %v1421 = vunpack.c.l.b16 %v893
        %v1422 = vunpack.c.l.b16 %v894
        %v1423 = vunpack.c.l.b16 %v895
        %v1424 = vunpack.c.l.b16 %v896
        %v1425 = vunpack.c.l.b16 %v897
        %v1426 = vunpack.c.l.b16 %v898
        %v1427 = vunpack.c.l.b16 %v899
        %v1428 = vunpack.c.l.b16 %v900
        %v1429 = vunpack.c.l.b16 %v901
        %v1430 = vunpack.c.l.b16 %v902
        %v1431 = vunpack.c.l.b16 %v903
        %v1432 = vunpack.c.l.b16 %v904
        %v1433 = vunpack.c.l.b16 %v905
        %v1434 = vunpack.c.l.b16 %v906
        %v1435 = vunpack.c.l.b16 %v907
        %v1436 = vunpack.c.l.b16 %v908
        %v1437 = vunpack.c.l.b16 %v909
        %v1438 = vunpack.c.l.b16 %v910
        %v1439 = vunpack.c.l.b16 %v911
        %v1440 = vunpack.c.l.b16 %v912
        %v1441 = vunpack.c.l.b16 %v913
        %v1442 = vunpack.c.l.b16 %v914
        %v1443 = vunpack.c.l.b16 %v915
        %v1444 = vunpack.c.l.b16 %v916
        %v1445 = vunpack.c.l.b16 %v917
        %v1446 = vunpack.c.l.b16 %v918
        %v1447 = vunpack.c.l.b16 %v919
        %v1448 = vunpack.c.l.b16 %v920
        %v1449 = vunpack.c.l.b16 %v921
        %v1450 = vunpack.c.l.b16 %v922
        %v1451 = vunpack.c.l.b16 %v923
        %v1452 = vunpack.c.l.b16 %v924
        %v1453 = vunpack.c.l.b16 %v925
        %v1454 = vunpack.c.l.b16 %v926
        %v1455 = vunpack.c.l.b16 %v927
        %v1456 = vunpack.c.l.b16 %v928
        %v1457 = vunpack.c.l.b16 %v929
        %v1458 = vunpack.c.l.b16 %v930
        %v1459 = vunpack.c.l.b16 %v931
        %v1460 = vunpack.c.l.b16 %v932
        %v1461 = vunpack.c.l.b16 %v933
        %v1462 = vunpack.c.l.b16 %v934
        %v1463 = vunpack.c.l.b16 %v935
        %v1464 = vunpack.c.l.b16 %v936
        %v1465 = vunpack.c.l.b16 %v937
        %v1466 = vunpack.c.l.b16 %v938
        %v1467 = vunpack.c.l.b16 %v939
        %v1468 = vunpack.c.l.b16 %v940
        %v1469 = vunpack.c.l.b16 %v941
        %v1470 = vunpack.c.l.b16 %v942
        %v1471 = vunpack.c.l.b16 %v943
        %v1472 = vunpack.c.l.b16 %v944
        %v1473 = vunpack.c.l.b16 %v945
        %v1474 = vunpack.c.l.b16 %v946
        %v1475 = vunpack.c.l.b16 %v947
        %v1476 = vunpack.c.l.b16 %v948
        %v1477 = vunpack.c.l.b16 %v949
        %v1478 = vunpack.c.l.b16 %v950
        %v1479 = vunpack.c.l.b16 %v951
        %v1480 = vunpack.c.l.b16 %v952
        %v1481 = vunpack.c.l.b16 %v953
        %v1482 = vunpack.c.l.b16 %v954
        %v1483 = vunpack.c.l.b16 %v955
        %v1484 = vunpack.c.l.b16 %v956
        %v1485 = vunpack.c.l.b16 %v957
        %v1486 = vunpack.c.l.b16 %v958
        %v1487 = vunpack.c.l.b16 %v959
        %v1488 = vunpack.c.l.b16 %v960
        %v1489 = vunpack.c.l.b16 %v961
        %v1490 = vunpack.c.l.b16 %v962
        %v1491 = vunpack.c.l.b16 %v963
        %v1492 = vunpack.c.l.b16 %v964
        %v1493 = vunpack.c.l.b16 %v965
        %v1494 = vunpack.c.l.b16 %v966
        %v1495 = vunpack.c.l.b16 %v967
        %v1496 = vunpack.c.l.b16 %v968
        %v1497 = vunpack.c.l.b16 %v969
        %v1498 = vunpack.c.l.b16 %v970
        %v1499 = vunpack.c.l.b16 %v971
        %v1500 = vunpack.c.l.b16 %v972
        %v1501 = vunpack.c.l.b16 %v973
        %v1502 = vunpack.c.l.b16 %v974
        %v1503 = vunpack.c.l.b16 %v975
        %v1504 = vunpack.c.l.b16 %v976
        %v1505 = vunpack.c.l.b16 %v977
        %v1506 = vunpack.c.l.b16 %v978
        %v1507 = vunpack.c.l.b16 %v979
        %v1508 = vunpack.c.l.b16 %v980
        %v1509 = vunpack.c.l.b16 %v981
        %v1510 = vunpack.c.l.b16 %v982
        %v1511 = vunpack.c.l.b16 %v983
        %v1512 = vunpack.c.l.b16 %v984
        %v1513 = vunpack.c.l.b16 %v985
        %v1514 = vunpack.c.l.b16 %v986
        %v1515 = vunpack.c.l.b16 %v987
        %v1516 = vunpack.c.l.b16 %v988
        %v1517 = vunpack.c.l.b16 %v989
        %v1518 = vunpack.c.l.b16 %v990
        %v1519 = vunpack.c.l.b16 %v991
        %v1520 = vunpack.c.l.b16 %v992
        %v1521 = vunpack.c.l.b16 %v993
        %v1522 = vunpack.c.l.b16 %v994
        %v1523 = vunpack.c.l.b16 %v995
        %v1524 = vunpack.c.l.b16 %v996
        %v1525 = vunpack.c.l.b16 %v997
        %v1526 = vunpack.c.l.b16 %v998
        %v1527 = vunpack.c.l.b16 %v999
        %v1528 = vunpack.c.l.b16 %v1000
        %v1529 = vunpack.c.l.b16 %v1001
        %v1530 = vunpack.c.l.b16 %v1002
        %v1531 = vpack.c.b16 %v1276, %v1275
        %v1532 = vpack.c.b16 %v1278, %v1277
        %v1533 = vpack.c.b16 %v1280, %v1279
        %v1534 = vpack.c.b16 %v1282, %v1281
        %v1535 = vpack.c.b16 %v1284, %v1283
        %v1536 = vpack.c.b16 %v1286, %v1285
        %v1537 = vpack.c.b16 %v1288, %v1287
        %v1538 = vpack.c.b16 %v1290, %v1289
        %v1539 = vpack.c.b16 %v1292, %v1291
        %v1540 = vpack.c.b16 %v1294, %v1293
        %v1541 = vpack.c.b16 %v1296, %v1295
        %v1542 = vpack.c.b16 %v1298, %v1297
        %v1543 = vpack.c.b16 %v1300, %v1299
        %v1544 = vpack.c.b16 %v1302, %v1301
        %v1545 = vpack.c.b16 %v1304, %v1303
        %v1546 = vpack.c.b16 %v1306, %v1305
        %v1547 = vpack.c.b16 %v1308, %v1307
        %v1548 = vpack.c.b16 %v1310, %v1309
        %v1549 = vpack.c.b16 %v1312, %v1311
        %v1550 = vpack.c.b16 %v1314, %v1313
        %v1551 = vpack.c.b16 %v1316, %v1315
        %v1552 = vpack.c.b16 %v1318, %v1317
        %v1553 = vpack.c.b16 %v1320, %v1319
        %v1554 = vpack.c.b16 %v1322, %v1321
        %v1555 = vpack.c.b16 %v1324, %v1323
        %v1556 = vpack.c.b16 %v1326, %v1325
        %v1557 = vpack.c.b16 %v1328, %v1327
        %v1558 = vpack.c.b16 %v1330, %v1329
        %v1559 = vpack.c.b16 %v1332, %v1331
        %v1560 = vpack.c.b16 %v1334, %v1333
        %v1561 = vpack.c.b16 %v1336, %v1335
        %v1562 = vpack.c.b16 %v1338, %v1337
        %v1563 = vpack.c.b16 %v1340, %v1339
        %v1564 = vpack.c.b16 %v1342, %v1341
        %v1565 = vpack.c.b16 %v1344, %v1343
        %v1566 = vpack.c.b16 %v1346, %v1345
        %v1567 = vpack.c.b16 %v1348, %v1347
        %v1568 = vpack.c.b16 %v1350, %v1349
        %v1569 = vpack.c.b16 %v1352, %v1351
        %v1570 = vpack.c.b16 %v1354, %v1353
        %v1571 = vpack.c.b16 %v1356, %v1355
        %v1572 = vpack.c.b16 %v1358, %v1357
        %v1573 = vpack.c.b16 %v1360, %v1359
        %v1574 = vpack.c.b16 %v1362, %v1361
        %v1575 = vpack.c.b16 %v1364, %v1363
        %v1576 = vpack.c.b16 %v1366, %v1365
        %v1577 = vpack.c.b16 %v1368, %v1367
        %v1578 = vpack.c.b16 %v1370, %v1369
        %v1579 = vpack.c.b16 %v1372, %v1371
        %v1580 = vpack.c.b16 %v1374, %v1373
        %v1581 = vpack.c.b16 %v1376, %v1375
        %v1582 = vpack.c.b16 %v1378, %v1377
        %v1583 = vpack.c.b16 %v1380, %v1379
        %v1584 = vpack.c.b16 %v1382, %v1381
        %v1585 = vpack.c.b16 %v1384, %v1383
        %v1586 = vpack.c.b16 %v1386, %v1385
        %v1587 = vpack.c.b16 %v1388, %v1387
        %v1588 = vpack.c.b16 %v1390, %v1389
        %v1589 = vpack.c.b16 %v1392, %v1391
        %v1590 = vpack.c.b16 %v1394, %v1393
        %v1591 = vpack.c.b16 %v1396, %v1395
        %v1592 = vpack.c.b16 %v1398, %v1397
        %v1593 = vpack.c.b16 %v1400, %v1399
        %v1594 = vpack.c.b16 %v1402, %v1401
        %v1595 = vpack.c.b16 %v1404, %v1403
        %v1596 = vpack.c.b16 %v1406, %v1405
        %v1597 = vpack.c.b16 %v1408, %v1407
        %v1598 = vpack.c.b16 %v1410, %v1409
        %v1599 = vpack.c.b16 %v1412, %v1411
        %v1600 = vpack.c.b16 %v1414, %v1413
        %v1601 = vpack.c.b16 %v1416, %v1415
        %v1602 = vpack.c.b16 %v1418, %v1417
        %v1603 = vpack.c.b16 %v1420, %v1419
        %v1604 = vpack.c.b16 %v1422, %v1421
        %v1605 = vpack.c.b16 %v1424, %v1423
        %v1606 = vpack.c.b16 %v1426, %v1425
        %v1607 = vpack.c.b16 %v1428, %v1427
        %v1608 = vpack.c.b16 %v1430, %v1429
        %v1609 = vpack.c.b16 %v1432, %v1431
        %v1610 = vpack.c.b16 %v1434, %v1433
        %v1611 = vpack.c.b16 %v1436, %v1435
        %v1612 = vpack.c.b16 %v1438, %v1437
        %v1613 = vpack.c.b16 %v1440, %v1439
        %v1614 = vpack.c.b16 %v1442, %v1441
        %v1615 = vpack.c.b16 %v1444, %v1443
        %v1616 = vpack.c.b16 %v1446, %v1445
        %v1617 = vpack.c.b16 %v1448, %v1447
        %v1618 = vpack.c.b16 %v1450, %v1449
        %v1619 = vpack.c.b16 %v1452, %v1451
        %v1620 = vpack.c.b16 %v1454, %v1453
        %v1621 = vpack.c.b16 %v1456, %v1455
        %v1622 = vpack.c.b16 %v1458, %v1457
        %v1623 = vpack.c.b16 %v1460, %v1459
        %v1624 = vpack.c.b16 %v1462, %v1461
        %v1625 = vpack.c.b16 %v1464, %v1463
        %v1626 = vpack.c.b16 %v1466, %v1465
        %v1627 = vpack.c.b16 %v1468, %v1467
        %v1628 = vpack.c.b16 %v1470, %v1469
        %v1629 = vpack.c.b16 %v1472, %v1471
        %v1630 = vpack.c.b16 %v1474, %v1473
        %v1631 = vpack.c.b16 %v1476, %v1475
        %v1632 = vpack.c.b16 %v1478, %v1477
        %v1633 = vpack.c.b16 %v1480, %v1479
        %v1634 = vpack.c.b16 %v1482, %v1481
        %v1635 = vpack.c.b16 %v1484, %v1483
        %v1636 = vpack.c.b16 %v1486, %v1485
        %v1637 = vpack.c.b16 %v1488, %v1487
        %v1638 = vpack.c.b16 %v1490, %v1489
        %v1639 = vpack.c.b16 %v1492, %v1491
        %v1640 = vpack.c.b16 %v1494, %v1493
        %v1641 = vpack.c.b16 %v1496, %v1495
        %v1642 = vpack.c.b16 %v1498, %v1497
        %v1643 = vpack.c.b16 %v1500, %v1499
        %v1644 = vpack.c.b16 %v1502, %v1501
        %v1645 = vpack.c.b16 %v1504, %v1503
        %v1646 = vpack.c.b16 %v1506, %v1505
        %v1647 = vpack.c.b16 %v1508, %v1507
        %v1648 = vpack.c.b16 %v1510, %v1509
        %v1649 = vpack.c.b16 %v1512, %v1511
        %v1650 = vpack.c.b16 %v1514, %v1513
        %v1651 = vpack.c.b16 %v1516, %v1515
        %v1652 = vpack.c.b16 %v1518, %v1517
        %v1653 = vpack.c.b16 %v1520, %v1519
        %v1654 = vpack.c.b16 %v1522, %v1521
        %v1655 = vpack.c.b16 %v1524, %v1523
        %v1656 = vpack.c.b16 %v1526, %v1525
        %v1657 = vpack.c.b16 %v1528, %v1527
        %v1658 = vpack.c.b16 %v1530, %v1529
        %v1803 = vunpack.c.l.b16 %v1003
        %v1804 = vunpack.c.l.b16 %v1004
        %v1805 = vunpack.c.l.b16 %v1005
        %v1806 = vunpack.c.l.b16 %v1006
        %v1807 = vunpack.c.l.b16 %v1007
        %v1808 = vunpack.c.l.b16 %v1008
        %v1809 = vunpack.c.l.b16 %v1009
        %v1810 = vunpack.c.l.b16 %v1010
        %v1811 = vunpack.c.l.b16 %v1011
        %v1812 = vunpack.c.l.b16 %v1012
        %v1813 = vunpack.c.l.b16 %v1013
        %v1814 = vunpack.c.l.b16 %v1014
        %v1815 = vunpack.c.l.b16 %v1015
        %v1816 = vunpack.c.l.b16 %v1016
        %v1817 = vunpack.c.l.b16 %v1017
        %v1818 = vunpack.c.l.b16 %v1018
        %v1819 = vpack.c.b16 %v1804, %v1803
        %v1820 = vpack.c.b16 %v1806, %v1805
        %v1821 = vpack.c.b16 %v1808, %v1807
        %v1822 = vpack.c.b16 %v1810, %v1809
        %v1823 = vpack.c.b16 %v1812, %v1811
        %v1824 = vpack.c.b16 %v1814, %v1813
        %v1825 = vpack.c.b16 %v1816, %v1815
        %v1826 = vpack.c.b16 %v1818, %v1817
        %1835 = vmatprep.subr.bf16.mxu0 0
        %1836 = vmatpush1.bf16.msra.mxu0 %v1819
        %1837 = vmatprep.subr.bf16.mxu0 0
        %1838 = vmatpush1.bf16.msra.mxu0 %v1820
        %1839 = vmatprep.subr.bf16.mxu0 0
        %1840 = vmatpush1.bf16.msra.mxu0 %v1821
        %1841 = vmatprep.subr.bf16.mxu0 0
        %1842 = vmatpush1.bf16.msra.mxu0 %v1822
        %1843 = vmatprep.subr.bf16.mxu0 0
        %1844 = vmatpush1.bf16.msra.mxu0 %v1823
        %1845 = vmatprep.subr.bf16.mxu0 0
        %1846 = vmatpush1.bf16.msra.mxu0 %v1824
        %1847 = vmatprep.subr.bf16.mxu0 0
        %1848 = vmatpush1.bf16.msra.mxu0 %v1825
        %1849 = vmatprep.subr.bf16.mxu0 0
        %1850 = vmatpush1.bf16.msra.mxu0 %v1826
        %1851 = vmatprep.subr.bf16.mxu0 0
        %1852 = vmatpush1.bf16.msra.mxu0 0
        %1853 = vmatprep.subr.bf16.mxu0 0
        %1854 = vmatpush1.bf16.msra.mxu0 0
        %1855 = vmatprep.subr.bf16.mxu0 0
        %1856 = vmatpush1.bf16.msra.mxu0 0
        %1857 = vmatprep.subr.bf16.mxu0 0
        %1858 = vmatpush1.bf16.msra.mxu0 0
        %1859 = vmatprep.subr.bf16.mxu0 0
        %1860 = vmatpush1.bf16.msra.mxu0 0
        %1861 = vmatprep.subr.bf16.mxu0 0
        %1862 = vmatpush1.bf16.msra.mxu0 0
        %1863 = vmatprep.subr.bf16.mxu0 0
        %1864 = vmatpush1.bf16.msra.mxu0 0
        %1865 = vmatprep.subr.bf16.mxu0 0
        %1866 = vmatpush1.bf16.msra.mxu0 0
        %1867 = vmatprep.mubr.bf16.mxu0 0
        %1868 = vmatmul.mubr.bf16.gmra.mrb[0].mxu0 %v1531
        %v1869 = vpop.f32.mrb[0].mxu0
        %v1870 = vadd.f32 0.0, %v1869
        %v1871 = vpop.f32.mrb[0].mxu0
        %v1872 = vpop.f32.mrb[0].mxu0
        %v1873 = vadd.f32 0.0, %v1872
        %v1874 = vpop.f32.mrb[0].mxu0
        %1875 = vmatprep.mubr.bf16.mxu0 0
        %1876 = vmatmul.mubr.bf16.gmra.mrb[0].mxu0 %v1532
        %v1877 = vpop.f32.mrb[0].mxu0
        %v1878 = vadd.f32 0.0, %v1877
        %v1879 = vpop.f32.mrb[0].mxu0
        %v1880 = vpop.f32.mrb[0].mxu0
        %v1881 = vadd.f32 0.0, %v1880
        %v1882 = vpop.f32.mrb[0].mxu0
        %1883 = vmatprep.mubr.bf16.mxu0 0
        %1884 = vmatmul.mubr.bf16.gmra.mrb[0].mxu0 %v1533
        %v1885 = vpop.f32.mrb[0].mxu0
        %v1886 = vadd.f32 0.0, %v1885
        %v1887 = vpop.f32.mrb[0].mxu0
        %v1888 = vpop.f32.mrb[0].mxu0
        %v1889 = vadd.f32 0.0, %v1888
        %v1890 = vpop.f32.mrb[0].mxu0
        %1891 = vmatprep.mubr.bf16.mxu0 0
        %1892 = vmatmul.mubr.bf16.gmra.mrb[0].mxu0 %v1534
        %v1893 = vpop.f32.mrb[0].mxu0
        %v1894 = vadd.f32 0.0, %v1893
        %v1895 = vpop.f32.mrb[0].mxu0
        %v1896 = vpop.f32.mrb[0].mxu0
        %v1897 = vadd.f32 0.0, %v1896
        %v1898 = vpop.f32.mrb[0].mxu0
        %1899 = vmatprep.mubr.bf16.mxu0 0
        %1900 = vmatmul.mubr.bf16.gmra.mrb[0].mxu0 %v1535
        %v1901 = vpop.f32.mrb[0].mxu0
        %v1902 = vadd.f32 0.0, %v1901
        %v1903 = vpop.f32.mrb[0].mxu0
        %v1904 = vpop.f32.mrb[0].mxu0
        %v1905 = vadd.f32 0.0, %v1904
        %v1906 = vpop.f32.mrb[0].mxu0
        %1907 = vmatprep.mubr.bf16.mxu0 0
        %1908 = vmatmul.mubr.bf16.gmra.mrb[0].mxu0 %v1536
        %v1909 = vpop.f32.mrb[0].mxu0
        %v1910 = vadd.f32 0.0, %v1909
        %v1911 = vpop.f32.mrb[0].mxu0
        %v1912 = vpop.f32.mrb[0].mxu0
        %v1913 = vadd.f32 0.0, %v1912
        %v1914 = vpop.f32.mrb[0].mxu0
        %1915 = vmatprep.mubr.bf16.mxu0 0
        %1916 = vmatmul.mubr.bf16.gmra.mrb[0].mxu0 %v1537
        %v1917 = vpop.f32.mrb[0].mxu0
        %v1918 = vadd.f32 0.0, %v1917
        %v1919 = vpop.f32.mrb[0].mxu0
        %v1920 = vpop.f32.mrb[0].mxu0
        %v1921 = vadd.f32 0.0, %v1920
        %v1922 = vpop.f32.mrb[0].mxu0
        %1923 = vmatprep.mubr.bf16.mxu0 0
        %1924 = vmatmul.mubr.bf16.gmra.mrb[0].mxu0 %v1538
        %v1925 = vpop.f32.mrb[0].mxu0
        %v1926 = vadd.f32 0.0, %v1925
        %v1927 = vpop.f32.mrb[0].mxu0
        %v1928 = vpop.f32.mrb[0].mxu0
        %v1929 = vadd.f32 0.0, %v1928
        %v1930 = vpop.f32.mrb[0].mxu0
        %1931 = vmatprep.mubr.bf16.mxu0 0
        %1932 = vmatmul.mubr.bf16.gmra.mrb[0].mxu0 %v1539
        %v1933 = vpop.f32.mrb[0].mxu0
        %v1934 = vadd.f32 0.0, %v1933
        %v1935 = vpop.f32.mrb[0].mxu0
        %v1936 = vpop.f32.mrb[0].mxu0
        %v1937 = vadd.f32 0.0, %v1936
        %v1938 = vpop.f32.mrb[0].mxu0
        %1939 = vmatprep.mubr.bf16.mxu0 0
        %1940 = vmatmul.mubr.bf16.gmra.mrb[0].mxu0 %v1540
        %v1941 = vpop.f32.mrb[0].mxu0
        %v1942 = vadd.f32 0.0, %v1941
        %v1943 = vpop.f32.mrb[0].mxu0
        %v1944 = vpop.f32.mrb[0].mxu0
        %v1945 = vadd.f32 0.0, %v1944
        %v1946 = vpop.f32.mrb[0].mxu0
        %1947 = vmatprep.mubr.bf16.mxu0 0
        %1948 = vmatmul.mubr.bf16.gmra.mrb[0].mxu0 %v1541
        %v1949 = vpop.f32.mrb[0].mxu0
        %v1950 = vadd.f32 0.0, %v1949
        %v1951 = vpop.f32.mrb[0].mxu0
        %v1952 = vpop.f32.mrb[0].mxu0
        %v1953 = vadd.f32 0.0, %v1952
        %v1954 = vpop.f32.mrb[0].mxu0
        %1955 = vmatprep.mubr.bf16.mxu0 0
        %1956 = vmatmul.mubr.bf16.gmra.mrb[0].mxu0 %v1542
        %v1957 = vpop.f32.mrb[0].mxu0
        %v1958 = vadd.f32 0.0, %v1957
        %v1959 = vpop.f32.mrb[0].mxu0
        %v1960 = vpop.f32.mrb[0].mxu0
        %v1961 = vadd.f32 0.0, %v1960
        %v1962 = vpop.f32.mrb[0].mxu0
        %1963 = vmatprep.mubr.bf16.mxu0 0
        %1964 = vmatmul.mubr.bf16.gmra.mrb[0].mxu0 %v1543
        %v1965 = vpop.f32.mrb[0].mxu0
        %v1966 = vadd.f32 0.0, %v1965
        %v1967 = vpop.f32.mrb[0].mxu0
        %v1968 = vpop.f32.mrb[0].mxu0
        %v1969 = vadd.f32 0.0, %v1968
        %v1970 = vpop.f32.mrb[0].mxu0
        %1971 = vmatprep.mubr.bf16.mxu0 0
        %1972 = vmatmul.mubr.bf16.gmra.mrb[0].mxu0 %v1544
        %v1973 = vpop.f32.mrb[0].mxu0
        %v1974 = vadd.f32 0.0, %v1973
        %v1975 = vpop.f32.mrb[0].mxu0
        %v1976 = vpop.f32.mrb[0].mxu0
        %v1977 = vadd.f32 0.0, %v1976
        %v1978 = vpop.f32.mrb[0].mxu0
        %1979 = vmatprep.mubr.bf16.mxu0 0
        %1980 = vmatmul.mubr.bf16.gmra.mrb[0].mxu0 %v1545
        %v1981 = vpop.f32.mrb[0].mxu0
        %v1982 = vadd.f32 0.0, %v1981
        %v1983 = vpop.f32.mrb[0].mxu0
        %v1984 = vpop.f32.mrb[0].mxu0
        %v1985 = vadd.f32 0.0, %v1984
        %v1986 = vpop.f32.mrb[0].mxu0
        %1987 = vmatprep.mubr.bf16.mxu0 0
        %1988 = vmatmul.mubr.bf16.gmra.mrb[0].mxu0 %v1546
        %v1989 = vpop.f32.mrb[0].mxu0
        %v1990 = vadd.f32 0.0, %v1989
        %v1991 = vpop.f32.mrb[0].mxu0
        %v1992 = vpop.f32.mrb[0].mxu0
        %v1993 = vadd.f32 0.0, %v1992
        %v1994 = vpop.f32.mrb[0].mxu0
        %1995 = vmatprep.mubr.bf16.mxu0 0
        %1996 = vmatmul.mubr.bf16.gmra.mrb[0].mxu0 %v1547
        %v1997 = vpop.f32.mrb[0].mxu0
        %v1998 = vadd.f32 0.0, %v1997
        %v1999 = vpop.f32.mrb[0].mxu0
        %v2000 = vpop.f32.mrb[0].mxu0
        %v2001 = vadd.f32 0.0, %v2000
        %v2002 = vpop.f32.mrb[0].mxu0
        %2003 = vmatprep.mubr.bf16.mxu0 0
        %2004 = vmatmul.mubr.bf16.gmra.mrb[0].mxu0 %v1548
        %v2005 = vpop.f32.mrb[0].mxu0
        %v2006 = vadd.f32 0.0, %v2005
        %v2007 = vpop.f32.mrb[0].mxu0
        %v2008 = vpop.f32.mrb[0].mxu0
        %v2009 = vadd.f32 0.0, %v2008
        %v2010 = vpop.f32.mrb[0].mxu0
        %2011 = vmatprep.mubr.bf16.mxu0 0
        %2012 = vmatmul.mubr.bf16.gmra.mrb[0].mxu0 %v1549
        %v2013 = vpop.f32.mrb[0].mxu0
        %v2014 = vadd.f32 0.0, %v2013
        %v2015 = vpop.f32.mrb[0].mxu0
        %v2016 = vpop.f32.mrb[0].mxu0
        %v2017 = vadd.f32 0.0, %v2016
        %v2018 = vpop.f32.mrb[0].mxu0
        %2019 = vmatprep.mubr.bf16.mxu0 0
        %2020 = vmatmul.mubr.bf16.gmra.mrb[0].mxu0 %v1550
        %v2021 = vpop.f32.mrb[0].mxu0
        %v2022 = vadd.f32 0.0, %v2021
        %v2023 = vpop.f32.mrb[0].mxu0
        %v2024 = vpop.f32.mrb[0].mxu0
        %v2025 = vadd.f32 0.0, %v2024
        %v2026 = vpop.f32.mrb[0].mxu0
        %2027 = vmatprep.mubr.bf16.mxu0 0
        %2028 = vmatmul.mubr.bf16.gmra.mrb[0].mxu0 %v1551
        %v2029 = vpop.f32.mrb[0].mxu0
        %v2030 = vadd.f32 0.0, %v2029
        %v2031 = vpop.f32.mrb[0].mxu0
        %v2032 = vpop.f32.mrb[0].mxu0
        %v2033 = vadd.f32 0.0, %v2032
        %v2034 = vpop.f32.mrb[0].mxu0
        %2035 = vmatprep.mubr.bf16.mxu0 0
        %2036 = vmatmul.mubr.bf16.gmra.mrb[0].mxu0 %v1552
        %v2037 = vpop.f32.mrb[0].mxu0
        %v2038 = vadd.f32 0.0, %v2037
        %v2039 = vpop.f32.mrb[0].mxu0
        %v2040 = vpop.f32.mrb[0].mxu0
        %v2041 = vadd.f32 0.0, %v2040
        %v2042 = vpop.f32.mrb[0].mxu0
        %2043 = vmatprep.mubr.bf16.mxu0 0
        %2044 = vmatmul.mubr.bf16.gmra.mrb[0].mxu0 %v1553
        %v2045 = vpop.f32.mrb[0].mxu0
        %v2046 = vadd.f32 0.0, %v2045
        %v2047 = vpop.f32.mrb[0].mxu0
        %v2048 = vpop.f32.mrb[0].mxu0
        %v2049 = vadd.f32 0.0, %v2048
        %v2050 = vpop.f32.mrb[0].mxu0
        %2051 = vmatprep.mubr.bf16.mxu0 0
        %2052 = vmatmul.mubr.bf16.gmra.mrb[0].mxu0 %v1554
        %v2053 = vpop.f32.mrb[0].mxu0
        %v2054 = vadd.f32 0.0, %v2053
        %v2055 = vpop.f32.mrb[0].mxu0
        %v2056 = vpop.f32.mrb[0].mxu0
        %v2057 = vadd.f32 0.0, %v2056
        %v2058 = vpop.f32.mrb[0].mxu0
        %2059 = vmatprep.mubr.bf16.mxu0 0
        %2060 = vmatmul.mubr.bf16.gmra.mrb[0].mxu0 %v1555
        %v2061 = vpop.f32.mrb[0].mxu0
        %v2062 = vadd.f32 0.0, %v2061
        %v2063 = vpop.f32.mrb[0].mxu0
        %v2064 = vpop.f32.mrb[0].mxu0
        %v2065 = vadd.f32 0.0, %v2064
        %v2066 = vpop.f32.mrb[0].mxu0
        %2067 = vmatprep.mubr.bf16.mxu0 0
        %2068 = vmatmul.mubr.bf16.gmra.mrb[0].mxu0 %v1556
        %v2069 = vpop.f32.mrb[0].mxu0
        %v2070 = vadd.f32 0.0, %v2069
        %v2071 = vpop.f32.mrb[0].mxu0
        %v2072 = vpop.f32.mrb[0].mxu0
        %v2073 = vadd.f32 0.0, %v2072
        %v2074 = vpop.f32.mrb[0].mxu0
        %2075 = vmatprep.mubr.bf16.mxu0 0
        %2076 = vmatmul.mubr.bf16.gmra.mrb[0].mxu0 %v1557
        %v2077 = vpop.f32.mrb[0].mxu0
        %v2078 = vadd.f32 0.0, %v2077
        %v2079 = vpop.f32.mrb[0].mxu0
        %v2080 = vpop.f32.mrb[0].mxu0
        %v2081 = vadd.f32 0.0, %v2080
        %v2082 = vpop.f32.mrb[0].mxu0
        %2083 = vmatprep.mubr.bf16.mxu0 0
        %2084 = vmatmul.mubr.bf16.gmra.mrb[0].mxu0 %v1558
        %v2085 = vpop.f32.mrb[0].mxu0
        %v2086 = vadd.f32 0.0, %v2085
        %v2087 = vpop.f32.mrb[0].mxu0
        %v2088 = vpop.f32.mrb[0].mxu0
        %v2089 = vadd.f32 0.0, %v2088
        %v2090 = vpop.f32.mrb[0].mxu0
        %2091 = vmatprep.mubr.bf16.mxu0 0
        %2092 = vmatmul.mubr.bf16.gmra.mrb[0].mxu0 %v1559
        %v2093 = vpop.f32.mrb[0].mxu0
        %v2094 = vadd.f32 0.0, %v2093
        %v2095 = vpop.f32.mrb[0].mxu0
        %v2096 = vpop.f32.mrb[0].mxu0
        %v2097 = vadd.f32 0.0, %v2096
        %v2098 = vpop.f32.mrb[0].mxu0
        %2099 = vmatprep.mubr.bf16.mxu0 0
        %2100 = vmatmul.mubr.bf16.gmra.mrb[0].mxu0 %v1560
        %v2101 = vpop.f32.mrb[0].mxu0
        %v2102 = vadd.f32 0.0, %v2101
        %v2103 = vpop.f32.mrb[0].mxu0
        %v2104 = vpop.f32.mrb[0].mxu0
        %v2105 = vadd.f32 0.0, %v2104
        %v2106 = vpop.f32.mrb[0].mxu0
        %2107 = vmatprep.mubr.bf16.mxu0 0
        %2108 = vmatmul.mubr.bf16.gmra.mrb[0].mxu0 %v1561
        %v2109 = vpop.f32.mrb[0].mxu0
        %v2110 = vadd.f32 0.0, %v2109
        %v2111 = vpop.f32.mrb[0].mxu0
        %v2112 = vpop.f32.mrb[0].mxu0
        %v2113 = vadd.f32 0.0, %v2112
        %v2114 = vpop.f32.mrb[0].mxu0
        %2115 = vmatprep.mubr.bf16.mxu0 0
        %2116 = vmatmul.mubr.bf16.gmra.mrb[0].mxu0 %v1562
        %v2117 = vpop.f32.mrb[0].mxu0
        %v2118 = vadd.f32 0.0, %v2117
        %v2119 = vpop.f32.mrb[0].mxu0
        %v2120 = vpop.f32.mrb[0].mxu0
        %v2121 = vadd.f32 0.0, %v2120
        %v2122 = vpop.f32.mrb[0].mxu0
        %2123 = vmatprep.mubr.bf16.mxu0 0
        %2124 = vmatmul.mubr.bf16.gmra.mrb[0].mxu0 %v1563
        %v2125 = vpop.f32.mrb[0].mxu0
        %v2126 = vadd.f32 0.0, %v2125
        %v2127 = vpop.f32.mrb[0].mxu0
        %v2128 = vpop.f32.mrb[0].mxu0
        %v2129 = vadd.f32 0.0, %v2128
        %v2130 = vpop.f32.mrb[0].mxu0
        %2131 = vmatprep.mubr.bf16.mxu0 0
        %2132 = vmatmul.mubr.bf16.gmra.mrb[0].mxu0 %v1564
        %v2133 = vpop.f32.mrb[0].mxu0
        %v2134 = vadd.f32 0.0, %v2133
        %v2135 = vpop.f32.mrb[0].mxu0
        %v2136 = vpop.f32.mrb[0].mxu0
        %v2137 = vadd.f32 0.0, %v2136
        %v2138 = vpop.f32.mrb[0].mxu0
        %2139 = vmatprep.mubr.bf16.mxu0 0
        %2140 = vmatmul.mubr.bf16.gmra.mrb[0].mxu0 %v1565
        %v2141 = vpop.f32.mrb[0].mxu0
        %v2142 = vadd.f32 0.0, %v2141
        %v2143 = vpop.f32.mrb[0].mxu0
        %v2144 = vpop.f32.mrb[0].mxu0
        %v2145 = vadd.f32 0.0, %v2144
        %v2146 = vpop.f32.mrb[0].mxu0
        %2147 = vmatprep.mubr.bf16.mxu0 0
        %2148 = vmatmul.mubr.bf16.gmra.mrb[0].mxu0 %v1566
        %v2149 = vpop.f32.mrb[0].mxu0
        %v2150 = vadd.f32 0.0, %v2149
        %v2151 = vpop.f32.mrb[0].mxu0
        %v2152 = vpop.f32.mrb[0].mxu0
        %v2153 = vadd.f32 0.0, %v2152
        %v2154 = vpop.f32.mrb[0].mxu0
        %2155 = vmatprep.mubr.bf16.mxu0 0
        %2156 = vmatmul.mubr.bf16.gmra.mrb[0].mxu0 %v1567
        %v2157 = vpop.f32.mrb[0].mxu0
        %v2158 = vadd.f32 0.0, %v2157
        %v2159 = vpop.f32.mrb[0].mxu0
        %v2160 = vpop.f32.mrb[0].mxu0
        %v2161 = vadd.f32 0.0, %v2160
        %v2162 = vpop.f32.mrb[0].mxu0
        %2163 = vmatprep.mubr.bf16.mxu0 0
        %2164 = vmatmul.mubr.bf16.gmra.mrb[0].mxu0 %v1568
        %v2165 = vpop.f32.mrb[0].mxu0
        %v2166 = vadd.f32 0.0, %v2165
        %v2167 = vpop.f32.mrb[0].mxu0
        %v2168 = vpop.f32.mrb[0].mxu0
        %v2169 = vadd.f32 0.0, %v2168
        %v2170 = vpop.f32.mrb[0].mxu0
        %2171 = vmatprep.mubr.bf16.mxu0 0
        %2172 = vmatmul.mubr.bf16.gmra.mrb[0].mxu0 %v1569
        %v2173 = vpop.f32.mrb[0].mxu0
        %v2174 = vadd.f32 0.0, %v2173
        %v2175 = vpop.f32.mrb[0].mxu0
        %v2176 = vpop.f32.mrb[0].mxu0
        %v2177 = vadd.f32 0.0, %v2176
        %v2178 = vpop.f32.mrb[0].mxu0
        %2179 = vmatprep.mubr.bf16.mxu0 0
        %2180 = vmatmul.mubr.bf16.gmra.mrb[0].mxu0 %v1570
        %v2181 = vpop.f32.mrb[0].mxu0
        %v2182 = vadd.f32 0.0, %v2181
        %v2183 = vpop.f32.mrb[0].mxu0
        %v2184 = vpop.f32.mrb[0].mxu0
        %v2185 = vadd.f32 0.0, %v2184
        %v2186 = vpop.f32.mrb[0].mxu0
        %2187 = vmatprep.mubr.bf16.mxu0 0
        %2188 = vmatmul.mubr.bf16.gmra.mrb[0].mxu0 %v1571
        %v2189 = vpop.f32.mrb[0].mxu0
        %v2190 = vadd.f32 0.0, %v2189
        %v2191 = vpop.f32.mrb[0].mxu0
        %v2192 = vpop.f32.mrb[0].mxu0
        %v2193 = vadd.f32 0.0, %v2192
        %v2194 = vpop.f32.mrb[0].mxu0
        %2195 = vmatprep.mubr.bf16.mxu0 0
        %2196 = vmatmul.mubr.bf16.gmra.mrb[0].mxu0 %v1572
        %v2197 = vpop.f32.mrb[0].mxu0
        %v2198 = vadd.f32 0.0, %v2197
        %v2199 = vpop.f32.mrb[0].mxu0
        %v2200 = vpop.f32.mrb[0].mxu0
        %v2201 = vadd.f32 0.0, %v2200
        %v2202 = vpop.f32.mrb[0].mxu0
        %2203 = vmatprep.mubr.bf16.mxu0 0
        %2204 = vmatmul.mubr.bf16.gmra.mrb[0].mxu0 %v1573
        %v2205 = vpop.f32.mrb[0].mxu0
        %v2206 = vadd.f32 0.0, %v2205
        %v2207 = vpop.f32.mrb[0].mxu0
        %v2208 = vpop.f32.mrb[0].mxu0
        %v2209 = vadd.f32 0.0, %v2208
        %v2210 = vpop.f32.mrb[0].mxu0
        %2211 = vmatprep.mubr.bf16.mxu0 0
        %2212 = vmatmul.mubr.bf16.gmra.mrb[0].mxu0 %v1574
        %v2213 = vpop.f32.mrb[0].mxu0
        %v2214 = vadd.f32 0.0, %v2213
        %v2215 = vpop.f32.mrb[0].mxu0
        %v2216 = vpop.f32.mrb[0].mxu0
        %v2217 = vadd.f32 0.0, %v2216
        %v2218 = vpop.f32.mrb[0].mxu0
        %2219 = vmatprep.mubr.bf16.mxu0 0
        %2220 = vmatmul.mubr.bf16.gmra.mrb[0].mxu0 %v1575
        %v2221 = vpop.f32.mrb[0].mxu0
        %v2222 = vadd.f32 0.0, %v2221
        %v2223 = vpop.f32.mrb[0].mxu0
        %v2224 = vpop.f32.mrb[0].mxu0
        %v2225 = vadd.f32 0.0, %v2224
        %v2226 = vpop.f32.mrb[0].mxu0
        %2227 = vmatprep.mubr.bf16.mxu0 0
        %2228 = vmatmul.mubr.bf16.gmra.mrb[0].mxu0 %v1576
        %v2229 = vpop.f32.mrb[0].mxu0
        %v2230 = vadd.f32 0.0, %v2229
        %v2231 = vpop.f32.mrb[0].mxu0
        %v2232 = vpop.f32.mrb[0].mxu0
        %v2233 = vadd.f32 0.0, %v2232
        %v2234 = vpop.f32.mrb[0].mxu0
        %2235 = vmatprep.mubr.bf16.mxu0 0
        %2236 = vmatmul.mubr.bf16.gmra.mrb[0].mxu0 %v1577
        %v2237 = vpop.f32.mrb[0].mxu0
        %v2238 = vadd.f32 0.0, %v2237
        %v2239 = vpop.f32.mrb[0].mxu0
        %v2240 = vpop.f32.mrb[0].mxu0
        %v2241 = vadd.f32 0.0, %v2240
        %v2242 = vpop.f32.mrb[0].mxu0
        %2243 = vmatprep.mubr.bf16.mxu0 0
        %2244 = vmatmul.mubr.bf16.gmra.mrb[0].mxu0 %v1578
        %v2245 = vpop.f32.mrb[0].mxu0
        %v2246 = vadd.f32 0.0, %v2245
        %v2247 = vpop.f32.mrb[0].mxu0
        %v2248 = vpop.f32.mrb[0].mxu0
        %v2249 = vadd.f32 0.0, %v2248
        %v2250 = vpop.f32.mrb[0].mxu0
        %2251 = vmatprep.mubr.bf16.mxu0 0
        %2252 = vmatmul.mubr.bf16.gmra.mrb[0].mxu0 %v1579
        %v2253 = vpop.f32.mrb[0].mxu0
        %v2254 = vadd.f32 0.0, %v2253
        %v2255 = vpop.f32.mrb[0].mxu0
        %v2256 = vpop.f32.mrb[0].mxu0
        %v2257 = vadd.f32 0.0, %v2256
        %v2258 = vpop.f32.mrb[0].mxu0
        %2259 = vmatprep.mubr.bf16.mxu0 0
        %2260 = vmatmul.mubr.bf16.gmra.mrb[0].mxu0 %v1580
        %v2261 = vpop.f32.mrb[0].mxu0
        %v2262 = vadd.f32 0.0, %v2261
        %v2263 = vpop.f32.mrb[0].mxu0
        %v2264 = vpop.f32.mrb[0].mxu0
        %v2265 = vadd.f32 0.0, %v2264
        %v2266 = vpop.f32.mrb[0].mxu0
        %2267 = vmatprep.mubr.bf16.mxu0 0
        %2268 = vmatmul.mubr.bf16.gmra.mrb[0].mxu0 %v1581
        %v2269 = vpop.f32.mrb[0].mxu0
        %v2270 = vadd.f32 0.0, %v2269
        %v2271 = vpop.f32.mrb[0].mxu0
        %v2272 = vpop.f32.mrb[0].mxu0
        %v2273 = vadd.f32 0.0, %v2272
        %v2274 = vpop.f32.mrb[0].mxu0
        %2275 = vmatprep.mubr.bf16.mxu0 0
        %2276 = vmatmul.mubr.bf16.gmra.mrb[0].mxu0 %v1582
        %v2277 = vpop.f32.mrb[0].mxu0
        %v2278 = vadd.f32 0.0, %v2277
        %v2279 = vpop.f32.mrb[0].mxu0
        %v2280 = vpop.f32.mrb[0].mxu0
        %v2281 = vadd.f32 0.0, %v2280
        %v2282 = vpop.f32.mrb[0].mxu0
        %2283 = vmatprep.mubr.bf16.mxu0 0
        %2284 = vmatmul.mubr.bf16.gmra.mrb[0].mxu0 %v1583
        %v2285 = vpop.f32.mrb[0].mxu0
        %v2286 = vadd.f32 0.0, %v2285
        %v2287 = vpop.f32.mrb[0].mxu0
        %v2288 = vpop.f32.mrb[0].mxu0
        %v2289 = vadd.f32 0.0, %v2288
        %v2290 = vpop.f32.mrb[0].mxu0
        %2291 = vmatprep.mubr.bf16.mxu0 0
        %2292 = vmatmul.mubr.bf16.gmra.mrb[0].mxu0 %v1584
        %v2293 = vpop.f32.mrb[0].mxu0
        %v2294 = vadd.f32 0.0, %v2293
        %v2295 = vpop.f32.mrb[0].mxu0
        %v2296 = vpop.f32.mrb[0].mxu0
        %v2297 = vadd.f32 0.0, %v2296
        %v2298 = vpop.f32.mrb[0].mxu0
        %2299 = vmatprep.mubr.bf16.mxu0 0
        %2300 = vmatmul.mubr.bf16.gmra.mrb[0].mxu0 %v1585
        %v2301 = vpop.f32.mrb[0].mxu0
        %v2302 = vadd.f32 0.0, %v2301
        %v2303 = vpop.f32.mrb[0].mxu0
        %v2304 = vpop.f32.mrb[0].mxu0
        %v2305 = vadd.f32 0.0, %v2304
        %v2306 = vpop.f32.mrb[0].mxu0
        %2307 = vmatprep.mubr.bf16.mxu0 0
        %2308 = vmatmul.mubr.bf16.gmra.mrb[0].mxu0 %v1586
        %v2309 = vpop.f32.mrb[0].mxu0
        %v2310 = vadd.f32 0.0, %v2309
        %v2311 = vpop.f32.mrb[0].mxu0
        %v2312 = vpop.f32.mrb[0].mxu0
        %v2313 = vadd.f32 0.0, %v2312
        %v2314 = vpop.f32.mrb[0].mxu0
        %2315 = vmatprep.mubr.bf16.mxu0 0
        %2316 = vmatmul.mubr.bf16.gmra.mrb[0].mxu0 %v1587
        %v2317 = vpop.f32.mrb[0].mxu0
        %v2318 = vadd.f32 0.0, %v2317
        %v2319 = vpop.f32.mrb[0].mxu0
        %v2320 = vpop.f32.mrb[0].mxu0
        %v2321 = vadd.f32 0.0, %v2320
        %v2322 = vpop.f32.mrb[0].mxu0
        %2323 = vmatprep.mubr.bf16.mxu0 0
        %2324 = vmatmul.mubr.bf16.gmra.mrb[0].mxu0 %v1588
        %v2325 = vpop.f32.mrb[0].mxu0
        %v2326 = vadd.f32 0.0, %v2325
        %v2327 = vpop.f32.mrb[0].mxu0
        %v2328 = vpop.f32.mrb[0].mxu0
        %v2329 = vadd.f32 0.0, %v2328
        %v2330 = vpop.f32.mrb[0].mxu0
        %2331 = vmatprep.mubr.bf16.mxu0 0
        %2332 = vmatmul.mubr.bf16.gmra.mrb[0].mxu0 %v1589
        %v2333 = vpop.f32.mrb[0].mxu0
        %v2334 = vadd.f32 0.0, %v2333
        %v2335 = vpop.f32.mrb[0].mxu0
        %v2336 = vpop.f32.mrb[0].mxu0
        %v2337 = vadd.f32 0.0, %v2336
        %v2338 = vpop.f32.mrb[0].mxu0
        %2339 = vmatprep.mubr.bf16.mxu0 0
        %2340 = vmatmul.mubr.bf16.gmra.mrb[0].mxu0 %v1590
        %v2341 = vpop.f32.mrb[0].mxu0
        %v2342 = vadd.f32 0.0, %v2341
        %v2343 = vpop.f32.mrb[0].mxu0
        %v2344 = vpop.f32.mrb[0].mxu0
        %v2345 = vadd.f32 0.0, %v2344
        %v2346 = vpop.f32.mrb[0].mxu0
        %2347 = vmatprep.mubr.bf16.mxu0 0
        %2348 = vmatmul.mubr.bf16.gmra.mrb[0].mxu0 %v1591
        %v2349 = vpop.f32.mrb[0].mxu0
        %v2350 = vadd.f32 0.0, %v2349
        %v2351 = vpop.f32.mrb[0].mxu0
        %v2352 = vpop.f32.mrb[0].mxu0
        %v2353 = vadd.f32 0.0, %v2352
        %v2354 = vpop.f32.mrb[0].mxu0
        %2355 = vmatprep.mubr.bf16.mxu0 0
        %2356 = vmatmul.mubr.bf16.gmra.mrb[0].mxu0 %v1592
        %v2357 = vpop.f32.mrb[0].mxu0
        %v2358 = vadd.f32 0.0, %v2357
        %v2359 = vpop.f32.mrb[0].mxu0
        %v2360 = vpop.f32.mrb[0].mxu0
        %v2361 = vadd.f32 0.0, %v2360
        %v2362 = vpop.f32.mrb[0].mxu0
        %2363 = vmatprep.mubr.bf16.mxu0 0
        %2364 = vmatmul.mubr.bf16.gmra.mrb[0].mxu0 %v1593
        %v2365 = vpop.f32.mrb[0].mxu0
        %v2366 = vadd.f32 0.0, %v2365
        %v2367 = vpop.f32.mrb[0].mxu0
        %v2368 = vpop.f32.mrb[0].mxu0
        %v2369 = vadd.f32 0.0, %v2368
        %v2370 = vpop.f32.mrb[0].mxu0
        %2371 = vmatprep.mubr.bf16.mxu0 0
        %2372 = vmatmul.mubr.bf16.gmra.mrb[0].mxu0 %v1594
        %v2373 = vpop.f32.mrb[0].mxu0
        %v2374 = vadd.f32 0.0, %v2373
        %v2375 = vpop.f32.mrb[0].mxu0
        %v2376 = vpop.f32.mrb[0].mxu0
        %v2377 = vadd.f32 0.0, %v2376
        %v2378 = vpop.f32.mrb[0].mxu0
        %2379 = vmatprep.mubr.bf16.mxu0 0
        %2380 = vmatmul.mubr.bf16.gmra.mrb[0].mxu0 %v1595
        %v2381 = vpop.f32.mrb[0].mxu0
        %v2382 = vadd.f32 0.0, %v2381
        %v2383 = vpop.f32.mrb[0].mxu0
        %v2384 = vpop.f32.mrb[0].mxu0
        %v2385 = vadd.f32 0.0, %v2384
        %v2386 = vpop.f32.mrb[0].mxu0
        %2387 = vmatprep.mubr.bf16.mxu0 0
        %2388 = vmatmul.mubr.bf16.gmra.mrb[0].mxu0 %v1596
        %v2389 = vpop.f32.mrb[0].mxu0
        %v2390 = vadd.f32 0.0, %v2389
        %v2391 = vpop.f32.mrb[0].mxu0
        %v2392 = vpop.f32.mrb[0].mxu0
        %v2393 = vadd.f32 0.0, %v2392
        %v2394 = vpop.f32.mrb[0].mxu0
        %2395 = vmatprep.mubr.bf16.mxu0 0
        %2396 = vmatmul.mubr.bf16.gmra.mrb[0].mxu0 %v1597
        %v2397 = vpop.f32.mrb[0].mxu0
        %v2398 = vadd.f32 0.0, %v2397
        %v2399 = vpop.f32.mrb[0].mxu0
        %v2400 = vpop.f32.mrb[0].mxu0
        %v2401 = vadd.f32 0.0, %v2400
        %v2402 = vpop.f32.mrb[0].mxu0
        %2403 = vmatprep.mubr.bf16.mxu0 0
        %2404 = vmatmul.mubr.bf16.gmra.mrb[0].mxu0 %v1598
        %v2405 = vpop.f32.mrb[0].mxu0
        %v2406 = vadd.f32 0.0, %v2405
        %v2407 = vpop.f32.mrb[0].mxu0
        %v2408 = vpop.f32.mrb[0].mxu0
        %v2409 = vadd.f32 0.0, %v2408
        %v2410 = vpop.f32.mrb[0].mxu0
        %2411 = vmatprep.mubr.bf16.mxu0 0
        %2412 = vmatmul.mubr.bf16.gmra.mrb[0].mxu0 %v1599
        %v2413 = vpop.f32.mrb[0].mxu0
        %v2414 = vadd.f32 0.0, %v2413
        %v2415 = vpop.f32.mrb[0].mxu0
        %v2416 = vpop.f32.mrb[0].mxu0
        %v2417 = vadd.f32 0.0, %v2416
        %v2418 = vpop.f32.mrb[0].mxu0
        %2419 = vmatprep.mubr.bf16.mxu0 0
        %2420 = vmatmul.mubr.bf16.gmra.mrb[0].mxu0 %v1600
        %v2421 = vpop.f32.mrb[0].mxu0
        %v2422 = vadd.f32 0.0, %v2421
        %v2423 = vpop.f32.mrb[0].mxu0
        %v2424 = vpop.f32.mrb[0].mxu0
        %v2425 = vadd.f32 0.0, %v2424
        %v2426 = vpop.f32.mrb[0].mxu0
        %2427 = vmatprep.mubr.bf16.mxu0 0
        %2428 = vmatmul.mubr.bf16.gmra.mrb[0].mxu0 %v1601
        %v2429 = vpop.f32.mrb[0].mxu0
        %v2430 = vadd.f32 0.0, %v2429
        %v2431 = vpop.f32.mrb[0].mxu0
        %v2432 = vpop.f32.mrb[0].mxu0
        %v2433 = vadd.f32 0.0, %v2432
        %v2434 = vpop.f32.mrb[0].mxu0
        %2435 = vmatprep.mubr.bf16.mxu0 0
        %2436 = vmatmul.mubr.bf16.gmra.mrb[0].mxu0 %v1602
        %v2437 = vpop.f32.mrb[0].mxu0
        %v2438 = vadd.f32 0.0, %v2437
        %v2439 = vpop.f32.mrb[0].mxu0
        %v2440 = vpop.f32.mrb[0].mxu0
        %v2441 = vadd.f32 0.0, %v2440
        %v2442 = vpop.f32.mrb[0].mxu0
        %2443 = vmatprep.mubr.bf16.mxu0 0
        %2444 = vmatmul.mubr.bf16.gmra.mrb[0].mxu0 %v1603
        %v2445 = vpop.f32.mrb[0].mxu0
        %v2446 = vadd.f32 0.0, %v2445
        %v2447 = vpop.f32.mrb[0].mxu0
        %v2448 = vpop.f32.mrb[0].mxu0
        %v2449 = vadd.f32 0.0, %v2448
        %v2450 = vpop.f32.mrb[0].mxu0
        %2451 = vmatprep.mubr.bf16.mxu0 0
        %2452 = vmatmul.mubr.bf16.gmra.mrb[0].mxu0 %v1604
        %v2453 = vpop.f32.mrb[0].mxu0
        %v2454 = vadd.f32 0.0, %v2453
        %v2455 = vpop.f32.mrb[0].mxu0
        %v2456 = vpop.f32.mrb[0].mxu0
        %v2457 = vadd.f32 0.0, %v2456
        %v2458 = vpop.f32.mrb[0].mxu0
        %2459 = vmatprep.mubr.bf16.mxu0 0
        %2460 = vmatmul.mubr.bf16.gmra.mrb[0].mxu0 %v1605
        %v2461 = vpop.f32.mrb[0].mxu0
        %v2462 = vadd.f32 0.0, %v2461
        %v2463 = vpop.f32.mrb[0].mxu0
        %v2464 = vpop.f32.mrb[0].mxu0
        %v2465 = vadd.f32 0.0, %v2464
        %v2466 = vpop.f32.mrb[0].mxu0
        %2467 = vmatprep.mubr.bf16.mxu0 0
        %2468 = vmatmul.mubr.bf16.gmra.mrb[0].mxu0 %v1606
        %v2469 = vpop.f32.mrb[0].mxu0
        %v2470 = vadd.f32 0.0, %v2469
        %v2471 = vpop.f32.mrb[0].mxu0
        %v2472 = vpop.f32.mrb[0].mxu0
        %v2473 = vadd.f32 0.0, %v2472
        %v2474 = vpop.f32.mrb[0].mxu0
        %2475 = vmatprep.mubr.bf16.mxu0 0
        %2476 = vmatmul.mubr.bf16.gmra.mrb[0].mxu0 %v1607
        %v2477 = vpop.f32.mrb[0].mxu0
        %v2478 = vadd.f32 0.0, %v2477
        %v2479 = vpop.f32.mrb[0].mxu0
        %v2480 = vpop.f32.mrb[0].mxu0
        %v2481 = vadd.f32 0.0, %v2480
        %v2482 = vpop.f32.mrb[0].mxu0
        %2483 = vmatprep.mubr.bf16.mxu0 0
        %2484 = vmatmul.mubr.bf16.gmra.mrb[0].mxu0 %v1608
        %v2485 = vpop.f32.mrb[0].mxu0
        %v2486 = vadd.f32 0.0, %v2485
        %v2487 = vpop.f32.mrb[0].mxu0
        %v2488 = vpop.f32.mrb[0].mxu0
        %v2489 = vadd.f32 0.0, %v2488
        %v2490 = vpop.f32.mrb[0].mxu0
        %2491 = vmatprep.mubr.bf16.mxu0 0
        %2492 = vmatmul.mubr.bf16.gmra.mrb[0].mxu0 %v1609
        %v2493 = vpop.f32.mrb[0].mxu0
        %v2494 = vadd.f32 0.0, %v2493
        %v2495 = vpop.f32.mrb[0].mxu0
        %v2496 = vpop.f32.mrb[0].mxu0
        %v2497 = vadd.f32 0.0, %v2496
        %v2498 = vpop.f32.mrb[0].mxu0
        %2499 = vmatprep.mubr.bf16.mxu0 0
        %2500 = vmatmul.mubr.bf16.gmra.mrb[0].mxu0 %v1610
        %v2501 = vpop.f32.mrb[0].mxu0
        %v2502 = vadd.f32 0.0, %v2501
        %v2503 = vpop.f32.mrb[0].mxu0
        %v2504 = vpop.f32.mrb[0].mxu0
        %v2505 = vadd.f32 0.0, %v2504
        %v2506 = vpop.f32.mrb[0].mxu0
        %2507 = vmatprep.mubr.bf16.mxu0 0
        %2508 = vmatmul.mubr.bf16.gmra.mrb[0].mxu0 %v1611
        %v2509 = vpop.f32.mrb[0].mxu0
        %v2510 = vadd.f32 0.0, %v2509
        %v2511 = vpop.f32.mrb[0].mxu0
        %v2512 = vpop.f32.mrb[0].mxu0
        %v2513 = vadd.f32 0.0, %v2512
        %v2514 = vpop.f32.mrb[0].mxu0
        %2515 = vmatprep.mubr.bf16.mxu0 0
        %2516 = vmatmul.mubr.bf16.gmra.mrb[0].mxu0 %v1612
        %v2517 = vpop.f32.mrb[0].mxu0
        %v2518 = vadd.f32 0.0, %v2517
        %v2519 = vpop.f32.mrb[0].mxu0
        %v2520 = vpop.f32.mrb[0].mxu0
        %v2521 = vadd.f32 0.0, %v2520
        %v2522 = vpop.f32.mrb[0].mxu0
        %2523 = vmatprep.mubr.bf16.mxu0 0
        %2524 = vmatmul.mubr.bf16.gmra.mrb[0].mxu0 %v1613
        %v2525 = vpop.f32.mrb[0].mxu0
        %v2526 = vadd.f32 0.0, %v2525
        %v2527 = vpop.f32.mrb[0].mxu0
        %v2528 = vpop.f32.mrb[0].mxu0
        %v2529 = vadd.f32 0.0, %v2528
        %v2530 = vpop.f32.mrb[0].mxu0
        %2531 = vmatprep.mubr.bf16.mxu0 0
        %2532 = vmatmul.mubr.bf16.gmra.mrb[0].mxu0 %v1614
        %v2533 = vpop.f32.mrb[0].mxu0
        %v2534 = vadd.f32 0.0, %v2533
        %v2535 = vpop.f32.mrb[0].mxu0
        %v2536 = vpop.f32.mrb[0].mxu0
        %v2537 = vadd.f32 0.0, %v2536
        %v2538 = vpop.f32.mrb[0].mxu0
        %2539 = vmatprep.mubr.bf16.mxu0 0
        %2540 = vmatmul.mubr.bf16.gmra.mrb[0].mxu0 %v1615
        %v2541 = vpop.f32.mrb[0].mxu0
        %v2542 = vadd.f32 0.0, %v2541
        %v2543 = vpop.f32.mrb[0].mxu0
        %v2544 = vpop.f32.mrb[0].mxu0
        %v2545 = vadd.f32 0.0, %v2544
        %v2546 = vpop.f32.mrb[0].mxu0
        %2547 = vmatprep.mubr.bf16.mxu0 0
        %2548 = vmatmul.mubr.bf16.gmra.mrb[0].mxu0 %v1616
        %v2549 = vpop.f32.mrb[0].mxu0
        %v2550 = vadd.f32 0.0, %v2549
        %v2551 = vpop.f32.mrb[0].mxu0
        %v2552 = vpop.f32.mrb[0].mxu0
        %v2553 = vadd.f32 0.0, %v2552
        %v2554 = vpop.f32.mrb[0].mxu0
        %2555 = vmatprep.mubr.bf16.mxu0 0
        %2556 = vmatmul.mubr.bf16.gmra.mrb[0].mxu0 %v1617
        %v2557 = vpop.f32.mrb[0].mxu0
        %v2558 = vadd.f32 0.0, %v2557
        %v2559 = vpop.f32.mrb[0].mxu0
        %v2560 = vpop.f32.mrb[0].mxu0
        %v2561 = vadd.f32 0.0, %v2560
        %v2562 = vpop.f32.mrb[0].mxu0
        %2563 = vmatprep.mubr.bf16.mxu0 0
        %2564 = vmatmul.mubr.bf16.gmra.mrb[0].mxu0 %v1618
        %v2565 = vpop.f32.mrb[0].mxu0
        %v2566 = vadd.f32 0.0, %v2565
        %v2567 = vpop.f32.mrb[0].mxu0
        %v2568 = vpop.f32.mrb[0].mxu0
        %v2569 = vadd.f32 0.0, %v2568
        %v2570 = vpop.f32.mrb[0].mxu0
        %2571 = vmatprep.mubr.bf16.mxu0 0
        %2572 = vmatmul.mubr.bf16.gmra.mrb[0].mxu0 %v1619
        %v2573 = vpop.f32.mrb[0].mxu0
        %v2574 = vadd.f32 0.0, %v2573
        %v2575 = vpop.f32.mrb[0].mxu0
        %v2576 = vpop.f32.mrb[0].mxu0
        %v2577 = vadd.f32 0.0, %v2576
        %v2578 = vpop.f32.mrb[0].mxu0
        %2579 = vmatprep.mubr.bf16.mxu0 0
        %2580 = vmatmul.mubr.bf16.gmra.mrb[0].mxu0 %v1620
        %v2581 = vpop.f32.mrb[0].mxu0
        %v2582 = vadd.f32 0.0, %v2581
        %v2583 = vpop.f32.mrb[0].mxu0
        %v2584 = vpop.f32.mrb[0].mxu0
        %v2585 = vadd.f32 0.0, %v2584
        %v2586 = vpop.f32.mrb[0].mxu0
        %2587 = vmatprep.mubr.bf16.mxu0 0
        %2588 = vmatmul.mubr.bf16.gmra.mrb[0].mxu0 %v1621
        %v2589 = vpop.f32.mrb[0].mxu0
        %v2590 = vadd.f32 0.0, %v2589
        %v2591 = vpop.f32.mrb[0].mxu0
        %v2592 = vpop.f32.mrb[0].mxu0
        %v2593 = vadd.f32 0.0, %v2592
        %v2594 = vpop.f32.mrb[0].mxu0
        %2595 = vmatprep.mubr.bf16.mxu0 0
        %2596 = vmatmul.mubr.bf16.gmra.mrb[0].mxu0 %v1622
        %v2597 = vpop.f32.mrb[0].mxu0
        %v2598 = vadd.f32 0.0, %v2597
        %v2599 = vpop.f32.mrb[0].mxu0
        %v2600 = vpop.f32.mrb[0].mxu0
        %v2601 = vadd.f32 0.0, %v2600
        %v2602 = vpop.f32.mrb[0].mxu0
        %2603 = vmatprep.mubr.bf16.mxu0 0
        %2604 = vmatmul.mubr.bf16.gmra.mrb[0].mxu0 %v1623
        %v2605 = vpop.f32.mrb[0].mxu0
        %v2606 = vadd.f32 0.0, %v2605
        %v2607 = vpop.f32.mrb[0].mxu0
        %v2608 = vpop.f32.mrb[0].mxu0
        %v2609 = vadd.f32 0.0, %v2608
        %v2610 = vpop.f32.mrb[0].mxu0
        %2611 = vmatprep.mubr.bf16.mxu0 0
        %2612 = vmatmul.mubr.bf16.gmra.mrb[0].mxu0 %v1624
        %v2613 = vpop.f32.mrb[0].mxu0
        %v2614 = vadd.f32 0.0, %v2613
        %v2615 = vpop.f32.mrb[0].mxu0
        %v2616 = vpop.f32.mrb[0].mxu0
        %v2617 = vadd.f32 0.0, %v2616
        %v2618 = vpop.f32.mrb[0].mxu0
        %2619 = vmatprep.mubr.bf16.mxu0 0
        %2620 = vmatmul.mubr.bf16.gmra.mrb[0].mxu0 %v1625
        %v2621 = vpop.f32.mrb[0].mxu0
        %v2622 = vadd.f32 0.0, %v2621
        %v2623 = vpop.f32.mrb[0].mxu0
        %v2624 = vpop.f32.mrb[0].mxu0
        %v2625 = vadd.f32 0.0, %v2624
        %v2626 = vpop.f32.mrb[0].mxu0
        %2627 = vmatprep.mubr.bf16.mxu0 0
        %2628 = vmatmul.mubr.bf16.gmra.mrb[0].mxu0 %v1626
        %v2629 = vpop.f32.mrb[0].mxu0
        %v2630 = vadd.f32 0.0, %v2629
        %v2631 = vpop.f32.mrb[0].mxu0
        %v2632 = vpop.f32.mrb[0].mxu0
        %v2633 = vadd.f32 0.0, %v2632
        %v2634 = vpop.f32.mrb[0].mxu0
        %2635 = vmatprep.mubr.bf16.mxu0 0
        %2636 = vmatmul.mubr.bf16.gmra.mrb[0].mxu0 %v1627
        %v2637 = vpop.f32.mrb[0].mxu0
        %v2638 = vadd.f32 0.0, %v2637
        %v2639 = vpop.f32.mrb[0].mxu0
        %v2640 = vpop.f32.mrb[0].mxu0
        %v2641 = vadd.f32 0.0, %v2640
        %v2642 = vpop.f32.mrb[0].mxu0
        %2643 = vmatprep.mubr.bf16.mxu0 0
        %2644 = vmatmul.mubr.bf16.gmra.mrb[0].mxu0 %v1628
        %v2645 = vpop.f32.mrb[0].mxu0
        %v2646 = vadd.f32 0.0, %v2645
        %v2647 = vpop.f32.mrb[0].mxu0
        %v2648 = vpop.f32.mrb[0].mxu0
        %v2649 = vadd.f32 0.0, %v2648
        %v2650 = vpop.f32.mrb[0].mxu0
        %2651 = vmatprep.mubr.bf16.mxu0 0
        %2652 = vmatmul.mubr.bf16.gmra.mrb[0].mxu0 %v1629
        %v2653 = vpop.f32.mrb[0].mxu0
        %v2654 = vadd.f32 0.0, %v2653
        %v2655 = vpop.f32.mrb[0].mxu0
        %v2656 = vpop.f32.mrb[0].mxu0
        %v2657 = vadd.f32 0.0, %v2656
        %v2658 = vpop.f32.mrb[0].mxu0
        %2659 = vmatprep.mubr.bf16.mxu0 0
        %2660 = vmatmul.mubr.bf16.gmra.mrb[0].mxu0 %v1630
        %v2661 = vpop.f32.mrb[0].mxu0
        %v2662 = vadd.f32 0.0, %v2661
        %v2663 = vpop.f32.mrb[0].mxu0
        %v2664 = vpop.f32.mrb[0].mxu0
        %v2665 = vadd.f32 0.0, %v2664
        %v2666 = vpop.f32.mrb[0].mxu0
        %2667 = vmatprep.mubr.bf16.mxu0 0
        %2668 = vmatmul.mubr.bf16.gmra.mrb[0].mxu0 %v1631
        %v2669 = vpop.f32.mrb[0].mxu0
        %v2670 = vadd.f32 0.0, %v2669
        %v2671 = vpop.f32.mrb[0].mxu0
        %v2672 = vpop.f32.mrb[0].mxu0
        %v2673 = vadd.f32 0.0, %v2672
        %v2674 = vpop.f32.mrb[0].mxu0
        %2675 = vmatprep.mubr.bf16.mxu0 0
        %2676 = vmatmul.mubr.bf16.gmra.mrb[0].mxu0 %v1632
        %v2677 = vpop.f32.mrb[0].mxu0
        %v2678 = vadd.f32 0.0, %v2677
        %v2679 = vpop.f32.mrb[0].mxu0
        %v2680 = vpop.f32.mrb[0].mxu0
        %v2681 = vadd.f32 0.0, %v2680
        %v2682 = vpop.f32.mrb[0].mxu0
        %2683 = vmatprep.mubr.bf16.mxu0 0
        %2684 = vmatmul.mubr.bf16.gmra.mrb[0].mxu0 %v1633
        %v2685 = vpop.f32.mrb[0].mxu0
        %v2686 = vadd.f32 0.0, %v2685
        %v2687 = vpop.f32.mrb[0].mxu0
        %v2688 = vpop.f32.mrb[0].mxu0
        %v2689 = vadd.f32 0.0, %v2688
        %v2690 = vpop.f32.mrb[0].mxu0
        %2691 = vmatprep.mubr.bf16.mxu0 0
        %2692 = vmatmul.mubr.bf16.gmra.mrb[0].mxu0 %v1634
        %v2693 = vpop.f32.mrb[0].mxu0
        %v2694 = vadd.f32 0.0, %v2693
        %v2695 = vpop.f32.mrb[0].mxu0
        %v2696 = vpop.f32.mrb[0].mxu0
        %v2697 = vadd.f32 0.0, %v2696
        %v2698 = vpop.f32.mrb[0].mxu0
        %2699 = vmatprep.mubr.bf16.mxu0 0
        %2700 = vmatmul.mubr.bf16.gmra.mrb[0].mxu0 %v1635
        %v2701 = vpop.f32.mrb[0].mxu0
        %v2702 = vadd.f32 0.0, %v2701
        %v2703 = vpop.f32.mrb[0].mxu0
        %v2704 = vpop.f32.mrb[0].mxu0
        %v2705 = vadd.f32 0.0, %v2704
        %v2706 = vpop.f32.mrb[0].mxu0
        %2707 = vmatprep.mubr.bf16.mxu0 0
        %2708 = vmatmul.mubr.bf16.gmra.mrb[0].mxu0 %v1636
        %v2709 = vpop.f32.mrb[0].mxu0
        %v2710 = vadd.f32 0.0, %v2709
        %v2711 = vpop.f32.mrb[0].mxu0
        %v2712 = vpop.f32.mrb[0].mxu0
        %v2713 = vadd.f32 0.0, %v2712
        %v2714 = vpop.f32.mrb[0].mxu0
        %2715 = vmatprep.mubr.bf16.mxu0 0
        %2716 = vmatmul.mubr.bf16.gmra.mrb[0].mxu0 %v1637
        %v2717 = vpop.f32.mrb[0].mxu0
        %v2718 = vadd.f32 0.0, %v2717
        %v2719 = vpop.f32.mrb[0].mxu0
        %v2720 = vpop.f32.mrb[0].mxu0
        %v2721 = vadd.f32 0.0, %v2720
        %v2722 = vpop.f32.mrb[0].mxu0
        %2723 = vmatprep.mubr.bf16.mxu0 0
        %2724 = vmatmul.mubr.bf16.gmra.mrb[0].mxu0 %v1638
        %v2725 = vpop.f32.mrb[0].mxu0
        %v2726 = vadd.f32 0.0, %v2725
        %v2727 = vpop.f32.mrb[0].mxu0
        %v2728 = vpop.f32.mrb[0].mxu0
        %v2729 = vadd.f32 0.0, %v2728
        %v2730 = vpop.f32.mrb[0].mxu0
        %2731 = vmatprep.mubr.bf16.mxu0 0
        %2732 = vmatmul.mubr.bf16.gmra.mrb[0].mxu0 %v1639
        %v2733 = vpop.f32.mrb[0].mxu0
        %v2734 = vadd.f32 0.0, %v2733
        %v2735 = vpop.f32.mrb[0].mxu0
        %v2736 = vpop.f32.mrb[0].mxu0
        %v2737 = vadd.f32 0.0, %v2736
        %v2738 = vpop.f32.mrb[0].mxu0
        %2739 = vmatprep.mubr.bf16.mxu0 0
        %2740 = vmatmul.mubr.bf16.gmra.mrb[0].mxu0 %v1640
        %v2741 = vpop.f32.mrb[0].mxu0
        %v2742 = vadd.f32 0.0, %v2741
        %v2743 = vpop.f32.mrb[0].mxu0
        %v2744 = vpop.f32.mrb[0].mxu0
        %v2745 = vadd.f32 0.0, %v2744
        %v2746 = vpop.f32.mrb[0].mxu0
        %2747 = vmatprep.mubr.bf16.mxu0 0
        %2748 = vmatmul.mubr.bf16.gmra.mrb[0].mxu0 %v1641
        %v2749 = vpop.f32.mrb[0].mxu0
        %v2750 = vadd.f32 0.0, %v2749
        %v2751 = vpop.f32.mrb[0].mxu0
        %v2752 = vpop.f32.mrb[0].mxu0
        %v2753 = vadd.f32 0.0, %v2752
        %v2754 = vpop.f32.mrb[0].mxu0
        %2755 = vmatprep.mubr.bf16.mxu0 0
        %2756 = vmatmul.mubr.bf16.gmra.mrb[0].mxu0 %v1642
        %v2757 = vpop.f32.mrb[0].mxu0
        %v2758 = vadd.f32 0.0, %v2757
        %v2759 = vpop.f32.mrb[0].mxu0
        %v2760 = vpop.f32.mrb[0].mxu0
        %v2761 = vadd.f32 0.0, %v2760
        %v2762 = vpop.f32.mrb[0].mxu0
        %2763 = vmatprep.mubr.bf16.mxu0 0
        %2764 = vmatmul.mubr.bf16.gmra.mrb[0].mxu0 %v1643
        %v2765 = vpop.f32.mrb[0].mxu0
        %v2766 = vadd.f32 0.0, %v2765
        %v2767 = vpop.f32.mrb[0].mxu0
        %v2768 = vpop.f32.mrb[0].mxu0
        %v2769 = vadd.f32 0.0, %v2768
        %v2770 = vpop.f32.mrb[0].mxu0
        %2771 = vmatprep.mubr.bf16.mxu0 0
        %2772 = vmatmul.mubr.bf16.gmra.mrb[0].mxu0 %v1644
        %v2773 = vpop.f32.mrb[0].mxu0
        %v2774 = vadd.f32 0.0, %v2773
        %v2775 = vpop.f32.mrb[0].mxu0
        %v2776 = vpop.f32.mrb[0].mxu0
        %v2777 = vadd.f32 0.0, %v2776
        %v2778 = vpop.f32.mrb[0].mxu0
        %2779 = vmatprep.mubr.bf16.mxu0 0
        %2780 = vmatmul.mubr.bf16.gmra.mrb[0].mxu0 %v1645
        %v2781 = vpop.f32.mrb[0].mxu0
        %v2782 = vadd.f32 0.0, %v2781
        %v2783 = vpop.f32.mrb[0].mxu0
        %v2784 = vpop.f32.mrb[0].mxu0
        %v2785 = vadd.f32 0.0, %v2784
        %v2786 = vpop.f32.mrb[0].mxu0
        %2787 = vmatprep.mubr.bf16.mxu0 0
        %2788 = vmatmul.mubr.bf16.gmra.mrb[0].mxu0 %v1646
        %v2789 = vpop.f32.mrb[0].mxu0
        %v2790 = vadd.f32 0.0, %v2789
        %v2791 = vpop.f32.mrb[0].mxu0
        %v2792 = vpop.f32.mrb[0].mxu0
        %v2793 = vadd.f32 0.0, %v2792
        %v2794 = vpop.f32.mrb[0].mxu0
        %2795 = vmatprep.mubr.bf16.mxu0 0
        %2796 = vmatmul.mubr.bf16.gmra.mrb[0].mxu0 %v1647
        %v2797 = vpop.f32.mrb[0].mxu0
        %v2798 = vadd.f32 0.0, %v2797
        %v2799 = vpop.f32.mrb[0].mxu0
        %v2800 = vpop.f32.mrb[0].mxu0
        %v2801 = vadd.f32 0.0, %v2800
        %v2802 = vpop.f32.mrb[0].mxu0
        %2803 = vmatprep.mubr.bf16.mxu0 0
        %2804 = vmatmul.mubr.bf16.gmra.mrb[0].mxu0 %v1648
        %v2805 = vpop.f32.mrb[0].mxu0
        %v2806 = vadd.f32 0.0, %v2805
        %v2807 = vpop.f32.mrb[0].mxu0
        %v2808 = vpop.f32.mrb[0].mxu0
        %v2809 = vadd.f32 0.0, %v2808
        %v2810 = vpop.f32.mrb[0].mxu0
        %2811 = vmatprep.mubr.bf16.mxu0 0
        %2812 = vmatmul.mubr.bf16.gmra.mrb[0].mxu0 %v1649
        %v2813 = vpop.f32.mrb[0].mxu0
        %v2814 = vadd.f32 0.0, %v2813
        %v2815 = vpop.f32.mrb[0].mxu0
        %v2816 = vpop.f32.mrb[0].mxu0
        %v2817 = vadd.f32 0.0, %v2816
        %v2818 = vpop.f32.mrb[0].mxu0
        %2819 = vmatprep.mubr.bf16.mxu0 0
        %2820 = vmatmul.mubr.bf16.gmra.mrb[0].mxu0 %v1650
        %v2821 = vpop.f32.mrb[0].mxu0
        %v2822 = vadd.f32 0.0, %v2821
        %v2823 = vpop.f32.mrb[0].mxu0
        %v2824 = vpop.f32.mrb[0].mxu0
        %v2825 = vadd.f32 0.0, %v2824
        %v2826 = vpop.f32.mrb[0].mxu0
        %2827 = vmatprep.mubr.bf16.mxu0 0
        %2828 = vmatmul.mubr.bf16.gmra.mrb[0].mxu0 %v1651
        %v2829 = vpop.f32.mrb[0].mxu0
        %v2830 = vadd.f32 0.0, %v2829
        %v2831 = vpop.f32.mrb[0].mxu0
        %v2832 = vpop.f32.mrb[0].mxu0
        %v2833 = vadd.f32 0.0, %v2832
        %v2834 = vpop.f32.mrb[0].mxu0
        %2835 = vmatprep.mubr.bf16.mxu0 0
        %2836 = vmatmul.mubr.bf16.gmra.mrb[0].mxu0 %v1652
        %v2837 = vpop.f32.mrb[0].mxu0
        %v2838 = vadd.f32 0.0, %v2837
        %v2839 = vpop.f32.mrb[0].mxu0
        %v2840 = vpop.f32.mrb[0].mxu0
        %v2841 = vadd.f32 0.0, %v2840
        %v2842 = vpop.f32.mrb[0].mxu0
        %2843 = vmatprep.mubr.bf16.mxu0 0
        %2844 = vmatmul.mubr.bf16.gmra.mrb[0].mxu0 %v1653
        %v2845 = vpop.f32.mrb[0].mxu0
        %v2846 = vadd.f32 0.0, %v2845
        %v2847 = vpop.f32.mrb[0].mxu0
        %v2848 = vpop.f32.mrb[0].mxu0
        %v2849 = vadd.f32 0.0, %v2848
        %v2850 = vpop.f32.mrb[0].mxu0
        %2851 = vmatprep.mubr.bf16.mxu0 0
        %2852 = vmatmul.mubr.bf16.gmra.mrb[0].mxu0 %v1654
        %v2853 = vpop.f32.mrb[0].mxu0
        %v2854 = vadd.f32 0.0, %v2853
        %v2855 = vpop.f32.mrb[0].mxu0
        %v2856 = vpop.f32.mrb[0].mxu0
        %v2857 = vadd.f32 0.0, %v2856
        %v2858 = vpop.f32.mrb[0].mxu0
        %2859 = vmatprep.mubr.bf16.mxu0 0
        %2860 = vmatmul.mubr.bf16.gmra.mrb[0].mxu0 %v1655
        %v2861 = vpop.f32.mrb[0].mxu0
        %v2862 = vadd.f32 0.0, %v2861
        %v2863 = vpop.f32.mrb[0].mxu0
        %v2864 = vpop.f32.mrb[0].mxu0
        %v2865 = vadd.f32 0.0, %v2864
        %v2866 = vpop.f32.mrb[0].mxu0
        %2867 = vmatprep.mubr.bf16.mxu0 0
        %2868 = vmatmul.mubr.bf16.gmra.mrb[0].mxu0 %v1656
        %v2869 = vpop.f32.mrb[0].mxu0
        %v2870 = vadd.f32 0.0, %v2869
        %v2871 = vpop.f32.mrb[0].mxu0
        %v2872 = vpop.f32.mrb[0].mxu0
        %v2873 = vadd.f32 0.0, %v2872
        %v2874 = vpop.f32.mrb[0].mxu0
        %2875 = vmatprep.mubr.bf16.mxu0 0
        %2876 = vmatmul.mubr.bf16.gmra.mrb[0].mxu0 %v1657
        %v2877 = vpop.f32.mrb[0].mxu0
        %v2878 = vadd.f32 0.0, %v2877
        %v2879 = vpop.f32.mrb[0].mxu0
        %v2880 = vpop.f32.mrb[0].mxu0
        %v2881 = vadd.f32 0.0, %v2880
        %v2882 = vpop.f32.mrb[0].mxu0
        %2883 = vmatprep.mubr.bf16.mxu0 0
        %2884 = vmatmul.mubr.bf16.gmra.mrb[0].mxu0 %v1658
        %v2885 = vpop.f32.mrb[0].mxu0
        %v2886 = vadd.f32 0.0, %v2885
        %v2887 = vpop.f32.mrb[0].mxu0
        %v2888 = vpop.f32.mrb[0].mxu0
        %v2889 = vadd.f32 0.0, %v2888
        %v2890 = vpop.f32.mrb[0].mxu0
        %2891 = vdwg.mxu0
        %v2892 = vadd.f32 %v491, %v1870
        %v2893 = vadd.f32 %v492, %v1873
        %v2894 = vadd.f32 %v493, %v1878
        %v2895 = vadd.f32 %v494, %v1881
        %v2896 = vadd.f32 %v495, %v1886
        %v2897 = vadd.f32 %v496, %v1889
        %v2898 = vadd.f32 %v497, %v1894
        %v2899 = vadd.f32 %v498, %v1897
        %v2900 = vadd.f32 %v499, %v1902
        %v2901 = vadd.f32 %v500, %v1905
        %v2902 = vadd.f32 %v501, %v1910
        %v2903 = vadd.f32 %v502, %v1913
        %v2904 = vadd.f32 %v503, %v1918
        %v2905 = vadd.f32 %v504, %v1921
        %v2906 = vadd.f32 %v505, %v1926
        %v2907 = vadd.f32 %v506, %v1929
        %v2908 = vadd.f32 %v507, %v1934
        %v2909 = vadd.f32 %v508, %v1937
        %v2910 = vadd.f32 %v509, %v1942
        %v2911 = vadd.f32 %v510, %v1945
        %v2912 = vadd.f32 %v511, %v1950
        %v2913 = vadd.f32 %v512, %v1953
        %v2914 = vadd.f32 %v513, %v1958
        %v2915 = vadd.f32 %v514, %v1961
        %v2916 = vadd.f32 %v515, %v1966
        %v2917 = vadd.f32 %v516, %v1969
        %v2918 = vadd.f32 %v517, %v1974
        %v2919 = vadd.f32 %v518, %v1977
        %v2920 = vadd.f32 %v519, %v1982
        %v2921 = vadd.f32 %v520, %v1985
        %v2922 = vadd.f32 %v521, %v1990
        %v2923 = vadd.f32 %v522, %v1993
        %v2924 = vadd.f32 %v523, %v1998
        %v2925 = vadd.f32 %v524, %v2001
        %v2926 = vadd.f32 %v525, %v2006
        %v2927 = vadd.f32 %v526, %v2009
        %v2928 = vadd.f32 %v527, %v2014
        %v2929 = vadd.f32 %v528, %v2017
        %v2930 = vadd.f32 %v529, %v2022
        %v2931 = vadd.f32 %v530, %v2025
        %v2932 = vadd.f32 %v531, %v2030
        %v2933 = vadd.f32 %v532, %v2033
        %v2934 = vadd.f32 %v533, %v2038
        %v2935 = vadd.f32 %v534, %v2041
        %v2936 = vadd.f32 %v535, %v2046
        %v2937 = vadd.f32 %v536, %v2049
        %v2938 = vadd.f32 %v537, %v2054
        %v2939 = vadd.f32 %v538, %v2057
        %v2940 = vadd.f32 %v539, %v2062
        %v2941 = vadd.f32 %v540, %v2065
        %v2942 = vadd.f32 %v541, %v2070
        %v2943 = vadd.f32 %v542, %v2073
        %v2944 = vadd.f32 %v543, %v2078
        %v2945 = vadd.f32 %v544, %v2081
        %v2946 = vadd.f32 %v545, %v2086
        %v2947 = vadd.f32 %v546, %v2089
        %v2948 = vadd.f32 %v547, %v2094
        %v2949 = vadd.f32 %v548, %v2097
        %v2950 = vadd.f32 %v549, %v2102
        %v2951 = vadd.f32 %v550, %v2105
        %v2952 = vadd.f32 %v551, %v2110
        %v2953 = vadd.f32 %v552, %v2113
        %v2954 = vadd.f32 %v553, %v2118
        %v2955 = vadd.f32 %v554, %v2121
        %v2956 = vadd.f32 %v555, %v2126
        %v2957 = vadd.f32 %v556, %v2129
        %v2958 = vadd.f32 %v557, %v2134
        %v2959 = vadd.f32 %v558, %v2137
        %v2960 = vadd.f32 %v559, %v2142
        %v2961 = vadd.f32 %v560, %v2145
        %v2962 = vadd.f32 %v561, %v2150
        %v2963 = vadd.f32 %v562, %v2153
        %v2964 = vadd.f32 %v563, %v2158
        %v2965 = vadd.f32 %v564, %v2161
        %v2966 = vadd.f32 %v565, %v2166
        %v2967 = vadd.f32 %v566, %v2169
        %v2968 = vadd.f32 %v567, %v2174
        %v2969 = vadd.f32 %v568, %v2177
        %v2970 = vadd.f32 %v569, %v2182
        %v2971 = vadd.f32 %v570, %v2185
        %v2972 = vadd.f32 %v571, %v2190
        %v2973 = vadd.f32 %v572, %v2193
        %v2974 = vadd.f32 %v573, %v2198
        %v2975 = vadd.f32 %v574, %v2201
        %v2976 = vadd.f32 %v575, %v2206
        %v2977 = vadd.f32 %v576, %v2209
        %v2978 = vadd.f32 %v577, %v2214
        %v2979 = vadd.f32 %v578, %v2217
        %v2980 = vadd.f32 %v579, %v2222
        %v2981 = vadd.f32 %v580, %v2225
        %v2982 = vadd.f32 %v581, %v2230
        %v2983 = vadd.f32 %v582, %v2233
        %v2984 = vadd.f32 %v583, %v2238
        %v2985 = vadd.f32 %v584, %v2241
        %v2986 = vadd.f32 %v585, %v2246
        %v2987 = vadd.f32 %v586, %v2249
        %v2988 = vadd.f32 %v587, %v2254
        %v2989 = vadd.f32 %v588, %v2257
        %v2990 = vadd.f32 %v589, %v2262
        %v2991 = vadd.f32 %v590, %v2265
        %v2992 = vadd.f32 %v591, %v2270
        %v2993 = vadd.f32 %v592, %v2273
        %v2994 = vadd.f32 %v593, %v2278
        %v2995 = vadd.f32 %v594, %v2281
        %v2996 = vadd.f32 %v595, %v2286
        %v2997 = vadd.f32 %v596, %v2289
        %v2998 = vadd.f32 %v597, %v2294
        %v2999 = vadd.f32 %v598, %v2297
        %v3000 = vadd.f32 %v599, %v2302
        %v3001 = vadd.f32 %v600, %v2305
        %v3002 = vadd.f32 %v601, %v2310
        %v3003 = vadd.f32 %v602, %v2313
        %v3004 = vadd.f32 %v603, %v2318
        %v3005 = vadd.f32 %v604, %v2321
        %v3006 = vadd.f32 %v605, %v2326
        %v3007 = vadd.f32 %v606, %v2329
        %v3008 = vadd.f32 %v607, %v2334
        %v3009 = vadd.f32 %v608, %v2337
        %v3010 = vadd.f32 %v609, %v2342
        %v3011 = vadd.f32 %v610, %v2345
        %v3012 = vadd.f32 %v611, %v2350
        %v3013 = vadd.f32 %v612, %v2353
        %v3014 = vadd.f32 %v613, %v2358
        %v3015 = vadd.f32 %v614, %v2361
        %v3016 = vadd.f32 %v615, %v2366
        %v3017 = vadd.f32 %v616, %v2369
        %v3018 = vadd.f32 %v617, %v2374
        %v3019 = vadd.f32 %v618, %v2377
        %v3020 = vadd.f32 %v619, %v2382
        %v3021 = vadd.f32 %v620, %v2385
        %v3022 = vadd.f32 %v621, %v2390
        %v3023 = vadd.f32 %v622, %v2393
        %v3024 = vadd.f32 %v623, %v2398
        %v3025 = vadd.f32 %v624, %v2401
        %v3026 = vadd.f32 %v625, %v2406
        %v3027 = vadd.f32 %v626, %v2409
        %v3028 = vadd.f32 %v627, %v2414
        %v3029 = vadd.f32 %v628, %v2417
        %v3030 = vadd.f32 %v629, %v2422
        %v3031 = vadd.f32 %v630, %v2425
        %v3032 = vadd.f32 %v631, %v2430
        %v3033 = vadd.f32 %v632, %v2433
        %v3034 = vadd.f32 %v633, %v2438
        %v3035 = vadd.f32 %v634, %v2441
        %v3036 = vadd.f32 %v635, %v2446
        %v3037 = vadd.f32 %v636, %v2449
        %v3038 = vadd.f32 %v637, %v2454
        %v3039 = vadd.f32 %v638, %v2457
        %v3040 = vadd.f32 %v639, %v2462
        %v3041 = vadd.f32 %v640, %v2465
        %v3042 = vadd.f32 %v641, %v2470
        %v3043 = vadd.f32 %v642, %v2473
        %v3044 = vadd.f32 %v643, %v2478
        %v3045 = vadd.f32 %v644, %v2481
        %v3046 = vadd.f32 %v645, %v2486
        %v3047 = vadd.f32 %v646, %v2489
        %v3048 = vadd.f32 %v647, %v2494
        %v3049 = vadd.f32 %v648, %v2497
        %v3050 = vadd.f32 %v649, %v2502
        %v3051 = vadd.f32 %v650, %v2505
        %v3052 = vadd.f32 %v651, %v2510
        %v3053 = vadd.f32 %v652, %v2513
        %v3054 = vadd.f32 %v653, %v2518
        %v3055 = vadd.f32 %v654, %v2521
        %v3056 = vadd.f32 %v655, %v2526
        %v3057 = vadd.f32 %v656, %v2529
        %v3058 = vadd.f32 %v657, %v2534
        %v3059 = vadd.f32 %v658, %v2537
        %v3060 = vadd.f32 %v659, %v2542
        %v3061 = vadd.f32 %v660, %v2545
        %v3062 = vadd.f32 %v661, %v2550
        %v3063 = vadd.f32 %v662, %v2553
        %v3064 = vadd.f32 %v663, %v2558
        %v3065 = vadd.f32 %v664, %v2561
        %v3066 = vadd.f32 %v665, %v2566
        %v3067 = vadd.f32 %v666, %v2569
        %v3068 = vadd.f32 %v667, %v2574
        %v3069 = vadd.f32 %v668, %v2577
        %v3070 = vadd.f32 %v669, %v2582
        %v3071 = vadd.f32 %v670, %v2585
        %v3072 = vadd.f32 %v671, %v2590
        %v3073 = vadd.f32 %v672, %v2593
        %v3074 = vadd.f32 %v673, %v2598
        %v3075 = vadd.f32 %v674, %v2601
        %v3076 = vadd.f32 %v675, %v2606
        %v3077 = vadd.f32 %v676, %v2609
        %v3078 = vadd.f32 %v677, %v2614
        %v3079 = vadd.f32 %v678, %v2617
        %v3080 = vadd.f32 %v679, %v2622
        %v3081 = vadd.f32 %v680, %v2625
        %v3082 = vadd.f32 %v681, %v2630
        %v3083 = vadd.f32 %v682, %v2633
        %v3084 = vadd.f32 %v683, %v2638
        %v3085 = vadd.f32 %v684, %v2641
        %v3086 = vadd.f32 %v685, %v2646
        %v3087 = vadd.f32 %v686, %v2649
        %v3088 = vadd.f32 %v687, %v2654
        %v3089 = vadd.f32 %v688, %v2657
        %v3090 = vadd.f32 %v689, %v2662
        %v3091 = vadd.f32 %v690, %v2665
        %v3092 = vadd.f32 %v691, %v2670
        %v3093 = vadd.f32 %v692, %v2673
        %v3094 = vadd.f32 %v693, %v2678
        %v3095 = vadd.f32 %v694, %v2681
        %v3096 = vadd.f32 %v695, %v2686
        %v3097 = vadd.f32 %v696, %v2689
        %v3098 = vadd.f32 %v697, %v2694
        %v3099 = vadd.f32 %v698, %v2697
        %v3100 = vadd.f32 %v699, %v2702
        %v3101 = vadd.f32 %v700, %v2705
        %v3102 = vadd.f32 %v701, %v2710
        %v3103 = vadd.f32 %v702, %v2713
        %v3104 = vadd.f32 %v703, %v2718
        %v3105 = vadd.f32 %v704, %v2721
        %v3106 = vadd.f32 %v705, %v2726
        %v3107 = vadd.f32 %v706, %v2729
        %v3108 = vadd.f32 %v707, %v2734
        %v3109 = vadd.f32 %v708, %v2737
        %v3110 = vadd.f32 %v709, %v2742
        %v3111 = vadd.f32 %v710, %v2745
        %v3112 = vadd.f32 %v711, %v2750
        %v3113 = vadd.f32 %v712, %v2753
        %v3114 = vadd.f32 %v713, %v2758
        %v3115 = vadd.f32 %v714, %v2761
        %v3116 = vadd.f32 %v715, %v2766
        %v3117 = vadd.f32 %v716, %v2769
        %v3118 = vadd.f32 %v717, %v2774
        %v3119 = vadd.f32 %v718, %v2777
        %v3120 = vadd.f32 %v719, %v2782
        %v3121 = vadd.f32 %v720, %v2785
        %v3122 = vadd.f32 %v721, %v2790
        %v3123 = vadd.f32 %v722, %v2793
        %v3124 = vadd.f32 %v723, %v2798
        %v3125 = vadd.f32 %v724, %v2801
        %v3126 = vadd.f32 %v725, %v2806
        %v3127 = vadd.f32 %v726, %v2809
        %v3128 = vadd.f32 %v727, %v2814
        %v3129 = vadd.f32 %v728, %v2817
        %v3130 = vadd.f32 %v729, %v2822
        %v3131 = vadd.f32 %v730, %v2825
        %v3132 = vadd.f32 %v731, %v2830
        %v3133 = vadd.f32 %v732, %v2833
        %v3134 = vadd.f32 %v733, %v2838
        %v3135 = vadd.f32 %v734, %v2841
        %v3136 = vadd.f32 %v735, %v2846
        %v3137 = vadd.f32 %v736, %v2849
        %v3138 = vadd.f32 %v737, %v2854
        %v3139 = vadd.f32 %v738, %v2857
        %v3140 = vadd.f32 %v739, %v2862
        %v3141 = vadd.f32 %v740, %v2865
        %v3142 = vadd.f32 %v741, %v2870
        %v3143 = vadd.f32 %v742, %v2873
        %v3144 = vadd.f32 %v743, %v2878
        %v3145 = vadd.f32 %v744, %v2881
        %v3146 = vadd.f32 %v745, %v2886
        %v3147 = vadd.f32 %v746, %v2889
        %3148 = vst [vmem:[#allocation2] sm:$0xff] %v2892
        %3149 = vst [vmem:[#allocation2 + $0x8] sm:$0xff] %v2893
        %3150 = vst [vmem:[#allocation2 + $0x10] sm:$0xff] %v2894
        %3151 = vst [vmem:[#allocation2 + $0x18] sm:$0xff] %v2895
        %3152 = vst [vmem:[#allocation2 + $0x20] sm:$0xff] %v2896
        %3153 = vst [vmem:[#allocation2 + $0x28] sm:$0xff] %v2897
        %3154 = vst [vmem:[#allocation2 + $0x30] sm:$0xff] %v2898
        %3155 = vst [vmem:[#allocation2 + $0x38] sm:$0xff] %v2899
        %3156 = vst [vmem:[#allocation2 + $0x40] sm:$0xff] %v2900
        %3157 = vst [vmem:[#allocation2 + $0x48] sm:$0xff] %v2901
        %3158 = vst [vmem:[#allocation2 + $0x50] sm:$0xff] %v2902
        %3159 = vst [vmem:[#allocation2 + $0x58] sm:$0xff] %v2903
        %3160 = vst [vmem:[#allocation2 + $0x60] sm:$0xff] %v2904
        %3161 = vst [vmem:[#allocation2 + $0x68] sm:$0xff] %v2905
        %3162 = vst [vmem:[#allocation2 + $0x70] sm:$0xff] %v2906
        %3163 = vst [vmem:[#allocation2 + $0x78] sm:$0xff] %v2907
        %3164 = vst [vmem:[#allocation2 + $0x80] sm:$0xff] %v2908
        %3165 = vst [vmem:[#allocation2 + $0x88] sm:$0xff] %v2909
        %3166 = vst [vmem:[#allocation2 + $0x90] sm:$0xff] %v2910
        %3167 = vst [vmem:[#allocation2 + $0x98] sm:$0xff] %v2911
        %3168 = vst [vmem:[#allocation2 + $0xa0] sm:$0xff] %v2912
        %3169 = vst [vmem:[#allocation2 + $0xa8] sm:$0xff] %v2913
        %3170 = vst [vmem:[#allocation2 + $0xb0] sm:$0xff] %v2914
        %3171 = vst [vmem:[#allocation2 + $0xb8] sm:$0xff] %v2915
        %3172 = vst [vmem:[#allocation2 + $0xc0] sm:$0xff] %v2916
        %3173 = vst [vmem:[#allocation2 + $0xc8] sm:$0xff] %v2917
        %3174 = vst [vmem:[#allocation2 + $0xd0] sm:$0xff] %v2918
        %3175 = vst [vmem:[#allocation2 + $0xd8] sm:$0xff] %v2919
        %3176 = vst [vmem:[#allocation2 + $0xe0] sm:$0xff] %v2920
        %3177 = vst [vmem:[#allocation2 + $0xe8] sm:$0xff] %v2921
        %3178 = vst [vmem:[#allocation2 + $0xf0] sm:$0xff] %v2922
        %3179 = vst [vmem:[#allocation2 + $0xf8] sm:$0xff] %v2923
        %3180 = vst [vmem:[#allocation2 + $0x100] sm:$0xff] %v2924
        %3181 = vst [vmem:[#allocation2 + $0x108] sm:$0xff] %v2925
        %3182 = vst [vmem:[#allocation2 + $0x110] sm:$0xff] %v2926
        %3183 = vst [vmem:[#allocation2 + $0x118] sm:$0xff] %v2927
        %3184 = vst [vmem:[#allocation2 + $0x120] sm:$0xff] %v2928
        %3185 = vst [vmem:[#allocation2 + $0x128] sm:$0xff] %v2929
        %3186 = vst [vmem:[#allocation2 + $0x130] sm:$0xff] %v2930
        %3187 = vst [vmem:[#allocation2 + $0x138] sm:$0xff] %v2931
        %3188 = vst [vmem:[#allocation2 + $0x140] sm:$0xff] %v2932
        %3189 = vst [vmem:[#allocation2 + $0x148] sm:$0xff] %v2933
        %3190 = vst [vmem:[#allocation2 + $0x150] sm:$0xff] %v2934
        %3191 = vst [vmem:[#allocation2 + $0x158] sm:$0xff] %v2935
        %3192 = vst [vmem:[#allocation2 + $0x160] sm:$0xff] %v2936
        %3193 = vst [vmem:[#allocation2 + $0x168] sm:$0xff] %v2937
        %3194 = vst [vmem:[#allocation2 + $0x170] sm:$0xff] %v2938
        %3195 = vst [vmem:[#allocation2 + $0x178] sm:$0xff] %v2939
        %3196 = vst [vmem:[#allocation2 + $0x180] sm:$0xff] %v2940
        %3197 = vst [vmem:[#allocation2 + $0x188] sm:$0xff] %v2941
        %3198 = vst [vmem:[#allocation2 + $0x190] sm:$0xff] %v2942
        %3199 = vst [vmem:[#allocation2 + $0x198] sm:$0xff] %v2943
        %3200 = vst [vmem:[#allocation2 + $0x1a0] sm:$0xff] %v2944
        %3201 = vst [vmem:[#allocation2 + $0x1a8] sm:$0xff] %v2945
        %3202 = vst [vmem:[#allocation2 + $0x1b0] sm:$0xff] %v2946
        %3203 = vst [vmem:[#allocation2 + $0x1b8] sm:$0xff] %v2947
        %3204 = vst [vmem:[#allocation2 + $0x1c0] sm:$0xff] %v2948
        %3205 = vst [vmem:[#allocation2 + $0x1c8] sm:$0xff] %v2949
        %3206 = vst [vmem:[#allocation2 + $0x1d0] sm:$0xff] %v2950
        %3207 = vst [vmem:[#allocation2 + $0x1d8] sm:$0xff] %v2951
        %3208 = vst [vmem:[#allocation2 + $0x1e0] sm:$0xff] %v2952
        %3209 = vst [vmem:[#allocation2 + $0x1e8] sm:$0xff] %v2953
        %3210 = vst [vmem:[#allocation2 + $0x1f0] sm:$0xff] %v2954
        %3211 = vst [vmem:[#allocation2 + $0x1f8] sm:$0xff] %v2955
        %3212 = vst [vmem:[#allocation2 + $0x200] sm:$0xff] %v2956
        %3213 = vst [vmem:[#allocation2 + $0x208] sm:$0xff] %v2957
        %3214 = vst [vmem:[#allocation2 + $0x210] sm:$0xff] %v2958
        %3215 = vst [vmem:[#allocation2 + $0x218] sm:$0xff] %v2959
        %3216 = vst [vmem:[#allocation2 + $0x220] sm:$0xff] %v2960
        %3217 = vst [vmem:[#allocation2 + $0x228] sm:$0xff] %v2961
        %3218 = vst [vmem:[#allocation2 + $0x230] sm:$0xff] %v2962
        %3219 = vst [vmem:[#allocation2 + $0x238] sm:$0xff] %v2963
        %3220 = vst [vmem:[#allocation2 + $0x240] sm:$0xff] %v2964
        %3221 = vst [vmem:[#allocation2 + $0x248] sm:$0xff] %v2965
        %3222 = vst [vmem:[#allocation2 + $0x250] sm:$0xff] %v2966
        %3223 = vst [vmem:[#allocation2 + $0x258] sm:$0xff] %v2967
        %3224 = vst [vmem:[#allocation2 + $0x260] sm:$0xff] %v2968
        %3225 = vst [vmem:[#allocation2 + $0x268] sm:$0xff] %v2969
        %3226 = vst [vmem:[#allocation2 + $0x270] sm:$0xff] %v2970
        %3227 = vst [vmem:[#allocation2 + $0x278] sm:$0xff] %v2971
        %3228 = vst [vmem:[#allocation2 + $0x280] sm:$0xff] %v2972
        %3229 = vst [vmem:[#allocation2 + $0x288] sm:$0xff] %v2973
        %3230 = vst [vmem:[#allocation2 + $0x290] sm:$0xff] %v2974
        %3231 = vst [vmem:[#allocation2 + $0x298] sm:$0xff] %v2975
        %3232 = vst [vmem:[#allocation2 + $0x2a0] sm:$0xff] %v2976
        %3233 = vst [vmem:[#allocation2 + $0x2a8] sm:$0xff] %v2977
        %3234 = vst [vmem:[#allocation2 + $0x2b0] sm:$0xff] %v2978
        %3235 = vst [vmem:[#allocation2 + $0x2b8] sm:$0xff] %v2979
        %3236 = vst [vmem:[#allocation2 + $0x2c0] sm:$0xff] %v2980
        %3237 = vst [vmem:[#allocation2 + $0x2c8] sm:$0xff] %v2981
        %3238 = vst [vmem:[#allocation2 + $0x2d0] sm:$0xff] %v2982
        %3239 = vst [vmem:[#allocation2 + $0x2d8] sm:$0xff] %v2983
        %3240 = vst [vmem:[#allocation2 + $0x2e0] sm:$0xff] %v2984
        %3241 = vst [vmem:[#allocation2 + $0x2e8] sm:$0xff] %v2985
        %3242 = vst [vmem:[#allocation2 + $0x2f0] sm:$0xff] %v2986
        %3243 = vst [vmem:[#allocation2 + $0x2f8] sm:$0xff] %v2987
        %3244 = vst [vmem:[#allocation2 + $0x300] sm:$0xff] %v2988
        %3245 = vst [vmem:[#allocation2 + $0x308] sm:$0xff] %v2989
        %3246 = vst [vmem:[#allocation2 + $0x310] sm:$0xff] %v2990
        %3247 = vst [vmem:[#allocation2 + $0x318] sm:$0xff] %v2991
        %3248 = vst [vmem:[#allocation2 + $0x320] sm:$0xff] %v2992
        %3249 = vst [vmem:[#allocation2 + $0x328] sm:$0xff] %v2993
        %3250 = vst [vmem:[#allocation2 + $0x330] sm:$0xff] %v2994
        %3251 = vst [vmem:[#allocation2 + $0x338] sm:$0xff] %v2995
        %3252 = vst [vmem:[#allocation2 + $0x340] sm:$0xff] %v2996
        %3253 = vst [vmem:[#allocation2 + $0x348] sm:$0xff] %v2997
        %3254 = vst [vmem:[#allocation2 + $0x350] sm:$0xff] %v2998
        %3255 = vst [vmem:[#allocation2 + $0x358] sm:$0xff] %v2999
        %3256 = vst [vmem:[#allocation2 + $0x360] sm:$0xff] %v3000
        %3257 = vst [vmem:[#allocation2 + $0x368] sm:$0xff] %v3001
        %3258 = vst [vmem:[#allocation2 + $0x370] sm:$0xff] %v3002
        %3259 = vst [vmem:[#allocation2 + $0x378] sm:$0xff] %v3003
        %3260 = vst [vmem:[#allocation2 + $0x380] sm:$0xff] %v3004
        %3261 = vst [vmem:[#allocation2 + $0x388] sm:$0xff] %v3005
        %3262 = vst [vmem:[#allocation2 + $0x390] sm:$0xff] %v3006
        %3263 = vst [vmem:[#allocation2 + $0x398] sm:$0xff] %v3007
        %3264 = vst [vmem:[#allocation2 + $0x3a0] sm:$0xff] %v3008
        %3265 = vst [vmem:[#allocation2 + $0x3a8] sm:$0xff] %v3009
        %3266 = vst [vmem:[#allocation2 + $0x3b0] sm:$0xff] %v3010
        %3267 = vst [vmem:[#allocation2 + $0x3b8] sm:$0xff] %v3011
        %3268 = vst [vmem:[#allocation2 + $0x3c0] sm:$0xff] %v3012
        %3269 = vst [vmem:[#allocation2 + $0x3c8] sm:$0xff] %v3013
        %3270 = vst [vmem:[#allocation2 + $0x3d0] sm:$0xff] %v3014
        %3271 = vst [vmem:[#allocation2 + $0x3d8] sm:$0xff] %v3015
        %3272 = vst [vmem:[#allocation2 + $0x3e0] sm:$0xff] %v3016
        %3273 = vst [vmem:[#allocation2 + $0x3e8] sm:$0xff] %v3017
        %3274 = vst [vmem:[#allocation2 + $0x3f0] sm:$0xff] %v3018
        %3275 = vst [vmem:[#allocation2 + $0x3f8] sm:$0xff] %v3019
        %3276 = vst [vmem:[#allocation2 + $0x400] sm:$0xff] %v3020
        %3277 = vst [vmem:[#allocation2 + $0x408] sm:$0xff] %v3021
        %3278 = vst [vmem:[#allocation2 + $0x410] sm:$0xff] %v3022
        %3279 = vst [vmem:[#allocation2 + $0x418] sm:$0xff] %v3023
        %3280 = vst [vmem:[#allocation2 + $0x420] sm:$0xff] %v3024
        %3281 = vst [vmem:[#allocation2 + $0x428] sm:$0xff] %v3025
        %3282 = vst [vmem:[#allocation2 + $0x430] sm:$0xff] %v3026
        %3283 = vst [vmem:[#allocation2 + $0x438] sm:$0xff] %v3027
        %3284 = vst [vmem:[#allocation2 + $0x440] sm:$0xff] %v3028
        %3285 = vst [vmem:[#allocation2 + $0x448] sm:$0xff] %v3029
        %3286 = vst [vmem:[#allocation2 + $0x450] sm:$0xff] %v3030
        %3287 = vst [vmem:[#allocation2 + $0x458] sm:$0xff] %v3031
        %3288 = vst [vmem:[#allocation2 + $0x460] sm:$0xff] %v3032
        %3289 = vst [vmem:[#allocation2 + $0x468] sm:$0xff] %v3033
        %3290 = vst [vmem:[#allocation2 + $0x470] sm:$0xff] %v3034
        %3291 = vst [vmem:[#allocation2 + $0x478] sm:$0xff] %v3035
        %3292 = vst [vmem:[#allocation2 + $0x480] sm:$0xff] %v3036
        %3293 = vst [vmem:[#allocation2 + $0x488] sm:$0xff] %v3037
        %3294 = vst [vmem:[#allocation2 + $0x490] sm:$0xff] %v3038
        %3295 = vst [vmem:[#allocation2 + $0x498] sm:$0xff] %v3039
        %3296 = vst [vmem:[#allocation2 + $0x4a0] sm:$0xff] %v3040
        %3297 = vst [vmem:[#allocation2 + $0x4a8] sm:$0xff] %v3041
        %3298 = vst [vmem:[#allocation2 + $0x4b0] sm:$0xff] %v3042
        %3299 = vst [vmem:[#allocation2 + $0x4b8] sm:$0xff] %v3043
        %3300 = vst [vmem:[#allocation2 + $0x4c0] sm:$0xff] %v3044
        %3301 = vst [vmem:[#allocation2 + $0x4c8] sm:$0xff] %v3045
        %3302 = vst [vmem:[#allocation2 + $0x4d0] sm:$0xff] %v3046
        %3303 = vst [vmem:[#allocation2 + $0x4d8] sm:$0xff] %v3047
        %3304 = vst [vmem:[#allocation2 + $0x4e0] sm:$0xff] %v3048
        %3305 = vst [vmem:[#allocation2 + $0x4e8] sm:$0xff] %v3049
        %3306 = vst [vmem:[#allocation2 + $0x4f0] sm:$0xff] %v3050
        %3307 = vst [vmem:[#allocation2 + $0x4f8] sm:$0xff] %v3051
        %3308 = vst [vmem:[#allocation2 + $0x500] sm:$0xff] %v3052
        %3309 = vst [vmem:[#allocation2 + $0x508] sm:$0xff] %v3053
        %3310 = vst [vmem:[#allocation2 + $0x510] sm:$0xff] %v3054
        %3311 = vst [vmem:[#allocation2 + $0x518] sm:$0xff] %v3055
        %3312 = vst [vmem:[#allocation2 + $0x520] sm:$0xff] %v3056
        %3313 = vst [vmem:[#allocation2 + $0x528] sm:$0xff] %v3057
        %3314 = vst [vmem:[#allocation2 + $0x530] sm:$0xff] %v3058
        %3315 = vst [vmem:[#allocation2 + $0x538] sm:$0xff] %v3059
        %3316 = vst [vmem:[#allocation2 + $0x540] sm:$0xff] %v3060
        %3317 = vst [vmem:[#allocation2 + $0x548] sm:$0xff] %v3061
        %3318 = vst [vmem:[#allocation2 + $0x550] sm:$0xff] %v3062
        %3319 = vst [vmem:[#allocation2 + $0x558] sm:$0xff] %v3063
        %3320 = vst [vmem:[#allocation2 + $0x560] sm:$0xff] %v3064
        %3321 = vst [vmem:[#allocation2 + $0x568] sm:$0xff] %v3065
        %3322 = vst [vmem:[#allocation2 + $0x570] sm:$0xff] %v3066
        %3323 = vst [vmem:[#allocation2 + $0x578] sm:$0xff] %v3067
        %3324 = vst [vmem:[#allocation2 + $0x580] sm:$0xff] %v3068
        %3325 = vst [vmem:[#allocation2 + $0x588] sm:$0xff] %v3069
        %3326 = vst [vmem:[#allocation2 + $0x590] sm:$0xff] %v3070
        %3327 = vst [vmem:[#allocation2 + $0x598] sm:$0xff] %v3071
        %3328 = vst [vmem:[#allocation2 + $0x5a0] sm:$0xff] %v3072
        %3329 = vst [vmem:[#allocation2 + $0x5a8] sm:$0xff] %v3073
        %3330 = vst [vmem:[#allocation2 + $0x5b0] sm:$0xff] %v3074
        %3331 = vst [vmem:[#allocation2 + $0x5b8] sm:$0xff] %v3075
        %3332 = vst [vmem:[#allocation2 + $0x5c0] sm:$0xff] %v3076
        %3333 = vst [vmem:[#allocation2 + $0x5c8] sm:$0xff] %v3077
        %3334 = vst [vmem:[#allocation2 + $0x5d0] sm:$0xff] %v3078
        %3335 = vst [vmem:[#allocation2 + $0x5d8] sm:$0xff] %v3079
        %3336 = vst [vmem:[#allocation2 + $0x5e0] sm:$0xff] %v3080
        %3337 = vst [vmem:[#allocation2 + $0x5e8] sm:$0xff] %v3081
        %3338 = vst [vmem:[#allocation2 + $0x5f0] sm:$0xff] %v3082
        %3339 = vst [vmem:[#allocation2 + $0x5f8] sm:$0xff] %v3083
        %3340 = vst [vmem:[#allocation2 + $0x600] sm:$0xff] %v3084
        %3341 = vst [vmem:[#allocation2 + $0x608] sm:$0xff] %v3085
        %3342 = vst [vmem:[#allocation2 + $0x610] sm:$0xff] %v3086
        %3343 = vst [vmem:[#allocation2 + $0x618] sm:$0xff] %v3087
        %3344 = vst [vmem:[#allocation2 + $0x620] sm:$0xff] %v3088
        %3345 = vst [vmem:[#allocation2 + $0x628] sm:$0xff] %v3089
        %3346 = vst [vmem:[#allocation2 + $0x630] sm:$0xff] %v3090
        %3347 = vst [vmem:[#allocation2 + $0x638] sm:$0xff] %v3091
        %3348 = vst [vmem:[#allocation2 + $0x640] sm:$0xff] %v3092
        %3349 = vst [vmem:[#allocation2 + $0x648] sm:$0xff] %v3093
        %3350 = vst [vmem:[#allocation2 + $0x650] sm:$0xff] %v3094
        %3351 = vst [vmem:[#allocation2 + $0x658] sm:$0xff] %v3095
        %3352 = vst [vmem:[#allocation2 + $0x660] sm:$0xff] %v3096
        %3353 = vst [vmem:[#allocation2 + $0x668] sm:$0xff] %v3097
        %3354 = vst [vmem:[#allocation2 + $0x670] sm:$0xff] %v3098
        %3355 = vst [vmem:[#allocation2 + $0x678] sm:$0xff] %v3099
        %3356 = vst [vmem:[#allocation2 + $0x680] sm:$0xff] %v3100
        %3357 = vst [vmem:[#allocation2 + $0x688] sm:$0xff] %v3101
        %3358 = vst [vmem:[#allocation2 + $0x690] sm:$0xff] %v3102
        %3359 = vst [vmem:[#allocation2 + $0x698] sm:$0xff] %v3103
        %3360 = vst [vmem:[#allocation2 + $0x6a0] sm:$0xff] %v3104
        %3361 = vst [vmem:[#allocation2 + $0x6a8] sm:$0xff] %v3105
        %3362 = vst [vmem:[#allocation2 + $0x6b0] sm:$0xff] %v3106
        %3363 = vst [vmem:[#allocation2 + $0x6b8] sm:$0xff] %v3107
        %3364 = vst [vmem:[#allocation2 + $0x6c0] sm:$0xff] %v3108
        %3365 = vst [vmem:[#allocation2 + $0x6c8] sm:$0xff] %v3109
        %3366 = vst [vmem:[#allocation2 + $0x6d0] sm:$0xff] %v3110
        %3367 = vst [vmem:[#allocation2 + $0x6d8] sm:$0xff] %v3111
        %3368 = vst [vmem:[#allocation2 + $0x6e0] sm:$0xff] %v3112
        %3369 = vst [vmem:[#allocation2 + $0x6e8] sm:$0xff] %v3113
        %3370 = vst [vmem:[#allocation2 + $0x6f0] sm:$0xff] %v3114
        %3371 = vst [vmem:[#allocation2 + $0x6f8] sm:$0xff] %v3115
        %3372 = vst [vmem:[#allocation2 + $0x700] sm:$0xff] %v3116
        %3373 = vst [vmem:[#allocation2 + $0x708] sm:$0xff] %v3117
        %3374 = vst [vmem:[#allocation2 + $0x710] sm:$0xff] %v3118
        %3375 = vst [vmem:[#allocation2 + $0x718] sm:$0xff] %v3119
        %3376 = vst [vmem:[#allocation2 + $0x720] sm:$0xff] %v3120
        %3377 = vst [vmem:[#allocation2 + $0x728] sm:$0xff] %v3121
        %3378 = vst [vmem:[#allocation2 + $0x730] sm:$0xff] %v3122
        %3379 = vst [vmem:[#allocation2 + $0x738] sm:$0xff] %v3123
        %3380 = vst [vmem:[#allocation2 + $0x740] sm:$0xff] %v3124
        %3381 = vst [vmem:[#allocation2 + $0x748] sm:$0xff] %v3125
        %3382 = vst [vmem:[#allocation2 + $0x750] sm:$0xff] %v3126
        %3383 = vst [vmem:[#allocation2 + $0x758] sm:$0xff] %v3127
        %3384 = vst [vmem:[#allocation2 + $0x760] sm:$0xff] %v3128
        %3385 = vst [vmem:[#allocation2 + $0x768] sm:$0xff] %v3129
        %3386 = vst [vmem:[#allocation2 + $0x770] sm:$0xff] %v3130
        %3387 = vst [vmem:[#allocation2 + $0x778] sm:$0xff] %v3131
        %3388 = vst [vmem:[#allocation2 + $0x780] sm:$0xff] %v3132
        %3389 = vst [vmem:[#allocation2 + $0x788] sm:$0xff] %v3133
        %3390 = vst [vmem:[#allocation2 + $0x790] sm:$0xff] %v3134
        %3391 = vst [vmem:[#allocation2 + $0x798] sm:$0xff] %v3135
        %3392 = vst [vmem:[#allocation2 + $0x7a0] sm:$0xff] %v3136
        %3393 = vst [vmem:[#allocation2 + $0x7a8] sm:$0xff] %v3137
        %3394 = vst [vmem:[#allocation2 + $0x7b0] sm:$0xff] %v3138
        %3395 = vst [vmem:[#allocation2 + $0x7b8] sm:$0xff] %v3139
        %3396 = vst [vmem:[#allocation2 + $0x7c0] sm:$0xff] %v3140
        %3397 = vst [vmem:[#allocation2 + $0x7c8] sm:$0xff] %v3141
        %3398 = vst [vmem:[#allocation2 + $0x7d0] sm:$0xff] %v3142
        %3399 = vst [vmem:[#allocation2 + $0x7d8] sm:$0xff] %v3143
        %3400 = vst [vmem:[#allocation2 + $0x7e0] sm:$0xff] %v3144
        %3401 = vst [vmem:[#allocation2 + $0x7e8] sm:$0xff] %v3145
        %3402 = vst [vmem:[#allocation2 + $0x7f0] sm:$0xff] %v3146
        %3403 = vst [vmem:[#allocation2 + $0x7f8] sm:$0xff] %v3147
        // Predicated region
        $region45: #{tpu_custom_call.1} parent=31 // pred_check
          %p3404 = pneg %p231
        $region46: #{tpu_custom_call.1} parent=31 // pred_check_branch
          %3406 = sbr.rel (%p3404) target = $region48
        $region47: #{tpu_custom_call.1} parent=31 // pred_region
          %v3407 = vld [vmem:[#allocation2] sm:$0xff]
          %v3408 = vld [vmem:[#allocation2 + $0x8] sm:$0xff]
          %v3409 = vld [vmem:[#allocation2 + $0x10] sm:$0xff]
          %v3410 = vld [vmem:[#allocation2 + $0x18] sm:$0xff]
          %v3411 = vld [vmem:[#allocation2 + $0x20] sm:$0xff]
          %v3412 = vld [vmem:[#allocation2 + $0x28] sm:$0xff]
          %v3413 = vld [vmem:[#allocation2 + $0x30] sm:$0xff]
          %v3414 = vld [vmem:[#allocation2 + $0x38] sm:$0xff]
          %v3415 = vld [vmem:[#allocation2 + $0x40] sm:$0xff]
          %v3416 = vld [vmem:[#allocation2 + $0x48] sm:$0xff]
          %v3417 = vld [vmem:[#allocation2 + $0x50] sm:$0xff]
          %v3418 = vld [vmem:[#allocation2 + $0x58] sm:$0xff]
          %v3419 = vld [vmem:[#allocation2 + $0x60] sm:$0xff]
          %v3420 = vld [vmem:[#allocation2 + $0x68] sm:$0xff]
          %v3421 = vld [vmem:[#allocation2 + $0x70] sm:$0xff]
          %v3422 = vld [vmem:[#allocation2 + $0x78] sm:$0xff]
          %v3423 = vld [vmem:[#allocation2 + $0x80] sm:$0xff]
          %v3424 = vld [vmem:[#allocation2 + $0x88] sm:$0xff]
          %v3425 = vld [vmem:[#allocation2 + $0x90] sm:$0xff]
          %v3426 = vld [vmem:[#allocation2 + $0x98] sm:$0xff]
          %v3427 = vld [vmem:[#allocation2 + $0xa0] sm:$0xff]
          %v3428 = vld [vmem:[#allocation2 + $0xa8] sm:$0xff]
          %v3429 = vld [vmem:[#allocation2 + $0xb0] sm:$0xff]
          %v3430 = vld [vmem:[#allocation2 + $0xb8] sm:$0xff]
          %v3431 = vld [vmem:[#allocation2 + $0xc0] sm:$0xff]
          %v3432 = vld [vmem:[#allocation2 + $0xc8] sm:$0xff]
          %v3433 = vld [vmem:[#allocation2 + $0xd0] sm:$0xff]
          %v3434 = vld [vmem:[#allocation2 + $0xd8] sm:$0xff]
          %v3435 = vld [vmem:[#allocation2 + $0xe0] sm:$0xff]
          %v3436 = vld [vmem:[#allocation2 + $0xe8] sm:$0xff]
          %v3437 = vld [vmem:[#allocation2 + $0xf0] sm:$0xff]
          %v3438 = vld [vmem:[#allocation2 + $0xf8] sm:$0xff]
          %v3439 = vld [vmem:[#allocation2 + $0x100] sm:$0xff]
          %v3440 = vld [vmem:[#allocation2 + $0x108] sm:$0xff]
          %v3441 = vld [vmem:[#allocation2 + $0x110] sm:$0xff]
          %v3442 = vld [vmem:[#allocation2 + $0x118] sm:$0xff]
          %v3443 = vld [vmem:[#allocation2 + $0x120] sm:$0xff]
          %v3444 = vld [vmem:[#allocation2 + $0x128] sm:$0xff]
          %v3445 = vld [vmem:[#allocation2 + $0x130] sm:$0xff]
          %v3446 = vld [vmem:[#allocation2 + $0x138] sm:$0xff]
          %v3447 = vld [vmem:[#allocation2 + $0x140] sm:$0xff]
          %v3448 = vld [vmem:[#allocation2 + $0x148] sm:$0xff]
          %v3449 = vld [vmem:[#allocation2 + $0x150] sm:$0xff]
          %v3450 = vld [vmem:[#allocation2 + $0x158] sm:$0xff]
          %v3451 = vld [vmem:[#allocation2 + $0x160] sm:$0xff]
          %v3452 = vld [vmem:[#allocation2 + $0x168] sm:$0xff]
          %v3453 = vld [vmem:[#allocation2 + $0x170] sm:$0xff]
          %v3454 = vld [vmem:[#allocation2 + $0x178] sm:$0xff]
          %v3455 = vld [vmem:[#allocation2 + $0x180] sm:$0xff]
          %v3456 = vld [vmem:[#allocation2 + $0x188] sm:$0xff]
          %v3457 = vld [vmem:[#allocation2 + $0x190] sm:$0xff]
          %v3458 = vld [vmem:[#allocation2 + $0x198] sm:$0xff]
          %v3459 = vld [vmem:[#allocation2 + $0x1a0] sm:$0xff]
          %v3460 = vld [vmem:[#allocation2 + $0x1a8] sm:$0xff]
          %v3461 = vld [vmem:[#allocation2 + $0x1b0] sm:$0xff]
          %v3462 = vld [vmem:[#allocation2 + $0x1b8] sm:$0xff]
          %v3463 = vld [vmem:[#allocation2 + $0x1c0] sm:$0xff]
          %v3464 = vld [vmem:[#allocation2 + $0x1c8] sm:$0xff]
          %v3465 = vld [vmem:[#allocation2 + $0x1d0] sm:$0xff]
          %v3466 = vld [vmem:[#allocation2 + $0x1d8] sm:$0xff]
          %v3467 = vld [vmem:[#allocation2 + $0x1e0] sm:$0xff]
          %v3468 = vld [vmem:[#allocation2 + $0x1e8] sm:$0xff]
          %v3469 = vld [vmem:[#allocation2 + $0x1f0] sm:$0xff]
          %v3470 = vld [vmem:[#allocation2 + $0x1f8] sm:$0xff]
          %v3471 = vld [vmem:[#allocation2 + $0x200] sm:$0xff]
          %v3472 = vld [vmem:[#allocation2 + $0x208] sm:$0xff]
          %v3473 = vld [vmem:[#allocation2 + $0x210] sm:$0xff]
          %v3474 = vld [vmem:[#allocation2 + $0x218] sm:$0xff]
          %v3475 = vld [vmem:[#allocation2 + $0x220] sm:$0xff]
          %v3476 = vld [vmem:[#allocation2 + $0x228] sm:$0xff]
          %v3477 = vld [vmem:[#allocation2 + $0x230] sm:$0xff]
          %v3478 = vld [vmem:[#allocation2 + $0x238] sm:$0xff]
          %v3479 = vld [vmem:[#allocation2 + $0x240] sm:$0xff]
          %v3480 = vld [vmem:[#allocation2 + $0x248] sm:$0xff]
          %v3481 = vld [vmem:[#allocation2 + $0x250] sm:$0xff]
          %v3482 = vld [vmem:[#allocation2 + $0x258] sm:$0xff]
          %v3483 = vld [vmem:[#allocation2 + $0x260] sm:$0xff]
          %v3484 = vld [vmem:[#allocation2 + $0x268] sm:$0xff]
          %v3485 = vld [vmem:[#allocation2 + $0x270] sm:$0xff]
          %v3486 = vld [vmem:[#allocation2 + $0x278] sm:$0xff]
          %v3487 = vld [vmem:[#allocation2 + $0x280] sm:$0xff]
          %v3488 = vld [vmem:[#allocation2 + $0x288] sm:$0xff]
          %v3489 = vld [vmem:[#allocation2 + $0x290] sm:$0xff]
          %v3490 = vld [vmem:[#allocation2 + $0x298] sm:$0xff]
          %v3491 = vld [vmem:[#allocation2 + $0x2a0] sm:$0xff]
          %v3492 = vld [vmem:[#allocation2 + $0x2a8] sm:$0xff]
          %v3493 = vld [vmem:[#allocation2 + $0x2b0] sm:$0xff]
          %v3494 = vld [vmem:[#allocation2 + $0x2b8] sm:$0xff]
          %v3495 = vld [vmem:[#allocation2 + $0x2c0] sm:$0xff]
          %v3496 = vld [vmem:[#allocation2 + $0x2c8] sm:$0xff]
          %v3497 = vld [vmem:[#allocation2 + $0x2d0] sm:$0xff]
          %v3498 = vld [vmem:[#allocation2 + $0x2d8] sm:$0xff]
          %v3499 = vld [vmem:[#allocation2 + $0x2e0] sm:$0xff]
          %v3500 = vld [vmem:[#allocation2 + $0x2e8] sm:$0xff]
          %v3501 = vld [vmem:[#allocation2 + $0x2f0] sm:$0xff]
          %v3502 = vld [vmem:[#allocation2 + $0x2f8] sm:$0xff]
          %v3503 = vld [vmem:[#allocation2 + $0x300] sm:$0xff]
          %v3504 = vld [vmem:[#allocation2 + $0x308] sm:$0xff]
          %v3505 = vld [vmem:[#allocation2 + $0x310] sm:$0xff]
          %v3506 = vld [vmem:[#allocation2 + $0x318] sm:$0xff]
          %v3507 = vld [vmem:[#allocation2 + $0x320] sm:$0xff]
          %v3508 = vld [vmem:[#allocation2 + $0x328] sm:$0xff]
          %v3509 = vld [vmem:[#allocation2 + $0x330] sm:$0xff]
          %v3510 = vld [vmem:[#allocation2 + $0x338] sm:$0xff]
          %v3511 = vld [vmem:[#allocation2 + $0x340] sm:$0xff]
          %v3512 = vld [vmem:[#allocation2 + $0x348] sm:$0xff]
          %v3513 = vld [vmem:[#allocation2 + $0x350] sm:$0xff]
          %v3514 = vld [vmem:[#allocation2 + $0x358] sm:$0xff]
          %v3515 = vld [vmem:[#allocation2 + $0x360] sm:$0xff]
          %v3516 = vld [vmem:[#allocation2 + $0x368] sm:$0xff]
          %v3517 = vld [vmem:[#allocation2 + $0x370] sm:$0xff]
          %v3518 = vld [vmem:[#allocation2 + $0x378] sm:$0xff]
          %v3519 = vld [vmem:[#allocation2 + $0x380] sm:$0xff]
          %v3520 = vld [vmem:[#allocation2 + $0x388] sm:$0xff]
          %v3521 = vld [vmem:[#allocation2 + $0x390] sm:$0xff]
          %v3522 = vld [vmem:[#allocation2 + $0x398] sm:$0xff]
          %v3523 = vld [vmem:[#allocation2 + $0x3a0] sm:$0xff]
          %v3524 = vld [vmem:[#allocation2 + $0x3a8] sm:$0xff]
          %v3525 = vld [vmem:[#allocation2 + $0x3b0] sm:$0xff]
          %v3526 = vld [vmem:[#allocation2 + $0x3b8] sm:$0xff]
          %v3527 = vld [vmem:[#allocation2 + $0x3c0] sm:$0xff]
          %v3528 = vld [vmem:[#allocation2 + $0x3c8] sm:$0xff]
          %v3529 = vld [vmem:[#allocation2 + $0x3d0] sm:$0xff]
          %v3530 = vld [vmem:[#allocation2 + $0x3d8] sm:$0xff]
          %v3531 = vld [vmem:[#allocation2 + $0x3e0] sm:$0xff]
          %v3532 = vld [vmem:[#allocation2 + $0x3e8] sm:$0xff]
          %v3533 = vld [vmem:[#allocation2 + $0x3f0] sm:$0xff]
          %v3534 = vld [vmem:[#allocation2 + $0x3f8] sm:$0xff]
          %v3535 = vld [vmem:[#allocation2 + $0x400] sm:$0xff]
          %v3536 = vld [vmem:[#allocation2 + $0x408] sm:$0xff]
          %v3537 = vld [vmem:[#allocation2 + $0x410] sm:$0xff]
          %v3538 = vld [vmem:[#allocation2 + $0x418] sm:$0xff]
          %v3539 = vld [vmem:[#allocation2 + $0x420] sm:$0xff]
          %v3540 = vld [vmem:[#allocation2 + $0x428] sm:$0xff]
          %v3541 = vld [vmem:[#allocation2 + $0x430] sm:$0xff]
          %v3542 = vld [vmem:[#allocation2 + $0x438] sm:$0xff]
          %v3543 = vld [vmem:[#allocation2 + $0x440] sm:$0xff]
          %v3544 = vld [vmem:[#allocation2 + $0x448] sm:$0xff]
          %v3545 = vld [vmem:[#allocation2 + $0x450] sm:$0xff]
          %v3546 = vld [vmem:[#allocation2 + $0x458] sm:$0xff]
          %v3547 = vld [vmem:[#allocation2 + $0x460] sm:$0xff]
          %v3548 = vld [vmem:[#allocation2 + $0x468] sm:$0xff]
          %v3549 = vld [vmem:[#allocation2 + $0x470] sm:$0xff]
          %v3550 = vld [vmem:[#allocation2 + $0x478] sm:$0xff]
          %v3551 = vld [vmem:[#allocation2 + $0x480] sm:$0xff]
          %v3552 = vld [vmem:[#allocation2 + $0x488] sm:$0xff]
          %v3553 = vld [vmem:[#allocation2 + $0x490] sm:$0xff]
          %v3554 = vld [vmem:[#allocation2 + $0x498] sm:$0xff]
          %v3555 = vld [vmem:[#allocation2 + $0x4a0] sm:$0xff]
          %v3556 = vld [vmem:[#allocation2 + $0x4a8] sm:$0xff]
          %v3557 = vld [vmem:[#allocation2 + $0x4b0] sm:$0xff]
          %v3558 = vld [vmem:[#allocation2 + $0x4b8] sm:$0xff]
          %v3559 = vld [vmem:[#allocation2 + $0x4c0] sm:$0xff]
          %v3560 = vld [vmem:[#allocation2 + $0x4c8] sm:$0xff]
          %v3561 = vld [vmem:[#allocation2 + $0x4d0] sm:$0xff]
          %v3562 = vld [vmem:[#allocation2 + $0x4d8] sm:$0xff]
          %v3563 = vld [vmem:[#allocation2 + $0x4e0] sm:$0xff]
          %v3564 = vld [vmem:[#allocation2 + $0x4e8] sm:$0xff]
          %v3565 = vld [vmem:[#allocation2 + $0x4f0] sm:$0xff]
          %v3566 = vld [vmem:[#allocation2 + $0x4f8] sm:$0xff]
          %v3567 = vld [vmem:[#allocation2 + $0x500] sm:$0xff]
          %v3568 = vld [vmem:[#allocation2 + $0x508] sm:$0xff]
          %v3569 = vld [vmem:[#allocation2 + $0x510] sm:$0xff]
          %v3570 = vld [vmem:[#allocation2 + $0x518] sm:$0xff]
          %v3571 = vld [vmem:[#allocation2 + $0x520] sm:$0xff]
          %v3572 = vld [vmem:[#allocation2 + $0x528] sm:$0xff]
          %v3573 = vld [vmem:[#allocation2 + $0x530] sm:$0xff]
          %v3574 = vld [vmem:[#allocation2 + $0x538] sm:$0xff]
          %v3575 = vld [vmem:[#allocation2 + $0x540] sm:$0xff]
          %v3576 = vld [vmem:[#allocation2 + $0x548] sm:$0xff]
          %v3577 = vld [vmem:[#allocation2 + $0x550] sm:$0xff]
          %v3578 = vld [vmem:[#allocation2 + $0x558] sm:$0xff]
          %v3579 = vld [vmem:[#allocation2 + $0x560] sm:$0xff]
          %v3580 = vld [vmem:[#allocation2 + $0x568] sm:$0xff]
          %v3581 = vld [vmem:[#allocation2 + $0x570] sm:$0xff]
          %v3582 = vld [vmem:[#allocation2 + $0x578] sm:$0xff]
          %v3583 = vld [vmem:[#allocation2 + $0x580] sm:$0xff]
          %v3584 = vld [vmem:[#allocation2 + $0x588] sm:$0xff]
          %v3585 = vld [vmem:[#allocation2 + $0x590] sm:$0xff]
          %v3586 = vld [vmem:[#allocation2 + $0x598] sm:$0xff]
          %v3587 = vld [vmem:[#allocation2 + $0x5a0] sm:$0xff]
          %v3588 = vld [vmem:[#allocation2 + $0x5a8] sm:$0xff]
          %v3589 = vld [vmem:[#allocation2 + $0x5b0] sm:$0xff]
          %v3590 = vld [vmem:[#allocation2 + $0x5b8] sm:$0xff]
          %v3591 = vld [vmem:[#allocation2 + $0x5c0] sm:$0xff]
          %v3592 = vld [vmem:[#allocation2 + $0x5c8] sm:$0xff]
          %v3593 = vld [vmem:[#allocation2 + $0x5d0] sm:$0xff]
          %v3594 = vld [vmem:[#allocation2 + $0x5d8] sm:$0xff]
          %v3595 = vld [vmem:[#allocation2 + $0x5e0] sm:$0xff]
          %v3596 = vld [vmem:[#allocation2 + $0x5e8] sm:$0xff]
          %v3597 = vld [vmem:[#allocation2 + $0x5f0] sm:$0xff]
          %v3598 = vld [vmem:[#allocation2 + $0x5f8] sm:$0xff]
          %v3599 = vld [vmem:[#allocation2 + $0x600] sm:$0xff]
          %v3600 = vld [vmem:[#allocation2 + $0x608] sm:$0xff]
          %v3601 = vld [vmem:[#allocation2 + $0x610] sm:$0xff]
          %v3602 = vld [vmem:[#allocation2 + $0x618] sm:$0xff]
          %v3603 = vld [vmem:[#allocation2 + $0x620] sm:$0xff]
          %v3604 = vld [vmem:[#allocation2 + $0x628] sm:$0xff]
          %v3605 = vld [vmem:[#allocation2 + $0x630] sm:$0xff]
          %v3606 = vld [vmem:[#allocation2 + $0x638] sm:$0xff]
          %v3607 = vld [vmem:[#allocation2 + $0x640] sm:$0xff]
          %v3608 = vld [vmem:[#allocation2 + $0x648] sm:$0xff]
          %v3609 = vld [vmem:[#allocation2 + $0x650] sm:$0xff]
          %v3610 = vld [vmem:[#allocation2 + $0x658] sm:$0xff]
          %v3611 = vld [vmem:[#allocation2 + $0x660] sm:$0xff]
          %v3612 = vld [vmem:[#allocation2 + $0x668] sm:$0xff]
          %v3613 = vld [vmem:[#allocation2 + $0x670] sm:$0xff]
          %v3614 = vld [vmem:[#allocation2 + $0x678] sm:$0xff]
          %v3615 = vld [vmem:[#allocation2 + $0x680] sm:$0xff]
          %v3616 = vld [vmem:[#allocation2 + $0x688] sm:$0xff]
          %v3617 = vld [vmem:[#allocation2 + $0x690] sm:$0xff]
          %v3618 = vld [vmem:[#allocation2 + $0x698] sm:$0xff]
          %v3619 = vld [vmem:[#allocation2 + $0x6a0] sm:$0xff]
          %v3620 = vld [vmem:[#allocation2 + $0x6a8] sm:$0xff]
          %v3621 = vld [vmem:[#allocation2 + $0x6b0] sm:$0xff]
          %v3622 = vld [vmem:[#allocation2 + $0x6b8] sm:$0xff]
          %v3623 = vld [vmem:[#allocation2 + $0x6c0] sm:$0xff]
          %v3624 = vld [vmem:[#allocation2 + $0x6c8] sm:$0xff]
          %v3625 = vld [vmem:[#allocation2 + $0x6d0] sm:$0xff]
          %v3626 = vld [vmem:[#allocation2 + $0x6d8] sm:$0xff]
          %v3627 = vld [vmem:[#allocation2 + $0x6e0] sm:$0xff]
          %v3628 = vld [vmem:[#allocation2 + $0x6e8] sm:$0xff]
          %v3629 = vld [vmem:[#allocation2 + $0x6f0] sm:$0xff]
          %v3630 = vld [vmem:[#allocation2 + $0x6f8] sm:$0xff]
          %v3631 = vld [vmem:[#allocation2 + $0x700] sm:$0xff]
          %v3632 = vld [vmem:[#allocation2 + $0x708] sm:$0xff]
          %v3633 = vld [vmem:[#allocation2 + $0x710] sm:$0xff]
          %v3634 = vld [vmem:[#allocation2 + $0x718] sm:$0xff]
          %v3635 = vld [vmem:[#allocation2 + $0x720] sm:$0xff]
          %v3636 = vld [vmem:[#allocation2 + $0x728] sm:$0xff]
          %v3637 = vld [vmem:[#allocation2 + $0x730] sm:$0xff]
          %v3638 = vld [vmem:[#allocation2 + $0x738] sm:$0xff]
          %v3639 = vld [vmem:[#allocation2 + $0x740] sm:$0xff]
          %v3640 = vld [vmem:[#allocation2 + $0x748] sm:$0xff]
          %v3641 = vld [vmem:[#allocation2 + $0x750] sm:$0xff]
          %v3642 = vld [vmem:[#allocation2 + $0x758] sm:$0xff]
          %v3643 = vld [vmem:[#allocation2 + $0x760] sm:$0xff]
          %v3644 = vld [vmem:[#allocation2 + $0x768] sm:$0xff]
          %v3645 = vld [vmem:[#allocation2 + $0x770] sm:$0xff]
          %v3646 = vld [vmem:[#allocation2 + $0x778] sm:$0xff]
          %v3647 = vld [vmem:[#allocation2 + $0x780] sm:$0xff]
          %v3648 = vld [vmem:[#allocation2 + $0x788] sm:$0xff]
          %v3649 = vld [vmem:[#allocation2 + $0x790] sm:$0xff]
          %v3650 = vld [vmem:[#allocation2 + $0x798] sm:$0xff]
          %v3651 = vld [vmem:[#allocation2 + $0x7a0] sm:$0xff]
          %v3652 = vld [vmem:[#allocation2 + $0x7a8] sm:$0xff]
          %v3653 = vld [vmem:[#allocation2 + $0x7b0] sm:$0xff]
          %v3654 = vld [vmem:[#allocation2 + $0x7b8] sm:$0xff]
          %v3655 = vld [vmem:[#allocation2 + $0x7c0] sm:$0xff]
          %v3656 = vld [vmem:[#allocation2 + $0x7c8] sm:$0xff]
          %v3657 = vld [vmem:[#allocation2 + $0x7d0] sm:$0xff]
          %v3658 = vld [vmem:[#allocation2 + $0x7d8] sm:$0xff]
          %v3659 = vld [vmem:[#allocation2 + $0x7e0] sm:$0xff]
          %v3660 = vld [vmem:[#allocation2 + $0x7e8] sm:$0xff]
          %v3661 = vld [vmem:[#allocation2 + $0x7f0] sm:$0xff]
          %v3662 = vld [vmem:[#allocation2 + $0x7f8] sm:$0xff]
          %v3663 = vld [vmem:[%s2] sm:$0x1]
          %v3665 = vlaneseq
          %v3666 = vshrl.u32 %v3665, 7
          %v3667 = vsub.s32 0, %v3666
          %v3668 = vrot.slane %v3663, %v3667
          %v3670 = vadd.f32 %v3407, %v3668
          %v3671 = vadd.f32 %v3408, %v3668
          %v3672 = vadd.f32 %v3409, %v3668
          %v3673 = vadd.f32 %v3410, %v3668
          %v3674 = vadd.f32 %v3411, %v3668
          %v3675 = vadd.f32 %v3412, %v3668
          %v3676 = vadd.f32 %v3413, %v3668
          %v3677 = vadd.f32 %v3414, %v3668
          %v3678 = vadd.f32 %v3415, %v3668
          %v3679 = vadd.f32 %v3416, %v3668
          %v3680 = vadd.f32 %v3417, %v3668
          %v3681 = vadd.f32 %v3418, %v3668
          %v3682 = vadd.f32 %v3419, %v3668
          %v3683 = vadd.f32 %v3420, %v3668
          %v3684 = vadd.f32 %v3421, %v3668
          %v3685 = vadd.f32 %v3422, %v3668
          %v3686 = vadd.f32 %v3423, %v3668
          %v3687 = vadd.f32 %v3424, %v3668
          %v3688 = vadd.f32 %v3425, %v3668
          %v3689 = vadd.f32 %v3426, %v3668
          %v3690 = vadd.f32 %v3427, %v3668
          %v3691 = vadd.f32 %v3428, %v3668
          %v3692 = vadd.f32 %v3429, %v3668
          %v3693 = vadd.f32 %v3430, %v3668
          %v3694 = vadd.f32 %v3431, %v3668
          %v3695 = vadd.f32 %v3432, %v3668
          %v3696 = vadd.f32 %v3433, %v3668
          %v3697 = vadd.f32 %v3434, %v3668
          %v3698 = vadd.f32 %v3435, %v3668
          %v3699 = vadd.f32 %v3436, %v3668
          %v3700 = vadd.f32 %v3437, %v3668
          %v3701 = vadd.f32 %v3438, %v3668
          %v3702 = vadd.f32 %v3439, %v3668
          %v3703 = vadd.f32 %v3440, %v3668
          %v3704 = vadd.f32 %v3441, %v3668
          %v3705 = vadd.f32 %v3442, %v3668
          %v3706 = vadd.f32 %v3443, %v3668
          %v3707 = vadd.f32 %v3444, %v3668
          %v3708 = vadd.f32 %v3445, %v3668
          %v3709 = vadd.f32 %v3446, %v3668
          %v3710 = vadd.f32 %v3447, %v3668
          %v3711 = vadd.f32 %v3448, %v3668
          %v3712 = vadd.f32 %v3449, %v3668
          %v3713 = vadd.f32 %v3450, %v3668
          %v3714 = vadd.f32 %v3451, %v3668
          %v3715 = vadd.f32 %v3452, %v3668
          %v3716 = vadd.f32 %v3453, %v3668
          %v3717 = vadd.f32 %v3454, %v3668
          %v3718 = vadd.f32 %v3455, %v3668
          %v3719 = vadd.f32 %v3456, %v3668
          %v3720 = vadd.f32 %v3457, %v3668
          %v3721 = vadd.f32 %v3458, %v3668
          %v3722 = vadd.f32 %v3459, %v3668
          %v3723 = vadd.f32 %v3460, %v3668
          %v3724 = vadd.f32 %v3461, %v3668
          %v3725 = vadd.f32 %v3462, %v3668
          %v3726 = vadd.f32 %v3463, %v3668
          %v3727 = vadd.f32 %v3464, %v3668
          %v3728 = vadd.f32 %v3465, %v3668
          %v3729 = vadd.f32 %v3466, %v3668
          %v3730 = vadd.f32 %v3467, %v3668
          %v3731 = vadd.f32 %v3468, %v3668
          %v3732 = vadd.f32 %v3469, %v3668
          %v3733 = vadd.f32 %v3470, %v3668
          %v3734 = vadd.f32 %v3471, %v3668
          %v3735 = vadd.f32 %v3472, %v3668
          %v3736 = vadd.f32 %v3473, %v3668
          %v3737 = vadd.f32 %v3474, %v3668
          %v3738 = vadd.f32 %v3475, %v3668
          %v3739 = vadd.f32 %v3476, %v3668
          %v3740 = vadd.f32 %v3477, %v3668
          %v3741 = vadd.f32 %v3478, %v3668
          %v3742 = vadd.f32 %v3479, %v3668
          %v3743 = vadd.f32 %v3480, %v3668
          %v3744 = vadd.f32 %v3481, %v3668
          %v3745 = vadd.f32 %v3482, %v3668
          %v3746 = vadd.f32 %v3483, %v3668
          %v3747 = vadd.f32 %v3484, %v3668
          %v3748 = vadd.f32 %v3485, %v3668
          %v3749 = vadd.f32 %v3486, %v3668
          %v3750 = vadd.f32 %v3487, %v3668
          %v3751 = vadd.f32 %v3488, %v3668
          %v3752 = vadd.f32 %v3489, %v3668
          %v3753 = vadd.f32 %v3490, %v3668
          %v3754 = vadd.f32 %v3491, %v3668
          %v3755 = vadd.f32 %v3492, %v3668
          %v3756 = vadd.f32 %v3493, %v3668
          %v3757 = vadd.f32 %v3494, %v3668
          %v3758 = vadd.f32 %v3495, %v3668
          %v3759 = vadd.f32 %v3496, %v3668
          %v3760 = vadd.f32 %v3497, %v3668
          %v3761 = vadd.f32 %v3498, %v3668
          %v3762 = vadd.f32 %v3499, %v3668
          %v3763 = vadd.f32 %v3500, %v3668
          %v3764 = vadd.f32 %v3501, %v3668
          %v3765 = vadd.f32 %v3502, %v3668
          %v3766 = vadd.f32 %v3503, %v3668
          %v3767 = vadd.f32 %v3504, %v3668
          %v3768 = vadd.f32 %v3505, %v3668
          %v3769 = vadd.f32 %v3506, %v3668
          %v3770 = vadd.f32 %v3507, %v3668
          %v3771 = vadd.f32 %v3508, %v3668
          %v3772 = vadd.f32 %v3509, %v3668
          %v3773 = vadd.f32 %v3510, %v3668
          %v3774 = vadd.f32 %v3511, %v3668
          %v3775 = vadd.f32 %v3512, %v3668
          %v3776 = vadd.f32 %v3513, %v3668
          %v3777 = vadd.f32 %v3514, %v3668
          %v3778 = vadd.f32 %v3515, %v3668
          %v3779 = vadd.f32 %v3516, %v3668
          %v3780 = vadd.f32 %v3517, %v3668
          %v3781 = vadd.f32 %v3518, %v3668
          %v3782 = vadd.f32 %v3519, %v3668
          %v3783 = vadd.f32 %v3520, %v3668
          %v3784 = vadd.f32 %v3521, %v3668
          %v3785 = vadd.f32 %v3522, %v3668
          %v3786 = vadd.f32 %v3523, %v3668
          %v3787 = vadd.f32 %v3524, %v3668
          %v3788 = vadd.f32 %v3525, %v3668
          %v3789 = vadd.f32 %v3526, %v3668
          %v3790 = vadd.f32 %v3527, %v3668
          %v3791 = vadd.f32 %v3528, %v3668
          %v3792 = vadd.f32 %v3529, %v3668
          %v3793 = vadd.f32 %v3530, %v3668
          %v3794 = vadd.f32 %v3531, %v3668
          %v3795 = vadd.f32 %v3532, %v3668
          %v3796 = vadd.f32 %v3533, %v3668
          %v3797 = vadd.f32 %v3534, %v3668
          %v3798 = vadd.f32 %v3535, %v3668
          %v3799 = vadd.f32 %v3536, %v3668
          %v3800 = vadd.f32 %v3537, %v3668
          %v3801 = vadd.f32 %v3538, %v3668
          %v3802 = vadd.f32 %v3539, %v3668
          %v3803 = vadd.f32 %v3540, %v3668
          %v3804 = vadd.f32 %v3541, %v3668
          %v3805 = vadd.f32 %v3542, %v3668
          %v3806 = vadd.f32 %v3543, %v3668
          %v3807 = vadd.f32 %v3544, %v3668
          %v3808 = vadd.f32 %v3545, %v3668
          %v3809 = vadd.f32 %v3546, %v3668
          %v3810 = vadd.f32 %v3547, %v3668
          %v3811 = vadd.f32 %v3548, %v3668
          %v3812 = vadd.f32 %v3549, %v3668
          %v3813 = vadd.f32 %v3550, %v3668
          %v3814 = vadd.f32 %v3551, %v3668
          %v3815 = vadd.f32 %v3552, %v3668
          %v3816 = vadd.f32 %v3553, %v3668
          %v3817 = vadd.f32 %v3554, %v3668
          %v3818 = vadd.f32 %v3555, %v3668
          %v3819 = vadd.f32 %v3556, %v3668
          %v3820 = vadd.f32 %v3557, %v3668
          %v3821 = vadd.f32 %v3558, %v3668
          %v3822 = vadd.f32 %v3559, %v3668
          %v3823 = vadd.f32 %v3560, %v3668
          %v3824 = vadd.f32 %v3561, %v3668
          %v3825 = vadd.f32 %v3562, %v3668
          %v3826 = vadd.f32 %v3563, %v3668
          %v3827 = vadd.f32 %v3564, %v3668
          %v3828 = vadd.f32 %v3565, %v3668
          %v3829 = vadd.f32 %v3566, %v3668
          %v3830 = vadd.f32 %v3567, %v3668
          %v3831 = vadd.f32 %v3568, %v3668
          %v3832 = vadd.f32 %v3569, %v3668
          %v3833 = vadd.f32 %v3570, %v3668
          %v3834 = vadd.f32 %v3571, %v3668
          %v3835 = vadd.f32 %v3572, %v3668
          %v3836 = vadd.f32 %v3573, %v3668
          %v3837 = vadd.f32 %v3574, %v3668
          %v3838 = vadd.f32 %v3575, %v3668
          %v3839 = vadd.f32 %v3576, %v3668
          %v3840 = vadd.f32 %v3577, %v3668
          %v3841 = vadd.f32 %v3578, %v3668
          %v3842 = vadd.f32 %v3579, %v3668
          %v3843 = vadd.f32 %v3580, %v3668
          %v3844 = vadd.f32 %v3581, %v3668
          %v3845 = vadd.f32 %v3582, %v3668
          %v3846 = vadd.f32 %v3583, %v3668
          %v3847 = vadd.f32 %v3584, %v3668
          %v3848 = vadd.f32 %v3585, %v3668
          %v3849 = vadd.f32 %v3586, %v3668
          %v3850 = vadd.f32 %v3587, %v3668
          %v3851 = vadd.f32 %v3588, %v3668
          %v3852 = vadd.f32 %v3589, %v3668
          %v3853 = vadd.f32 %v3590, %v3668
          %v3854 = vadd.f32 %v3591, %v3668
          %v3855 = vadd.f32 %v3592, %v3668
          %v3856 = vadd.f32 %v3593, %v3668
          %v3857 = vadd.f32 %v3594, %v3668
          %v3858 = vadd.f32 %v3595, %v3668
          %v3859 = vadd.f32 %v3596, %v3668
          %v3860 = vadd.f32 %v3597, %v3668
          %v3861 = vadd.f32 %v3598, %v3668
          %v3862 = vadd.f32 %v3599, %v3668
          %v3863 = vadd.f32 %v3600, %v3668
          %v3864 = vadd.f32 %v3601, %v3668
          %v3865 = vadd.f32 %v3602, %v3668
          %v3866 = vadd.f32 %v3603, %v3668
          %v3867 = vadd.f32 %v3604, %v3668
          %v3868 = vadd.f32 %v3605, %v3668
          %v3869 = vadd.f32 %v3606, %v3668
          %v3870 = vadd.f32 %v3607, %v3668
          %v3871 = vadd.f32 %v3608, %v3668
          %v3872 = vadd.f32 %v3609, %v3668
          %v3873 = vadd.f32 %v3610, %v3668
          %v3874 = vadd.f32 %v3611, %v3668
          %v3875 = vadd.f32 %v3612, %v3668
          %v3876 = vadd.f32 %v3613, %v3668
          %v3877 = vadd.f32 %v3614, %v3668
          %v3878 = vadd.f32 %v3615, %v3668
          %v3879 = vadd.f32 %v3616, %v3668
          %v3880 = vadd.f32 %v3617, %v3668
          %v3881 = vadd.f32 %v3618, %v3668
          %v3882 = vadd.f32 %v3619, %v3668
          %v3883 = vadd.f32 %v3620, %v3668
          %v3884 = vadd.f32 %v3621, %v3668
          %v3885 = vadd.f32 %v3622, %v3668
          %v3886 = vadd.f32 %v3623, %v3668
          %v3887 = vadd.f32 %v3624, %v3668
          %v3888 = vadd.f32 %v3625, %v3668
          %v3889 = vadd.f32 %v3626, %v3668
          %v3890 = vadd.f32 %v3627, %v3668
          %v3891 = vadd.f32 %v3628, %v3668
          %v3892 = vadd.f32 %v3629, %v3668
          %v3893 = vadd.f32 %v3630, %v3668
          %v3894 = vadd.f32 %v3631, %v3668
          %v3895 = vadd.f32 %v3632, %v3668
          %v3896 = vadd.f32 %v3633, %v3668
          %v3897 = vadd.f32 %v3634, %v3668
          %v3898 = vadd.f32 %v3635, %v3668
          %v3899 = vadd.f32 %v3636, %v3668
          %v3900 = vadd.f32 %v3637, %v3668
          %v3901 = vadd.f32 %v3638, %v3668
          %v3902 = vadd.f32 %v3639, %v3668
          %v3903 = vadd.f32 %v3640, %v3668
          %v3904 = vadd.f32 %v3641, %v3668
          %v3905 = vadd.f32 %v3642, %v3668
          %v3906 = vadd.f32 %v3643, %v3668
          %v3907 = vadd.f32 %v3644, %v3668
          %v3908 = vadd.f32 %v3645, %v3668
          %v3909 = vadd.f32 %v3646, %v3668
          %v3910 = vadd.f32 %v3647, %v3668
          %v3911 = vadd.f32 %v3648, %v3668
          %v3912 = vadd.f32 %v3649, %v3668
          %v3913 = vadd.f32 %v3650, %v3668
          %v3914 = vadd.f32 %v3651, %v3668
          %v3915 = vadd.f32 %v3652, %v3668
          %v3916 = vadd.f32 %v3653, %v3668
          %v3917 = vadd.f32 %v3654, %v3668
          %v3918 = vadd.f32 %v3655, %v3668
          %v3919 = vadd.f32 %v3656, %v3668
          %v3920 = vadd.f32 %v3657, %v3668
          %v3921 = vadd.f32 %v3658, %v3668
          %v3922 = vadd.f32 %v3659, %v3668
          %v3923 = vadd.f32 %v3660, %v3668
          %v3924 = vadd.f32 %v3661, %v3668
          %v3925 = vadd.f32 %v3662, %v3668
          %vm3926 = vcmp.gt.f32.partialorder %v3670, 0.0
          %vm3927 = vcmp.gt.f32.partialorder %v3671, 0.0
          %vm3928 = vcmp.gt.f32.partialorder %v3672, 0.0
          %vm3929 = vcmp.gt.f32.partialorder %v3673, 0.0
          %vm3930 = vcmp.gt.f32.partialorder %v3674, 0.0
          %vm3931 = vcmp.gt.f32.partialorder %v3675, 0.0
          %vm3932 = vcmp.gt.f32.partialorder %v3676, 0.0
          %vm3933 = vcmp.gt.f32.partialorder %v3677, 0.0
          %vm3934 = vcmp.gt.f32.partialorder %v3678, 0.0
          %vm3935 = vcmp.gt.f32.partialorder %v3679, 0.0
          %vm3936 = vcmp.gt.f32.partialorder %v3680, 0.0
          %vm3937 = vcmp.gt.f32.partialorder %v3681, 0.0
          %vm3938 = vcmp.gt.f32.partialorder %v3682, 0.0
          %vm3939 = vcmp.gt.f32.partialorder %v3683, 0.0
          %vm3940 = vcmp.gt.f32.partialorder %v3684, 0.0
          %vm3941 = vcmp.gt.f32.partialorder %v3685, 0.0
          %vm3942 = vcmp.gt.f32.partialorder %v3686, 0.0
          %vm3943 = vcmp.gt.f32.partialorder %v3687, 0.0
          %vm3944 = vcmp.gt.f32.partialorder %v3688, 0.0
          %vm3945 = vcmp.gt.f32.partialorder %v3689, 0.0
          %vm3946 = vcmp.gt.f32.partialorder %v3690, 0.0
          %vm3947 = vcmp.gt.f32.partialorder %v3691, 0.0
          %vm3948 = vcmp.gt.f32.partialorder %v3692, 0.0
          %vm3949 = vcmp.gt.f32.partialorder %v3693, 0.0
          %vm3950 = vcmp.gt.f32.partialorder %v3694, 0.0
          %vm3951 = vcmp.gt.f32.partialorder %v3695, 0.0
          %vm3952 = vcmp.gt.f32.partialorder %v3696, 0.0
          %vm3953 = vcmp.gt.f32.partialorder %v3697, 0.0
          %vm3954 = vcmp.gt.f32.partialorder %v3698, 0.0
          %vm3955 = vcmp.gt.f32.partialorder %v3699, 0.0
          %vm3956 = vcmp.gt.f32.partialorder %v3700, 0.0
          %vm3957 = vcmp.gt.f32.partialorder %v3701, 0.0
          %vm3958 = vcmp.gt.f32.partialorder %v3702, 0.0
          %vm3959 = vcmp.gt.f32.partialorder %v3703, 0.0
          %vm3960 = vcmp.gt.f32.partialorder %v3704, 0.0
          %vm3961 = vcmp.gt.f32.partialorder %v3705, 0.0
          %vm3962 = vcmp.gt.f32.partialorder %v3706, 0.0
          %vm3963 = vcmp.gt.f32.partialorder %v3707, 0.0
          %vm3964 = vcmp.gt.f32.partialorder %v3708, 0.0
          %vm3965 = vcmp.gt.f32.partialorder %v3709, 0.0
          %vm3966 = vcmp.gt.f32.partialorder %v3710, 0.0
          %vm3967 = vcmp.gt.f32.partialorder %v3711, 0.0
          %vm3968 = vcmp.gt.f32.partialorder %v3712, 0.0
          %vm3969 = vcmp.gt.f32.partialorder %v3713, 0.0
          %vm3970 = vcmp.gt.f32.partialorder %v3714, 0.0
          %vm3971 = vcmp.gt.f32.partialorder %v3715, 0.0
          %vm3972 = vcmp.gt.f32.partialorder %v3716, 0.0
          %vm3973 = vcmp.gt.f32.partialorder %v3717, 0.0
          %vm3974 = vcmp.gt.f32.partialorder %v3718, 0.0
          %vm3975 = vcmp.gt.f32.partialorder %v3719, 0.0
          %vm3976 = vcmp.gt.f32.partialorder %v3720, 0.0
          %vm3977 = vcmp.gt.f32.partialorder %v3721, 0.0
          %vm3978 = vcmp.gt.f32.partialorder %v3722, 0.0
          %vm3979 = vcmp.gt.f32.partialorder %v3723, 0.0
          %vm3980 = vcmp.gt.f32.partialorder %v3724, 0.0
          %vm3981 = vcmp.gt.f32.partialorder %v3725, 0.0
          %vm3982 = vcmp.gt.f32.partialorder %v3726, 0.0
          %vm3983 = vcmp.gt.f32.partialorder %v3727, 0.0
          %vm3984 = vcmp.gt.f32.partialorder %v3728, 0.0
          %vm3985 = vcmp.gt.f32.partialorder %v3729, 0.0
          %vm3986 = vcmp.gt.f32.partialorder %v3730, 0.0
          %vm3987 = vcmp.gt.f32.partialorder %v3731, 0.0
          %vm3988 = vcmp.gt.f32.partialorder %v3732, 0.0
          %vm3989 = vcmp.gt.f32.partialorder %v3733, 0.0
          %vm3990 = vcmp.gt.f32.partialorder %v3734, 0.0
          %vm3991 = vcmp.gt.f32.partialorder %v3735, 0.0
          %vm3992 = vcmp.gt.f32.partialorder %v3736, 0.0
          %vm3993 = vcmp.gt.f32.partialorder %v3737, 0.0
          %vm3994 = vcmp.gt.f32.partialorder %v3738, 0.0
          %vm3995 = vcmp.gt.f32.partialorder %v3739, 0.0
          %vm3996 = vcmp.gt.f32.partialorder %v3740, 0.0
          %vm3997 = vcmp.gt.f32.partialorder %v3741, 0.0
          %vm3998 = vcmp.gt.f32.partialorder %v3742, 0.0
          %vm3999 = vcmp.gt.f32.partialorder %v3743, 0.0
          %vm4000 = vcmp.gt.f32.partialorder %v3744, 0.0
          %vm4001 = vcmp.gt.f32.partialorder %v3745, 0.0
          %vm4002 = vcmp.gt.f32.partialorder %v3746, 0.0
          %vm4003 = vcmp.gt.f32.partialorder %v3747, 0.0
          %vm4004 = vcmp.gt.f32.partialorder %v3748, 0.0
          %vm4005 = vcmp.gt.f32.partialorder %v3749, 0.0
          %vm4006 = vcmp.gt.f32.partialorder %v3750, 0.0
          %vm4007 = vcmp.gt.f32.partialorder %v3751, 0.0
          %vm4008 = vcmp.gt.f32.partialorder %v3752, 0.0
          %vm4009 = vcmp.gt.f32.partialorder %v3753, 0.0
          %vm4010 = vcmp.gt.f32.partialorder %v3754, 0.0
          %vm4011 = vcmp.gt.f32.partialorder %v3755, 0.0
          %vm4012 = vcmp.gt.f32.partialorder %v3756, 0.0
          %vm4013 = vcmp.gt.f32.partialorder %v3757, 0.0
          %vm4014 = vcmp.gt.f32.partialorder %v3758, 0.0
          %vm4015 = vcmp.gt.f32.partialorder %v3759, 0.0
          %vm4016 = vcmp.gt.f32.partialorder %v3760, 0.0
          %vm4017 = vcmp.gt.f32.partialorder %v3761, 0.0
          %vm4018 = vcmp.gt.f32.partialorder %v3762, 0.0
          %vm4019 = vcmp.gt.f32.partialorder %v3763, 0.0
          %vm4020 = vcmp.gt.f32.partialorder %v3764, 0.0
          %vm4021 = vcmp.gt.f32.partialorder %v3765, 0.0
          %vm4022 = vcmp.gt.f32.partialorder %v3766, 0.0
          %vm4023 = vcmp.gt.f32.partialorder %v3767, 0.0
          %vm4024 = vcmp.gt.f32.partialorder %v3768, 0.0
          %vm4025 = vcmp.gt.f32.partialorder %v3769, 0.0
          %vm4026 = vcmp.gt.f32.partialorder %v3770, 0.0
          %vm4027 = vcmp.gt.f32.partialorder %v3771, 0.0
          %vm4028 = vcmp.gt.f32.partialorder %v3772, 0.0
          %vm4029 = vcmp.gt.f32.partialorder %v3773, 0.0
          %vm4030 = vcmp.gt.f32.partialorder %v3774, 0.0
          %vm4031 = vcmp.gt.f32.partialorder %v3775, 0.0
          %vm4032 = vcmp.gt.f32.partialorder %v3776, 0.0
          %vm4033 = vcmp.gt.f32.partialorder %v3777, 0.0
          %vm4034 = vcmp.gt.f32.partialorder %v3778, 0.0
          %vm4035 = vcmp.gt.f32.partialorder %v3779, 0.0
          %vm4036 = vcmp.gt.f32.partialorder %v3780, 0.0
          %vm4037 = vcmp.gt.f32.partialorder %v3781, 0.0
          %vm4038 = vcmp.gt.f32.partialorder %v3782, 0.0
          %vm4039 = vcmp.gt.f32.partialorder %v3783, 0.0
          %vm4040 = vcmp.gt.f32.partialorder %v3784, 0.0
          %vm4041 = vcmp.gt.f32.partialorder %v3785, 0.0
          %vm4042 = vcmp.gt.f32.partialorder %v3786, 0.0
          %vm4043 = vcmp.gt.f32.partialorder %v3787, 0.0
          %vm4044 = vcmp.gt.f32.partialorder %v3788, 0.0
          %vm4045 = vcmp.gt.f32.partialorder %v3789, 0.0
          %vm4046 = vcmp.gt.f32.partialorder %v3790, 0.0
          %vm4047 = vcmp.gt.f32.partialorder %v3791, 0.0
          %vm4048 = vcmp.gt.f32.partialorder %v3792, 0.0
          %vm4049 = vcmp.gt.f32.partialorder %v3793, 0.0
          %vm4050 = vcmp.gt.f32.partialorder %v3794, 0.0
          %vm4051 = vcmp.gt.f32.partialorder %v3795, 0.0
          %vm4052 = vcmp.gt.f32.partialorder %v3796, 0.0
          %vm4053 = vcmp.gt.f32.partialorder %v3797, 0.0
          %vm4054 = vcmp.gt.f32.partialorder %v3798, 0.0
          %vm4055 = vcmp.gt.f32.partialorder %v3799, 0.0
          %vm4056 = vcmp.gt.f32.partialorder %v3800, 0.0
          %vm4057 = vcmp.gt.f32.partialorder %v3801, 0.0
          %vm4058 = vcmp.gt.f32.partialorder %v3802, 0.0
          %vm4059 = vcmp.gt.f32.partialorder %v3803, 0.0
          %vm4060 = vcmp.gt.f32.partialorder %v3804, 0.0
          %vm4061 = vcmp.gt.f32.partialorder %v3805, 0.0
          %vm4062 = vcmp.gt.f32.partialorder %v3806, 0.0
          %vm4063 = vcmp.gt.f32.partialorder %v3807, 0.0
          %vm4064 = vcmp.gt.f32.partialorder %v3808, 0.0
          %vm4065 = vcmp.gt.f32.partialorder %v3809, 0.0
          %vm4066 = vcmp.gt.f32.partialorder %v3810, 0.0
          %vm4067 = vcmp.gt.f32.partialorder %v3811, 0.0
          %vm4068 = vcmp.gt.f32.partialorder %v3812, 0.0
          %vm4069 = vcmp.gt.f32.partialorder %v3813, 0.0
          %vm4070 = vcmp.gt.f32.partialorder %v3814, 0.0
          %vm4071 = vcmp.gt.f32.partialorder %v3815, 0.0
          %vm4072 = vcmp.gt.f32.partialorder %v3816, 0.0
          %vm4073 = vcmp.gt.f32.partialorder %v3817, 0.0
          %vm4074 = vcmp.gt.f32.partialorder %v3818, 0.0
          %vm4075 = vcmp.gt.f32.partialorder %v3819, 0.0
          %vm4076 = vcmp.gt.f32.partialorder %v3820, 0.0
          %vm4077 = vcmp.gt.f32.partialorder %v3821, 0.0
          %vm4078 = vcmp.gt.f32.partialorder %v3822, 0.0
          %vm4079 = vcmp.gt.f32.partialorder %v3823, 0.0
          %vm4080 = vcmp.gt.f32.partialorder %v3824, 0.0
          %vm4081 = vcmp.gt.f32.partialorder %v3825, 0.0
          %vm4082 = vcmp.gt.f32.partialorder %v3826, 0.0
          %vm4083 = vcmp.gt.f32.partialorder %v3827, 0.0
          %vm4084 = vcmp.gt.f32.partialorder %v3828, 0.0
          %vm4085 = vcmp.gt.f32.partialorder %v3829, 0.0
          %vm4086 = vcmp.gt.f32.partialorder %v3830, 0.0
          %vm4087 = vcmp.gt.f32.partialorder %v3831, 0.0
          %vm4088 = vcmp.gt.f32.partialorder %v3832, 0.0
          %vm4089 = vcmp.gt.f32.partialorder %v3833, 0.0
          %vm4090 = vcmp.gt.f32.partialorder %v3834, 0.0
          %vm4091 = vcmp.gt.f32.partialorder %v3835, 0.0
          %vm4092 = vcmp.gt.f32.partialorder %v3836, 0.0
          %vm4093 = vcmp.gt.f32.partialorder %v3837, 0.0
          %vm4094 = vcmp.gt.f32.partialorder %v3838, 0.0
          %vm4095 = vcmp.gt.f32.partialorder %v3839, 0.0
          %vm4096 = vcmp.gt.f32.partialorder %v3840, 0.0
          %vm4097 = vcmp.gt.f32.partialorder %v3841, 0.0
          %vm4098 = vcmp.gt.f32.partialorder %v3842, 0.0
          %vm4099 = vcmp.gt.f32.partialorder %v3843, 0.0
          %vm4100 = vcmp.gt.f32.partialorder %v3844, 0.0
          %vm4101 = vcmp.gt.f32.partialorder %v3845, 0.0
          %vm4102 = vcmp.gt.f32.partialorder %v3846, 0.0
          %vm4103 = vcmp.gt.f32.partialorder %v3847, 0.0
          %vm4104 = vcmp.gt.f32.partialorder %v3848, 0.0
          %vm4105 = vcmp.gt.f32.partialorder %v3849, 0.0
          %vm4106 = vcmp.gt.f32.partialorder %v3850, 0.0
          %vm4107 = vcmp.gt.f32.partialorder %v3851, 0.0
          %vm4108 = vcmp.gt.f32.partialorder %v3852, 0.0
          %vm4109 = vcmp.gt.f32.partialorder %v3853, 0.0
          %vm4110 = vcmp.gt.f32.partialorder %v3854, 0.0
          %vm4111 = vcmp.gt.f32.partialorder %v3855, 0.0
          %vm4112 = vcmp.gt.f32.partialorder %v3856, 0.0
          %vm4113 = vcmp.gt.f32.partialorder %v3857, 0.0
          %vm4114 = vcmp.gt.f32.partialorder %v3858, 0.0
          %vm4115 = vcmp.gt.f32.partialorder %v3859, 0.0
          %vm4116 = vcmp.gt.f32.partialorder %v3860, 0.0
          %vm4117 = vcmp.gt.f32.partialorder %v3861, 0.0
          %vm4118 = vcmp.gt.f32.partialorder %v3862, 0.0
          %vm4119 = vcmp.gt.f32.partialorder %v3863, 0.0
          %vm4120 = vcmp.gt.f32.partialorder %v3864, 0.0
          %vm4121 = vcmp.gt.f32.partialorder %v3865, 0.0
          %vm4122 = vcmp.gt.f32.partialorder %v3866, 0.0
          %vm4123 = vcmp.gt.f32.partialorder %v3867, 0.0
          %vm4124 = vcmp.gt.f32.partialorder %v3868, 0.0
          %vm4125 = vcmp.gt.f32.partialorder %v3869, 0.0
          %vm4126 = vcmp.gt.f32.partialorder %v3870, 0.0
          %vm4127 = vcmp.gt.f32.partialorder %v3871, 0.0
          %vm4128 = vcmp.gt.f32.partialorder %v3872, 0.0
          %vm4129 = vcmp.gt.f32.partialorder %v3873, 0.0
          %vm4130 = vcmp.gt.f32.partialorder %v3874, 0.0
          %vm4131 = vcmp.gt.f32.partialorder %v3875, 0.0
          %vm4132 = vcmp.gt.f32.partialorder %v3876, 0.0
          %vm4133 = vcmp.gt.f32.partialorder %v3877, 0.0
          %vm4134 = vcmp.gt.f32.partialorder %v3878, 0.0
          %vm4135 = vcmp.gt.f32.partialorder %v3879, 0.0
          %vm4136 = vcmp.gt.f32.partialorder %v3880, 0.0
          %vm4137 = vcmp.gt.f32.partialorder %v3881, 0.0
          %vm4138 = vcmp.gt.f32.partialorder %v3882, 0.0
          %vm4139 = vcmp.gt.f32.partialorder %v3883, 0.0
          %vm4140 = vcmp.gt.f32.partialorder %v3884, 0.0
          %vm4141 = vcmp.gt.f32.partialorder %v3885, 0.0
          %vm4142 = vcmp.gt.f32.partialorder %v3886, 0.0
          %vm4143 = vcmp.gt.f32.partialorder %v3887, 0.0
          %vm4144 = vcmp.gt.f32.partialorder %v3888, 0.0
          %vm4145 = vcmp.gt.f32.partialorder %v3889, 0.0
          %vm4146 = vcmp.gt.f32.partialorder %v3890, 0.0
          %vm4147 = vcmp.gt.f32.partialorder %v3891, 0.0
          %vm4148 = vcmp.gt.f32.partialorder %v3892, 0.0
          %vm4149 = vcmp.gt.f32.partialorder %v3893, 0.0
          %vm4150 = vcmp.gt.f32.partialorder %v3894, 0.0
          %vm4151 = vcmp.gt.f32.partialorder %v3895, 0.0
          %vm4152 = vcmp.gt.f32.partialorder %v3896, 0.0
          %vm4153 = vcmp.gt.f32.partialorder %v3897, 0.0
          %vm4154 = vcmp.gt.f32.partialorder %v3898, 0.0
          %vm4155 = vcmp.gt.f32.partialorder %v3899, 0.0
          %vm4156 = vcmp.gt.f32.partialorder %v3900, 0.0
          %vm4157 = vcmp.gt.f32.partialorder %v3901, 0.0
          %vm4158 = vcmp.gt.f32.partialorder %v3902, 0.0
          %vm4159 = vcmp.gt.f32.partialorder %v3903, 0.0
          %vm4160 = vcmp.gt.f32.partialorder %v3904, 0.0
          %vm4161 = vcmp.gt.f32.partialorder %v3905, 0.0
          %vm4162 = vcmp.gt.f32.partialorder %v3906, 0.0
          %vm4163 = vcmp.gt.f32.partialorder %v3907, 0.0
          %vm4164 = vcmp.gt.f32.partialorder %v3908, 0.0
          %vm4165 = vcmp.gt.f32.partialorder %v3909, 0.0
          %vm4166 = vcmp.gt.f32.partialorder %v3910, 0.0
          %vm4167 = vcmp.gt.f32.partialorder %v3911, 0.0
          %vm4168 = vcmp.gt.f32.partialorder %v3912, 0.0
          %vm4169 = vcmp.gt.f32.partialorder %v3913, 0.0
          %vm4170 = vcmp.gt.f32.partialorder %v3914, 0.0
          %vm4171 = vcmp.gt.f32.partialorder %v3915, 0.0
          %vm4172 = vcmp.gt.f32.partialorder %v3916, 0.0
          %vm4173 = vcmp.gt.f32.partialorder %v3917, 0.0
          %vm4174 = vcmp.gt.f32.partialorder %v3918, 0.0
          %vm4175 = vcmp.gt.f32.partialorder %v3919, 0.0
          %vm4176 = vcmp.gt.f32.partialorder %v3920, 0.0
          %vm4177 = vcmp.gt.f32.partialorder %v3921, 0.0
          %vm4178 = vcmp.gt.f32.partialorder %v3922, 0.0
          %vm4179 = vcmp.gt.f32.partialorder %v3923, 0.0
          %vm4180 = vcmp.gt.f32.partialorder %v3924, 0.0
          %vm4181 = vcmp.gt.f32.partialorder %v3925, 0.0
          %v4182 = vmin.f32 %v3670, 0.0
          %v4183 = vmin.f32 %v3671, 0.0
          %v4184 = vmin.f32 %v3672, 0.0
          %v4185 = vmin.f32 %v3673, 0.0
          %v4186 = vmin.f32 %v3674, 0.0
          %v4187 = vmin.f32 %v3675, 0.0
          %v4188 = vmin.f32 %v3676, 0.0
          %v4189 = vmin.f32 %v3677, 0.0
          %v4190 = vmin.f32 %v3678, 0.0
          %v4191 = vmin.f32 %v3679, 0.0
          %v4192 = vmin.f32 %v3680, 0.0
          %v4193 = vmin.f32 %v3681, 0.0
          %v4194 = vmin.f32 %v3682, 0.0
          %v4195 = vmin.f32 %v3683, 0.0
          %v4196 = vmin.f32 %v3684, 0.0
          %v4197 = vmin.f32 %v3685, 0.0
          %v4198 = vmin.f32 %v3686, 0.0
          %v4199 = vmin.f32 %v3687, 0.0
          %v4200 = vmin.f32 %v3688, 0.0
          %v4201 = vmin.f32 %v3689, 0.0
          %v4202 = vmin.f32 %v3690, 0.0
          %v4203 = vmin.f32 %v3691, 0.0
          %v4204 = vmin.f32 %v3692, 0.0
          %v4205 = vmin.f32 %v3693, 0.0
          %v4206 = vmin.f32 %v3694, 0.0
          %v4207 = vmin.f32 %v3695, 0.0
          %v4208 = vmin.f32 %v3696, 0.0
          %v4209 = vmin.f32 %v3697, 0.0
          %v4210 = vmin.f32 %v3698, 0.0
          %v4211 = vmin.f32 %v3699, 0.0
          %v4212 = vmin.f32 %v3700, 0.0
          %v4213 = vmin.f32 %v3701, 0.0
          %v4214 = vmin.f32 %v3702, 0.0
          %v4215 = vmin.f32 %v3703, 0.0
          %v4216 = vmin.f32 %v3704, 0.0
          %v4217 = vmin.f32 %v3705, 0.0
          %v4218 = vmin.f32 %v3706, 0.0
          %v4219 = vmin.f32 %v3707, 0.0
          %v4220 = vmin.f32 %v3708, 0.0
          %v4221 = vmin.f32 %v3709, 0.0
          %v4222 = vmin.f32 %v3710, 0.0
          %v4223 = vmin.f32 %v3711, 0.0
          %v4224 = vmin.f32 %v3712, 0.0
          %v4225 = vmin.f32 %v3713, 0.0
          %v4226 = vmin.f32 %v3714, 0.0
          %v4227 = vmin.f32 %v3715, 0.0
          %v4228 = vmin.f32 %v3716, 0.0
          %v4229 = vmin.f32 %v3717, 0.0
          %v4230 = vmin.f32 %v3718, 0.0
          %v4231 = vmin.f32 %v3719, 0.0
          %v4232 = vmin.f32 %v3720, 0.0
          %v4233 = vmin.f32 %v3721, 0.0
          %v4234 = vmin.f32 %v3722, 0.0
          %v4235 = vmin.f32 %v3723, 0.0
          %v4236 = vmin.f32 %v3724, 0.0
          %v4237 = vmin.f32 %v3725, 0.0
          %v4238 = vmin.f32 %v3726, 0.0
          %v4239 = vmin.f32 %v3727, 0.0
          %v4240 = vmin.f32 %v3728, 0.0
          %v4241 = vmin.f32 %v3729, 0.0
          %v4242 = vmin.f32 %v3730, 0.0
          %v4243 = vmin.f32 %v3731, 0.0
          %v4244 = vmin.f32 %v3732, 0.0
          %v4245 = vmin.f32 %v3733, 0.0
          %v4246 = vmin.f32 %v3734, 0.0
          %v4247 = vmin.f32 %v3735, 0.0
          %v4248 = vmin.f32 %v3736, 0.0
          %v4249 = vmin.f32 %v3737, 0.0
          %v4250 = vmin.f32 %v3738, 0.0
          %v4251 = vmin.f32 %v3739, 0.0
          %v4252 = vmin.f32 %v3740, 0.0
          %v4253 = vmin.f32 %v3741, 0.0
          %v4254 = vmin.f32 %v3742, 0.0
          %v4255 = vmin.f32 %v3743, 0.0
          %v4256 = vmin.f32 %v3744, 0.0
          %v4257 = vmin.f32 %v3745, 0.0
          %v4258 = vmin.f32 %v3746, 0.0
          %v4259 = vmin.f32 %v3747, 0.0
          %v4260 = vmin.f32 %v3748, 0.0
          %v4261 = vmin.f32 %v3749, 0.0
          %v4262 = vmin.f32 %v3750, 0.0
          %v4263 = vmin.f32 %v3751, 0.0
          %v4264 = vmin.f32 %v3752, 0.0
          %v4265 = vmin.f32 %v3753, 0.0
          %v4266 = vmin.f32 %v3754, 0.0
          %v4267 = vmin.f32 %v3755, 0.0
          %v4268 = vmin.f32 %v3756, 0.0
          %v4269 = vmin.f32 %v3757, 0.0
          %v4270 = vmin.f32 %v3758, 0.0
          %v4271 = vmin.f32 %v3759, 0.0
          %v4272 = vmin.f32 %v3760, 0.0
          %v4273 = vmin.f32 %v3761, 0.0
          %v4274 = vmin.f32 %v3762, 0.0
          %v4275 = vmin.f32 %v3763, 0.0
          %v4276 = vmin.f32 %v3764, 0.0
          %v4277 = vmin.f32 %v3765, 0.0
          %v4278 = vmin.f32 %v3766, 0.0
          %v4279 = vmin.f32 %v3767, 0.0
          %v4280 = vmin.f32 %v3768, 0.0
          %v4281 = vmin.f32 %v3769, 0.0
          %v4282 = vmin.f32 %v3770, 0.0
          %v4283 = vmin.f32 %v3771, 0.0
          %v4284 = vmin.f32 %v3772, 0.0
          %v4285 = vmin.f32 %v3773, 0.0
          %v4286 = vmin.f32 %v3774, 0.0
          %v4287 = vmin.f32 %v3775, 0.0
          %v4288 = vmin.f32 %v3776, 0.0
          %v4289 = vmin.f32 %v3777, 0.0
          %v4290 = vmin.f32 %v3778, 0.0
          %v4291 = vmin.f32 %v3779, 0.0
          %v4292 = vmin.f32 %v3780, 0.0
          %v4293 = vmin.f32 %v3781, 0.0
          %v4294 = vmin.f32 %v3782, 0.0
          %v4295 = vmin.f32 %v3783, 0.0
          %v4296 = vmin.f32 %v3784, 0.0
          %v4297 = vmin.f32 %v3785, 0.0
          %v4298 = vmin.f32 %v3786, 0.0
          %v4299 = vmin.f32 %v3787, 0.0
          %v4300 = vmin.f32 %v3788, 0.0
          %v4301 = vmin.f32 %v3789, 0.0
          %v4302 = vmin.f32 %v3790, 0.0
          %v4303 = vmin.f32 %v3791, 0.0
          %v4304 = vmin.f32 %v3792, 0.0
          %v4305 = vmin.f32 %v3793, 0.0
          %v4306 = vmin.f32 %v3794, 0.0
          %v4307 = vmin.f32 %v3795, 0.0
          %v4308 = vmin.f32 %v3796, 0.0
          %v4309 = vmin.f32 %v3797, 0.0
          %v4310 = vmin.f32 %v3798, 0.0
          %v4311 = vmin.f32 %v3799, 0.0
          %v4312 = vmin.f32 %v3800, 0.0
          %v4313 = vmin.f32 %v3801, 0.0
          %v4314 = vmin.f32 %v3802, 0.0
          %v4315 = vmin.f32 %v3803, 0.0
          %v4316 = vmin.f32 %v3804, 0.0
          %v4317 = vmin.f32 %v3805, 0.0
          %v4318 = vmin.f32 %v3806, 0.0
          %v4319 = vmin.f32 %v3807, 0.0
          %v4320 = vmin.f32 %v3808, 0.0
          %v4321 = vmin.f32 %v3809, 0.0
          %v4322 = vmin.f32 %v3810, 0.0
          %v4323 = vmin.f32 %v3811, 0.0
          %v4324 = vmin.f32 %v3812, 0.0
          %v4325 = vmin.f32 %v3813, 0.0
          %v4326 = vmin.f32 %v3814, 0.0
          %v4327 = vmin.f32 %v3815, 0.0
          %v4328 = vmin.f32 %v3816, 0.0
          %v4329 = vmin.f32 %v3817, 0.0
          %v4330 = vmin.f32 %v3818, 0.0
          %v4331 = vmin.f32 %v3819, 0.0
          %v4332 = vmin.f32 %v3820, 0.0
          %v4333 = vmin.f32 %v3821, 0.0
          %v4334 = vmin.f32 %v3822, 0.0
          %v4335 = vmin.f32 %v3823, 0.0
          %v4336 = vmin.f32 %v3824, 0.0
          %v4337 = vmin.f32 %v3825, 0.0
          %v4338 = vmin.f32 %v3826, 0.0
          %v4339 = vmin.f32 %v3827, 0.0
          %v4340 = vmin.f32 %v3828, 0.0
          %v4341 = vmin.f32 %v3829, 0.0
          %v4342 = vmin.f32 %v3830, 0.0
          %v4343 = vmin.f32 %v3831, 0.0
          %v4344 = vmin.f32 %v3832, 0.0
          %v4345 = vmin.f32 %v3833, 0.0
          %v4346 = vmin.f32 %v3834, 0.0
          %v4347 = vmin.f32 %v3835, 0.0
          %v4348 = vmin.f32 %v3836, 0.0
          %v4349 = vmin.f32 %v3837, 0.0
          %v4350 = vmin.f32 %v3838, 0.0
          %v4351 = vmin.f32 %v3839, 0.0
          %v4352 = vmin.f32 %v3840, 0.0
          %v4353 = vmin.f32 %v3841, 0.0
          %v4354 = vmin.f32 %v3842, 0.0
          %v4355 = vmin.f32 %v3843, 0.0
          %v4356 = vmin.f32 %v3844, 0.0
          %v4357 = vmin.f32 %v3845, 0.0
          %v4358 = vmin.f32 %v3846, 0.0
          %v4359 = vmin.f32 %v3847, 0.0
          %v4360 = vmin.f32 %v3848, 0.0
          %v4361 = vmin.f32 %v3849, 0.0
          %v4362 = vmin.f32 %v3850, 0.0
          %v4363 = vmin.f32 %v3851, 0.0
          %v4364 = vmin.f32 %v3852, 0.0
          %v4365 = vmin.f32 %v3853, 0.0
          %v4366 = vmin.f32 %v3854, 0.0
          %v4367 = vmin.f32 %v3855, 0.0
          %v4368 = vmin.f32 %v3856, 0.0
          %v4369 = vmin.f32 %v3857, 0.0
          %v4370 = vmin.f32 %v3858, 0.0
          %v4371 = vmin.f32 %v3859, 0.0
          %v4372 = vmin.f32 %v3860, 0.0
          %v4373 = vmin.f32 %v3861, 0.0
          %v4374 = vmin.f32 %v3862, 0.0
          %v4375 = vmin.f32 %v3863, 0.0
          %v4376 = vmin.f32 %v3864, 0.0
          %v4377 = vmin.f32 %v3865, 0.0
          %v4378 = vmin.f32 %v3866, 0.0
          %v4379 = vmin.f32 %v3867, 0.0
          %v4380 = vmin.f32 %v3868, 0.0
          %v4381 = vmin.f32 %v3869, 0.0
          %v4382 = vmin.f32 %v3870, 0.0
          %v4383 = vmin.f32 %v3871, 0.0
          %v4384 = vmin.f32 %v3872, 0.0
          %v4385 = vmin.f32 %v3873, 0.0
          %v4386 = vmin.f32 %v3874, 0.0
          %v4387 = vmin.f32 %v3875, 0.0
          %v4388 = vmin.f32 %v3876, 0.0
          %v4389 = vmin.f32 %v3877, 0.0
          %v4390 = vmin.f32 %v3878, 0.0
          %v4391 = vmin.f32 %v3879, 0.0
          %v4392 = vmin.f32 %v3880, 0.0
          %v4393 = vmin.f32 %v3881, 0.0
          %v4394 = vmin.f32 %v3882, 0.0
          %v4395 = vmin.f32 %v3883, 0.0
          %v4396 = vmin.f32 %v3884, 0.0
          %v4397 = vmin.f32 %v3885, 0.0
          %v4398 = vmin.f32 %v3886, 0.0
          %v4399 = vmin.f32 %v3887, 0.0
          %v4400 = vmin.f32 %v3888, 0.0
          %v4401 = vmin.f32 %v3889, 0.0
          %v4402 = vmin.f32 %v3890, 0.0
          %v4403 = vmin.f32 %v3891, 0.0
          %v4404 = vmin.f32 %v3892, 0.0
          %v4405 = vmin.f32 %v3893, 0.0
          %v4406 = vmin.f32 %v3894, 0.0
          %v4407 = vmin.f32 %v3895, 0.0
          %v4408 = vmin.f32 %v3896, 0.0
          %v4409 = vmin.f32 %v3897, 0.0
          %v4410 = vmin.f32 %v3898, 0.0
          %v4411 = vmin.f32 %v3899, 0.0
          %v4412 = vmin.f32 %v3900, 0.0
          %v4413 = vmin.f32 %v3901, 0.0
          %v4414 = vmin.f32 %v3902, 0.0
          %v4415 = vmin.f32 %v3903, 0.0
          %v4416 = vmin.f32 %v3904, 0.0
          %v4417 = vmin.f32 %v3905, 0.0
          %v4418 = vmin.f32 %v3906, 0.0
          %v4419 = vmin.f32 %v3907, 0.0
          %v4420 = vmin.f32 %v3908, 0.0
          %v4421 = vmin.f32 %v3909, 0.0
          %v4422 = vmin.f32 %v3910, 0.0
          %v4423 = vmin.f32 %v3911, 0.0
          %v4424 = vmin.f32 %v3912, 0.0
          %v4425 = vmin.f32 %v3913, 0.0
          %v4426 = vmin.f32 %v3914, 0.0
          %v4427 = vmin.f32 %v3915, 0.0
          %v4428 = vmin.f32 %v3916, 0.0
          %v4429 = vmin.f32 %v3917, 0.0
          %v4430 = vmin.f32 %v3918, 0.0
          %v4431 = vmin.f32 %v3919, 0.0
          %v4432 = vmin.f32 %v3920, 0.0
          %v4433 = vmin.f32 %v3921, 0.0
          %v4434 = vmin.f32 %v3922, 0.0
          %v4435 = vmin.f32 %v3923, 0.0
          %v4436 = vmin.f32 %v3924, 0.0
          %v4437 = vmin.f32 %v3925, 0.0
          %v4438 = vmul.f32 %v4182, 1.442695
          %v4439 = vpow.pop %v4438
          %v4440 = vmul.f32 %v4183, 1.442695
          %v4441 = vpow.pop %v4440
          %v4442 = vmul.f32 %v4184, 1.442695
          %v4443 = vpow.pop %v4442
          %v4444 = vmul.f32 %v4185, 1.442695
          %v4445 = vpow.pop %v4444
          %v4446 = vmul.f32 %v4186, 1.442695
          %v4447 = vpow.pop %v4446
          %v4448 = vmul.f32 %v4187, 1.442695
          %v4449 = vpow.pop %v4448
          %v4450 = vmul.f32 %v4188, 1.442695
          %v4451 = vpow.pop %v4450
          %v4452 = vmul.f32 %v4189, 1.442695
          %v4453 = vpow.pop %v4452
          %v4454 = vmul.f32 %v4190, 1.442695
          %v4455 = vpow.pop %v4454
          %v4456 = vmul.f32 %v4191, 1.442695
          %v4457 = vpow.pop %v4456
          %v4458 = vmul.f32 %v4192, 1.442695
          %v4459 = vpow.pop %v4458
          %v4460 = vmul.f32 %v4193, 1.442695
          %v4461 = vpow.pop %v4460
          %v4462 = vmul.f32 %v4194, 1.442695
          %v4463 = vpow.pop %v4462
          %v4464 = vmul.f32 %v4195, 1.442695
          %v4465 = vpow.pop %v4464
          %v4466 = vmul.f32 %v4196, 1.442695
          %v4467 = vpow.pop %v4466
          %v4468 = vmul.f32 %v4197, 1.442695
          %v4469 = vpow.pop %v4468
          %v4470 = vmul.f32 %v4198, 1.442695
          %v4471 = vpow.pop %v4470
          %v4472 = vmul.f32 %v4199, 1.442695
          %v4473 = vpow.pop %v4472
          %v4474 = vmul.f32 %v4200, 1.442695
          %v4475 = vpow.pop %v4474
          %v4476 = vmul.f32 %v4201, 1.442695
          %v4477 = vpow.pop %v4476
          %v4478 = vmul.f32 %v4202, 1.442695
          %v4479 = vpow.pop %v4478
          %v4480 = vmul.f32 %v4203, 1.442695
          %v4481 = vpow.pop %v4480
          %v4482 = vmul.f32 %v4204, 1.442695
          %v4483 = vpow.pop %v4482
          %v4484 = vmul.f32 %v4205, 1.442695
          %v4485 = vpow.pop %v4484
          %v4486 = vmul.f32 %v4206, 1.442695
          %v4487 = vpow.pop %v4486
          %v4488 = vmul.f32 %v4207, 1.442695
          %v4489 = vpow.pop %v4488
          %v4490 = vmul.f32 %v4208, 1.442695
          %v4491 = vpow.pop %v4490
          %v4492 = vmul.f32 %v4209, 1.442695
          %v4493 = vpow.pop %v4492
          %v4494 = vmul.f32 %v4210, 1.442695
          %v4495 = vpow.pop %v4494
          %v4496 = vmul.f32 %v4211, 1.442695
          %v4497 = vpow.pop %v4496
          %v4498 = vmul.f32 %v4212, 1.442695
          %v4499 = vpow.pop %v4498
          %v4500 = vmul.f32 %v4213, 1.442695
          %v4501 = vpow.pop %v4500
          %v4502 = vmul.f32 %v4214, 1.442695
          %v4503 = vpow.pop %v4502
          %v4504 = vmul.f32 %v4215, 1.442695
          %v4505 = vpow.pop %v4504
          %v4506 = vmul.f32 %v4216, 1.442695
          %v4507 = vpow.pop %v4506
          %v4508 = vmul.f32 %v4217, 1.442695
          %v4509 = vpow.pop %v4508
          %v4510 = vmul.f32 %v4218, 1.442695
          %v4511 = vpow.pop %v4510
          %v4512 = vmul.f32 %v4219, 1.442695
          %v4513 = vpow.pop %v4512
          %v4514 = vmul.f32 %v4220, 1.442695
          %v4515 = vpow.pop %v4514
          %v4516 = vmul.f32 %v4221, 1.442695
          %v4517 = vpow.pop %v4516
          %v4518 = vmul.f32 %v4222, 1.442695
          %v4519 = vpow.pop %v4518
          %v4520 = vmul.f32 %v4223, 1.442695
          %v4521 = vpow.pop %v4520
          %v4522 = vmul.f32 %v4224, 1.442695
          %v4523 = vpow.pop %v4522
          %v4524 = vmul.f32 %v4225, 1.442695
          %v4525 = vpow.pop %v4524
          %v4526 = vmul.f32 %v4226, 1.442695
          %v4527 = vpow.pop %v4526
          %v4528 = vmul.f32 %v4227, 1.442695
          %v4529 = vpow.pop %v4528
          %v4530 = vmul.f32 %v4228, 1.442695
          %v4531 = vpow.pop %v4530
          %v4532 = vmul.f32 %v4229, 1.442695
          %v4533 = vpow.pop %v4532
          %v4534 = vmul.f32 %v4230, 1.442695
          %v4535 = vpow.pop %v4534
          %v4536 = vmul.f32 %v4231, 1.442695
          %v4537 = vpow.pop %v4536
          %v4538 = vmul.f32 %v4232, 1.442695
          %v4539 = vpow.pop %v4538
          %v4540 = vmul.f32 %v4233, 1.442695
          %v4541 = vpow.pop %v4540
          %v4542 = vmul.f32 %v4234, 1.442695
          %v4543 = vpow.pop %v4542
          %v4544 = vmul.f32 %v4235, 1.442695
          %v4545 = vpow.pop %v4544
          %v4546 = vmul.f32 %v4236, 1.442695
          %v4547 = vpow.pop %v4546
          %v4548 = vmul.f32 %v4237, 1.442695
          %v4549 = vpow.pop %v4548
          %v4550 = vmul.f32 %v4238, 1.442695
          %v4551 = vpow.pop %v4550
          %v4552 = vmul.f32 %v4239, 1.442695
          %v4553 = vpow.pop %v4552
          %v4554 = vmul.f32 %v4240, 1.442695
          %v4555 = vpow.pop %v4554
          %v4556 = vmul.f32 %v4241, 1.442695
          %v4557 = vpow.pop %v4556
          %v4558 = vmul.f32 %v4242, 1.442695
          %v4559 = vpow.pop %v4558
          %v4560 = vmul.f32 %v4243, 1.442695
          %v4561 = vpow.pop %v4560
          %v4562 = vmul.f32 %v4244, 1.442695
          %v4563 = vpow.pop %v4562
          %v4564 = vmul.f32 %v4245, 1.442695
          %v4565 = vpow.pop %v4564
          %v4566 = vmul.f32 %v4246, 1.442695
          %v4567 = vpow.pop %v4566
          %v4568 = vmul.f32 %v4247, 1.442695
          %v4569 = vpow.pop %v4568
          %v4570 = vmul.f32 %v4248, 1.442695
          %v4571 = vpow.pop %v4570
          %v4572 = vmul.f32 %v4249, 1.442695
          %v4573 = vpow.pop %v4572
          %v4574 = vmul.f32 %v4250, 1.442695
          %v4575 = vpow.pop %v4574
          %v4576 = vmul.f32 %v4251, 1.442695
          %v4577 = vpow.pop %v4576
          %v4578 = vmul.f32 %v4252, 1.442695
          %v4579 = vpow.pop %v4578
          %v4580 = vmul.f32 %v4253, 1.442695
          %v4581 = vpow.pop %v4580
          %v4582 = vmul.f32 %v4254, 1.442695
          %v4583 = vpow.pop %v4582
          %v4584 = vmul.f32 %v4255, 1.442695
          %v4585 = vpow.pop %v4584
          %v4586 = vmul.f32 %v4256, 1.442695
          %v4587 = vpow.pop %v4586
          %v4588 = vmul.f32 %v4257, 1.442695
          %v4589 = vpow.pop %v4588
          %v4590 = vmul.f32 %v4258, 1.442695
          %v4591 = vpow.pop %v4590
          %v4592 = vmul.f32 %v4259, 1.442695
          %v4593 = vpow.pop %v4592
          %v4594 = vmul.f32 %v4260, 1.442695
          %v4595 = vpow.pop %v4594
          %v4596 = vmul.f32 %v4261, 1.442695
          %v4597 = vpow.pop %v4596
          %v4598 = vmul.f32 %v4262, 1.442695
          %v4599 = vpow.pop %v4598
          %v4600 = vmul.f32 %v4263, 1.442695
          %v4601 = vpow.pop %v4600
          %v4602 = vmul.f32 %v4264, 1.442695
          %v4603 = vpow.pop %v4602
          %v4604 = vmul.f32 %v4265, 1.442695
          %v4605 = vpow.pop %v4604
          %v4606 = vmul.f32 %v4266, 1.442695
          %v4607 = vpow.pop %v4606
          %v4608 = vmul.f32 %v4267, 1.442695
          %v4609 = vpow.pop %v4608
          %v4610 = vmul.f32 %v4268, 1.442695
          %v4611 = vpow.pop %v4610
          %v4612 = vmul.f32 %v4269, 1.442695
          %v4613 = vpow.pop %v4612
          %v4614 = vmul.f32 %v4270, 1.442695
          %v4615 = vpow.pop %v4614
          %v4616 = vmul.f32 %v4271, 1.442695
          %v4617 = vpow.pop %v4616
          %v4618 = vmul.f32 %v4272, 1.442695
          %v4619 = vpow.pop %v4618
          %v4620 = vmul.f32 %v4273, 1.442695
          %v4621 = vpow.pop %v4620
          %v4622 = vmul.f32 %v4274, 1.442695
          %v4623 = vpow.pop %v4622
          %v4624 = vmul.f32 %v4275, 1.442695
          %v4625 = vpow.pop %v4624
          %v4626 = vmul.f32 %v4276, 1.442695
          %v4627 = vpow.pop %v4626
          %v4628 = vmul.f32 %v4277, 1.442695
          %v4629 = vpow.pop %v4628
          %v4630 = vmul.f32 %v4278, 1.442695
          %v4631 = vpow.pop %v4630
          %v4632 = vmul.f32 %v4279, 1.442695
          %v4633 = vpow.pop %v4632
          %v4634 = vmul.f32 %v4280, 1.442695
          %v4635 = vpow.pop %v4634
          %v4636 = vmul.f32 %v4281, 1.442695
          %v4637 = vpow.pop %v4636
          %v4638 = vmul.f32 %v4282, 1.442695
          %v4639 = vpow.pop %v4638
          %v4640 = vmul.f32 %v4283, 1.442695
          %v4641 = vpow.pop %v4640
          %v4642 = vmul.f32 %v4284, 1.442695
          %v4643 = vpow.pop %v4642
          %v4644 = vmul.f32 %v4285, 1.442695
          %v4645 = vpow.pop %v4644
          %v4646 = vmul.f32 %v4286, 1.442695
          %v4647 = vpow.pop %v4646
          %v4648 = vmul.f32 %v4287, 1.442695
          %v4649 = vpow.pop %v4648
          %v4650 = vmul.f32 %v4288, 1.442695
          %v4651 = vpow.pop %v4650
          %v4652 = vmul.f32 %v4289, 1.442695
          %v4653 = vpow.pop %v4652
          %v4654 = vmul.f32 %v4290, 1.442695
          %v4655 = vpow.pop %v4654
          %v4656 = vmul.f32 %v4291, 1.442695
          %v4657 = vpow.pop %v4656
          %v4658 = vmul.f32 %v4292, 1.442695
          %v4659 = vpow.pop %v4658
          %v4660 = vmul.f32 %v4293, 1.442695
          %v4661 = vpow.pop %v4660
          %v4662 = vmul.f32 %v4294, 1.442695
          %v4663 = vpow.pop %v4662
          %v4664 = vmul.f32 %v4295, 1.442695
          %v4665 = vpow.pop %v4664
          %v4666 = vmul.f32 %v4296, 1.442695
          %v4667 = vpow.pop %v4666
          %v4668 = vmul.f32 %v4297, 1.442695
          %v4669 = vpow.pop %v4668
          %v4670 = vmul.f32 %v4298, 1.442695
          %v4671 = vpow.pop %v4670
          %v4672 = vmul.f32 %v4299, 1.442695
          %v4673 = vpow.pop %v4672
          %v4674 = vmul.f32 %v4300, 1.442695
          %v4675 = vpow.pop %v4674
          %v4676 = vmul.f32 %v4301, 1.442695
          %v4677 = vpow.pop %v4676
          %v4678 = vmul.f32 %v4302, 1.442695
          %v4679 = vpow.pop %v4678
          %v4680 = vmul.f32 %v4303, 1.442695
          %v4681 = vpow.pop %v4680
          %v4682 = vmul.f32 %v4304, 1.442695
          %v4683 = vpow.pop %v4682
          %v4684 = vmul.f32 %v4305, 1.442695
          %v4685 = vpow.pop %v4684
          %v4686 = vmul.f32 %v4306, 1.442695
          %v4687 = vpow.pop %v4686
          %v4688 = vmul.f32 %v4307, 1.442695
          %v4689 = vpow.pop %v4688
          %v4690 = vmul.f32 %v4308, 1.442695
          %v4691 = vpow.pop %v4690
          %v4692 = vmul.f32 %v4309, 1.442695
          %v4693 = vpow.pop %v4692
          %v4694 = vmul.f32 %v4310, 1.442695
          %v4695 = vpow.pop %v4694
          %v4696 = vmul.f32 %v4311, 1.442695
          %v4697 = vpow.pop %v4696
          %v4698 = vmul.f32 %v4312, 1.442695
          %v4699 = vpow.pop %v4698
          %v4700 = vmul.f32 %v4313, 1.442695
          %v4701 = vpow.pop %v4700
          %v4702 = vmul.f32 %v4314, 1.442695
          %v4703 = vpow.pop %v4702
          %v4704 = vmul.f32 %v4315, 1.442695
          %v4705 = vpow.pop %v4704
          %v4706 = vmul.f32 %v4316, 1.442695
          %v4707 = vpow.pop %v4706
          %v4708 = vmul.f32 %v4317, 1.442695
          %v4709 = vpow.pop %v4708
          %v4710 = vmul.f32 %v4318, 1.442695
          %v4711 = vpow.pop %v4710
          %v4712 = vmul.f32 %v4319, 1.442695
          %v4713 = vpow.pop %v4712
          %v4714 = vmul.f32 %v4320, 1.442695
          %v4715 = vpow.pop %v4714
          %v4716 = vmul.f32 %v4321, 1.442695
          %v4717 = vpow.pop %v4716
          %v4718 = vmul.f32 %v4322, 1.442695
          %v4719 = vpow.pop %v4718
          %v4720 = vmul.f32 %v4323, 1.442695
          %v4721 = vpow.pop %v4720
          %v4722 = vmul.f32 %v4324, 1.442695
          %v4723 = vpow.pop %v4722
          %v4724 = vmul.f32 %v4325, 1.442695
          %v4725 = vpow.pop %v4724
          %v4726 = vmul.f32 %v4326, 1.442695
          %v4727 = vpow.pop %v4726
          %v4728 = vmul.f32 %v4327, 1.442695
          %v4729 = vpow.pop %v4728
          %v4730 = vmul.f32 %v4328, 1.442695
          %v4731 = vpow.pop %v4730
          %v4732 = vmul.f32 %v4329, 1.442695
          %v4733 = vpow.pop %v4732
          %v4734 = vmul.f32 %v4330, 1.442695
          %v4735 = vpow.pop %v4734
          %v4736 = vmul.f32 %v4331, 1.442695
          %v4737 = vpow.pop %v4736
          %v4738 = vmul.f32 %v4332, 1.442695
          %v4739 = vpow.pop %v4738
          %v4740 = vmul.f32 %v4333, 1.442695
          %v4741 = vpow.pop %v4740
          %v4742 = vmul.f32 %v4334, 1.442695
          %v4743 = vpow.pop %v4742
          %v4744 = vmul.f32 %v4335, 1.442695
          %v4745 = vpow.pop %v4744
          %v4746 = vmul.f32 %v4336, 1.442695
          %v4747 = vpow.pop %v4746
          %v4748 = vmul.f32 %v4337, 1.442695
          %v4749 = vpow.pop %v4748
          %v4750 = vmul.f32 %v4338, 1.442695
          %v4751 = vpow.pop %v4750
          %v4752 = vmul.f32 %v4339, 1.442695
          %v4753 = vpow.pop %v4752
          %v4754 = vmul.f32 %v4340, 1.442695
          %v4755 = vpow.pop %v4754
          %v4756 = vmul.f32 %v4341, 1.442695
          %v4757 = vpow.pop %v4756
          %v4758 = vmul.f32 %v4342, 1.442695
          %v4759 = vpow.pop %v4758
          %v4760 = vmul.f32 %v4343, 1.442695
          %v4761 = vpow.pop %v4760
          %v4762 = vmul.f32 %v4344, 1.442695
          %v4763 = vpow.pop %v4762
          %v4764 = vmul.f32 %v4345, 1.442695
          %v4765 = vpow.pop %v4764
          %v4766 = vmul.f32 %v4346, 1.442695
          %v4767 = vpow.pop %v4766
          %v4768 = vmul.f32 %v4347, 1.442695
          %v4769 = vpow.pop %v4768
          %v4770 = vmul.f32 %v4348, 1.442695
          %v4771 = vpow.pop %v4770
          %v4772 = vmul.f32 %v4349, 1.442695
          %v4773 = vpow.pop %v4772
          %v4774 = vmul.f32 %v4350, 1.442695
          %v4775 = vpow.pop %v4774
          %v4776 = vmul.f32 %v4351, 1.442695
          %v4777 = vpow.pop %v4776
          %v4778 = vmul.f32 %v4352, 1.442695
          %v4779 = vpow.pop %v4778
          %v4780 = vmul.f32 %v4353, 1.442695
          %v4781 = vpow.pop %v4780
          %v4782 = vmul.f32 %v4354, 1.442695
          %v4783 = vpow.pop %v4782
          %v4784 = vmul.f32 %v4355, 1.442695
          %v4785 = vpow.pop %v4784
          %v4786 = vmul.f32 %v4356, 1.442695
          %v4787 = vpow.pop %v4786
          %v4788 = vmul.f32 %v4357, 1.442695
          %v4789 = vpow.pop %v4788
          %v4790 = vmul.f32 %v4358, 1.442695
          %v4791 = vpow.pop %v4790
          %v4792 = vmul.f32 %v4359, 1.442695
          %v4793 = vpow.pop %v4792
          %v4794 = vmul.f32 %v4360, 1.442695
          %v4795 = vpow.pop %v4794
          %v4796 = vmul.f32 %v4361, 1.442695
          %v4797 = vpow.pop %v4796
          %v4798 = vmul.f32 %v4362, 1.442695
          %v4799 = vpow.pop %v4798
          %v4800 = vmul.f32 %v4363, 1.442695
          %v4801 = vpow.pop %v4800
          %v4802 = vmul.f32 %v4364, 1.442695
          %v4803 = vpow.pop %v4802
          %v4804 = vmul.f32 %v4365, 1.442695
          %v4805 = vpow.pop %v4804
          %v4806 = vmul.f32 %v4366, 1.442695
          %v4807 = vpow.pop %v4806
          %v4808 = vmul.f32 %v4367, 1.442695
          %v4809 = vpow.pop %v4808
          %v4810 = vmul.f32 %v4368, 1.442695
          %v4811 = vpow.pop %v4810
          %v4812 = vmul.f32 %v4369, 1.442695
          %v4813 = vpow.pop %v4812
          %v4814 = vmul.f32 %v4370, 1.442695
          %v4815 = vpow.pop %v4814
          %v4816 = vmul.f32 %v4371, 1.442695
          %v4817 = vpow.pop %v4816
          %v4818 = vmul.f32 %v4372, 1.442695
          %v4819 = vpow.pop %v4818
          %v4820 = vmul.f32 %v4373, 1.442695
          %v4821 = vpow.pop %v4820
          %v4822 = vmul.f32 %v4374, 1.442695
          %v4823 = vpow.pop %v4822
          %v4824 = vmul.f32 %v4375, 1.442695
          %v4825 = vpow.pop %v4824
          %v4826 = vmul.f32 %v4376, 1.442695
          %v4827 = vpow.pop %v4826
          %v4828 = vmul.f32 %v4377, 1.442695
          %v4829 = vpow.pop %v4828
          %v4830 = vmul.f32 %v4378, 1.442695
          %v4831 = vpow.pop %v4830
          %v4832 = vmul.f32 %v4379, 1.442695
          %v4833 = vpow.pop %v4832
          %v4834 = vmul.f32 %v4380, 1.442695
          %v4835 = vpow.pop %v4834
          %v4836 = vmul.f32 %v4381, 1.442695
          %v4837 = vpow.pop %v4836
          %v4838 = vmul.f32 %v4382, 1.442695
          %v4839 = vpow.pop %v4838
          %v4840 = vmul.f32 %v4383, 1.442695
          %v4841 = vpow.pop %v4840
          %v4842 = vmul.f32 %v4384, 1.442695
          %v4843 = vpow.pop %v4842
          %v4844 = vmul.f32 %v4385, 1.442695
          %v4845 = vpow.pop %v4844
          %v4846 = vmul.f32 %v4386, 1.442695
          %v4847 = vpow.pop %v4846
          %v4848 = vmul.f32 %v4387, 1.442695
          %v4849 = vpow.pop %v4848
          %v4850 = vmul.f32 %v4388, 1.442695
          %v4851 = vpow.pop %v4850
          %v4852 = vmul.f32 %v4389, 1.442695
          %v4853 = vpow.pop %v4852
          %v4854 = vmul.f32 %v4390, 1.442695
          %v4855 = vpow.pop %v4854
          %v4856 = vmul.f32 %v4391, 1.442695
          %v4857 = vpow.pop %v4856
          %v4858 = vmul.f32 %v4392, 1.442695
          %v4859 = vpow.pop %v4858
          %v4860 = vmul.f32 %v4393, 1.442695
          %v4861 = vpow.pop %v4860
          %v4862 = vmul.f32 %v4394, 1.442695
          %v4863 = vpow.pop %v4862
          %v4864 = vmul.f32 %v4395, 1.442695
          %v4865 = vpow.pop %v4864
          %v4866 = vmul.f32 %v4396, 1.442695
          %v4867 = vpow.pop %v4866
          %v4868 = vmul.f32 %v4397, 1.442695
          %v4869 = vpow.pop %v4868
          %v4870 = vmul.f32 %v4398, 1.442695
          %v4871 = vpow.pop %v4870
          %v4872 = vmul.f32 %v4399, 1.442695
          %v4873 = vpow.pop %v4872
          %v4874 = vmul.f32 %v4400, 1.442695
          %v4875 = vpow.pop %v4874
          %v4876 = vmul.f32 %v4401, 1.442695
          %v4877 = vpow.pop %v4876
          %v4878 = vmul.f32 %v4402, 1.442695
          %v4879 = vpow.pop %v4878
          %v4880 = vmul.f32 %v4403, 1.442695
          %v4881 = vpow.pop %v4880
          %v4882 = vmul.f32 %v4404, 1.442695
          %v4883 = vpow.pop %v4882
          %v4884 = vmul.f32 %v4405, 1.442695
          %v4885 = vpow.pop %v4884
          %v4886 = vmul.f32 %v4406, 1.442695
          %v4887 = vpow.pop %v4886
          %v4888 = vmul.f32 %v4407, 1.442695
          %v4889 = vpow.pop %v4888
          %v4890 = vmul.f32 %v4408, 1.442695
          %v4891 = vpow.pop %v4890
          %v4892 = vmul.f32 %v4409, 1.442695
          %v4893 = vpow.pop %v4892
          %v4894 = vmul.f32 %v4410, 1.442695
          %v4895 = vpow.pop %v4894
          %v4896 = vmul.f32 %v4411, 1.442695
          %v4897 = vpow.pop %v4896
          %v4898 = vmul.f32 %v4412, 1.442695
          %v4899 = vpow.pop %v4898
          %v4900 = vmul.f32 %v4413, 1.442695
          %v4901 = vpow.pop %v4900
          %v4902 = vmul.f32 %v4414, 1.442695
          %v4903 = vpow.pop %v4902
          %v4904 = vmul.f32 %v4415, 1.442695
          %v4905 = vpow.pop %v4904
          %v4906 = vmul.f32 %v4416, 1.442695
          %v4907 = vpow.pop %v4906
          %v4908 = vmul.f32 %v4417, 1.442695
          %v4909 = vpow.pop %v4908
          %v4910 = vmul.f32 %v4418, 1.442695
          %v4911 = vpow.pop %v4910
          %v4912 = vmul.f32 %v4419, 1.442695
          %v4913 = vpow.pop %v4912
          %v4914 = vmul.f32 %v4420, 1.442695
          %v4915 = vpow.pop %v4914
          %v4916 = vmul.f32 %v4421, 1.442695
          %v4917 = vpow.pop %v4916
          %v4918 = vmul.f32 %v4422, 1.442695
          %v4919 = vpow.pop %v4918
          %v4920 = vmul.f32 %v4423, 1.442695
          %v4921 = vpow.pop %v4920
          %v4922 = vmul.f32 %v4424, 1.442695
          %v4923 = vpow.pop %v4922
          %v4924 = vmul.f32 %v4425, 1.442695
          %v4925 = vpow.pop %v4924
          %v4926 = vmul.f32 %v4426, 1.442695
          %v4927 = vpow.pop %v4926
          %v4928 = vmul.f32 %v4427, 1.442695
          %v4929 = vpow.pop %v4928
          %v4930 = vmul.f32 %v4428, 1.442695
          %v4931 = vpow.pop %v4930
          %v4932 = vmul.f32 %v4429, 1.442695
          %v4933 = vpow.pop %v4932
          %v4934 = vmul.f32 %v4430, 1.442695
          %v4935 = vpow.pop %v4934
          %v4936 = vmul.f32 %v4431, 1.442695
          %v4937 = vpow.pop %v4936
          %v4938 = vmul.f32 %v4432, 1.442695
          %v4939 = vpow.pop %v4938
          %v4940 = vmul.f32 %v4433, 1.442695
          %v4941 = vpow.pop %v4940
          %v4942 = vmul.f32 %v4434, 1.442695
          %v4943 = vpow.pop %v4942
          %v4944 = vmul.f32 %v4435, 1.442695
          %v4945 = vpow.pop %v4944
          %v4946 = vmul.f32 %v4436, 1.442695
          %v4947 = vpow.pop %v4946
          %v4948 = vmul.f32 %v4437, 1.442695
          %v4949 = vpow.pop %v4948
          %v4950 = vsub.f32 %v4439, 1.0
          %v4951 = vsub.f32 %v4441, 1.0
          %v4952 = vsub.f32 %v4443, 1.0
          %v4953 = vsub.f32 %v4445, 1.0
          %v4954 = vsub.f32 %v4447, 1.0
          %v4955 = vsub.f32 %v4449, 1.0
          %v4956 = vsub.f32 %v4451, 1.0
          %v4957 = vsub.f32 %v4453, 1.0
          %v4958 = vsub.f32 %v4455, 1.0
          %v4959 = vsub.f32 %v4457, 1.0
          %v4960 = vsub.f32 %v4459, 1.0
          %v4961 = vsub.f32 %v4461, 1.0
          %v4962 = vsub.f32 %v4463, 1.0
          %v4963 = vsub.f32 %v4465, 1.0
          %v4964 = vsub.f32 %v4467, 1.0
          %v4965 = vsub.f32 %v4469, 1.0
          %v4966 = vsub.f32 %v4471, 1.0
          %v4967 = vsub.f32 %v4473, 1.0
          %v4968 = vsub.f32 %v4475, 1.0
          %v4969 = vsub.f32 %v4477, 1.0
          %v4970 = vsub.f32 %v4479, 1.0
          %v4971 = vsub.f32 %v4481, 1.0
          %v4972 = vsub.f32 %v4483, 1.0
          %v4973 = vsub.f32 %v4485, 1.0
          %v4974 = vsub.f32 %v4487, 1.0
          %v4975 = vsub.f32 %v4489, 1.0
          %v4976 = vsub.f32 %v4491, 1.0
          %v4977 = vsub.f32 %v4493, 1.0
          %v4978 = vsub.f32 %v4495, 1.0
          %v4979 = vsub.f32 %v4497, 1.0
          %v4980 = vsub.f32 %v4499, 1.0
          %v4981 = vsub.f32 %v4501, 1.0
          %v4982 = vsub.f32 %v4503, 1.0
          %v4983 = vsub.f32 %v4505, 1.0
          %v4984 = vsub.f32 %v4507, 1.0
          %v4985 = vsub.f32 %v4509, 1.0
          %v4986 = vsub.f32 %v4511, 1.0
          %v4987 = vsub.f32 %v4513, 1.0
          %v4988 = vsub.f32 %v4515, 1.0
          %v4989 = vsub.f32 %v4517, 1.0
          %v4990 = vsub.f32 %v4519, 1.0
          %v4991 = vsub.f32 %v4521, 1.0
          %v4992 = vsub.f32 %v4523, 1.0
          %v4993 = vsub.f32 %v4525, 1.0
          %v4994 = vsub.f32 %v4527, 1.0
          %v4995 = vsub.f32 %v4529, 1.0
          %v4996 = vsub.f32 %v4531, 1.0
          %v4997 = vsub.f32 %v4533, 1.0
          %v4998 = vsub.f32 %v4535, 1.0
          %v4999 = vsub.f32 %v4537, 1.0
          %v5000 = vsub.f32 %v4539, 1.0
          %v5001 = vsub.f32 %v4541, 1.0
          %v5002 = vsub.f32 %v4543, 1.0
          %v5003 = vsub.f32 %v4545, 1.0
          %v5004 = vsub.f32 %v4547, 1.0
          %v5005 = vsub.f32 %v4549, 1.0
          %v5006 = vsub.f32 %v4551, 1.0
          %v5007 = vsub.f32 %v4553, 1.0
          %v5008 = vsub.f32 %v4555, 1.0
          %v5009 = vsub.f32 %v4557, 1.0
          %v5010 = vsub.f32 %v4559, 1.0
          %v5011 = vsub.f32 %v4561, 1.0
          %v5012 = vsub.f32 %v4563, 1.0
          %v5013 = vsub.f32 %v4565, 1.0
          %v5014 = vsub.f32 %v4567, 1.0
          %v5015 = vsub.f32 %v4569, 1.0
          %v5016 = vsub.f32 %v4571, 1.0
          %v5017 = vsub.f32 %v4573, 1.0
          %v5018 = vsub.f32 %v4575, 1.0
          %v5019 = vsub.f32 %v4577, 1.0
          %v5020 = vsub.f32 %v4579, 1.0
          %v5021 = vsub.f32 %v4581, 1.0
          %v5022 = vsub.f32 %v4583, 1.0
          %v5023 = vsub.f32 %v4585, 1.0
          %v5024 = vsub.f32 %v4587, 1.0
          %v5025 = vsub.f32 %v4589, 1.0
          %v5026 = vsub.f32 %v4591, 1.0
          %v5027 = vsub.f32 %v4593, 1.0
          %v5028 = vsub.f32 %v4595, 1.0
          %v5029 = vsub.f32 %v4597, 1.0
          %v5030 = vsub.f32 %v4599, 1.0
          %v5031 = vsub.f32 %v4601, 1.0
          %v5032 = vsub.f32 %v4603, 1.0
          %v5033 = vsub.f32 %v4605, 1.0
          %v5034 = vsub.f32 %v4607, 1.0
          %v5035 = vsub.f32 %v4609, 1.0
          %v5036 = vsub.f32 %v4611, 1.0
          %v5037 = vsub.f32 %v4613, 1.0
          %v5038 = vsub.f32 %v4615, 1.0
          %v5039 = vsub.f32 %v4617, 1.0
          %v5040 = vsub.f32 %v4619, 1.0
          %v5041 = vsub.f32 %v4621, 1.0
          %v5042 = vsub.f32 %v4623, 1.0
          %v5043 = vsub.f32 %v4625, 1.0
          %v5044 = vsub.f32 %v4627, 1.0
          %v5045 = vsub.f32 %v4629, 1.0
          %v5046 = vsub.f32 %v4631, 1.0
          %v5047 = vsub.f32 %v4633, 1.0
          %v5048 = vsub.f32 %v4635, 1.0
          %v5049 = vsub.f32 %v4637, 1.0
          %v5050 = vsub.f32 %v4639, 1.0
          %v5051 = vsub.f32 %v4641, 1.0
          %v5052 = vsub.f32 %v4643, 1.0
          %v5053 = vsub.f32 %v4645, 1.0
          %v5054 = vsub.f32 %v4647, 1.0
          %v5055 = vsub.f32 %v4649, 1.0
          %v5056 = vsub.f32 %v4651, 1.0
          %v5057 = vsub.f32 %v4653, 1.0
          %v5058 = vsub.f32 %v4655, 1.0
          %v5059 = vsub.f32 %v4657, 1.0
          %v5060 = vsub.f32 %v4659, 1.0
          %v5061 = vsub.f32 %v4661, 1.0
          %v5062 = vsub.f32 %v4663, 1.0
          %v5063 = vsub.f32 %v4665, 1.0
          %v5064 = vsub.f32 %v4667, 1.0
          %v5065 = vsub.f32 %v4669, 1.0
          %v5066 = vsub.f32 %v4671, 1.0
          %v5067 = vsub.f32 %v4673, 1.0
          %v5068 = vsub.f32 %v4675, 1.0
          %v5069 = vsub.f32 %v4677, 1.0
          %v5070 = vsub.f32 %v4679, 1.0
          %v5071 = vsub.f32 %v4681, 1.0
          %v5072 = vsub.f32 %v4683, 1.0
          %v5073 = vsub.f32 %v4685, 1.0
          %v5074 = vsub.f32 %v4687, 1.0
          %v5075 = vsub.f32 %v4689, 1.0
          %v5076 = vsub.f32 %v4691, 1.0
          %v5077 = vsub.f32 %v4693, 1.0
          %v5078 = vsub.f32 %v4695, 1.0
          %v5079 = vsub.f32 %v4697, 1.0
          %v5080 = vsub.f32 %v4699, 1.0
          %v5081 = vsub.f32 %v4701, 1.0
          %v5082 = vsub.f32 %v4703, 1.0
          %v5083 = vsub.f32 %v4705, 1.0
          %v5084 = vsub.f32 %v4707, 1.0
          %v5085 = vsub.f32 %v4709, 1.0
          %v5086 = vsub.f32 %v4711, 1.0
          %v5087 = vsub.f32 %v4713, 1.0
          %v5088 = vsub.f32 %v4715, 1.0
          %v5089 = vsub.f32 %v4717, 1.0
          %v5090 = vsub.f32 %v4719, 1.0
          %v5091 = vsub.f32 %v4721, 1.0
          %v5092 = vsub.f32 %v4723, 1.0
          %v5093 = vsub.f32 %v4725, 1.0
          %v5094 = vsub.f32 %v4727, 1.0
          %v5095 = vsub.f32 %v4729, 1.0
          %v5096 = vsub.f32 %v4731, 1.0
          %v5097 = vsub.f32 %v4733, 1.0
          %v5098 = vsub.f32 %v4735, 1.0
          %v5099 = vsub.f32 %v4737, 1.0
          %v5100 = vsub.f32 %v4739, 1.0
          %v5101 = vsub.f32 %v4741, 1.0
          %v5102 = vsub.f32 %v4743, 1.0
          %v5103 = vsub.f32 %v4745, 1.0
          %v5104 = vsub.f32 %v4747, 1.0
          %v5105 = vsub.f32 %v4749, 1.0
          %v5106 = vsub.f32 %v4751, 1.0
          %v5107 = vsub.f32 %v4753, 1.0
          %v5108 = vsub.f32 %v4755, 1.0
          %v5109 = vsub.f32 %v4757, 1.0
          %v5110 = vsub.f32 %v4759, 1.0
          %v5111 = vsub.f32 %v4761, 1.0
          %v5112 = vsub.f32 %v4763, 1.0
          %v5113 = vsub.f32 %v4765, 1.0
          %v5114 = vsub.f32 %v4767, 1.0
          %v5115 = vsub.f32 %v4769, 1.0
          %v5116 = vsub.f32 %v4771, 1.0
          %v5117 = vsub.f32 %v4773, 1.0
          %v5118 = vsub.f32 %v4775, 1.0
          %v5119 = vsub.f32 %v4777, 1.0
          %v5120 = vsub.f32 %v4779, 1.0
          %v5121 = vsub.f32 %v4781, 1.0
          %v5122 = vsub.f32 %v4783, 1.0
          %v5123 = vsub.f32 %v4785, 1.0
          %v5124 = vsub.f32 %v4787, 1.0
          %v5125 = vsub.f32 %v4789, 1.0
          %v5126 = vsub.f32 %v4791, 1.0
          %v5127 = vsub.f32 %v4793, 1.0
          %v5128 = vsub.f32 %v4795, 1.0
          %v5129 = vsub.f32 %v4797, 1.0
          %v5130 = vsub.f32 %v4799, 1.0
          %v5131 = vsub.f32 %v4801, 1.0
          %v5132 = vsub.f32 %v4803, 1.0
          %v5133 = vsub.f32 %v4805, 1.0
          %v5134 = vsub.f32 %v4807, 1.0
          %v5135 = vsub.f32 %v4809, 1.0
          %v5136 = vsub.f32 %v4811, 1.0
          %v5137 = vsub.f32 %v4813, 1.0
          %v5138 = vsub.f32 %v4815, 1.0
          %v5139 = vsub.f32 %v4817, 1.0
          %v5140 = vsub.f32 %v4819, 1.0
          %v5141 = vsub.f32 %v4821, 1.0
          %v5142 = vsub.f32 %v4823, 1.0
          %v5143 = vsub.f32 %v4825, 1.0
          %v5144 = vsub.f32 %v4827, 1.0
          %v5145 = vsub.f32 %v4829, 1.0
          %v5146 = vsub.f32 %v4831, 1.0
          %v5147 = vsub.f32 %v4833, 1.0
          %v5148 = vsub.f32 %v4835, 1.0
          %v5149 = vsub.f32 %v4837, 1.0
          %v5150 = vsub.f32 %v4839, 1.0
          %v5151 = vsub.f32 %v4841, 1.0
          %v5152 = vsub.f32 %v4843, 1.0
          %v5153 = vsub.f32 %v4845, 1.0
          %v5154 = vsub.f32 %v4847, 1.0
          %v5155 = vsub.f32 %v4849, 1.0
          %v5156 = vsub.f32 %v4851, 1.0
          %v5157 = vsub.f32 %v4853, 1.0
          %v5158 = vsub.f32 %v4855, 1.0
          %v5159 = vsub.f32 %v4857, 1.0
          %v5160 = vsub.f32 %v4859, 1.0
          %v5161 = vsub.f32 %v4861, 1.0
          %v5162 = vsub.f32 %v4863, 1.0
          %v5163 = vsub.f32 %v4865, 1.0
          %v5164 = vsub.f32 %v4867, 1.0
          %v5165 = vsub.f32 %v4869, 1.0
          %v5166 = vsub.f32 %v4871, 1.0
          %v5167 = vsub.f32 %v4873, 1.0
          %v5168 = vsub.f32 %v4875, 1.0
          %v5169 = vsub.f32 %v4877, 1.0
          %v5170 = vsub.f32 %v4879, 1.0
          %v5171 = vsub.f32 %v4881, 1.0
          %v5172 = vsub.f32 %v4883, 1.0
          %v5173 = vsub.f32 %v4885, 1.0
          %v5174 = vsub.f32 %v4887, 1.0
          %v5175 = vsub.f32 %v4889, 1.0
          %v5176 = vsub.f32 %v4891, 1.0
          %v5177 = vsub.f32 %v4893, 1.0
          %v5178 = vsub.f32 %v4895, 1.0
          %v5179 = vsub.f32 %v4897, 1.0
          %v5180 = vsub.f32 %v4899, 1.0
          %v5181 = vsub.f32 %v4901, 1.0
          %v5182 = vsub.f32 %v4903, 1.0
          %v5183 = vsub.f32 %v4905, 1.0
          %v5184 = vsub.f32 %v4907, 1.0
          %v5185 = vsub.f32 %v4909, 1.0
          %v5186 = vsub.f32 %v4911, 1.0
          %v5187 = vsub.f32 %v4913, 1.0
          %v5188 = vsub.f32 %v4915, 1.0
          %v5189 = vsub.f32 %v4917, 1.0
          %v5190 = vsub.f32 %v4919, 1.0
          %v5191 = vsub.f32 %v4921, 1.0
          %v5192 = vsub.f32 %v4923, 1.0
          %v5193 = vsub.f32 %v4925, 1.0
          %v5194 = vsub.f32 %v4927, 1.0
          %v5195 = vsub.f32 %v4929, 1.0
          %v5196 = vsub.f32 %v4931, 1.0
          %v5197 = vsub.f32 %v4933, 1.0
          %v5198 = vsub.f32 %v4935, 1.0
          %v5199 = vsub.f32 %v4937, 1.0
          %v5200 = vsub.f32 %v4939, 1.0
          %v5201 = vsub.f32 %v4941, 1.0
          %v5202 = vsub.f32 %v4943, 1.0
          %v5203 = vsub.f32 %v4945, 1.0
          %v5204 = vsub.f32 %v4947, 1.0
          %v5205 = vsub.f32 %v4949, 1.0
          %v5206 = vsel %vm3926, %v3670, %v4950
          %v5207 = vsel %vm3927, %v3671, %v4951
          %v5208 = vsel %vm3928, %v3672, %v4952
          %v5209 = vsel %vm3929, %v3673, %v4953
          %v5210 = vsel %vm3930, %v3674, %v4954
          %v5211 = vsel %vm3931, %v3675, %v4955
          %v5212 = vsel %vm3932, %v3676, %v4956
          %v5213 = vsel %vm3933, %v3677, %v4957
          %v5214 = vsel %vm3934, %v3678, %v4958
          %v5215 = vsel %vm3935, %v3679, %v4959
          %v5216 = vsel %vm3936, %v3680, %v4960
          %v5217 = vsel %vm3937, %v3681, %v4961
          %v5218 = vsel %vm3938, %v3682, %v4962
          %v5219 = vsel %vm3939, %v3683, %v4963
          %v5220 = vsel %vm3940, %v3684, %v4964
          %v5221 = vsel %vm3941, %v3685, %v4965
          %v5222 = vsel %vm3942, %v3686, %v4966
          %v5223 = vsel %vm3943, %v3687, %v4967
          %v5224 = vsel %vm3944, %v3688, %v4968
          %v5225 = vsel %vm3945, %v3689, %v4969
          %v5226 = vsel %vm3946, %v3690, %v4970
          %v5227 = vsel %vm3947, %v3691, %v4971
          %v5228 = vsel %vm3948, %v3692, %v4972
          %v5229 = vsel %vm3949, %v3693, %v4973
          %v5230 = vsel %vm3950, %v3694, %v4974
          %v5231 = vsel %vm3951, %v3695, %v4975
          %v5232 = vsel %vm3952, %v3696, %v4976
          %v5233 = vsel %vm3953, %v3697, %v4977
          %v5234 = vsel %vm3954, %v3698, %v4978
          %v5235 = vsel %vm3955, %v3699, %v4979
          %v5236 = vsel %vm3956, %v3700, %v4980
          %v5237 = vsel %vm3957, %v3701, %v4981
          %v5238 = vsel %vm3958, %v3702, %v4982
          %v5239 = vsel %vm3959, %v3703, %v4983
          %v5240 = vsel %vm3960, %v3704, %v4984
          %v5241 = vsel %vm3961, %v3705, %v4985
          %v5242 = vsel %vm3962, %v3706, %v4986
          %v5243 = vsel %vm3963, %v3707, %v4987
          %v5244 = vsel %vm3964, %v3708, %v4988
          %v5245 = vsel %vm3965, %v3709, %v4989
          %v5246 = vsel %vm3966, %v3710, %v4990
          %v5247 = vsel %vm3967, %v3711, %v4991
          %v5248 = vsel %vm3968, %v3712, %v4992
          %v5249 = vsel %vm3969, %v3713, %v4993
          %v5250 = vsel %vm3970, %v3714, %v4994
          %v5251 = vsel %vm3971, %v3715, %v4995
          %v5252 = vsel %vm3972, %v3716, %v4996
          %v5253 = vsel %vm3973, %v3717, %v4997
          %v5254 = vsel %vm3974, %v3718, %v4998
          %v5255 = vsel %vm3975, %v3719, %v4999
          %v5256 = vsel %vm3976, %v3720, %v5000
          %v5257 = vsel %vm3977, %v3721, %v5001
          %v5258 = vsel %vm3978, %v3722, %v5002
          %v5259 = vsel %vm3979, %v3723, %v5003
          %v5260 = vsel %vm3980, %v3724, %v5004
          %v5261 = vsel %vm3981, %v3725, %v5005
          %v5262 = vsel %vm3982, %v3726, %v5006
          %v5263 = vsel %vm3983, %v3727, %v5007
          %v5264 = vsel %vm3984, %v3728, %v5008
          %v5265 = vsel %vm3985, %v3729, %v5009
          %v5266 = vsel %vm3986, %v3730, %v5010
          %v5267 = vsel %vm3987, %v3731, %v5011
          %v5268 = vsel %vm3988, %v3732, %v5012
          %v5269 = vsel %vm3989, %v3733, %v5013
          %v5270 = vsel %vm3990, %v3734, %v5014
          %v5271 = vsel %vm3991, %v3735, %v5015
          %v5272 = vsel %vm3992, %v3736, %v5016
          %v5273 = vsel %vm3993, %v3737, %v5017
          %v5274 = vsel %vm3994, %v3738, %v5018
          %v5275 = vsel %vm3995, %v3739, %v5019
          %v5276 = vsel %vm3996, %v3740, %v5020
          %v5277 = vsel %vm3997, %v3741, %v5021
          %v5278 = vsel %vm3998, %v3742, %v5022
          %v5279 = vsel %vm3999, %v3743, %v5023
          %v5280 = vsel %vm4000, %v3744, %v5024
          %v5281 = vsel %vm4001, %v3745, %v5025
          %v5282 = vsel %vm4002, %v3746, %v5026
          %v5283 = vsel %vm4003, %v3747, %v5027
          %v5284 = vsel %vm4004, %v3748, %v5028
          %v5285 = vsel %vm4005, %v3749, %v5029
          %v5286 = vsel %vm4006, %v3750, %v5030
          %v5287 = vsel %vm4007, %v3751, %v5031
          %v5288 = vsel %vm4008, %v3752, %v5032
          %v5289 = vsel %vm4009, %v3753, %v5033
          %v5290 = vsel %vm4010, %v3754, %v5034
          %v5291 = vsel %vm4011, %v3755, %v5035
          %v5292 = vsel %vm4012, %v3756, %v5036
          %v5293 = vsel %vm4013, %v3757, %v5037
          %v5294 = vsel %vm4014, %v3758, %v5038
          %v5295 = vsel %vm4015, %v3759, %v5039
          %v5296 = vsel %vm4016, %v3760, %v5040
          %v5297 = vsel %vm4017, %v3761, %v5041
          %v5298 = vsel %vm4018, %v3762, %v5042
          %v5299 = vsel %vm4019, %v3763, %v5043
          %v5300 = vsel %vm4020, %v3764, %v5044
          %v5301 = vsel %vm4021, %v3765, %v5045
          %v5302 = vsel %vm4022, %v3766, %v5046
          %v5303 = vsel %vm4023, %v3767, %v5047
          %v5304 = vsel %vm4024, %v3768, %v5048
          %v5305 = vsel %vm4025, %v3769, %v5049
          %v5306 = vsel %vm4026, %v3770, %v5050
          %v5307 = vsel %vm4027, %v3771, %v5051
          %v5308 = vsel %vm4028, %v3772, %v5052
          %v5309 = vsel %vm4029, %v3773, %v5053
          %v5310 = vsel %vm4030, %v3774, %v5054
          %v5311 = vsel %vm4031, %v3775, %v5055
          %v5312 = vsel %vm4032, %v3776, %v5056
          %v5313 = vsel %vm4033, %v3777, %v5057
          %v5314 = vsel %vm4034, %v3778, %v5058
          %v5315 = vsel %vm4035, %v3779, %v5059
          %v5316 = vsel %vm4036, %v3780, %v5060
          %v5317 = vsel %vm4037, %v3781, %v5061
          %v5318 = vsel %vm4038, %v3782, %v5062
          %v5319 = vsel %vm4039, %v3783, %v5063
          %v5320 = vsel %vm4040, %v3784, %v5064
          %v5321 = vsel %vm4041, %v3785, %v5065
          %v5322 = vsel %vm4042, %v3786, %v5066
          %v5323 = vsel %vm4043, %v3787, %v5067
          %v5324 = vsel %vm4044, %v3788, %v5068
          %v5325 = vsel %vm4045, %v3789, %v5069
          %v5326 = vsel %vm4046, %v3790, %v5070
          %v5327 = vsel %vm4047, %v3791, %v5071
          %v5328 = vsel %vm4048, %v3792, %v5072
          %v5329 = vsel %vm4049, %v3793, %v5073
          %v5330 = vsel %vm4050, %v3794, %v5074
          %v5331 = vsel %vm4051, %v3795, %v5075
          %v5332 = vsel %vm4052, %v3796, %v5076
          %v5333 = vsel %vm4053, %v3797, %v5077
          %v5334 = vsel %vm4054, %v3798, %v5078
          %v5335 = vsel %vm4055, %v3799, %v5079
          %v5336 = vsel %vm4056, %v3800, %v5080
          %v5337 = vsel %vm4057, %v3801, %v5081
          %v5338 = vsel %vm4058, %v3802, %v5082
          %v5339 = vsel %vm4059, %v3803, %v5083
          %v5340 = vsel %vm4060, %v3804, %v5084
          %v5341 = vsel %vm4061, %v3805, %v5085
          %v5342 = vsel %vm4062, %v3806, %v5086
          %v5343 = vsel %vm4063, %v3807, %v5087
          %v5344 = vsel %vm4064, %v3808, %v5088
          %v5345 = vsel %vm4065, %v3809, %v5089
          %v5346 = vsel %vm4066, %v3810, %v5090
          %v5347 = vsel %vm4067, %v3811, %v5091
          %v5348 = vsel %vm4068, %v3812, %v5092
          %v5349 = vsel %vm4069, %v3813, %v5093
          %v5350 = vsel %vm4070, %v3814, %v5094
          %v5351 = vsel %vm4071, %v3815, %v5095
          %v5352 = vsel %vm4072, %v3816, %v5096
          %v5353 = vsel %vm4073, %v3817, %v5097
          %v5354 = vsel %vm4074, %v3818, %v5098
          %v5355 = vsel %vm4075, %v3819, %v5099
          %v5356 = vsel %vm4076, %v3820, %v5100
          %v5357 = vsel %vm4077, %v3821, %v5101
          %v5358 = vsel %vm4078, %v3822, %v5102
          %v5359 = vsel %vm4079, %v3823, %v5103
          %v5360 = vsel %vm4080, %v3824, %v5104
          %v5361 = vsel %vm4081, %v3825, %v5105
          %v5362 = vsel %vm4082, %v3826, %v5106
          %v5363 = vsel %vm4083, %v3827, %v5107
          %v5364 = vsel %vm4084, %v3828, %v5108
          %v5365 = vsel %vm4085, %v3829, %v5109
          %v5366 = vsel %vm4086, %v3830, %v5110
          %v5367 = vsel %vm4087, %v3831, %v5111
          %v5368 = vsel %vm4088, %v3832, %v5112
          %v5369 = vsel %vm4089, %v3833, %v5113
          %v5370 = vsel %vm4090, %v3834, %v5114
          %v5371 = vsel %vm4091, %v3835, %v5115
          %v5372 = vsel %vm4092, %v3836, %v5116
          %v5373 = vsel %vm4093, %v3837, %v5117
          %v5374 = vsel %vm4094, %v3838, %v5118
          %v5375 = vsel %vm4095, %v3839, %v5119
          %v5376 = vsel %vm4096, %v3840, %v5120
          %v5377 = vsel %vm4097, %v3841, %v5121
          %v5378 = vsel %vm4098, %v3842, %v5122
          %v5379 = vsel %vm4099, %v3843, %v5123
          %v5380 = vsel %vm4100, %v3844, %v5124
          %v5381 = vsel %vm4101, %v3845, %v5125
          %v5382 = vsel %vm4102, %v3846, %v5126
          %v5383 = vsel %vm4103, %v3847, %v5127
          %v5384 = vsel %vm4104, %v3848, %v5128
          %v5385 = vsel %vm4105, %v3849, %v5129
          %v5386 = vsel %vm4106, %v3850, %v5130
          %v5387 = vsel %vm4107, %v3851, %v5131
          %v5388 = vsel %vm4108, %v3852, %v5132
          %v5389 = vsel %vm4109, %v3853, %v5133
          %v5390 = vsel %vm4110, %v3854, %v5134
          %v5391 = vsel %vm4111, %v3855, %v5135
          %v5392 = vsel %vm4112, %v3856, %v5136
          %v5393 = vsel %vm4113, %v3857, %v5137
          %v5394 = vsel %vm4114, %v3858, %v5138
          %v5395 = vsel %vm4115, %v3859, %v5139
          %v5396 = vsel %vm4116, %v3860, %v5140
          %v5397 = vsel %vm4117, %v3861, %v5141
          %v5398 = vsel %vm4118, %v3862, %v5142
          %v5399 = vsel %vm4119, %v3863, %v5143
          %v5400 = vsel %vm4120, %v3864, %v5144
          %v5401 = vsel %vm4121, %v3865, %v5145
          %v5402 = vsel %vm4122, %v3866, %v5146
          %v5403 = vsel %vm4123, %v3867, %v5147
          %v5404 = vsel %vm4124, %v3868, %v5148
          %v5405 = vsel %vm4125, %v3869, %v5149
          %v5406 = vsel %vm4126, %v3870, %v5150
          %v5407 = vsel %vm4127, %v3871, %v5151
          %v5408 = vsel %vm4128, %v3872, %v5152
          %v5409 = vsel %vm4129, %v3873, %v5153
          %v5410 = vsel %vm4130, %v3874, %v5154
          %v5411 = vsel %vm4131, %v3875, %v5155
          %v5412 = vsel %vm4132, %v3876, %v5156
          %v5413 = vsel %vm4133, %v3877, %v5157
          %v5414 = vsel %vm4134, %v3878, %v5158
          %v5415 = vsel %vm4135, %v3879, %v5159
          %v5416 = vsel %vm4136, %v3880, %v5160
          %v5417 = vsel %vm4137, %v3881, %v5161
          %v5418 = vsel %vm4138, %v3882, %v5162
          %v5419 = vsel %vm4139, %v3883, %v5163
          %v5420 = vsel %vm4140, %v3884, %v5164
          %v5421 = vsel %vm4141, %v3885, %v5165
          %v5422 = vsel %vm4142, %v3886, %v5166
          %v5423 = vsel %vm4143, %v3887, %v5167
          %v5424 = vsel %vm4144, %v3888, %v5168
          %v5425 = vsel %vm4145, %v3889, %v5169
          %v5426 = vsel %vm4146, %v3890, %v5170
          %v5427 = vsel %vm4147, %v3891, %v5171
          %v5428 = vsel %vm4148, %v3892, %v5172
          %v5429 = vsel %vm4149, %v3893, %v5173
          %v5430 = vsel %vm4150, %v3894, %v5174
          %v5431 = vsel %vm4151, %v3895, %v5175
          %v5432 = vsel %vm4152, %v3896, %v5176
          %v5433 = vsel %vm4153, %v3897, %v5177
          %v5434 = vsel %vm4154, %v3898, %v5178
          %v5435 = vsel %vm4155, %v3899, %v5179
          %v5436 = vsel %vm4156, %v3900, %v5180
          %v5437 = vsel %vm4157, %v3901, %v5181
          %v5438 = vsel %vm4158, %v3902, %v5182
          %v5439 = vsel %vm4159, %v3903, %v5183
          %v5440 = vsel %vm4160, %v3904, %v5184
          %v5441 = vsel %vm4161, %v3905, %v5185
          %v5442 = vsel %vm4162, %v3906, %v5186
          %v5443 = vsel %vm4163, %v3907, %v5187
          %v5444 = vsel %vm4164, %v3908, %v5188
          %v5445 = vsel %vm4165, %v3909, %v5189
          %v5446 = vsel %vm4166, %v3910, %v5190
          %v5447 = vsel %vm4167, %v3911, %v5191
          %v5448 = vsel %vm4168, %v3912, %v5192
          %v5449 = vsel %vm4169, %v3913, %v5193
          %v5450 = vsel %vm4170, %v3914, %v5194
          %v5451 = vsel %vm4171, %v3915, %v5195
          %v5452 = vsel %vm4172, %v3916, %v5196
          %v5453 = vsel %vm4173, %v3917, %v5197
          %v5454 = vsel %vm4174, %v3918, %v5198
          %v5455 = vsel %vm4175, %v3919, %v5199
          %v5456 = vsel %vm4176, %v3920, %v5200
          %v5457 = vsel %vm4177, %v3921, %v5201
          %v5458 = vsel %vm4178, %v3922, %v5202
          %v5459 = vsel %vm4179, %v3923, %v5203
          %v5460 = vsel %vm4180, %v3924, %v5204
          %v5461 = vsel %vm4181, %v3925, %v5205
          %v5462 = vpack.c.bf16 %v5207, %v5206
          %v5463 = vpack.c.bf16 %v5209, %v5208
          %v5464 = vpack.c.bf16 %v5211, %v5210
          %v5465 = vpack.c.bf16 %v5213, %v5212
          %v5466 = vpack.c.bf16 %v5215, %v5214
          %v5467 = vpack.c.bf16 %v5217, %v5216
          %v5468 = vpack.c.bf16 %v5219, %v5218
          %v5469 = vpack.c.bf16 %v5221, %v5220
          %v5470 = vpack.c.bf16 %v5223, %v5222
          %v5471 = vpack.c.bf16 %v5225, %v5224
          %v5472 = vpack.c.bf16 %v5227, %v5226
          %v5473 = vpack.c.bf16 %v5229, %v5228
          %v5474 = vpack.c.bf16 %v5231, %v5230
          %v5475 = vpack.c.bf16 %v5233, %v5232
          %v5476 = vpack.c.bf16 %v5235, %v5234
          %v5477 = vpack.c.bf16 %v5237, %v5236
          %v5478 = vpack.c.bf16 %v5239, %v5238
          %v5479 = vpack.c.bf16 %v5241, %v5240
          %v5480 = vpack.c.bf16 %v5243, %v5242
          %v5481 = vpack.c.bf16 %v5245, %v5244
          %v5482 = vpack.c.bf16 %v5247, %v5246
          %v5483 = vpack.c.bf16 %v5249, %v5248
          %v5484 = vpack.c.bf16 %v5251, %v5250
          %v5485 = vpack.c.bf16 %v5253, %v5252
          %v5486 = vpack.c.bf16 %v5255, %v5254
          %v5487 = vpack.c.bf16 %v5257, %v5256
          %v5488 = vpack.c.bf16 %v5259, %v5258
          %v5489 = vpack.c.bf16 %v5261, %v5260
          %v5490 = vpack.c.bf16 %v5263, %v5262
          %v5491 = vpack.c.bf16 %v5265, %v5264
          %v5492 = vpack.c.bf16 %v5267, %v5266
          %v5493 = vpack.c.bf16 %v5269, %v5268
          %v5494 = vpack.c.bf16 %v5271, %v5270
          %v5495 = vpack.c.bf16 %v5273, %v5272
          %v5496 = vpack.c.bf16 %v5275, %v5274
          %v5497 = vpack.c.bf16 %v5277, %v5276
          %v5498 = vpack.c.bf16 %v5279, %v5278
          %v5499 = vpack.c.bf16 %v5281, %v5280
          %v5500 = vpack.c.bf16 %v5283, %v5282
          %v5501 = vpack.c.bf16 %v5285, %v5284
          %v5502 = vpack.c.bf16 %v5287, %v5286
          %v5503 = vpack.c.bf16 %v5289, %v5288
          %v5504 = vpack.c.bf16 %v5291, %v5290
          %v5505 = vpack.c.bf16 %v5293, %v5292
          %v5506 = vpack.c.bf16 %v5295, %v5294
          %v5507 = vpack.c.bf16 %v5297, %v5296
          %v5508 = vpack.c.bf16 %v5299, %v5298
          %v5509 = vpack.c.bf16 %v5301, %v5300
          %v5510 = vpack.c.bf16 %v5303, %v5302
          %v5511 = vpack.c.bf16 %v5305, %v5304
          %v5512 = vpack.c.bf16 %v5307, %v5306
          %v5513 = vpack.c.bf16 %v5309, %v5308
          %v5514 = vpack.c.bf16 %v5311, %v5310
          %v5515 = vpack.c.bf16 %v5313, %v5312
          %v5516 = vpack.c.bf16 %v5315, %v5314
          %v5517 = vpack.c.bf16 %v5317, %v5316
          %v5518 = vpack.c.bf16 %v5319, %v5318
          %v5519 = vpack.c.bf16 %v5321, %v5320
          %v5520 = vpack.c.bf16 %v5323, %v5322
          %v5521 = vpack.c.bf16 %v5325, %v5324
          %v5522 = vpack.c.bf16 %v5327, %v5326
          %v5523 = vpack.c.bf16 %v5329, %v5328
          %v5524 = vpack.c.bf16 %v5331, %v5330
          %v5525 = vpack.c.bf16 %v5333, %v5332
          %v5526 = vpack.c.bf16 %v5335, %v5334
          %v5527 = vpack.c.bf16 %v5337, %v5336
          %v5528 = vpack.c.bf16 %v5339, %v5338
          %v5529 = vpack.c.bf16 %v5341, %v5340
          %v5530 = vpack.c.bf16 %v5343, %v5342
          %v5531 = vpack.c.bf16 %v5345, %v5344
          %v5532 = vpack.c.bf16 %v5347, %v5346
          %v5533 = vpack.c.bf16 %v5349, %v5348
          %v5534 = vpack.c.bf16 %v5351, %v5350
          %v5535 = vpack.c.bf16 %v5353, %v5352
          %v5536 = vpack.c.bf16 %v5355, %v5354
          %v5537 = vpack.c.bf16 %v5357, %v5356
          %v5538 = vpack.c.bf16 %v5359, %v5358
          %v5539 = vpack.c.bf16 %v5361, %v5360
          %v5540 = vpack.c.bf16 %v5363, %v5362
          %v5541 = vpack.c.bf16 %v5365, %v5364
          %v5542 = vpack.c.bf16 %v5367, %v5366
          %v5543 = vpack.c.bf16 %v5369, %v5368
          %v5544 = vpack.c.bf16 %v5371, %v5370
          %v5545 = vpack.c.bf16 %v5373, %v5372
          %v5546 = vpack.c.bf16 %v5375, %v5374
          %v5547 = vpack.c.bf16 %v5377, %v5376
          %v5548 = vpack.c.bf16 %v5379, %v5378
          %v5549 = vpack.c.bf16 %v5381, %v5380
          %v5550 = vpack.c.bf16 %v5383, %v5382
          %v5551 = vpack.c.bf16 %v5385, %v5384
          %v5552 = vpack.c.bf16 %v5387, %v5386
          %v5553 = vpack.c.bf16 %v5389, %v5388
          %v5554 = vpack.c.bf16 %v5391, %v5390
          %v5555 = vpack.c.bf16 %v5393, %v5392
          %v5556 = vpack.c.bf16 %v5395, %v5394
          %v5557 = vpack.c.bf16 %v5397, %v5396
          %v5558 = vpack.c.bf16 %v5399, %v5398
          %v5559 = vpack.c.bf16 %v5401, %v5400
          %v5560 = vpack.c.bf16 %v5403, %v5402
          %v5561 = vpack.c.bf16 %v5405, %v5404
          %v5562 = vpack.c.bf16 %v5407, %v5406
          %v5563 = vpack.c.bf16 %v5409, %v5408
          %v5564 = vpack.c.bf16 %v5411, %v5410
          %v5565 = vpack.c.bf16 %v5413, %v5412
          %v5566 = vpack.c.bf16 %v5415, %v5414
          %v5567 = vpack.c.bf16 %v5417, %v5416
          %v5568 = vpack.c.bf16 %v5419, %v5418
          %v5569 = vpack.c.bf16 %v5421, %v5420
          %v5570 = vpack.c.bf16 %v5423, %v5422
          %v5571 = vpack.c.bf16 %v5425, %v5424
          %v5572 = vpack.c.bf16 %v5427, %v5426
          %v5573 = vpack.c.bf16 %v5429, %v5428
          %v5574 = vpack.c.bf16 %v5431, %v5430
          %v5575 = vpack.c.bf16 %v5433, %v5432
          %v5576 = vpack.c.bf16 %v5435, %v5434
          %v5577 = vpack.c.bf16 %v5437, %v5436
          %v5578 = vpack.c.bf16 %v5439, %v5438
          %v5579 = vpack.c.bf16 %v5441, %v5440
          %v5580 = vpack.c.bf16 %v5443, %v5442
          %v5581 = vpack.c.bf16 %v5445, %v5444
          %v5582 = vpack.c.bf16 %v5447, %v5446
          %v5583 = vpack.c.bf16 %v5449, %v5448
          %v5584 = vpack.c.bf16 %v5451, %v5450
          %v5585 = vpack.c.bf16 %v5453, %v5452
          %v5586 = vpack.c.bf16 %v5455, %v5454
          %v5587 = vpack.c.bf16 %v5457, %v5456
          %v5588 = vpack.c.bf16 %v5459, %v5458
          %v5589 = vpack.c.bf16 %v5461, %v5460
          %v5718 = vunpack.c.l.b16 %v5462
          %v5719 = vunpack.c.h.b16 %v5462
          %v5720 = vunpack.c.l.b16 %v5463
          %v5721 = vunpack.c.h.b16 %v5463
          %v5722 = vunpack.c.l.b16 %v5464
          %v5723 = vunpack.c.h.b16 %v5464
          %v5724 = vunpack.c.l.b16 %v5465
          %v5725 = vunpack.c.h.b16 %v5465
          %v5726 = vunpack.c.l.b16 %v5466
          %v5727 = vunpack.c.h.b16 %v5466
          %v5728 = vunpack.c.l.b16 %v5467
          %v5729 = vunpack.c.h.b16 %v5467
          %v5730 = vunpack.c.l.b16 %v5468
          %v5731 = vunpack.c.h.b16 %v5468
          %v5732 = vunpack.c.l.b16 %v5469
          %v5733 = vunpack.c.h.b16 %v5469
          %v5734 = vunpack.c.l.b16 %v5470
          %v5735 = vunpack.c.h.b16 %v5470
          %v5736 = vunpack.c.l.b16 %v5471
          %v5737 = vunpack.c.h.b16 %v5471
          %v5738 = vunpack.c.l.b16 %v5472
          %v5739 = vunpack.c.h.b16 %v5472
          %v5740 = vunpack.c.l.b16 %v5473
          %v5741 = vunpack.c.h.b16 %v5473
          %v5742 = vunpack.c.l.b16 %v5474
          %v5743 = vunpack.c.h.b16 %v5474
          %v5744 = vunpack.c.l.b16 %v5475
          %v5745 = vunpack.c.h.b16 %v5475
          %v5746 = vunpack.c.l.b16 %v5476
          %v5747 = vunpack.c.h.b16 %v5476
          %v5748 = vunpack.c.l.b16 %v5477
          %v5749 = vunpack.c.h.b16 %v5477
          %v5750 = vunpack.c.l.b16 %v5478
          %v5751 = vunpack.c.h.b16 %v5478
          %v5752 = vunpack.c.l.b16 %v5479
          %v5753 = vunpack.c.h.b16 %v5479
          %v5754 = vunpack.c.l.b16 %v5480
          %v5755 = vunpack.c.h.b16 %v5480
          %v5756 = vunpack.c.l.b16 %v5481
          %v5757 = vunpack.c.h.b16 %v5481
          %v5758 = vunpack.c.l.b16 %v5482
          %v5759 = vunpack.c.h.b16 %v5482
          %v5760 = vunpack.c.l.b16 %v5483
          %v5761 = vunpack.c.h.b16 %v5483
          %v5762 = vunpack.c.l.b16 %v5484
          %v5763 = vunpack.c.h.b16 %v5484
          %v5764 = vunpack.c.l.b16 %v5485
          %v5765 = vunpack.c.h.b16 %v5485
          %v5766 = vunpack.c.l.b16 %v5486
          %v5767 = vunpack.c.h.b16 %v5486
          %v5768 = vunpack.c.l.b16 %v5487
          %v5769 = vunpack.c.h.b16 %v5487
          %v5770 = vunpack.c.l.b16 %v5488
          %v5771 = vunpack.c.h.b16 %v5488
          %v5772 = vunpack.c.l.b16 %v5489
          %v5773 = vunpack.c.h.b16 %v5489
          %v5774 = vunpack.c.l.b16 %v5490
          %v5775 = vunpack.c.h.b16 %v5490
          %v5776 = vunpack.c.l.b16 %v5491
          %v5777 = vunpack.c.h.b16 %v5491
          %v5778 = vunpack.c.l.b16 %v5492
          %v5779 = vunpack.c.h.b16 %v5492
          %v5780 = vunpack.c.l.b16 %v5493
          %v5781 = vunpack.c.h.b16 %v5493
          %v5782 = vunpack.c.l.b16 %v5494
          %v5783 = vunpack.c.h.b16 %v5494
          %v5784 = vunpack.c.l.b16 %v5495
          %v5785 = vunpack.c.h.b16 %v5495
          %v5786 = vunpack.c.l.b16 %v5496
          %v5787 = vunpack.c.h.b16 %v5496
          %v5788 = vunpack.c.l.b16 %v5497
          %v5789 = vunpack.c.h.b16 %v5497
          %v5790 = vunpack.c.l.b16 %v5498
          %v5791 = vunpack.c.h.b16 %v5498
          %v5792 = vunpack.c.l.b16 %v5499
          %v5793 = vunpack.c.h.b16 %v5499
          %v5794 = vunpack.c.l.b16 %v5500
          %v5795 = vunpack.c.h.b16 %v5500
          %v5796 = vunpack.c.l.b16 %v5501
          %v5797 = vunpack.c.h.b16 %v5501
          %v5798 = vunpack.c.l.b16 %v5502
          %v5799 = vunpack.c.h.b16 %v5502
          %v5800 = vunpack.c.l.b16 %v5503
          %v5801 = vunpack.c.h.b16 %v5503
          %v5802 = vunpack.c.l.b16 %v5504
          %v5803 = vunpack.c.h.b16 %v5504
          %v5804 = vunpack.c.l.b16 %v5505
          %v5805 = vunpack.c.h.b16 %v5505
          %v5806 = vunpack.c.l.b16 %v5506
          %v5807 = vunpack.c.h.b16 %v5506
          %v5808 = vunpack.c.l.b16 %v5507
          %v5809 = vunpack.c.h.b16 %v5507
          %v5810 = vunpack.c.l.b16 %v5508
          %v5811 = vunpack.c.h.b16 %v5508
          %v5812 = vunpack.c.l.b16 %v5509
          %v5813 = vunpack.c.h.b16 %v5509
          %v5814 = vunpack.c.l.b16 %v5510
          %v5815 = vunpack.c.h.b16 %v5510
          %v5816 = vunpack.c.l.b16 %v5511
          %v5817 = vunpack.c.h.b16 %v5511
          %v5818 = vunpack.c.l.b16 %v5512
          %v5819 = vunpack.c.h.b16 %v5512
          %v5820 = vunpack.c.l.b16 %v5513
          %v5821 = vunpack.c.h.b16 %v5513
          %v5822 = vunpack.c.l.b16 %v5514
          %v5823 = vunpack.c.h.b16 %v5514
          %v5824 = vunpack.c.l.b16 %v5515
          %v5825 = vunpack.c.h.b16 %v5515
          %v5826 = vunpack.c.l.b16 %v5516
          %v5827 = vunpack.c.h.b16 %v5516
          %v5828 = vunpack.c.l.b16 %v5517
          %v5829 = vunpack.c.h.b16 %v5517
          %v5830 = vunpack.c.l.b16 %v5518
          %v5831 = vunpack.c.h.b16 %v5518
          %v5832 = vunpack.c.l.b16 %v5519
          %v5833 = vunpack.c.h.b16 %v5519
          %v5834 = vunpack.c.l.b16 %v5520
          %v5835 = vunpack.c.h.b16 %v5520
          %v5836 = vunpack.c.l.b16 %v5521
          %v5837 = vunpack.c.h.b16 %v5521
          %v5838 = vunpack.c.l.b16 %v5522
          %v5839 = vunpack.c.h.b16 %v5522
          %v5840 = vunpack.c.l.b16 %v5523
          %v5841 = vunpack.c.h.b16 %v5523
          %v5842 = vunpack.c.l.b16 %v5524
          %v5843 = vunpack.c.h.b16 %v5524
          %v5844 = vunpack.c.l.b16 %v5525
          %v5845 = vunpack.c.h.b16 %v5525
          %v5846 = vunpack.c.l.b16 %v5526
          %v5847 = vunpack.c.h.b16 %v5526
          %v5848 = vunpack.c.l.b16 %v5527
          %v5849 = vunpack.c.h.b16 %v5527
          %v5850 = vunpack.c.l.b16 %v5528
          %v5851 = vunpack.c.h.b16 %v5528
          %v5852 = vunpack.c.l.b16 %v5529
          %v5853 = vunpack.c.h.b16 %v5529
          %v5854 = vunpack.c.l.b16 %v5530
          %v5855 = vunpack.c.h.b16 %v5530
          %v5856 = vunpack.c.l.b16 %v5531
          %v5857 = vunpack.c.h.b16 %v5531
          %v5858 = vunpack.c.l.b16 %v5532
          %v5859 = vunpack.c.h.b16 %v5532
          %v5860 = vunpack.c.l.b16 %v5533
          %v5861 = vunpack.c.h.b16 %v5533
          %v5862 = vunpack.c.l.b16 %v5534
          %v5863 = vunpack.c.h.b16 %v5534
          %v5864 = vunpack.c.l.b16 %v5535
          %v5865 = vunpack.c.h.b16 %v5535
          %v5866 = vunpack.c.l.b16 %v5536
          %v5867 = vunpack.c.h.b16 %v5536
          %v5868 = vunpack.c.l.b16 %v5537
          %v5869 = vunpack.c.h.b16 %v5537
          %v5870 = vunpack.c.l.b16 %v5538
          %v5871 = vunpack.c.h.b16 %v5538
          %v5872 = vunpack.c.l.b16 %v5539
          %v5873 = vunpack.c.h.b16 %v5539
          %v5874 = vunpack.c.l.b16 %v5540
          %v5875 = vunpack.c.h.b16 %v5540
          %v5876 = vunpack.c.l.b16 %v5541
          %v5877 = vunpack.c.h.b16 %v5541
          %v5878 = vunpack.c.l.b16 %v5542
          %v5879 = vunpack.c.h.b16 %v5542
          %v5880 = vunpack.c.l.b16 %v5543
          %v5881 = vunpack.c.h.b16 %v5543
          %v5882 = vunpack.c.l.b16 %v5544
          %v5883 = vunpack.c.h.b16 %v5544
          %v5884 = vunpack.c.l.b16 %v5545
          %v5885 = vunpack.c.h.b16 %v5545
          %v5886 = vunpack.c.l.b16 %v5546
          %v5887 = vunpack.c.h.b16 %v5546
          %v5888 = vunpack.c.l.b16 %v5547
          %v5889 = vunpack.c.h.b16 %v5547
          %v5890 = vunpack.c.l.b16 %v5548
          %v5891 = vunpack.c.h.b16 %v5548
          %v5892 = vunpack.c.l.b16 %v5549
          %v5893 = vunpack.c.h.b16 %v5549
          %v5894 = vunpack.c.l.b16 %v5550
          %v5895 = vunpack.c.h.b16 %v5550
          %v5896 = vunpack.c.l.b16 %v5551
          %v5897 = vunpack.c.h.b16 %v5551
          %v5898 = vunpack.c.l.b16 %v5552
          %v5899 = vunpack.c.h.b16 %v5552
          %v5900 = vunpack.c.l.b16 %v5553
          %v5901 = vunpack.c.h.b16 %v5553
          %v5902 = vunpack.c.l.b16 %v5554
          %v5903 = vunpack.c.h.b16 %v5554
          %v5904 = vunpack.c.l.b16 %v5555
          %v5905 = vunpack.c.h.b16 %v5555
          %v5906 = vunpack.c.l.b16 %v5556
          %v5907 = vunpack.c.h.b16 %v5556
          %v5908 = vunpack.c.l.b16 %v5557
          %v5909 = vunpack.c.h.b16 %v5557
          %v5910 = vunpack.c.l.b16 %v5558
          %v5911 = vunpack.c.h.b16 %v5558
          %v5912 = vunpack.c.l.b16 %v5559
          %v5913 = vunpack.c.h.b16 %v5559
          %v5914 = vunpack.c.l.b16 %v5560
          %v5915 = vunpack.c.h.b16 %v5560
          %v5916 = vunpack.c.l.b16 %v5561
          %v5917 = vunpack.c.h.b16 %v5561
          %v5918 = vunpack.c.l.b16 %v5562
          %v5919 = vunpack.c.h.b16 %v5562
          %v5920 = vunpack.c.l.b16 %v5563
          %v5921 = vunpack.c.h.b16 %v5563
          %v5922 = vunpack.c.l.b16 %v5564
          %v5923 = vunpack.c.h.b16 %v5564
          %v5924 = vunpack.c.l.b16 %v5565
          %v5925 = vunpack.c.h.b16 %v5565
          %v5926 = vunpack.c.l.b16 %v5566
          %v5927 = vunpack.c.h.b16 %v5566
          %v5928 = vunpack.c.l.b16 %v5567
          %v5929 = vunpack.c.h.b16 %v5567
          %v5930 = vunpack.c.l.b16 %v5568
          %v5931 = vunpack.c.h.b16 %v5568
          %v5932 = vunpack.c.l.b16 %v5569
          %v5933 = vunpack.c.h.b16 %v5569
          %v5934 = vunpack.c.l.b16 %v5570
          %v5935 = vunpack.c.h.b16 %v5570
          %v5936 = vunpack.c.l.b16 %v5571
          %v5937 = vunpack.c.h.b16 %v5571
          %v5938 = vunpack.c.l.b16 %v5572
          %v5939 = vunpack.c.h.b16 %v5572
          %v5940 = vunpack.c.l.b16 %v5573
          %v5941 = vunpack.c.h.b16 %v5573
          %v5942 = vunpack.c.l.b16 %v5574
          %v5943 = vunpack.c.h.b16 %v5574
          %v5944 = vunpack.c.l.b16 %v5575
          %v5945 = vunpack.c.h.b16 %v5575
          %v5946 = vunpack.c.l.b16 %v5576
          %v5947 = vunpack.c.h.b16 %v5576
          %v5948 = vunpack.c.l.b16 %v5577
          %v5949 = vunpack.c.h.b16 %v5577
          %v5950 = vunpack.c.l.b16 %v5578
          %v5951 = vunpack.c.h.b16 %v5578
          %v5952 = vunpack.c.l.b16 %v5579
          %v5953 = vunpack.c.h.b16 %v5579
          %v5954 = vunpack.c.l.b16 %v5580
          %v5955 = vunpack.c.h.b16 %v5580
          %v5956 = vunpack.c.l.b16 %v5581
          %v5957 = vunpack.c.h.b16 %v5581
          %v5958 = vunpack.c.l.b16 %v5582
          %v5959 = vunpack.c.h.b16 %v5582
          %v5960 = vunpack.c.l.b16 %v5583
          %v5961 = vunpack.c.h.b16 %v5583
          %v5962 = vunpack.c.l.b16 %v5584
          %v5963 = vunpack.c.h.b16 %v5584
          %v5964 = vunpack.c.l.b16 %v5585
          %v5965 = vunpack.c.h.b16 %v5585
          %v5966 = vunpack.c.l.b16 %v5586
          %v5967 = vunpack.c.h.b16 %v5586
          %v5968 = vunpack.c.l.b16 %v5587
          %v5969 = vunpack.c.h.b16 %v5587
          %v5970 = vunpack.c.l.b16 %v5588
          %v5971 = vunpack.c.h.b16 %v5588
          %v5972 = vunpack.c.l.b16 %v5589
          %v5973 = vunpack.c.h.b16 %v5589
          %v5974 = vpack.c.b16 %v5718, %v5718
          %v5975 = vpack.c.b16 %v5719, %v5719
          %v5976 = vpack.c.b16 %v5720, %v5720
          %v5977 = vpack.c.b16 %v5721, %v5721
          %v5978 = vpack.c.b16 %v5722, %v5722
          %v5979 = vpack.c.b16 %v5723, %v5723
          %v5980 = vpack.c.b16 %v5724, %v5724
          %v5981 = vpack.c.b16 %v5725, %v5725
          %v5982 = vpack.c.b16 %v5726, %v5726
          %v5983 = vpack.c.b16 %v5727, %v5727
          %v5984 = vpack.c.b16 %v5728, %v5728
          %v5985 = vpack.c.b16 %v5729, %v5729
          %v5986 = vpack.c.b16 %v5730, %v5730
          %v5987 = vpack.c.b16 %v5731, %v5731
          %v5988 = vpack.c.b16 %v5732, %v5732
          %v5989 = vpack.c.b16 %v5733, %v5733
          %v5990 = vpack.c.b16 %v5734, %v5734
          %v5991 = vpack.c.b16 %v5735, %v5735
          %v5992 = vpack.c.b16 %v5736, %v5736
          %v5993 = vpack.c.b16 %v5737, %v5737
          %v5994 = vpack.c.b16 %v5738, %v5738
          %v5995 = vpack.c.b16 %v5739, %v5739
          %v5996 = vpack.c.b16 %v5740, %v5740
          %v5997 = vpack.c.b16 %v5741, %v5741
          %v5998 = vpack.c.b16 %v5742, %v5742
          %v5999 = vpack.c.b16 %v5743, %v5743
          %v6000 = vpack.c.b16 %v5744, %v5744
          %v6001 = vpack.c.b16 %v5745, %v5745
          %v6002 = vpack.c.b16 %v5746, %v5746
          %v6003 = vpack.c.b16 %v5747, %v5747
          %v6004 = vpack.c.b16 %v5748, %v5748
          %v6005 = vpack.c.b16 %v5749, %v5749
          %v6006 = vpack.c.b16 %v5750, %v5750
          %v6007 = vpack.c.b16 %v5751, %v5751
          %v6008 = vpack.c.b16 %v5752, %v5752
          %v6009 = vpack.c.b16 %v5753, %v5753
          %v6010 = vpack.c.b16 %v5754, %v5754
          %v6011 = vpack.c.b16 %v5755, %v5755
          %v6012 = vpack.c.b16 %v5756, %v5756
          %v6013 = vpack.c.b16 %v5757, %v5757
          %v6014 = vpack.c.b16 %v5758, %v5758
          %v6015 = vpack.c.b16 %v5759, %v5759
          %v6016 = vpack.c.b16 %v5760, %v5760
          %v6017 = vpack.c.b16 %v5761, %v5761
          %v6018 = vpack.c.b16 %v5762, %v5762
          %v6019 = vpack.c.b16 %v5763, %v5763
          %v6020 = vpack.c.b16 %v5764, %v5764
          %v6021 = vpack.c.b16 %v5765, %v5765
          %v6022 = vpack.c.b16 %v5766, %v5766
          %v6023 = vpack.c.b16 %v5767, %v5767
          %v6024 = vpack.c.b16 %v5768, %v5768
          %v6025 = vpack.c.b16 %v5769, %v5769
          %v6026 = vpack.c.b16 %v5770, %v5770
          %v6027 = vpack.c.b16 %v5771, %v5771
          %v6028 = vpack.c.b16 %v5772, %v5772
          %v6029 = vpack.c.b16 %v5773, %v5773
          %v6030 = vpack.c.b16 %v5774, %v5774
          %v6031 = vpack.c.b16 %v5775, %v5775
          %v6032 = vpack.c.b16 %v5776, %v5776
          %v6033 = vpack.c.b16 %v5777, %v5777
          %v6034 = vpack.c.b16 %v5778, %v5778
          %v6035 = vpack.c.b16 %v5779, %v5779
          %v6036 = vpack.c.b16 %v5780, %v5780
          %v6037 = vpack.c.b16 %v5781, %v5781
          %v6038 = vpack.c.b16 %v5782, %v5782
          %v6039 = vpack.c.b16 %v5783, %v5783
          %v6040 = vpack.c.b16 %v5784, %v5784
          %v6041 = vpack.c.b16 %v5785, %v5785
          %v6042 = vpack.c.b16 %v5786, %v5786
          %v6043 = vpack.c.b16 %v5787, %v5787
          %v6044 = vpack.c.b16 %v5788, %v5788
          %v6045 = vpack.c.b16 %v5789, %v5789
          %v6046 = vpack.c.b16 %v5790, %v5790
          %v6047 = vpack.c.b16 %v5791, %v5791
          %v6048 = vpack.c.b16 %v5792, %v5792
          %v6049 = vpack.c.b16 %v5793, %v5793
          %v6050 = vpack.c.b16 %v5794, %v5794
          %v6051 = vpack.c.b16 %v5795, %v5795
          %v6052 = vpack.c.b16 %v5796, %v5796
          %v6053 = vpack.c.b16 %v5797, %v5797
          %v6054 = vpack.c.b16 %v5798, %v5798
          %v6055 = vpack.c.b16 %v5799, %v5799
          %v6056 = vpack.c.b16 %v5800, %v5800
          %v6057 = vpack.c.b16 %v5801, %v5801
          %v6058 = vpack.c.b16 %v5802, %v5802
          %v6059 = vpack.c.b16 %v5803, %v5803
          %v6060 = vpack.c.b16 %v5804, %v5804
          %v6061 = vpack.c.b16 %v5805, %v5805
          %v6062 = vpack.c.b16 %v5806, %v5806
          %v6063 = vpack.c.b16 %v5807, %v5807
          %v6064 = vpack.c.b16 %v5808, %v5808
          %v6065 = vpack.c.b16 %v5809, %v5809
          %v6066 = vpack.c.b16 %v5810, %v5810
          %v6067 = vpack.c.b16 %v5811, %v5811
          %v6068 = vpack.c.b16 %v5812, %v5812
          %v6069 = vpack.c.b16 %v5813, %v5813
          %v6070 = vpack.c.b16 %v5814, %v5814
          %v6071 = vpack.c.b16 %v5815, %v5815
          %v6072 = vpack.c.b16 %v5816, %v5816
          %v6073 = vpack.c.b16 %v5817, %v5817
          %v6074 = vpack.c.b16 %v5818, %v5818
          %v6075 = vpack.c.b16 %v5819, %v5819
          %v6076 = vpack.c.b16 %v5820, %v5820
          %v6077 = vpack.c.b16 %v5821, %v5821
          %v6078 = vpack.c.b16 %v5822, %v5822
          %v6079 = vpack.c.b16 %v5823, %v5823
          %v6080 = vpack.c.b16 %v5824, %v5824
          %v6081 = vpack.c.b16 %v5825, %v5825
          %v6082 = vpack.c.b16 %v5826, %v5826
          %v6083 = vpack.c.b16 %v5827, %v5827
          %v6084 = vpack.c.b16 %v5828, %v5828
          %v6085 = vpack.c.b16 %v5829, %v5829
          %v6086 = vpack.c.b16 %v5830, %v5830
          %v6087 = vpack.c.b16 %v5831, %v5831
          %v6088 = vpack.c.b16 %v5832, %v5832
          %v6089 = vpack.c.b16 %v5833, %v5833
          %v6090 = vpack.c.b16 %v5834, %v5834
          %v6091 = vpack.c.b16 %v5835, %v5835
          %v6092 = vpack.c.b16 %v5836, %v5836
          %v6093 = vpack.c.b16 %v5837, %v5837
          %v6094 = vpack.c.b16 %v5838, %v5838
          %v6095 = vpack.c.b16 %v5839, %v5839
          %v6096 = vpack.c.b16 %v5840, %v5840
          %v6097 = vpack.c.b16 %v5841, %v5841
          %v6098 = vpack.c.b16 %v5842, %v5842
          %v6099 = vpack.c.b16 %v5843, %v5843
          %v6100 = vpack.c.b16 %v5844, %v5844
          %v6101 = vpack.c.b16 %v5845, %v5845
          %v6102 = vpack.c.b16 %v5846, %v5846
          %v6103 = vpack.c.b16 %v5847, %v5847
          %v6104 = vpack.c.b16 %v5848, %v5848
          %v6105 = vpack.c.b16 %v5849, %v5849
          %v6106 = vpack.c.b16 %v5850, %v5850
          %v6107 = vpack.c.b16 %v5851, %v5851
          %v6108 = vpack.c.b16 %v5852, %v5852
          %v6109 = vpack.c.b16 %v5853, %v5853
          %v6110 = vpack.c.b16 %v5854, %v5854
          %v6111 = vpack.c.b16 %v5855, %v5855
          %v6112 = vpack.c.b16 %v5856, %v5856
          %v6113 = vpack.c.b16 %v5857, %v5857
          %v6114 = vpack.c.b16 %v5858, %v5858
          %v6115 = vpack.c.b16 %v5859, %v5859
          %v6116 = vpack.c.b16 %v5860, %v5860
          %v6117 = vpack.c.b16 %v5861, %v5861
          %v6118 = vpack.c.b16 %v5862, %v5862
          %v6119 = vpack.c.b16 %v5863, %v5863
          %v6120 = vpack.c.b16 %v5864, %v5864
          %v6121 = vpack.c.b16 %v5865, %v5865
          %v6122 = vpack.c.b16 %v5866, %v5866
          %v6123 = vpack.c.b16 %v5867, %v5867
          %v6124 = vpack.c.b16 %v5868, %v5868
          %v6125 = vpack.c.b16 %v5869, %v5869
          %v6126 = vpack.c.b16 %v5870, %v5870
          %v6127 = vpack.c.b16 %v5871, %v5871
          %v6128 = vpack.c.b16 %v5872, %v5872
          %v6129 = vpack.c.b16 %v5873, %v5873
          %v6130 = vpack.c.b16 %v5874, %v5874
          %v6131 = vpack.c.b16 %v5875, %v5875
          %v6132 = vpack.c.b16 %v5876, %v5876
          %v6133 = vpack.c.b16 %v5877, %v5877
          %v6134 = vpack.c.b16 %v5878, %v5878
          %v6135 = vpack.c.b16 %v5879, %v5879
          %v6136 = vpack.c.b16 %v5880, %v5880
          %v6137 = vpack.c.b16 %v5881, %v5881
          %v6138 = vpack.c.b16 %v5882, %v5882
          %v6139 = vpack.c.b16 %v5883, %v5883
          %v6140 = vpack.c.b16 %v5884, %v5884
          %v6141 = vpack.c.b16 %v5885, %v5885
          %v6142 = vpack.c.b16 %v5886, %v5886
          %v6143 = vpack.c.b16 %v5887, %v5887
          %v6144 = vpack.c.b16 %v5888, %v5888
          %v6145 = vpack.c.b16 %v5889, %v5889
          %v6146 = vpack.c.b16 %v5890, %v5890
          %v6147 = vpack.c.b16 %v5891, %v5891
          %v6148 = vpack.c.b16 %v5892, %v5892
          %v6149 = vpack.c.b16 %v5893, %v5893
          %v6150 = vpack.c.b16 %v5894, %v5894
          %v6151 = vpack.c.b16 %v5895, %v5895
          %v6152 = vpack.c.b16 %v5896, %v5896
          %v6153 = vpack.c.b16 %v5897, %v5897
          %v6154 = vpack.c.b16 %v5898, %v5898
          %v6155 = vpack.c.b16 %v5899, %v5899
          %v6156 = vpack.c.b16 %v5900, %v5900
          %v6157 = vpack.c.b16 %v5901, %v5901
          %v6158 = vpack.c.b16 %v5902, %v5902
          %v6159 = vpack.c.b16 %v5903, %v5903
          %v6160 = vpack.c.b16 %v5904, %v5904
          %v6161 = vpack.c.b16 %v5905, %v5905
          %v6162 = vpack.c.b16 %v5906, %v5906
          %v6163 = vpack.c.b16 %v5907, %v5907
          %v6164 = vpack.c.b16 %v5908, %v5908
          %v6165 = vpack.c.b16 %v5909, %v5909
          %v6166 = vpack.c.b16 %v5910, %v5910
          %v6167 = vpack.c.b16 %v5911, %v5911
          %v6168 = vpack.c.b16 %v5912, %v5912
          %v6169 = vpack.c.b16 %v5913, %v5913
          %v6170 = vpack.c.b16 %v5914, %v5914
          %v6171 = vpack.c.b16 %v5915, %v5915
          %v6172 = vpack.c.b16 %v5916, %v5916
          %v6173 = vpack.c.b16 %v5917, %v5917
          %v6174 = vpack.c.b16 %v5918, %v5918
          %v6175 = vpack.c.b16 %v5919, %v5919
          %v6176 = vpack.c.b16 %v5920, %v5920
          %v6177 = vpack.c.b16 %v5921, %v5921
          %v6178 = vpack.c.b16 %v5922, %v5922
          %v6179 = vpack.c.b16 %v5923, %v5923
          %v6180 = vpack.c.b16 %v5924, %v5924
          %v6181 = vpack.c.b16 %v5925, %v5925
          %v6182 = vpack.c.b16 %v5926, %v5926
          %v6183 = vpack.c.b16 %v5927, %v5927
          %v6184 = vpack.c.b16 %v5928, %v5928
          %v6185 = vpack.c.b16 %v5929, %v5929
          %v6186 = vpack.c.b16 %v5930, %v5930
          %v6187 = vpack.c.b16 %v5931, %v5931
          %v6188 = vpack.c.b16 %v5932, %v5932
          %v6189 = vpack.c.b16 %v5933, %v5933
          %v6190 = vpack.c.b16 %v5934, %v5934
          %v6191 = vpack.c.b16 %v5935, %v5935
          %v6192 = vpack.c.b16 %v5936, %v5936
          %v6193 = vpack.c.b16 %v5937, %v5937
          %v6194 = vpack.c.b16 %v5938, %v5938
          %v6195 = vpack.c.b16 %v5939, %v5939
          %v6196 = vpack.c.b16 %v5940, %v5940
          %v6197 = vpack.c.b16 %v5941, %v5941
          %v6198 = vpack.c.b16 %v5942, %v5942
          %v6199 = vpack.c.b16 %v5943, %v5943
          %v6200 = vpack.c.b16 %v5944, %v5944
          %v6201 = vpack.c.b16 %v5945, %v5945
          %v6202 = vpack.c.b16 %v5946, %v5946
          %v6203 = vpack.c.b16 %v5947, %v5947
          %v6204 = vpack.c.b16 %v5948, %v5948
          %v6205 = vpack.c.b16 %v5949, %v5949
          %v6206 = vpack.c.b16 %v5950, %v5950
          %v6207 = vpack.c.b16 %v5951, %v5951
          %v6208 = vpack.c.b16 %v5952, %v5952
          %v6209 = vpack.c.b16 %v5953, %v5953
          %v6210 = vpack.c.b16 %v5954, %v5954
          %v6211 = vpack.c.b16 %v5955, %v5955
          %v6212 = vpack.c.b16 %v5956, %v5956
          %v6213 = vpack.c.b16 %v5957, %v5957
          %v6214 = vpack.c.b16 %v5958, %v5958
          %v6215 = vpack.c.b16 %v5959, %v5959
          %v6216 = vpack.c.b16 %v5960, %v5960
          %v6217 = vpack.c.b16 %v5961, %v5961
          %v6218 = vpack.c.b16 %v5962, %v5962
          %v6219 = vpack.c.b16 %v5963, %v5963
          %v6220 = vpack.c.b16 %v5964, %v5964
          %v6221 = vpack.c.b16 %v5965, %v5965
          %v6222 = vpack.c.b16 %v5966, %v5966
          %v6223 = vpack.c.b16 %v5967, %v5967
          %v6224 = vpack.c.b16 %v5968, %v5968
          %v6225 = vpack.c.b16 %v5969, %v5969
          %v6226 = vpack.c.b16 %v5970, %v5970
          %v6227 = vpack.c.b16 %v5971, %v5971
          %v6228 = vpack.c.b16 %v5972, %v5972
          %v6229 = vpack.c.b16 %v5973, %v5973
          %6486 = vst [vmem:[%s226] sm:$0xf] %v5974
          %6487 = vst [vmem:[%s226 + $0x4] sm:$0xf] %v5975
          %6488 = vst [vmem:[%s226 + $0x8] sm:$0xf] %v5976
          %6489 = vst [vmem:[%s226 + $0xc] sm:$0xf] %v5977
          %6490 = vst [vmem:[%s226 + $0x10] sm:$0xf] %v5978
          %6491 = vst [vmem:[%s226 + $0x14] sm:$0xf] %v5979
          %6492 = vst [vmem:[%s226 + $0x18] sm:$0xf] %v5980
          %6493 = vst [vmem:[%s226 + $0x1c] sm:$0xf] %v5981
          %6494 = vst [vmem:[%s226 + $0x20] sm:$0xf] %v5982
          %6495 = vst [vmem:[%s226 + $0x24] sm:$0xf] %v5983
          %6496 = vst [vmem:[%s226 + $0x28] sm:$0xf] %v5984
          %6497 = vst [vmem:[%s226 + $0x2c] sm:$0xf] %v5985
          %6498 = vst [vmem:[%s226 + $0x30] sm:$0xf] %v5986
          %6499 = vst [vmem:[%s226 + $0x34] sm:$0xf] %v5987
          %6500 = vst [vmem:[%s226 + $0x38] sm:$0xf] %v5988
          %6501 = vst [vmem:[%s226 + $0x3c] sm:$0xf] %v5989
          %6502 = vst [vmem:[%s226 + $0x40] sm:$0xf] %v5990
          %6503 = vst [vmem:[%s226 + $0x44] sm:$0xf] %v5991
          %6504 = vst [vmem:[%s226 + $0x48] sm:$0xf] %v5992
          %6505 = vst [vmem:[%s226 + $0x4c] sm:$0xf] %v5993
          %6506 = vst [vmem:[%s226 + $0x50] sm:$0xf] %v5994
          %6507 = vst [vmem:[%s226 + $0x54] sm:$0xf] %v5995
          %6508 = vst [vmem:[%s226 + $0x58] sm:$0xf] %v5996
          %6509 = vst [vmem:[%s226 + $0x5c] sm:$0xf] %v5997
          %6510 = vst [vmem:[%s226 + $0x60] sm:$0xf] %v5998
          %6511 = vst [vmem:[%s226 + $0x64] sm:$0xf] %v5999
          %6512 = vst [vmem:[%s226 + $0x68] sm:$0xf] %v6000
          %6513 = vst [vmem:[%s226 + $0x6c] sm:$0xf] %v6001
          %6514 = vst [vmem:[%s226 + $0x70] sm:$0xf] %v6002
          %6515 = vst [vmem:[%s226 + $0x74] sm:$0xf] %v6003
          %6516 = vst [vmem:[%s226 + $0x78] sm:$0xf] %v6004
          %6517 = vst [vmem:[%s226 + $0x7c] sm:$0xf] %v6005
          %6518 = vst [vmem:[%s226 + $0x80] sm:$0xf] %v6006
          %6519 = vst [vmem:[%s226 + $0x84] sm:$0xf] %v6007
          %6520 = vst [vmem:[%s226 + $0x88] sm:$0xf] %v6008
          %6521 = vst [vmem:[%s226 + $0x8c] sm:$0xf] %v6009
          %6522 = vst [vmem:[%s226 + $0x90] sm:$0xf] %v6010
          %6523 = vst [vmem:[%s226 + $0x94] sm:$0xf] %v6011
          %6524 = vst [vmem:[%s226 + $0x98] sm:$0xf] %v6012
          %6525 = vst [vmem:[%s226 + $0x9c] sm:$0xf] %v6013
          %6526 = vst [vmem:[%s226 + $0xa0] sm:$0xf] %v6014
          %6527 = vst [vmem:[%s226 + $0xa4] sm:$0xf] %v6015
          %6528 = vst [vmem:[%s226 + $0xa8] sm:$0xf] %v6016
          %6529 = vst [vmem:[%s226 + $0xac] sm:$0xf] %v6017
          %6530 = vst [vmem:[%s226 + $0xb0] sm:$0xf] %v6018
          %6531 = vst [vmem:[%s226 + $0xb4] sm:$0xf] %v6019
          %6532 = vst [vmem:[%s226 + $0xb8] sm:$0xf] %v6020
          %6533 = vst [vmem:[%s226 + $0xbc] sm:$0xf] %v6021
          %6534 = vst [vmem:[%s226 + $0xc0] sm:$0xf] %v6022
          %6535 = vst [vmem:[%s226 + $0xc4] sm:$0xf] %v6023
          %6536 = vst [vmem:[%s226 + $0xc8] sm:$0xf] %v6024
          %6537 = vst [vmem:[%s226 + $0xcc] sm:$0xf] %v6025
          %6538 = vst [vmem:[%s226 + $0xd0] sm:$0xf] %v6026
          %6539 = vst [vmem:[%s226 + $0xd4] sm:$0xf] %v6027
          %6540 = vst [vmem:[%s226 + $0xd8] sm:$0xf] %v6028
          %6541 = vst [vmem:[%s226 + $0xdc] sm:$0xf] %v6029
          %6542 = vst [vmem:[%s226 + $0xe0] sm:$0xf] %v6030
          %6543 = vst [vmem:[%s226 + $0xe4] sm:$0xf] %v6031
          %6544 = vst [vmem:[%s226 + $0xe8] sm:$0xf] %v6032
          %6545 = vst [vmem:[%s226 + $0xec] sm:$0xf] %v6033
          %6546 = vst [vmem:[%s226 + $0xf0] sm:$0xf] %v6034
          %6547 = vst [vmem:[%s226 + $0xf4] sm:$0xf] %v6035
          %6548 = vst [vmem:[%s226 + $0xf8] sm:$0xf] %v6036
          %6549 = vst [vmem:[%s226 + $0xfc] sm:$0xf] %v6037
          %6550 = vst [vmem:[%s226 + $0x100] sm:$0xf] %v6038
          %6551 = vst [vmem:[%s226 + $0x104] sm:$0xf] %v6039
          %6552 = vst [vmem:[%s226 + $0x108] sm:$0xf] %v6040
          %6553 = vst [vmem:[%s226 + $0x10c] sm:$0xf] %v6041
          %6554 = vst [vmem:[%s226 + $0x110] sm:$0xf] %v6042
          %6555 = vst [vmem:[%s226 + $0x114] sm:$0xf] %v6043
          %6556 = vst [vmem:[%s226 + $0x118] sm:$0xf] %v6044
          %6557 = vst [vmem:[%s226 + $0x11c] sm:$0xf] %v6045
          %6558 = vst [vmem:[%s226 + $0x120] sm:$0xf] %v6046
          %6559 = vst [vmem:[%s226 + $0x124] sm:$0xf] %v6047
          %6560 = vst [vmem:[%s226 + $0x128] sm:$0xf] %v6048
          %6561 = vst [vmem:[%s226 + $0x12c] sm:$0xf] %v6049
          %6562 = vst [vmem:[%s226 + $0x130] sm:$0xf] %v6050
          %6563 = vst [vmem:[%s226 + $0x134] sm:$0xf] %v6051
          %6564 = vst [vmem:[%s226 + $0x138] sm:$0xf] %v6052
          %6565 = vst [vmem:[%s226 + $0x13c] sm:$0xf] %v6053
          %6566 = vst [vmem:[%s226 + $0x140] sm:$0xf] %v6054
          %6567 = vst [vmem:[%s226 + $0x144] sm:$0xf] %v6055
          %6568 = vst [vmem:[%s226 + $0x148] sm:$0xf] %v6056
          %6569 = vst [vmem:[%s226 + $0x14c] sm:$0xf] %v6057
          %6570 = vst [vmem:[%s226 + $0x150] sm:$0xf] %v6058
          %6571 = vst [vmem:[%s226 + $0x154] sm:$0xf] %v6059
          %6572 = vst [vmem:[%s226 + $0x158] sm:$0xf] %v6060
          %6573 = vst [vmem:[%s226 + $0x15c] sm:$0xf] %v6061
          %6574 = vst [vmem:[%s226 + $0x160] sm:$0xf] %v6062
          %6575 = vst [vmem:[%s226 + $0x164] sm:$0xf] %v6063
          %6576 = vst [vmem:[%s226 + $0x168] sm:$0xf] %v6064
          %6577 = vst [vmem:[%s226 + $0x16c] sm:$0xf] %v6065
          %6578 = vst [vmem:[%s226 + $0x170] sm:$0xf] %v6066
          %6579 = vst [vmem:[%s226 + $0x174] sm:$0xf] %v6067
          %6580 = vst [vmem:[%s226 + $0x178] sm:$0xf] %v6068
          %6581 = vst [vmem:[%s226 + $0x17c] sm:$0xf] %v6069
          %6582 = vst [vmem:[%s226 + $0x180] sm:$0xf] %v6070
          %6583 = vst [vmem:[%s226 + $0x184] sm:$0xf] %v6071
          %6584 = vst [vmem:[%s226 + $0x188] sm:$0xf] %v6072
          %6585 = vst [vmem:[%s226 + $0x18c] sm:$0xf] %v6073
          %6586 = vst [vmem:[%s226 + $0x190] sm:$0xf] %v6074
          %6587 = vst [vmem:[%s226 + $0x194] sm:$0xf] %v6075
          %6588 = vst [vmem:[%s226 + $0x198] sm:$0xf] %v6076
          %6589 = vst [vmem:[%s226 + $0x19c] sm:$0xf] %v6077
          %6590 = vst [vmem:[%s226 + $0x1a0] sm:$0xf] %v6078
          %6591 = vst [vmem:[%s226 + $0x1a4] sm:$0xf] %v6079
          %6592 = vst [vmem:[%s226 + $0x1a8] sm:$0xf] %v6080
          %6593 = vst [vmem:[%s226 + $0x1ac] sm:$0xf] %v6081
          %6594 = vst [vmem:[%s226 + $0x1b0] sm:$0xf] %v6082
          %6595 = vst [vmem:[%s226 + $0x1b4] sm:$0xf] %v6083
          %6596 = vst [vmem:[%s226 + $0x1b8] sm:$0xf] %v6084
          %6597 = vst [vmem:[%s226 + $0x1bc] sm:$0xf] %v6085
          %6598 = vst [vmem:[%s226 + $0x1c0] sm:$0xf] %v6086
          %6599 = vst [vmem:[%s226 + $0x1c4] sm:$0xf] %v6087
          %6600 = vst [vmem:[%s226 + $0x1c8] sm:$0xf] %v6088
          %6601 = vst [vmem:[%s226 + $0x1cc] sm:$0xf] %v6089
          %6602 = vst [vmem:[%s226 + $0x1d0] sm:$0xf] %v6090
          %6603 = vst [vmem:[%s226 + $0x1d4] sm:$0xf] %v6091
          %6604 = vst [vmem:[%s226 + $0x1d8] sm:$0xf] %v6092
          %6605 = vst [vmem:[%s226 + $0x1dc] sm:$0xf] %v6093
          %6606 = vst [vmem:[%s226 + $0x1e0] sm:$0xf] %v6094
          %6607 = vst [vmem:[%s226 + $0x1e4] sm:$0xf] %v6095
          %6608 = vst [vmem:[%s226 + $0x1e8] sm:$0xf] %v6096
          %6609 = vst [vmem:[%s226 + $0x1ec] sm:$0xf] %v6097
          %6610 = vst [vmem:[%s226 + $0x1f0] sm:$0xf] %v6098
          %6611 = vst [vmem:[%s226 + $0x1f4] sm:$0xf] %v6099
          %6612 = vst [vmem:[%s226 + $0x1f8] sm:$0xf] %v6100
          %6613 = vst [vmem:[%s226 + $0x1fc] sm:$0xf] %v6101
          %6614 = vst [vmem:[%s226 + $0x200] sm:$0xf] %v6102
          %6615 = vst [vmem:[%s226 + $0x204] sm:$0xf] %v6103
          %6616 = vst [vmem:[%s226 + $0x208] sm:$0xf] %v6104
          %6617 = vst [vmem:[%s226 + $0x20c] sm:$0xf] %v6105
          %6618 = vst [vmem:[%s226 + $0x210] sm:$0xf] %v6106
          %6619 = vst [vmem:[%s226 + $0x214] sm:$0xf] %v6107
          %6620 = vst [vmem:[%s226 + $0x218] sm:$0xf] %v6108
          %6621 = vst [vmem:[%s226 + $0x21c] sm:$0xf] %v6109
          %6622 = vst [vmem:[%s226 + $0x220] sm:$0xf] %v6110
          %6623 = vst [vmem:[%s226 + $0x224] sm:$0xf] %v6111
          %6624 = vst [vmem:[%s226 + $0x228] sm:$0xf] %v6112
          %6625 = vst [vmem:[%s226 + $0x22c] sm:$0xf] %v6113
          %6626 = vst [vmem:[%s226 + $0x230] sm:$0xf] %v6114
          %6627 = vst [vmem:[%s226 + $0x234] sm:$0xf] %v6115
          %6628 = vst [vmem:[%s226 + $0x238] sm:$0xf] %v6116
          %6629 = vst [vmem:[%s226 + $0x23c] sm:$0xf] %v6117
          %6630 = vst [vmem:[%s226 + $0x240] sm:$0xf] %v6118
          %6631 = vst [vmem:[%s226 + $0x244] sm:$0xf] %v6119
          %6632 = vst [vmem:[%s226 + $0x248] sm:$0xf] %v6120
          %6633 = vst [vmem:[%s226 + $0x24c] sm:$0xf] %v6121
          %6634 = vst [vmem:[%s226 + $0x250] sm:$0xf] %v6122
          %6635 = vst [vmem:[%s226 + $0x254] sm:$0xf] %v6123
          %6636 = vst [vmem:[%s226 + $0x258] sm:$0xf] %v6124
          %6637 = vst [vmem:[%s226 + $0x25c] sm:$0xf] %v6125
          %6638 = vst [vmem:[%s226 + $0x260] sm:$0xf] %v6126
          %6639 = vst [vmem:[%s226 + $0x264] sm:$0xf] %v6127
          %6640 = vst [vmem:[%s226 + $0x268] sm:$0xf] %v6128
          %6641 = vst [vmem:[%s226 + $0x26c] sm:$0xf] %v6129
          %6642 = vst [vmem:[%s226 + $0x270] sm:$0xf] %v6130
          %6643 = vst [vmem:[%s226 + $0x274] sm:$0xf] %v6131
          %6644 = vst [vmem:[%s226 + $0x278] sm:$0xf] %v6132
          %6645 = vst [vmem:[%s226 + $0x27c] sm:$0xf] %v6133
          %6646 = vst [vmem:[%s226 + $0x280] sm:$0xf] %v6134
          %6647 = vst [vmem:[%s226 + $0x284] sm:$0xf] %v6135
          %6648 = vst [vmem:[%s226 + $0x288] sm:$0xf] %v6136
          %6649 = vst [vmem:[%s226 + $0x28c] sm:$0xf] %v6137
          %6650 = vst [vmem:[%s226 + $0x290] sm:$0xf] %v6138
          %6651 = vst [vmem:[%s226 + $0x294] sm:$0xf] %v6139
          %6652 = vst [vmem:[%s226 + $0x298] sm:$0xf] %v6140
          %6653 = vst [vmem:[%s226 + $0x29c] sm:$0xf] %v6141
          %6654 = vst [vmem:[%s226 + $0x2a0] sm:$0xf] %v6142
          %6655 = vst [vmem:[%s226 + $0x2a4] sm:$0xf] %v6143
          %6656 = vst [vmem:[%s226 + $0x2a8] sm:$0xf] %v6144
          %6657 = vst [vmem:[%s226 + $0x2ac] sm:$0xf] %v6145
          %6658 = vst [vmem:[%s226 + $0x2b0] sm:$0xf] %v6146
          %6659 = vst [vmem:[%s226 + $0x2b4] sm:$0xf] %v6147
          %6660 = vst [vmem:[%s226 + $0x2b8] sm:$0xf] %v6148
          %6661 = vst [vmem:[%s226 + $0x2bc] sm:$0xf] %v6149
          %6662 = vst [vmem:[%s226 + $0x2c0] sm:$0xf] %v6150
          %6663 = vst [vmem:[%s226 + $0x2c4] sm:$0xf] %v6151
          %6664 = vst [vmem:[%s226 + $0x2c8] sm:$0xf] %v6152
          %6665 = vst [vmem:[%s226 + $0x2cc] sm:$0xf] %v6153
          %6666 = vst [vmem:[%s226 + $0x2d0] sm:$0xf] %v6154
          %6667 = vst [vmem:[%s226 + $0x2d4] sm:$0xf] %v6155
          %6668 = vst [vmem:[%s226 + $0x2d8] sm:$0xf] %v6156
          %6669 = vst [vmem:[%s226 + $0x2dc] sm:$0xf] %v6157
          %6670 = vst [vmem:[%s226 + $0x2e0] sm:$0xf] %v6158
          %6671 = vst [vmem:[%s226 + $0x2e4] sm:$0xf] %v6159
          %6672 = vst [vmem:[%s226 + $0x2e8] sm:$0xf] %v6160
          %6673 = vst [vmem:[%s226 + $0x2ec] sm:$0xf] %v6161
          %6674 = vst [vmem:[%s226 + $0x2f0] sm:$0xf] %v6162
          %6675 = vst [vmem:[%s226 + $0x2f4] sm:$0xf] %v6163
          %6676 = vst [vmem:[%s226 + $0x2f8] sm:$0xf] %v6164
          %6677 = vst [vmem:[%s226 + $0x2fc] sm:$0xf] %v6165
          %6678 = vst [vmem:[%s226 + $0x300] sm:$0xf] %v6166
          %6679 = vst [vmem:[%s226 + $0x304] sm:$0xf] %v6167
          %6680 = vst [vmem:[%s226 + $0x308] sm:$0xf] %v6168
          %6681 = vst [vmem:[%s226 + $0x30c] sm:$0xf] %v6169
          %6682 = vst [vmem:[%s226 + $0x310] sm:$0xf] %v6170
          %6683 = vst [vmem:[%s226 + $0x314] sm:$0xf] %v6171
          %6684 = vst [vmem:[%s226 + $0x318] sm:$0xf] %v6172
          %6685 = vst [vmem:[%s226 + $0x31c] sm:$0xf] %v6173
          %6686 = vst [vmem:[%s226 + $0x320] sm:$0xf] %v6174
          %6687 = vst [vmem:[%s226 + $0x324] sm:$0xf] %v6175
          %6688 = vst [vmem:[%s226 + $0x328] sm:$0xf] %v6176
          %6689 = vst [vmem:[%s226 + $0x32c] sm:$0xf] %v6177
          %6690 = vst [vmem:[%s226 + $0x330] sm:$0xf] %v6178
          %6691 = vst [vmem:[%s226 + $0x334] sm:$0xf] %v6179
          %6692 = vst [vmem:[%s226 + $0x338] sm:$0xf] %v6180
          %6693 = vst [vmem:[%s226 + $0x33c] sm:$0xf] %v6181
          %6694 = vst [vmem:[%s226 + $0x340] sm:$0xf] %v6182
          %6695 = vst [vmem:[%s226 + $0x344] sm:$0xf] %v6183
          %6696 = vst [vmem:[%s226 + $0x348] sm:$0xf] %v6184
          %6697 = vst [vmem:[%s226 + $0x34c] sm:$0xf] %v6185
          %6698 = vst [vmem:[%s226 + $0x350] sm:$0xf] %v6186
          %6699 = vst [vmem:[%s226 + $0x354] sm:$0xf] %v6187
          %6700 = vst [vmem:[%s226 + $0x358] sm:$0xf] %v6188
          %6701 = vst [vmem:[%s226 + $0x35c] sm:$0xf] %v6189
          %6702 = vst [vmem:[%s226 + $0x360] sm:$0xf] %v6190
          %6703 = vst [vmem:[%s226 + $0x364] sm:$0xf] %v6191
          %6704 = vst [vmem:[%s226 + $0x368] sm:$0xf] %v6192
          %6705 = vst [vmem:[%s226 + $0x36c] sm:$0xf] %v6193
          %6706 = vst [vmem:[%s226 + $0x370] sm:$0xf] %v6194
          %6707 = vst [vmem:[%s226 + $0x374] sm:$0xf] %v6195
          %6708 = vst [vmem:[%s226 + $0x378] sm:$0xf] %v6196
          %6709 = vst [vmem:[%s226 + $0x37c] sm:$0xf] %v6197
          %6710 = vst [vmem:[%s226 + $0x380] sm:$0xf] %v6198
          %6711 = vst [vmem:[%s226 + $0x384] sm:$0xf] %v6199
          %6712 = vst [vmem:[%s226 + $0x388] sm:$0xf] %v6200
          %6713 = vst [vmem:[%s226 + $0x38c] sm:$0xf] %v6201
          %6714 = vst [vmem:[%s226 + $0x390] sm:$0xf] %v6202
          %6715 = vst [vmem:[%s226 + $0x394] sm:$0xf] %v6203
          %6716 = vst [vmem:[%s226 + $0x398] sm:$0xf] %v6204
          %6717 = vst [vmem:[%s226 + $0x39c] sm:$0xf] %v6205
          %6718 = vst [vmem:[%s226 + $0x3a0] sm:$0xf] %v6206
          %6719 = vst [vmem:[%s226 + $0x3a4] sm:$0xf] %v6207
          %6720 = vst [vmem:[%s226 + $0x3a8] sm:$0xf] %v6208
          %6721 = vst [vmem:[%s226 + $0x3ac] sm:$0xf] %v6209
          %6722 = vst [vmem:[%s226 + $0x3b0] sm:$0xf] %v6210
          %6723 = vst [vmem:[%s226 + $0x3b4] sm:$0xf] %v6211
          %6724 = vst [vmem:[%s226 + $0x3b8] sm:$0xf] %v6212
          %6725 = vst [vmem:[%s226 + $0x3bc] sm:$0xf] %v6213
          %6726 = vst [vmem:[%s226 + $0x3c0] sm:$0xf] %v6214
          %6727 = vst [vmem:[%s226 + $0x3c4] sm:$0xf] %v6215
          %6728 = vst [vmem:[%s226 + $0x3c8] sm:$0xf] %v6216
          %6729 = vst [vmem:[%s226 + $0x3cc] sm:$0xf] %v6217
          %6730 = vst [vmem:[%s226 + $0x3d0] sm:$0xf] %v6218
          %6731 = vst [vmem:[%s226 + $0x3d4] sm:$0xf] %v6219
          %6732 = vst [vmem:[%s226 + $0x3d8] sm:$0xf] %v6220
          %6733 = vst [vmem:[%s226 + $0x3dc] sm:$0xf] %v6221
          %6734 = vst [vmem:[%s226 + $0x3e0] sm:$0xf] %v6222
          %6735 = vst [vmem:[%s226 + $0x3e4] sm:$0xf] %v6223
          %6736 = vst [vmem:[%s226 + $0x3e8] sm:$0xf] %v6224
          %6737 = vst [vmem:[%s226 + $0x3ec] sm:$0xf] %v6225
          %6738 = vst [vmem:[%s226 + $0x3f0] sm:$0xf] %v6226
          %6739 = vst [vmem:[%s226 + $0x3f4] sm:$0xf] %v6227
          %6740 = vst [vmem:[%s226 + $0x3f8] sm:$0xf] %v6228
          %6741 = vst [vmem:[%s226 + $0x3fc] sm:$0xf] %v6229
        $region48: #{tpu_custom_call.1} parent=31 // pred_fallthru
          _
        %s6742 = sand.u32 %s116, 1
        %s6743 = scalar_lea.sflag [#allocation5], %s6742
        %s6744 = sand.u32 %s116, 1
        %s6745 = smul.addr %s6744, 1024
        %s6746 = scalar_lea.vmem [#allocation8], %s6745
        // Predicated region
        $region49: #{tpu_custom_call.1} parent=31 // pred_check
          %p6747 = pneg %p126
        $region50: #{tpu_custom_call.1} parent=31 // pred_check_branch
          %6749 = sbr.rel (%p6747) target = $region52
        $region51: #{tpu_custom_call.1} parent=31 // pred_region
          %s6750 = smul.u32 256, %s25
          %s6752 = ssub.s32 16384, 16384
          %6753 = vsyncadd %s6743, %s6752
          %s6754 = smul.addr %s6750, 64
          %s6755 = scalar_lea.hbm %s3, %s6754
          %s6756 = sshll.u32 %s6746, 4
          %s6757 = int_to_ptr.vmem [resolvable:$true] %s6756
          %6762 = dma.vmem_to_hbm [thread:$0]  %s6757, 16384, %s6755, %s6743, 64, 64, 4
        $region52: #{tpu_custom_call.1} parent=31 // pred_fallthru
          _
      $region32: #{tpu_custom_call.1} parent=5 // pred_fallthru
        _
      %p6763 = scmp.le.s32.totalorder 2, %s16
      // Predicated region
      $region53: #{tpu_custom_call.1} parent=5 // pred_check
        %p6764 = pneg %p6763
      $region54: #{tpu_custom_call.1} parent=5 // pred_check_branch
        %6766 = sbr.rel (%p6764) target = $region56
      $region55: #{tpu_custom_call.1} parent=5 // pred_region
        %s6767 = ssub.s32 %s16, 2
        // Predicated region
        $region57: #{tpu_custom_call.1} parent=55 // pred_check
          %p6768 = pneg %p132
        $region58: #{tpu_custom_call.1} parent=55 // pred_check_branch
          %6770 = sbr.rel (%p6768) target = $region60
        $region59: #{tpu_custom_call.1} parent=55 // pred_region
          %s6771 = sand.u32 %s117, 1
          %s6772 = scalar_lea.sflag [#allocation5], %s6771
          %s6773 = sand.u32 %s117, 1
          %s6774 = smul.addr %s6773, 1024
          %s6775 = scalar_lea.vmem [#allocation8], %s6774
          %6776 = dma.done %s6772, 16384
        $region60: #{tpu_custom_call.1} parent=55 // pred_fallthru
          _
      $region56: #{tpu_custom_call.1} parent=5 // pred_fallthru
        _
    $region6: #{tpu_custom_call.1} parent=1 // loop_footer
      %s20 = sadd.s32 1, %s16
    $region7: #{tpu_custom_call.1} parent=1 // loop_footer_branch
      %15 = sbr.rel target = $region3
    $region8: #{tpu_custom_call.1} parent=1 // loop_exit
      _
    %6777 = vsyncpa [#allocation4], 1
    %s6778 = scalar_lea.sflag [#allocation4], 1
    %6779 = vsyncpa %s6778, 1
    %6780 = vsyncpa [#allocation7], 1
    %6781 = vsyncpa [#allocation5], 1
    %s6782 = scalar_lea.sflag [#allocation5], 1
    %6783 = vsyncpa %s6782, 1

</llo_original>
